<compile_context>
chip_gen: v7x
topology: tpu7x:2x2x1
jax: 0.10.0
libtpu: 0.0.40
codegen_flags: <defaults>
</compile_context>

<pallas_src>
import math

import jax
import jax.numpy as jnp
from jax.experimental import pallas as pl
from jax.experimental.pallas import tpu as pltpu

F32 = jnp.float32
CDT = jnp.bfloat16            # MXU operand dtype (f32 accumulation everywhere)


# --------------- encoder: pooled features -> fc -> ReLU -----------------------
# TODO(synk): the full pretrained MaxVit backbone (conv stem, MBConv +
# block/grid attention stages) has no compact Pallas equivalent; it is stood-in
# by global-average-pool + trainable replacement-head fc + ReLU (dropout is an
# eval identity), matching the image -> (B, embed) shape contract.
def encoder_kernel(pooled_ref, w_ref, b_ref, out_ref):
    feat = jnp.dot(pooled_ref[...], w_ref[...],
                   preferred_element_type=F32) + b_ref[...]
    out_ref[...] = jnp.maximum(feat, 0.0)


# --------------- fused L-layer TransformerDecoder stack ----------------------
def make_decoder_stack_kernel(*, B, T, E, H):
    assert E % H == 0
    BT = B * T
    Dh = E // H
    scale = 1.0 / math.sqrt(Dh)

    def kernel(x0_ref, mem_ref,
               wq_ref, bq_ref, wk_ref, bk_ref, wv_ref, bv_ref, wo_ref, bo_ref,
               cav_w_ref, cav_b_ref, cao_w_ref, cao_b_ref,
               w1_ref, b1_ref, w2_ref, b2_ref,
               lng_ref, lnb_ref,
               hid_ref, x_sc):
        l = pl.program_id(0)

        @pl.when(l == 0)
        def _():
            x_sc[...] = x0_ref[...]

        x = x_sc[...]                                  # (BT, E) f32, VMEM-resident

        # layer-norm params loaded once per layer (hoisted out of the helper)
        ga0 = lng_ref[0:1, :]; be0 = lnb_ref[0:1, :]
        ga1 = lng_ref[1:2, :]; be1 = lnb_ref[1:2, :]
        ga2 = lng_ref[2:3, :]; be2 = lnb_ref[2:3, :]

        def layer_norm(v, g, b):
            mu = jnp.mean(v, axis=-1, keepdims=True)
            var = jnp.mean((v - mu) ** 2, axis=-1, keepdims=True)
            return (v - mu) * jax.lax.rsqrt(var + 1e-5) * g + b

        # causal mask built in-kernel (free VPU filler; no HBM/VMEM mask tensor)
        rows = jax.lax.broadcasted_iota(jnp.int32, (T, T), 0)
        cols = jax.lax.broadcasted_iota(jnp.int32, (T, T), 1)
        causal = (cols <= rows)[None, :, :]            # (1, T, T)

        # ---- 1) masked multi-head self-attention --------------------------
        xc = x.astype(CDT)
        q = jnp.dot(xc, wq_ref[...], preferred_element_type=F32) + bq_ref[...]
        k = jnp.dot(xc, wk_ref[...], preferred_element_type=F32) + bk_ref[...]
        v = jnp.dot(xc, wv_ref[...], preferred_element_type=F32) + bv_ref[...]
        q3 = q.reshape(B, T, E)
        k3 = k.reshape(B, T, E)
        v3 = v.reshape(B, T, E)

        # per-head score/softmax/context (inherently Dh-contraction), batched
        # over B: (B, T, T) scores instead of the old (BT, BT).
        ctx_heads = []
        for h in range(H):
            sl = slice(h * Dh, (h + 1) * Dh)
            qh = q3[:, :, sl].astype(CDT)
            kh = k3[:, :, sl].astype(CDT)
            vh = v3[:, :, sl].astype(CDT)
            s = jnp.einsum('bqd,bkd->bqk', qh, kh,
                           preferred_element_type=F32) * scale     # (B, T, T)
            s = jnp.where(causal, s, -1e30)
            s = s - jnp.max(s, axis=-1, keepdims=True)
            p = jnp.exp(s)
            p = p / jnp.sum(p, axis=-1, keepdims=True)
            ctx_heads.append(jnp.einsum('bqk,bkd->bqd', p.astype(CDT), vh,
                                        preferred_element_type=F32))  # (B,T,Dh)
        ctx = jnp.concatenate(ctx_heads, axis=-1).reshape(BT, E)
        attn = jnp.dot(ctx.astype(CDT), wo_ref[...],
                       preferred_element_type=F32) + bo_ref[...]
        x = layer_norm(x + attn, ga0, be0)

        # ---- 2) cross-attention over the single pooled memory token --------
        # softmax over one key is identically 1 => attention output is just the
        # projected memory value, independent of Q/K; broadcast over T.
        memv = jnp.dot(mem_ref[...].astype(CDT), cav_w_ref[...],
                       preferred_element_type=F32) + cav_b_ref[...]   # (B, E)
        ca = jnp.dot(memv.astype(CDT), cao_w_ref[...],
                     preferred_element_type=F32) + cao_b_ref[...]     # (B, E)
        x = (x.reshape(B, T, E) + ca[:, None, :]).reshape(BT, E)
        x = layer_norm(x, ga1, be1)

        # ---- 3) feed-forward (relu) -----------------------------------------
        h1 = jnp.maximum(jnp.dot(x.astype(CDT), w1_ref[...],
                                 preferred_element_type=F32) + b1_ref[...], 0.0)
        ff = jnp.dot(h1.astype(CDT), w2_ref[...],
                     preferred_element_type=F32) + b2_ref[...]
        x = layer_norm(x + ff, ga2, be2)

        x_sc[...] = x                                   # carry to next layer

        @pl.when(l == pl.num_programs(0) - 1)
        def _():
            hid_ref[...] = x.astype(hid_ref.dtype)

    return kernel


# --------------- vocab projection (separate call, V-tiled) --------------------
def vocab_proj_kernel(x_ref, w_ref, b_ref, out_ref):
    out_ref[...] = (jnp.dot(x_ref[...], w_ref[...], preferred_element_type=F32)
                    + b_ref[...]).astype(out_ref.dtype)


# --------------- parameters ---------------------------------------------------
def positional_encoding(max_len, E):
    pos = jnp.arange(max_len, dtype=F32)[:, None]
    div = jnp.exp(jnp.arange(0, E, 2, dtype=F32) * (-math.log(10000.0) / E))
    ang = pos * div                                     # (max_len, E//2)
    pe = jnp.stack([jnp.sin(ang), jnp.cos(ang)], axis=-1).reshape(max_len, E)
    return pe[:, None, :]                               # (max_len, 1, E)


def init_params(key, *, C, E, V, L, FF, H):
    assert E % H == 0
    ks = jax.random.split(key, 11)

    def nrm(k, shape, s=0.02, dt=F32):
        return (s * jax.random.normal(k, shape, dtype=F32)).astype(dt)

    # Decoder-layer weights stacked on a leading L axis so one gridded
    # pallas_call can pipeline them; matmul weights stored bf16, biases and
    # layer-norm params f32 (VPU math stays f32).
    return {
        "enc_w": nrm(ks[0], (C, E)),
        "enc_b": jnp.zeros((1, E), F32),
        "emb": nrm(ks[1], (V, E)),
        # self-attention: packed full-width projections
        "wq": nrm(ks[2], (L, E, E), dt=CDT),
        "wk": nrm(ks[3], (L, E, E), dt=CDT),
        "wv": nrm(ks[4], (L, E, E), dt=CDT),
        "bq": jnp.zeros((L, 1, E), F32),
        "bk": jnp.zeros((L, 1, E), F32),
        "bv": jnp.zeros((L, 1, E), F32),
        "wo": nrm(ks[5], (L, E, E), dt=CDT),
        "bo": jnp.zeros((L, 1, E), F32),
        # cross-attention: with a single memory token only V / out projections
        # affect the output (softmax over one key == 1), so Q/K are omitted.
        "ca_wv": nrm(ks[6], (L, E, E), dt=CDT),
        "ca_bv": jnp.zeros((L, 1, E), F32),
        "ca_wo": nrm(ks[7], (L, E, E), dt=CDT),
        "ca_bo": jnp.zeros((L, 1, E), F32),
        # feed-forward
        "w1": nrm(ks[8], (L, E, FF), dt=CDT),
        "b1": jnp.zeros((L, 1, FF), F32),
        "w2": nrm(ks[9], (L, FF, E), dt=CDT),
        "b2": jnp.zeros((L, 1, E), F32),
        # layer norms (3 per layer, post-norm)
        "ln_g": jnp.ones((L, 3, E), F32),
        "ln_b": jnp.zeros((L, 3, E), F32),
        # output vocab projection
        "out_w": nrm(ks[10], (E, V), dt=CDT),
        "out_b": jnp.zeros((1, V), F32),
    }


# --------------- wrapper -------------------------------------------------------
def build_forward(*, B, T, E, V, H, L, FF):
    assert E % H == 0
    BT = B * T

    vmem_full = pl.BlockSpec(memory_space=pltpu.MemorySpace.VMEM)

    # -- encoder call (single small kernel, whole arrays in VMEM) --
    enc_call = pl.pallas_call(
        encoder_kernel,
        out_shape=jax.ShapeDtypeStruct((B, E), F32),
        in_specs=[vmem_full] * 3,
        out_specs=vmem_full,
    )

    # -- fused decoder-stack call --
    def _cspec(shape):                      # grid-invariant block
        zeros = (0,) * len(shape)
        def imap(l):
            return zeros
        return pl.BlockSpec(tuple(shape), imap)

    def _lspec(*shape):                     # per-layer block, leading L squeezed
        rest = (0,) * len(shape)
        def imap(l):
            return (l,) + rest
        return pl.BlockSpec((None,) + tuple(shape), imap)

    in_specs = [
        _cspec((BT, E)),                    # x0
        _cspec((B, E)),                     # memory
        _lspec(E, E), _lspec(1, E),         # wq, bq
        _lspec(E, E), _lspec(1, E),         # wk, bk
        _lspec(E, E), _lspec(1, E),         # wv, bv
        _lspec(E, E), _lspec(1, E),         # wo, bo
        _lspec(E, E), _lspec(1, E),         # ca_wv, ca_bv
        _lspec(E, E), _lspec(1, E),         # ca_wo, ca_bo
        _lspec(E, FF), _lspec(1, FF),       # w1, b1
        _lspec(FF, E), _lspec(1, E),        # w2, b2
        _lspec(3, E), _lspec(3, E),         # ln_g, ln_b
    ]

    stack_call = pl.pallas_call(
        make_decoder_stack_kernel(B=B, T=T, E=E, H=H),
        out_shape=jax.ShapeDtypeStruct((BT, E), CDT),   # final hidden states
        grid_spec=pltpu.PrefetchScalarGridSpec(
            num_scalar_prefetch=0,
            grid=(L,),
            in_specs=in_specs,
            out_specs=pl.BlockSpec((BT, E), lambda l: (0, 0)),
            scratch_shapes=[pltpu.VMEM((BT, E), F32)],  # x resident across layers
        ),
        compiler_params=pltpu.CompilerParams(
            dimension_semantics=("arbitrary",),         # layers are sequential
            vmem_limit_bytes=64 * 1024 * 1024,          # keep weight prefetch 2-deep
        ),
    )

    # -- vocab projection call: grid over V tiles (lane-dense stores, out_w
    #    streamed per tile rather than resident across all L layers) --
    TV = next((c for c in (1024, 512, 256, 128) if V % c == 0), V)
    vocab_call = pl.pallas_call(
        vocab_proj_kernel,
        out_shape=jax.ShapeDtypeStruct((BT, V), F32),
        grid_spec=pltpu.PrefetchScalarGridSpec(
            num_scalar_prefetch=0,
            grid=(V // TV,),
            in_specs=[
                pl.BlockSpec((BT, E), lambda j: (0, 0)),    # hidden (grid-invariant)
                pl.BlockSpec((E, TV), lambda j: (0, j)),    # out_w tile
                pl.BlockSpec((1, TV), lambda j: (0, j)),    # out_b tile
            ],
            out_specs=pl.BlockSpec((BT, TV), lambda j: (0, j)),
        ),
        compiler_params=pltpu.CompilerParams(
            dimension_semantics=("parallel",),
        ),
    )

    # Static positional-encoding table (baked into the jitted fwd as a const).
    pe = positional_encoding(max(64, T), E)

    def forward(params, image, caption):
        # ---- encoder (MaxVit stand-in): global mean-pool + head fc + ReLU ----
        pooled = jnp.mean(image.astype(F32), axis=(2, 3))               # (B, C)
        memory = enc_call(pooled, params["enc_w"], params["enc_b"])     # (B, E)

        # ---- embedding + positional encoding (glue, outside Pallas) ----
        emb = jnp.take(params["emb"], caption, axis=0)                  # (T, B, E)
        emb = emb + pe[:T]                                              # (T, 1, E) bcast
        x0 = jnp.transpose(emb, (1, 0, 2)).reshape(BT, E).astype(F32)   # (B*T, E)

        # ---- fused decoder stack (single Pallas call over layers) ----
        p = params
        hid = stack_call(
            x0, memory,
            p["wq"], p["bq"], p["wk"], p["bk"], p["wv"], p["bv"],
            p["wo"], p["bo"],
            p["ca_wv"], p["ca_bv"], p["ca_wo"], p["ca_bo"],
            p["w1"], p["b1"], p["w2"], p["b2"],
            p["ln_g"], p["ln_b"],
        )                                                               # (BT, E) bf16

        # ---- vocab projection (V-tiled Pallas call) ----
        logits = vocab_call(hid, p["out_w"], p["out_b"])                # (BT, V) f32
        return logits.reshape(B, T, V).transpose(1, 0, 2)               # (T, B, V)

    return jax.jit(forward)


if __name__ == "__main__":
    # small shapes consistent with the module
    B, C, Himg, Wimg = 2, 3, 16, 16      # image: NCHW
    T = 8                                # caption length (seq-first like PyTorch)
    E = 64                               # embedding_size
    V = 128                              # trg_vocab_size
    H = 8                                # num_heads (module default)
    L = 2                                # num_decoder_layers (small for demo)
    FF = 2048                            # nn.TransformerDecoderLayer default dim_feedforward

    key = jax.random.PRNGKey(0)
    k_img, k_cap, k_par = jax.random.split(key, 3)
    image = jax.random.normal(k_img, (B, C, Himg, Wimg), F32)
    caption = jax.random.randint(k_cap, (T, B), 0, V, dtype=jnp.int32)
    params = init_params(k_par, C=C, E=E, V=V, L=L, FF=FF, H=H)

    fwd = build_forward(B=B, T=T, E=E, V=V, H=H, L=L, FF=FF)
    out = fwd(params, image, caption)
    out = jax.block_until_ready(out)

    assert out.shape == (T, B, V), out.shape
    assert bool(jnp.isfinite(out).all())
    print("KERNEL_OK")
</pallas_src>

<mosaic_0001>
module attributes {stable_mosaic.version = 11 : i64} {
  func.func @encoder_kernel(%arg0: memref<2x3xf32, #tpu.memory_space<vmem>>, %arg1: memref<3x64xf32, #tpu.memory_space<vmem>>, %arg2: memref<1x64xf32, #tpu.memory_space<vmem>>, %arg3: memref<2x64xf32, #tpu.memory_space<vmem>>) attributes {dimension_semantics = [], scalar_prefetch = 0 : i64, scratch_operands = 0 : i64, tpu.core_type = #tpu.core_type<tc>} {
    %c0 = arith.constant 0 : index
    %c0_0 = arith.constant 0 : index
    %0 = vector.load %arg0[%c0, %c0_0] : memref<2x3xf32, #tpu.memory_space<vmem>>, vector<2x3xf32>
    %c0_1 = arith.constant 0 : index
    %c0_2 = arith.constant 0 : index
    %1 = vector.load %arg1[%c0_1, %c0_2] : memref<3x64xf32, #tpu.memory_space<vmem>>, vector<3x64xf32>
    %cst = arith.constant dense<0.000000e+00> : vector<2x64xf32>
    %2 = tpu.matmul %0, %1, %cst {dimension_numbers = #tpu.dot_dimension_numbers<[1], [0], [0], [1], [0, 0, 1, 1], [], []>} : vector<2x3xf32>, vector<3x64xf32>, vector<2x64xf32> -> vector<2x64xf32>
    %c0_3 = arith.constant 0 : index
    %c0_4 = arith.constant 0 : index
    %3 = vector.load %arg2[%c0_3, %c0_4] : memref<1x64xf32, #tpu.memory_space<vmem>>, vector<1x64xf32>
    %4 = vector.broadcast %3 : vector<1x64xf32> to vector<2x64xf32>
    %5 = arith.addf %2, %4 : vector<2x64xf32>
    %cst_5 = arith.constant 0.000000e+00 : f32
    %6 = vector.broadcast %cst_5 : f32 to vector<2x64xf32>
    %7 = arith.maximumf %5, %6 : vector<2x64xf32>
    %c0_6 = arith.constant 0 : index
    %c0_7 = arith.constant 0 : index
    %8 = vector.load %arg3[%c0_6, %c0_7] : memref<2x64xf32, #tpu.memory_space<vmem>>, vector<2x64xf32>
    tpu.vector_store %arg3[%c0_6, %c0_7], %7 {strides = array<i32>} : memref<2x64xf32, #tpu.memory_space<vmem>>, vector<2x64xf32>,
    return
  }
}

module attributes {stable_mosaic.version = 11 : i64} {
  func.func @vocab_proj_kernel(%arg0: i32, %arg1: memref<16x64xbf16, #tpu.memory_space<vmem>>, %arg2: memref<64x128xbf16, #tpu.memory_space<vmem>>, %arg3: memref<1x128xf32, #tpu.memory_space<vmem>>, %arg4: memref<16x128xf32, #tpu.memory_space<vmem>>) attributes {dimension_semantics = [#tpu.dimension_semantics<parallel>], iteration_bounds = array<i64: 1>, scalar_prefetch = 0 : i64, scratch_operands = 0 : i64, tpu.core_type = #tpu.core_type<tc>, window_params = [{pipeline_mode = #tpu.pipeline_mode<synchronous>, transform_indices = @transform_0, window_bounds = array<i64: 16, 64>}, {transform_indices = @transform_1, window_bounds = array<i64: 64, 128>}, {transform_indices = @transform_2, window_bounds = array<i64: 1, 128>}, {transform_indices = @transform_3, window_bounds = array<i64: 16, 128>}]} {
    %c0 = arith.constant 0 : index
    %c0_0 = arith.constant 0 : index
    %0 = vector.load %arg1[%c0, %c0_0] : memref<16x64xbf16, #tpu.memory_space<vmem>>, vector<16x64xbf16>
    %c0_1 = arith.constant 0 : index
    %c0_2 = arith.constant 0 : index
    %1 = vector.load %arg2[%c0_1, %c0_2] : memref<64x128xbf16, #tpu.memory_space<vmem>>, vector<64x128xbf16>
    %cst = arith.constant dense<0.000000e+00> : vector<16x128xf32>
    %2 = tpu.matmul %0, %1, %cst {dimension_numbers = #tpu.dot_dimension_numbers<[1], [0], [0], [1], [0, 0, 1, 1], [], []>} : vector<16x64xbf16>, vector<64x128xbf16>, vector<16x128xf32> -> vector<16x128xf32>
    %c0_3 = arith.constant 0 : index
    %c0_4 = arith.constant 0 : index
    %3 = vector.load %arg3[%c0_3, %c0_4] : memref<1x128xf32, #tpu.memory_space<vmem>>, vector<1x128xf32>
    %4 = vector.broadcast %3 : vector<1x128xf32> to vector<16x128xf32>
    %5 = arith.addf %2, %4 : vector<16x128xf32>
    %c0_5 = arith.constant 0 : index
    %c0_6 = arith.constant 0 : index
    %6 = vector.load %arg4[%c0_5, %c0_6] : memref<16x128xf32, #tpu.memory_space<vmem>>, vector<16x128xf32>
    tpu.vector_store %arg4[%c0_5, %c0_6], %5 {strides = array<i32>} : memref<16x128xf32, #tpu.memory_space<vmem>>, vector<16x128xf32>,
    return
  }
  func.func @transform_0(%arg0: i32) -> (i32, i32) {
    %c0_i32 = arith.constant 0 : i32
    %c0_i32_0 = arith.constant 0 : i32
    %c0_i32_1 = arith.constant 0 : i32
    return %c0_i32, %c0_i32_0 : i32, i32
  }
  func.func @transform_1(%arg0: i32) -> (i32, i32) {
    %c0_i32 = arith.constant 0 : i32
    %c0_i32_0 = arith.constant 0 : i32
    return %c0_i32, %arg0 : i32, i32
  }
  func.func @transform_2(%arg0: i32) -> (i32, i32) {
    %c0_i32 = arith.constant 0 : i32
    %c0_i32_0 = arith.constant 0 : i32
    return %c0_i32, %arg0 : i32, i32
  }
  func.func @transform_3(%arg0: i32) -> (i32, i32) {
    %c0_i32 = arith.constant 0 : i32
    %c0_i32_0 = arith.constant 0 : i32
    return %c0_i32, %arg0 : i32, i32
  }
}

module attributes {stable_mosaic.version = 11 : i64} {
  func.func @kernel(%arg0: i32, %arg1: memref<16x64xf32, #tpu.memory_space<vmem>>, %arg2: memref<2x64xf32, #tpu.memory_space<vmem>>, %arg3: memref<1x64x64xbf16, #tpu.memory_space<vmem>>, %arg4: memref<1x1x64xf32, #tpu.memory_space<vmem>>, %arg5: memref<1x64x64xbf16, #tpu.memory_space<vmem>>, %arg6: memref<1x1x64xf32, #tpu.memory_space<vmem>>, %arg7: memref<1x64x64xbf16, #tpu.memory_space<vmem>>, %arg8: memref<1x1x64xf32, #tpu.memory_space<vmem>>, %arg9: memref<1x64x64xbf16, #tpu.memory_space<vmem>>, %arg10: memref<1x1x64xf32, #tpu.memory_space<vmem>>, %arg11: memref<1x64x64xbf16, #tpu.memory_space<vmem>>, %arg12: memref<1x1x64xf32, #tpu.memory_space<vmem>>, %arg13: memref<1x64x64xbf16, #tpu.memory_space<vmem>>, %arg14: memref<1x1x64xf32, #tpu.memory_space<vmem>>, %arg15: memref<1x64x2048xbf16, #tpu.memory_space<vmem>>, %arg16: memref<1x1x2048xf32, #tpu.memory_space<vmem>>, %arg17: memref<1x2048x64xbf16, #tpu.memory_space<vmem>>, %arg18: memref<1x1x64xf32, #tpu.memory_space<vmem>>, %arg19: memref<1x3x64xf32, #tpu.memory_space<vmem>>, %arg20: memref<1x3x64xf32, #tpu.memory_space<vmem>>, %arg21: memref<16x64xbf16, #tpu.memory_space<vmem>>, %arg22: memref<16x64xf32, #tpu.memory_space<vmem>>) attributes {dimension_semantics = [#tpu.dimension_semantics<arbitrary>], iteration_bounds = array<i64: 2>, scalar_prefetch = 0 : i64, scratch_operands = 1 : i64, tpu.core_type = #tpu.core_type<tc>, window_params = [{pipeline_mode = #tpu.pipeline_mode<synchronous>, transform_indices = @transform_0, window_bounds = array<i64: 16, 64>}, {pipeline_mode = #tpu.pipeline_mode<synchronous>, transform_indices = @transform_1, window_bounds = array<i64: 2, 64>}, {transform_indices = @transform_2, window_bounds = array<i64: 1, 64, 64>}, {transform_indices = @transform_3, window_bounds = array<i64: 1, 1, 64>}, {transform_indices = @transform_4, window_bounds = array<i64: 1, 64, 64>}, {transform_indices = @transform_5, window_bounds = array<i64: 1, 1, 64>}, {transform_indices = @transform_6, window_bounds = array<i64: 1, 64, 64>}, {transform_indices = @transform_7, window_bounds = array<i64: 1, 1, 64>}, {transform_indices = @transform_8, window_bounds = array<i64: 1, 64, 64>}, {transform_indices = @transform_9, window_bounds = array<i64: 1, 1, 64>}, {transform_indices = @transform_10, window_bounds = array<i64: 1, 64, 64>}, {transform_indices = @transform_11, window_bounds = array<i64: 1, 1, 64>}, {transform_indices = @transform_12, window_bounds = array<i64: 1, 64, 64>}, {transform_indices = @transform_13, window_bounds = array<i64: 1, 1, 64>}, {transform_indices = @transform_14, window_bounds = array<i64: 1, 64, 2048>}, {transform_indices = @transform_15, window_bounds = array<i64: 1, 1, 2048>}, {transform_indices = @transform_16, window_bounds = array<i64: 1, 2048, 64>}, {transform_indices = @transform_17, window_bounds = array<i64: 1, 1, 64>}, {transform_indices = @transform_18, window_bounds = array<i64: 1, 3, 64>}, {transform_indices = @transform_19, window_bounds = array<i64: 1, 3, 64>}, {pipeline_mode = #tpu.pipeline_mode<synchronous>, transform_indices = @transform_20, window_bounds = array<i64: 16, 64>}]} {
    %c0_i32 = arith.constant 0 : i32
    %0 = arith.cmpi eq, %arg0, %c0_i32 : i32
    %1 = arith.extui %0 : i1 to i32
    %c0_i32_0 = arith.constant 0 : i32
    %2 = arith.cmpi ne, %1, %c0_i32_0 : i32
    scf.if %2 {
      %c0_142 = arith.constant 0 : index
      %c0_143 = arith.constant 0 : index
      %359 = vector.load %arg1[%c0_142, %c0_143] : memref<16x64xf32, #tpu.memory_space<vmem>>, vector<16x64xf32>
      %c0_144 = arith.constant 0 : index
      %c0_145 = arith.constant 0 : index
      %360 = vector.load %arg22[%c0_144, %c0_145] : memref<16x64xf32, #tpu.memory_space<vmem>>, vector<16x64xf32>
      tpu.vector_store %arg22[%c0_144, %c0_145], %359 {strides = array<i32>} : memref<16x64xf32, #tpu.memory_space<vmem>>, vector<16x64xf32>,
    } else {
    }
    %c0 = arith.constant 0 : index
    %c0_1 = arith.constant 0 : index
    %3 = vector.load %arg22[%c0, %c0_1] : memref<16x64xf32, #tpu.memory_space<vmem>>, vector<16x64xf32>
    %c0_2 = arith.constant 0 : index
    %c0_3 = arith.constant 0 : index
    %c0_4 = arith.constant 0 : index
    %4 = vector.load %arg19[%c0_2, %c0_3, %c0_4] : memref<1x3x64xf32, #tpu.memory_space<vmem>>, vector<1x1x64xf32>
    %5 = vector.shape_cast %4 : vector<1x1x64xf32> to vector<1x64xf32>
    %c0_5 = arith.constant 0 : index
    %c0_6 = arith.constant 0 : index
    %c0_7 = arith.constant 0 : index
    %6 = vector.load %arg20[%c0_5, %c0_6, %c0_7] : memref<1x3x64xf32, #tpu.memory_space<vmem>>, vector<1x1x64xf32>
    %7 = vector.shape_cast %6 : vector<1x1x64xf32> to vector<1x64xf32>
    %c0_8 = arith.constant 0 : index
    %c1 = arith.constant 1 : index
    %c0_9 = arith.constant 0 : index
    %8 = vector.load %arg19[%c0_8, %c1, %c0_9] : memref<1x3x64xf32, #tpu.memory_space<vmem>>, vector<1x1x64xf32>
    %9 = vector.shape_cast %8 : vector<1x1x64xf32> to vector<1x64xf32>
    %c0_10 = arith.constant 0 : index
    %c1_11 = arith.constant 1 : index
    %c0_12 = arith.constant 0 : index
    %10 = vector.load %arg20[%c0_10, %c1_11, %c0_12] : memref<1x3x64xf32, #tpu.memory_space<vmem>>, vector<1x1x64xf32>
    %11 = vector.shape_cast %10 : vector<1x1x64xf32> to vector<1x64xf32>
    %c0_13 = arith.constant 0 : index
    %c2 = arith.constant 2 : index
    %c0_14 = arith.constant 0 : index
    %12 = vector.load %arg19[%c0_13, %c2, %c0_14] : memref<1x3x64xf32, #tpu.memory_space<vmem>>, vector<1x1x64xf32>
    %13 = vector.shape_cast %12 : vector<1x1x64xf32> to vector<1x64xf32>
    %c0_15 = arith.constant 0 : index
    %c2_16 = arith.constant 2 : index
    %c0_17 = arith.constant 0 : index
    %14 = vector.load %arg20[%c0_15, %c2_16, %c0_17] : memref<1x3x64xf32, #tpu.memory_space<vmem>>, vector<1x1x64xf32>
    %15 = vector.shape_cast %14 : vector<1x1x64xf32> to vector<1x64xf32>
    %16 = tpu.iota {dimensions = array<i32: 0>} : vector<8x8xi32>
    %17 = tpu.iota {dimensions = array<i32: 1>} : vector<8x8xi32>
    %18 = arith.cmpi sle, %17, %16 : vector<8x8xi32>
    %19 = vector.shape_cast %18 : vector<8x8xi1> to vector<1x8x8xi1>
    %20 = arith.truncf %3 : vector<16x64xf32> to vector<16x64xbf16>
    %c0_18 = arith.constant 0 : index
    %c0_19 = arith.constant 0 : index
    %c0_20 = arith.constant 0 : index
    %21 = vector.load %arg3[%c0_18, %c0_19, %c0_20] : memref<1x64x64xbf16, #tpu.memory_space<vmem>>, vector<1x64x64xbf16>
    %22 = vector.shape_cast %21 : vector<1x64x64xbf16> to vector<64x64xbf16>
    %cst = arith.constant dense<0.000000e+00> : vector<16x64xf32>
    %23 = tpu.matmul %20, %22, %cst {dimension_numbers = #tpu.dot_dimension_numbers<[1], [0], [0], [1], [0, 0, 1, 1], [], []>} : vector<16x64xbf16>, vector<64x64xbf16>, vector<16x64xf32> -> vector<16x64xf32>
    %c0_21 = arith.constant 0 : index
    %c0_22 = arith.constant 0 : index
    %c0_23 = arith.constant 0 : index
    %24 = vector.load %arg4[%c0_21, %c0_22, %c0_23] : memref<1x1x64xf32, #tpu.memory_space<vmem>>, vector<1x1x64xf32>
    %25 = vector.shape_cast %24 : vector<1x1x64xf32> to vector<1x64xf32>
    %26 = vector.broadcast %25 : vector<1x64xf32> to vector<16x64xf32>
    %27 = arith.addf %23, %26 : vector<16x64xf32>
    %c0_24 = arith.constant 0 : index
    %c0_25 = arith.constant 0 : index
    %c0_26 = arith.constant 0 : index
    %28 = vector.load %arg5[%c0_24, %c0_25, %c0_26] : memref<1x64x64xbf16, #tpu.memory_space<vmem>>, vector<1x64x64xbf16>
    %29 = vector.shape_cast %28 : vector<1x64x64xbf16> to vector<64x64xbf16>
    %cst_27 = arith.constant dense<0.000000e+00> : vector<16x64xf32>
    %30 = tpu.matmul %20, %29, %cst_27 {dimension_numbers = #tpu.dot_dimension_numbers<[1], [0], [0], [1], [0, 0, 1, 1], [], []>} : vector<16x64xbf16>, vector<64x64xbf16>, vector<16x64xf32> -> vector<16x64xf32>
    %c0_28 = arith.constant 0 : index
    %c0_29 = arith.constant 0 : index
    %c0_30 = arith.constant 0 : index
    %31 = vector.load %arg6[%c0_28, %c0_29, %c0_30] : memref<1x1x64xf32, #tpu.memory_space<vmem>>, vector<1x1x64xf32>
    %32 = vector.shape_cast %31 : vector<1x1x64xf32> to vector<1x64xf32>
    %33 = vector.broadcast %32 : vector<1x64xf32> to vector<16x64xf32>
    %34 = arith.addf %30, %33 : vector<16x64xf32>
    %c0_31 = arith.constant 0 : index
    %c0_32 = arith.constant 0 : index
    %c0_33 = arith.constant 0 : index
    %35 = vector.load %arg7[%c0_31, %c0_32, %c0_33] : memref<1x64x64xbf16, #tpu.memory_space<vmem>>, vector<1x64x64xbf16>
    %36 = vector.shape_cast %35 : vector<1x64x64xbf16> to vector<64x64xbf16>
    %cst_34 = arith.constant dense<0.000000e+00> : vector<16x64xf32>
    %37 = tpu.matmul %20, %36, %cst_34 {dimension_numbers = #tpu.dot_dimension_numbers<[1], [0], [0], [1], [0, 0, 1, 1], [], []>} : vector<16x64xbf16>, vector<64x64xbf16>, vector<16x64xf32> -> vector<16x64xf32>
    %c0_35 = arith.constant 0 : index
    %c0_36 = arith.constant 0 : index
    %c0_37 = arith.constant 0 : index
    %38 = vector.load %arg8[%c0_35, %c0_36, %c0_37] : memref<1x1x64xf32, #tpu.memory_space<vmem>>, vector<1x1x64xf32>
    %39 = vector.shape_cast %38 : vector<1x1x64xf32> to vector<1x64xf32>
    %40 = vector.broadcast %39 : vector<1x64xf32> to vector<16x64xf32>
    %41 = arith.addf %37, %40 : vector<16x64xf32>
    %42 = vector.shape_cast %27 : vector<16x64xf32> to vector<2x8x64xf32>
    %43 = vector.shape_cast %34 : vector<16x64xf32> to vector<2x8x64xf32>
    %44 = vector.shape_cast %41 : vector<16x64xf32> to vector<2x8x64xf32>
    %45 = vector.extract_strided_slice %42 {offsets = [0, 0, 0], sizes = [2, 8, 8], strides = [1, 1, 1]} : vector<2x8x64xf32> to vector<2x8x8xf32>
    %46 = arith.truncf %45 : vector<2x8x8xf32> to vector<2x8x8xbf16>
    %47 = vector.extract_strided_slice %43 {offsets = [0, 0, 0], sizes = [2, 8, 8], strides = [1, 1, 1]} : vector<2x8x64xf32> to vector<2x8x8xf32>
    %48 = arith.truncf %47 : vector<2x8x8xf32> to vector<2x8x8xbf16>
    %49 = vector.extract_strided_slice %44 {offsets = [0, 0, 0], sizes = [2, 8, 8], strides = [1, 1, 1]} : vector<2x8x64xf32> to vector<2x8x8xf32>
    %50 = arith.truncf %49 : vector<2x8x8xf32> to vector<2x8x8xbf16>
    "tpu.trace_start"() <{level = 10 : i32, message = "bqd,bkd->bqk"}> : () -> ()
    %cst_38 = arith.constant dense<0.000000e+00> : vector<2x8x8xf32>
    %51 = tpu.matmul %46, %48, %cst_38 {dimension_numbers = #tpu.dot_dimension_numbers<[2], [2], [1], [1], [0, 0, 0, 1, 1, 1], [0], [0]>} : vector<2x8x8xbf16>, vector<2x8x8xbf16>, vector<2x8x8xf32> -> vector<2x8x8xf32>
    "tpu.trace_stop"() : () -> ()
    %cst_39 = arith.constant 0.353553385 : f32
    %52 = vector.broadcast %cst_39 : f32 to vector<2x8x8xf32>
    %53 = arith.mulf %51, %52 : vector<2x8x8xf32>
    %cst_40 = arith.constant -1.000000e+30 : f32
    %54 = vector.shape_cast %19 : vector<1x8x8xi1> to vector<1x8x8xi1>
    %55 = vector.broadcast %54 : vector<1x8x8xi1> to vector<2x8x8xi1>
    %56 = vector.broadcast %cst_40 : f32 to vector<2x8x8xf32>
    %57 = arith.select %55, %53, %56 : vector<2x8x8xi1>, vector<2x8x8xf32>
    %cst_41 = arith.constant dense<0xFF800000> : vector<2x8xf32>
    %58 = vector.multi_reduction <maximumf>, %57, %cst_41 [2] : vector<2x8x8xf32> to vector<2x8xf32>
    %59 = vector.shape_cast %58 : vector<2x8xf32> to vector<2x8x1xf32>
    %60 = vector.broadcast %59 : vector<2x8x1xf32> to vector<2x8x8xf32>
    %61 = arith.subf %57, %60 : vector<2x8x8xf32>
    %62 = math.exp %61 : vector<2x8x8xf32>
    %cst_42 = arith.constant dense<0.000000e+00> : vector<2x8xf32>
    %63 = vector.multi_reduction <add>, %62, %cst_42 [2] : vector<2x8x8xf32> to vector<2x8xf32>
    %64 = vector.shape_cast %63 : vector<2x8xf32> to vector<2x8x1xf32>
    %65 = vector.broadcast %64 : vector<2x8x1xf32> to vector<2x8x8xf32>
    %66 = arith.divf %62, %65 : vector<2x8x8xf32>
    %67 = arith.truncf %66 : vector<2x8x8xf32> to vector<2x8x8xbf16>
    "tpu.trace_start"() <{level = 10 : i32, message = "bqk,bkd->bqd"}> : () -> ()
    %cst_43 = arith.constant dense<0.000000e+00> : vector<2x8x8xf32>
    %68 = tpu.matmul %67, %50, %cst_43 {dimension_numbers = #tpu.dot_dimension_numbers<[2], [1], [1], [2], [0, 0, 0, 1, 1, 2], [0], [0]>} : vector<2x8x8xbf16>, vector<2x8x8xbf16>, vector<2x8x8xf32> -> vector<2x8x8xf32>
    "tpu.trace_stop"() : () -> ()
    %69 = vector.extract_strided_slice %42 {offsets = [0, 0, 8], sizes = [2, 8, 8], strides = [1, 1, 1]} : vector<2x8x64xf32> to vector<2x8x8xf32>
    %70 = arith.truncf %69 : vector<2x8x8xf32> to vector<2x8x8xbf16>
    %71 = vector.extract_strided_slice %43 {offsets = [0, 0, 8], sizes = [2, 8, 8], strides = [1, 1, 1]} : vector<2x8x64xf32> to vector<2x8x8xf32>
    %72 = arith.truncf %71 : vector<2x8x8xf32> to vector<2x8x8xbf16>
    %73 = vector.extract_strided_slice %44 {offsets = [0, 0, 8], sizes = [2, 8, 8], strides = [1, 1, 1]} : vector<2x8x64xf32> to vector<2x8x8xf32>
    %74 = arith.truncf %73 : vector<2x8x8xf32> to vector<2x8x8xbf16>
    "tpu.trace_start"() <{level = 10 : i32, message = "bqd,bkd->bqk"}> : () -> ()
    %cst_44 = arith.constant dense<0.000000e+00> : vector<2x8x8xf32>
    %75 = tpu.matmul %70, %72, %cst_44 {dimension_numbers = #tpu.dot_dimension_numbers<[2], [2], [1], [1], [0, 0, 0, 1, 1, 1], [0], [0]>} : vector<2x8x8xbf16>, vector<2x8x8xbf16>, vector<2x8x8xf32> -> vector<2x8x8xf32>
    "tpu.trace_stop"() : () -> ()
    %cst_45 = arith.constant 0.353553385 : f32
    %76 = vector.broadcast %cst_45 : f32 to vector<2x8x8xf32>
    %77 = arith.mulf %75, %76 : vector<2x8x8xf32>
    %cst_46 = arith.constant -1.000000e+30 : f32
    %78 = vector.shape_cast %19 : vector<1x8x8xi1> to vector<1x8x8xi1>
    %79 = vector.broadcast %78 : vector<1x8x8xi1> to vector<2x8x8xi1>
    %80 = vector.broadcast %cst_46 : f32 to vector<2x8x8xf32>
    %81 = arith.select %79, %77, %80 : vector<2x8x8xi1>, vector<2x8x8xf32>
    %cst_47 = arith.constant dense<0xFF800000> : vector<2x8xf32>
    %82 = vector.multi_reduction <maximumf>, %81, %cst_47 [2] : vector<2x8x8xf32> to vector<2x8xf32>
    %83 = vector.shape_cast %82 : vector<2x8xf32> to vector<2x8x1xf32>
    %84 = vector.broadcast %83 : vector<2x8x1xf32> to vector<2x8x8xf32>
    %85 = arith.subf %81, %84 : vector<2x8x8xf32>
    %86 = math.exp %85 : vector<2x8x8xf32>
    %cst_48 = arith.constant dense<0.000000e+00> : vector<2x8xf32>
    %87 = vector.multi_reduction <add>, %86, %cst_48 [2] : vector<2x8x8xf32> to vector<2x8xf32>
    %88 = vector.shape_cast %87 : vector<2x8xf32> to vector<2x8x1xf32>
    %89 = vector.broadcast %88 : vector<2x8x1xf32> to vector<2x8x8xf32>
    %90 = arith.divf %86, %89 : vector<2x8x8xf32>
    %91 = arith.truncf %90 : vector<2x8x8xf32> to vector<2x8x8xbf16>
    "tpu.trace_start"() <{level = 10 : i32, message = "bqk,bkd->bqd"}> : () -> ()
    %cst_49 = arith.constant dense<0.000000e+00> : vector<2x8x8xf32>
    %92 = tpu.matmul %91, %74, %cst_49 {dimension_numbers = #tpu.dot_dimension_numbers<[2], [1], [1], [2], [0, 0, 0, 1, 1, 2], [0], [0]>} : vector<2x8x8xbf16>, vector<2x8x8xbf16>, vector<2x8x8xf32> -> vector<2x8x8xf32>
    "tpu.trace_stop"() : () -> ()
    %93 = vector.extract_strided_slice %42 {offsets = [0, 0, 16], sizes = [2, 8, 8], strides = [1, 1, 1]} : vector<2x8x64xf32> to vector<2x8x8xf32>
    %94 = arith.truncf %93 : vector<2x8x8xf32> to vector<2x8x8xbf16>
    %95 = vector.extract_strided_slice %43 {offsets = [0, 0, 16], sizes = [2, 8, 8], strides = [1, 1, 1]} : vector<2x8x64xf32> to vector<2x8x8xf32>
    %96 = arith.truncf %95 : vector<2x8x8xf32> to vector<2x8x8xbf16>
    %97 = vector.extract_strided_slice %44 {offsets = [0, 0, 16], sizes = [2, 8, 8], strides = [1, 1, 1]} : vector<2x8x64xf32> to vector<2x8x8xf32>
    %98 = arith.truncf %97 : vector<2x8x8xf32> to vector<2x8x8xbf16>
    "tpu.trace_start"() <{level = 10 : i32, message = "bqd,bkd->bqk"}> : () -> ()
    %cst_50 = arith.constant dense<0.000000e+00> : vector<2x8x8xf32>
    %99 = tpu.matmul %94, %96, %cst_50 {dimension_numbers = #tpu.dot_dimension_numbers<[2], [2], [1], [1], [0, 0, 0, 1, 1, 1], [0], [0]>} : vector<2x8x8xbf16>, vector<2x8x8xbf16>, vector<2x8x8xf32> -> vector<2x8x8xf32>
    "tpu.trace_stop"() : () -> ()
    %cst_51 = arith.constant 0.353553385 : f32
    %100 = vector.broadcast %cst_51 : f32 to vector<2x8x8xf32>
    %101 = arith.mulf %99, %100 : vector<2x8x8xf32>
    %cst_52 = arith.constant -1.000000e+30 : f32
    %102 = vector.shape_cast %19 : vector<1x8x8xi1> to vector<1x8x8xi1>
    %103 = vector.broadcast %102 : vector<1x8x8xi1> to vector<2x8x8xi1>
    %104 = vector.broadcast %cst_52 : f32 to vector<2x8x8xf32>
    %105 = arith.select %103, %101, %104 : vector<2x8x8xi1>, vector<2x8x8xf32>
    %cst_53 = arith.constant dense<0xFF800000> : vector<2x8xf32>
    %106 = vector.multi_reduction <maximumf>, %105, %cst_53 [2] : vector<2x8x8xf32> to vector<2x8xf32>
    %107 = vector.shape_cast %106 : vector<2x8xf32> to vector<2x8x1xf32>
    %108 = vector.broadcast %107 : vector<2x8x1xf32> to vector<2x8x8xf32>
    %109 = arith.subf %105, %108 : vector<2x8x8xf32>
    %110 = math.exp %109 : vector<2x8x8xf32>
    %cst_54 = arith.constant dense<0.000000e+00> : vector<2x8xf32>
    %111 = vector.multi_reduction <add>, %110, %cst_54 [2] : vector<2x8x8xf32> to vector<2x8xf32>
    %112 = vector.shape_cast %111 : vector<2x8xf32> to vector<2x8x1xf32>
    %113 = vector.broadcast %112 : vector<2x8x1xf32> to vector<2x8x8xf32>
    %114 = arith.divf %110, %113 : vector<2x8x8xf32>
    %115 = arith.truncf %114 : vector<2x8x8xf32> to vector<2x8x8xbf16>
    "tpu.trace_start"() <{level = 10 : i32, message = "bqk,bkd->bqd"}> : () -> ()
    %cst_55 = arith.constant dense<0.000000e+00> : vector<2x8x8xf32>
    %116 = tpu.matmul %115, %98, %cst_55 {dimension_numbers = #tpu.dot_dimension_numbers<[2], [1], [1], [2], [0, 0, 0, 1, 1, 2], [0], [0]>} : vector<2x8x8xbf16>, vector<2x8x8xbf16>, vector<2x8x8xf32> -> vector<2x8x8xf32>
    "tpu.trace_stop"() : () -> ()
    %117 = vector.extract_strided_slice %42 {offsets = [0, 0, 24], sizes = [2, 8, 8], strides = [1, 1, 1]} : vector<2x8x64xf32> to vector<2x8x8xf32>
    %118 = arith.truncf %117 : vector<2x8x8xf32> to vector<2x8x8xbf16>
    %119 = vector.extract_strided_slice %43 {offsets = [0, 0, 24], sizes = [2, 8, 8], strides = [1, 1, 1]} : vector<2x8x64xf32> to vector<2x8x8xf32>
    %120 = arith.truncf %119 : vector<2x8x8xf32> to vector<2x8x8xbf16>
    %121 = vector.extract_strided_slice %44 {offsets = [0, 0, 24], sizes = [2, 8, 8], strides = [1, 1, 1]} : vector<2x8x64xf32> to vector<2x8x8xf32>
    %122 = arith.truncf %121 : vector<2x8x8xf32> to vector<2x8x8xbf16>
    "tpu.trace_start"() <{level = 10 : i32, message = "bqd,bkd->bqk"}> : () -> ()
    %cst_56 = arith.constant dense<0.000000e+00> : vector<2x8x8xf32>
    %123 = tpu.matmul %118, %120, %cst_56 {dimension_numbers = #tpu.dot_dimension_numbers<[2], [2], [1], [1], [0, 0, 0, 1, 1, 1], [0], [0]>} : vector<2x8x8xbf16>, vector<2x8x8xbf16>, vector<2x8x8xf32> -> vector<2x8x8xf32>
    "tpu.trace_stop"() : () -> ()
    %cst_57 = arith.constant 0.353553385 : f32
    %124 = vector.broadcast %cst_57 : f32 to vector<2x8x8xf32>
    %125 = arith.mulf %123, %124 : vector<2x8x8xf32>
    %cst_58 = arith.constant -1.000000e+30 : f32
    %126 = vector.shape_cast %19 : vector<1x8x8xi1> to vector<1x8x8xi1>
    %127 = vector.broadcast %126 : vector<1x8x8xi1> to vector<2x8x8xi1>
    %128 = vector.broadcast %cst_58 : f32 to vector<2x8x8xf32>
    %129 = arith.select %127, %125, %128 : vector<2x8x8xi1>, vector<2x8x8xf32>
    %cst_59 = arith.constant dense<0xFF800000> : vector<2x8xf32>
    %130 = vector.multi_reduction <maximumf>, %129, %cst_59 [2] : vector<2x8x8xf32> to vector<2x8xf32>
    %131 = vector.shape_cast %130 : vector<2x8xf32> to vector<2x8x1xf32>
    %132 = vector.broadcast %131 : vector<2x8x1xf32> to vector<2x8x8xf32>
    %133 = arith.subf %129, %132 : vector<2x8x8xf32>
    %134 = math.exp %133 : vector<2x8x8xf32>
    %cst_60 = arith.constant dense<0.000000e+00> : vector<2x8xf32>
    %135 = vector.multi_reduction <add>, %134, %cst_60 [2] : vector<2x8x8xf32> to vector<2x8xf32>
    %136 = vector.shape_cast %135 : vector<2x8xf32> to vector<2x8x1xf32>
    %137 = vector.broadcast %136 : vector<2x8x1xf32> to vector<2x8x8xf32>
    %138 = arith.divf %134, %137 : vector<2x8x8xf32>
    %139 = arith.truncf %138 : vector<2x8x8xf32> to vector<2x8x8xbf16>
    "tpu.trace_start"() <{level = 10 : i32, message = "bqk,bkd->bqd"}> : () -> ()
    %cst_61 = arith.constant dense<0.000000e+00> : vector<2x8x8xf32>
    %140 = tpu.matmul %139, %122, %cst_61 {dimension_numbers = #tpu.dot_dimension_numbers<[2], [1], [1], [2], [0, 0, 0, 1, 1, 2], [0], [0]>} : vector<2x8x8xbf16>, vector<2x8x8xbf16>, vector<2x8x8xf32> -> vector<2x8x8xf32>
    "tpu.trace_stop"() : () -> ()
    %141 = vector.extract_strided_slice %42 {offsets = [0, 0, 32], sizes = [2, 8, 8], strides = [1, 1, 1]} : vector<2x8x64xf32> to vector<2x8x8xf32>
    %142 = arith.truncf %141 : vector<2x8x8xf32> to vector<2x8x8xbf16>
    %143 = vector.extract_strided_slice %43 {offsets = [0, 0, 32], sizes = [2, 8, 8], strides = [1, 1, 1]} : vector<2x8x64xf32> to vector<2x8x8xf32>
    %144 = arith.truncf %143 : vector<2x8x8xf32> to vector<2x8x8xbf16>
    %145 = vector.extract_strided_slice %44 {offsets = [0, 0, 32], sizes = [2, 8, 8], strides = [1, 1, 1]} : vector<2x8x64xf32> to vector<2x8x8xf32>
    %146 = arith.truncf %145 : vector<2x8x8xf32> to vector<2x8x8xbf16>
    "tpu.trace_start"() <{level = 10 : i32, message = "bqd,bkd->bqk"}> : () -> ()
    %cst_62 = arith.constant dense<0.000000e+00> : vector<2x8x8xf32>
    %147 = tpu.matmul %142, %144, %cst_62 {dimension_numbers = #tpu.dot_dimension_numbers<[2], [2], [1], [1], [0, 0, 0, 1, 1, 1], [0], [0]>} : vector<2x8x8xbf16>, vector<2x8x8xbf16>, vector<2x8x8xf32> -> vector<2x8x8xf32>
    "tpu.trace_stop"() : () -> ()
    %cst_63 = arith.constant 0.353553385 : f32
    %148 = vector.broadcast %cst_63 : f32 to vector<2x8x8xf32>
    %149 = arith.mulf %147, %148 : vector<2x8x8xf32>
    %cst_64 = arith.constant -1.000000e+30 : f32
    %150 = vector.shape_cast %19 : vector<1x8x8xi1> to vector<1x8x8xi1>
    %151 = vector.broadcast %150 : vector<1x8x8xi1> to vector<2x8x8xi1>
    %152 = vector.broadcast %cst_64 : f32 to vector<2x8x8xf32>
    %153 = arith.select %151, %149, %152 : vector<2x8x8xi1>, vector<2x8x8xf32>
    %cst_65 = arith.constant dense<0xFF800000> : vector<2x8xf32>
    %154 = vector.multi_reduction <maximumf>, %153, %cst_65 [2] : vector<2x8x8xf32> to vector<2x8xf32>
    %155 = vector.shape_cast %154 : vector<2x8xf32> to vector<2x8x1xf32>
    %156 = vector.broadcast %155 : vector<2x8x1xf32> to vector<2x8x8xf32>
    %157 = arith.subf %153, %156 : vector<2x8x8xf32>
    %158 = math.exp %157 : vector<2x8x8xf32>
    %cst_66 = arith.constant dense<0.000000e+00> : vector<2x8xf32>
    %159 = vector.multi_reduction <add>, %158, %cst_66 [2] : vector<2x8x8xf32> to vector<2x8xf32>
    %160 = vector.shape_cast %159 : vector<2x8xf32> to vector<2x8x1xf32>
    %161 = vector.broadcast %160 : vector<2x8x1xf32> to vector<2x8x8xf32>
    %162 = arith.divf %158, %161 : vector<2x8x8xf32>
    %163 = arith.truncf %162 : vector<2x8x8xf32> to vector<2x8x8xbf16>
    "tpu.trace_start"() <{level = 10 : i32, message = "bqk,bkd->bqd"}> : () -> ()
    %cst_67 = arith.constant dense<0.000000e+00> : vector<2x8x8xf32>
    %164 = tpu.matmul %163, %146, %cst_67 {dimension_numbers = #tpu.dot_dimension_numbers<[2], [1], [1], [2], [0, 0, 0, 1, 1, 2], [0], [0]>} : vector<2x8x8xbf16>, vector<2x8x8xbf16>, vector<2x8x8xf32> -> vector<2x8x8xf32>
    "tpu.trace_stop"() : () -> ()
    %165 = vector.extract_strided_slice %42 {offsets = [0, 0, 40], sizes = [2, 8, 8], strides = [1, 1, 1]} : vector<2x8x64xf32> to vector<2x8x8xf32>
    %166 = arith.truncf %165 : vector<2x8x8xf32> to vector<2x8x8xbf16>
    %167 = vector.extract_strided_slice %43 {offsets = [0, 0, 40], sizes = [2, 8, 8], strides = [1, 1, 1]} : vector<2x8x64xf32> to vector<2x8x8xf32>
    %168 = arith.truncf %167 : vector<2x8x8xf32> to vector<2x8x8xbf16>
    %169 = vector.extract_strided_slice %44 {offsets = [0, 0, 40], sizes = [2, 8, 8], strides = [1, 1, 1]} : vector<2x8x64xf32> to vector<2x8x8xf32>
    %170 = arith.truncf %169 : vector<2x8x8xf32> to vector<2x8x8xbf16>
    "tpu.trace_start"() <{level = 10 : i32, message = "bqd,bkd->bqk"}> : () -> ()
    %cst_68 = arith.constant dense<0.000000e+00> : vector<2x8x8xf32>
    %171 = tpu.matmul %166, %168, %cst_68 {dimension_numbers = #tpu.dot_dimension_numbers<[2], [2], [1], [1], [0, 0, 0, 1, 1, 1], [0], [0]>} : vector<2x8x8xbf16>, vector<2x8x8xbf16>, vector<2x8x8xf32> -> vector<2x8x8xf32>
    "tpu.trace_stop"() : () -> ()
    %cst_69 = arith.constant 0.353553385 : f32
    %172 = vector.broadcast %cst_69 : f32 to vector<2x8x8xf32>
    %173 = arith.mulf %171, %172 : vector<2x8x8xf32>
    %cst_70 = arith.constant -1.000000e+30 : f32
    %174 = vector.shape_cast %19 : vector<1x8x8xi1> to vector<1x8x8xi1>
    %175 = vector.broadcast %174 : vector<1x8x8xi1> to vector<2x8x8xi1>
    %176 = vector.broadcast %cst_70 : f32 to vector<2x8x8xf32>
    %177 = arith.select %175, %173, %176 : vector<2x8x8xi1>, vector<2x8x8xf32>
    %cst_71 = arith.constant dense<0xFF800000> : vector<2x8xf32>
    %178 = vector.multi_reduction <maximumf>, %177, %cst_71 [2] : vector<2x8x8xf32> to vector<2x8xf32>
    %179 = vector.shape_cast %178 : vector<2x8xf32> to vector<2x8x1xf32>
    %180 = vector.broadcast %179 : vector<2x8x1xf32> to vector<2x8x8xf32>
    %181 = arith.subf %177, %180 : vector<2x8x8xf32>
    %182 = math.exp %181 : vector<2x8x8xf32>
    %cst_72 = arith.constant dense<0.000000e+00> : vector<2x8xf32>
    %183 = vector.multi_reduction <add>, %182, %cst_72 [2] : vector<2x8x8xf32> to vector<2x8xf32>
    %184 = vector.shape_cast %183 : vector<2x8xf32> to vector<2x8x1xf32>
    %185 = vector.broadcast %184 : vector<2x8x1xf32> to vector<2x8x8xf32>
    %186 = arith.divf %182, %185 : vector<2x8x8xf32>
    %187 = arith.truncf %186 : vector<2x8x8xf32> to vector<2x8x8xbf16>
    "tpu.trace_start"() <{level = 10 : i32, message = "bqk,bkd->bqd"}> : () -> ()
    %cst_73 = arith.constant dense<0.000000e+00> : vector<2x8x8xf32>
    %188 = tpu.matmul %187, %170, %cst_73 {dimension_numbers = #tpu.dot_dimension_numbers<[2], [1], [1], [2], [0, 0, 0, 1, 1, 2], [0], [0]>} : vector<2x8x8xbf16>, vector<2x8x8xbf16>, vector<2x8x8xf32> -> vector<2x8x8xf32>
    "tpu.trace_stop"() : () -> ()
    %189 = vector.extract_strided_slice %42 {offsets = [0, 0, 48], sizes = [2, 8, 8], strides = [1, 1, 1]} : vector<2x8x64xf32> to vector<2x8x8xf32>
    %190 = arith.truncf %189 : vector<2x8x8xf32> to vector<2x8x8xbf16>
    %191 = vector.extract_strided_slice %43 {offsets = [0, 0, 48], sizes = [2, 8, 8], strides = [1, 1, 1]} : vector<2x8x64xf32> to vector<2x8x8xf32>
    %192 = arith.truncf %191 : vector<2x8x8xf32> to vector<2x8x8xbf16>
    %193 = vector.extract_strided_slice %44 {offsets = [0, 0, 48], sizes = [2, 8, 8], strides = [1, 1, 1]} : vector<2x8x64xf32> to vector<2x8x8xf32>
    %194 = arith.truncf %193 : vector<2x8x8xf32> to vector<2x8x8xbf16>
    "tpu.trace_start"() <{level = 10 : i32, message = "bqd,bkd->bqk"}> : () -> ()
    %cst_74 = arith.constant dense<0.000000e+00> : vector<2x8x8xf32>
    %195 = tpu.matmul %190, %192, %cst_74 {dimension_numbers = #tpu.dot_dimension_numbers<[2], [2], [1], [1], [0, 0, 0, 1, 1, 1], [0], [0]>} : vector<2x8x8xbf16>, vector<2x8x8xbf16>, vector<2x8x8xf32> -> vector<2x8x8xf32>
    "tpu.trace_stop"() : () -> ()
    %cst_75 = arith.constant 0.353553385 : f32
    %196 = vector.broadcast %cst_75 : f32 to vector<2x8x8xf32>
    %197 = arith.mulf %195, %196 : vector<2x8x8xf32>
    %cst_76 = arith.constant -1.000000e+30 : f32
    %198 = vector.shape_cast %19 : vector<1x8x8xi1> to vector<1x8x8xi1>
    %199 = vector.broadcast %198 : vector<1x8x8xi1> to vector<2x8x8xi1>
    %200 = vector.broadcast %cst_76 : f32 to vector<2x8x8xf32>
    %201 = arith.select %199, %197, %200 : vector<2x8x8xi1>, vector<2x8x8xf32>
    %cst_77 = arith.constant dense<0xFF800000> : vector<2x8xf32>
    %202 = vector.multi_reduction <maximumf>, %201, %cst_77 [2] : vector<2x8x8xf32> to vector<2x8xf32>
    %203 = vector.shape_cast %202 : vector<2x8xf32> to vector<2x8x1xf32>
    %204 = vector.broadcast %203 : vector<2x8x1xf32> to vector<2x8x8xf32>
    %205 = arith.subf %201, %204 : vector<2x8x8xf32>
    %206 = math.exp %205 : vector<2x8x8xf32>
    %cst_78 = arith.constant dense<0.000000e+00> : vector<2x8xf32>
    %207 = vector.multi_reduction <add>, %206, %cst_78 [2] : vector<2x8x8xf32> to vector<2x8xf32>
    %208 = vector.shape_cast %207 : vector<2x8xf32> to vector<2x8x1xf32>
    %209 = vector.broadcast %208 : vector<2x8x1xf32> to vector<2x8x8xf32>
    %210 = arith.divf %206, %209 : vector<2x8x8xf32>
    %211 = arith.truncf %210 : vector<2x8x8xf32> to vector<2x8x8xbf16>
    "tpu.trace_start"() <{level = 10 : i32, message = "bqk,bkd->bqd"}> : () -> ()
    %cst_79 = arith.constant dense<0.000000e+00> : vector<2x8x8xf32>
    %212 = tpu.matmul %211, %194, %cst_79 {dimension_numbers = #tpu.dot_dimension_numbers<[2], [1], [1], [2], [0, 0, 0, 1, 1, 2], [0], [0]>} : vector<2x8x8xbf16>, vector<2x8x8xbf16>, vector<2x8x8xf32> -> vector<2x8x8xf32>
    "tpu.trace_stop"() : () -> ()
    %213 = vector.extract_strided_slice %42 {offsets = [0, 0, 56], sizes = [2, 8, 8], strides = [1, 1, 1]} : vector<2x8x64xf32> to vector<2x8x8xf32>
    %214 = arith.truncf %213 : vector<2x8x8xf32> to vector<2x8x8xbf16>
    %215 = vector.extract_strided_slice %43 {offsets = [0, 0, 56], sizes = [2, 8, 8], strides = [1, 1, 1]} : vector<2x8x64xf32> to vector<2x8x8xf32>
    %216 = arith.truncf %215 : vector<2x8x8xf32> to vector<2x8x8xbf16>
    %217 = vector.extract_strided_slice %44 {offsets = [0, 0, 56], sizes = [2, 8, 8], strides = [1, 1, 1]} : vector<2x8x64xf32> to vector<2x8x8xf32>
    %218 = arith.truncf %217 : vector<2x8x8xf32> to vector<2x8x8xbf16>
    "tpu.trace_start"() <{level = 10 : i32, message = "bqd,bkd->bqk"}> : () -> ()
    %cst_80 = arith.constant dense<0.000000e+00> : vector<2x8x8xf32>
    %219 = tpu.matmul %214, %216, %cst_80 {dimension_numbers = #tpu.dot_dimension_numbers<[2], [2], [1], [1], [0, 0, 0, 1, 1, 1], [0], [0]>} : vector<2x8x8xbf16>, vector<2x8x8xbf16>, vector<2x8x8xf32> -> vector<2x8x8xf32>
    "tpu.trace_stop"() : () -> ()
    %cst_81 = arith.constant 0.353553385 : f32
    %220 = vector.broadcast %cst_81 : f32 to vector<2x8x8xf32>
    %221 = arith.mulf %219, %220 : vector<2x8x8xf32>
    %cst_82 = arith.constant -1.000000e+30 : f32
    %222 = vector.shape_cast %19 : vector<1x8x8xi1> to vector<1x8x8xi1>
    %223 = vector.broadcast %222 : vector<1x8x8xi1> to vector<2x8x8xi1>
    %224 = vector.broadcast %cst_82 : f32 to vector<2x8x8xf32>
    %225 = arith.select %223, %221, %224 : vector<2x8x8xi1>, vector<2x8x8xf32>
    %cst_83 = arith.constant dense<0xFF800000> : vector<2x8xf32>
    %226 = vector.multi_reduction <maximumf>, %225, %cst_83 [2] : vector<2x8x8xf32> to vector<2x8xf32>
    %227 = vector.shape_cast %226 : vector<2x8xf32> to vector<2x8x1xf32>
    %228 = vector.broadcast %227 : vector<2x8x1xf32> to vector<2x8x8xf32>
    %229 = arith.subf %225, %228 : vector<2x8x8xf32>
    %230 = math.exp %229 : vector<2x8x8xf32>
    %cst_84 = arith.constant dense<0.000000e+00> : vector<2x8xf32>
    %231 = vector.multi_reduction <add>, %230, %cst_84 [2] : vector<2x8x8xf32> to vector<2x8xf32>
    %232 = vector.shape_cast %231 : vector<2x8xf32> to vector<2x8x1xf32>
    %233 = vector.broadcast %232 : vector<2x8x1xf32> to vector<2x8x8xf32>
    %234 = arith.divf %230, %233 : vector<2x8x8xf32>
    %235 = arith.truncf %234 : vector<2x8x8xf32> to vector<2x8x8xbf16>
    "tpu.trace_start"() <{level = 10 : i32, message = "bqk,bkd->bqd"}> : () -> ()
    %cst_85 = arith.constant dense<0.000000e+00> : vector<2x8x8xf32>
    %236 = tpu.matmul %235, %218, %cst_85 {dimension_numbers = #tpu.dot_dimension_numbers<[2], [1], [1], [2], [0, 0, 0, 1, 1, 2], [0], [0]>} : vector<2x8x8xbf16>, vector<2x8x8xbf16>, vector<2x8x8xf32> -> vector<2x8x8xf32>
    "tpu.trace_stop"() : () -> ()
    %237 = tpu.concatenate %68, %92, %116, %140, %164, %188, %212, %236 in 2 : vector<2x8x8xf32>, vector<2x8x8xf32>, vector<2x8x8xf32>, vector<2x8x8xf32>, vector<2x8x8xf32>, vector<2x8x8xf32>, vector<2x8x8xf32>, vector<2x8x8xf32> -> vector<2x8x64xf32>
    %238 = vector.shape_cast %237 : vector<2x8x64xf32> to vector<16x64xf32>
    %239 = arith.truncf %238 : vector<16x64xf32> to vector<16x64xbf16>
    %c0_86 = arith.constant 0 : index
    %c0_87 = arith.constant 0 : index
    %c0_88 = arith.constant 0 : index
    %240 = vector.load %arg9[%c0_86, %c0_87, %c0_88] : memref<1x64x64xbf16, #tpu.memory_space<vmem>>, vector<1x64x64xbf16>
    %241 = vector.shape_cast %240 : vector<1x64x64xbf16> to vector<64x64xbf16>
    %cst_89 = arith.constant dense<0.000000e+00> : vector<16x64xf32>
    %242 = tpu.matmul %239, %241, %cst_89 {dimension_numbers = #tpu.dot_dimension_numbers<[1], [0], [0], [1], [0, 0, 1, 1], [], []>} : vector<16x64xbf16>, vector<64x64xbf16>, vector<16x64xf32> -> vector<16x64xf32>
    %c0_90 = arith.constant 0 : index
    %c0_91 = arith.constant 0 : index
    %c0_92 = arith.constant 0 : index
    %243 = vector.load %arg10[%c0_90, %c0_91, %c0_92] : memref<1x1x64xf32, #tpu.memory_space<vmem>>, vector<1x1x64xf32>
    %244 = vector.shape_cast %243 : vector<1x1x64xf32> to vector<1x64xf32>
    %245 = vector.broadcast %244 : vector<1x64xf32> to vector<16x64xf32>
    %246 = arith.addf %242, %245 : vector<16x64xf32>
    %247 = arith.addf %3, %246 : vector<16x64xf32>
    %cst_93 = arith.constant dense<0.000000e+00> : vector<16xf32>
    %248 = vector.multi_reduction <add>, %247, %cst_93 [1] : vector<16x64xf32> to vector<16xf32>
    %249 = vector.shape_cast %248 : vector<16xf32> to vector<16x1xf32>
    %cst_94 = arith.constant 6.400000e+01 : f32
    %250 = vector.broadcast %cst_94 : f32 to vector<16x1xf32>
    %251 = arith.divf %249, %250 : vector<16x1xf32>
    %252 = vector.broadcast %251 : vector<16x1xf32> to vector<16x64xf32>
    %253 = arith.subf %247, %252 : vector<16x64xf32>
    %254 = arith.mulf %253, %253 : vector<16x64xf32>
    %cst_95 = arith.constant dense<0.000000e+00> : vector<16xf32>
    %255 = vector.multi_reduction <add>, %254, %cst_95 [1] : vector<16x64xf32> to vector<16xf32>
    %256 = vector.shape_cast %255 : vector<16xf32> to vector<16x1xf32>
    %cst_96 = arith.constant 6.400000e+01 : f32
    %257 = vector.broadcast %cst_96 : f32 to vector<16x1xf32>
    %258 = arith.divf %256, %257 : vector<16x1xf32>
    %259 = vector.broadcast %251 : vector<16x1xf32> to vector<16x64xf32>
    %260 = arith.subf %247, %259 : vector<16x64xf32>
    %cst_97 = arith.constant 9.99999974E-6 : f32
    %261 = vector.broadcast %cst_97 : f32 to vector<16x1xf32>
    %262 = arith.addf %258, %261 : vector<16x1xf32>
    %263 = math.rsqrt %262 : vector<16x1xf32>
    %264 = vector.broadcast %263 : vector<16x1xf32> to vector<16x64xf32>
    %265 = arith.mulf %260, %264 : vector<16x64xf32>
    %266 = vector.broadcast %5 : vector<1x64xf32> to vector<16x64xf32>
    %267 = arith.mulf %265, %266 : vector<16x64xf32>
    %268 = vector.broadcast %7 : vector<1x64xf32> to vector<16x64xf32>
    %269 = arith.addf %267, %268 : vector<16x64xf32>
    %c0_98 = arith.constant 0 : index
    %c0_99 = arith.constant 0 : index
    %270 = vector.load %arg2[%c0_98, %c0_99] : memref<2x64xf32, #tpu.memory_space<vmem>>, vector<2x64xf32>
    %271 = arith.truncf %270 : vector<2x64xf32> to vector<2x64xbf16>
    %c0_100 = arith.constant 0 : index
    %c0_101 = arith.constant 0 : index
    %c0_102 = arith.constant 0 : index
    %272 = vector.load %arg11[%c0_100, %c0_101, %c0_102] : memref<1x64x64xbf16, #tpu.memory_space<vmem>>, vector<1x64x64xbf16>
    %273 = vector.shape_cast %272 : vector<1x64x64xbf16> to vector<64x64xbf16>
    %cst_103 = arith.constant dense<0.000000e+00> : vector<2x64xf32>
    %274 = tpu.matmul %271, %273, %cst_103 {dimension_numbers = #tpu.dot_dimension_numbers<[1], [0], [0], [1], [0, 0, 1, 1], [], []>} : vector<2x64xbf16>, vector<64x64xbf16>, vector<2x64xf32> -> vector<2x64xf32>
    %c0_104 = arith.constant 0 : index
    %c0_105 = arith.constant 0 : index
    %c0_106 = arith.constant 0 : index
    %275 = vector.load %arg12[%c0_104, %c0_105, %c0_106] : memref<1x1x64xf32, #tpu.memory_space<vmem>>, vector<1x1x64xf32>
    %276 = vector.shape_cast %275 : vector<1x1x64xf32> to vector<1x64xf32>
    %277 = vector.broadcast %276 : vector<1x64xf32> to vector<2x64xf32>
    %278 = arith.addf %274, %277 : vector<2x64xf32>
    %279 = arith.truncf %278 : vector<2x64xf32> to vector<2x64xbf16>
    %c0_107 = arith.constant 0 : index
    %c0_108 = arith.constant 0 : index
    %c0_109 = arith.constant 0 : index
    %280 = vector.load %arg13[%c0_107, %c0_108, %c0_109] : memref<1x64x64xbf16, #tpu.memory_space<vmem>>, vector<1x64x64xbf16>
    %281 = vector.shape_cast %280 : vector<1x64x64xbf16> to vector<64x64xbf16>
    %cst_110 = arith.constant dense<0.000000e+00> : vector<2x64xf32>
    %282 = tpu.matmul %279, %281, %cst_110 {dimension_numbers = #tpu.dot_dimension_numbers<[1], [0], [0], [1], [0, 0, 1, 1], [], []>} : vector<2x64xbf16>, vector<64x64xbf16>, vector<2x64xf32> -> vector<2x64xf32>
    %c0_111 = arith.constant 0 : index
    %c0_112 = arith.constant 0 : index
    %c0_113 = arith.constant 0 : index
    %283 = vector.load %arg14[%c0_111, %c0_112, %c0_113] : memref<1x1x64xf32, #tpu.memory_space<vmem>>, vector<1x1x64xf32>
    %284 = vector.shape_cast %283 : vector<1x1x64xf32> to vector<1x64xf32>
    %285 = vector.broadcast %284 : vector<1x64xf32> to vector<2x64xf32>
    %286 = arith.addf %282, %285 : vector<2x64xf32>
    %287 = vector.shape_cast %269 : vector<16x64xf32> to vector<2x8x64xf32>
    %288 = vector.shape_cast %286 : vector<2x64xf32> to vector<2x1x64xf32>
    %289 = vector.broadcast %288 : vector<2x1x64xf32> to vector<2x8x64xf32>
    %290 = arith.addf %287, %289 : vector<2x8x64xf32>
    %291 = vector.shape_cast %290 : vector<2x8x64xf32> to vector<16x64xf32>
    %cst_114 = arith.constant dense<0.000000e+00> : vector<16xf32>
    %292 = vector.multi_reduction <add>, %291, %cst_114 [1] : vector<16x64xf32> to vector<16xf32>
    %293 = vector.shape_cast %292 : vector<16xf32> to vector<16x1xf32>
    %cst_115 = arith.constant 6.400000e+01 : f32
    %294 = vector.broadcast %cst_115 : f32 to vector<16x1xf32>
    %295 = arith.divf %293, %294 : vector<16x1xf32>
    %296 = vector.broadcast %295 : vector<16x1xf32> to vector<16x64xf32>
    %297 = arith.subf %291, %296 : vector<16x64xf32>
    %298 = arith.mulf %297, %297 : vector<16x64xf32>
    %cst_116 = arith.constant dense<0.000000e+00> : vector<16xf32>
    %299 = vector.multi_reduction <add>, %298, %cst_116 [1] : vector<16x64xf32> to vector<16xf32>
    %300 = vector.shape_cast %299 : vector<16xf32> to vector<16x1xf32>
    %cst_117 = arith.constant 6.400000e+01 : f32
    %301 = vector.broadcast %cst_117 : f32 to vector<16x1xf32>
    %302 = arith.divf %300, %301 : vector<16x1xf32>
    %303 = vector.broadcast %295 : vector<16x1xf32> to vector<16x64xf32>
    %304 = arith.subf %291, %303 : vector<16x64xf32>
    %cst_118 = arith.constant 9.99999974E-6 : f32
    %305 = vector.broadcast %cst_118 : f32 to vector<16x1xf32>
    %306 = arith.addf %302, %305 : vector<16x1xf32>
    %307 = math.rsqrt %306 : vector<16x1xf32>
    %308 = vector.broadcast %307 : vector<16x1xf32> to vector<16x64xf32>
    %309 = arith.mulf %304, %308 : vector<16x64xf32>
    %310 = vector.broadcast %9 : vector<1x64xf32> to vector<16x64xf32>
    %311 = arith.mulf %309, %310 : vector<16x64xf32>
    %312 = vector.broadcast %11 : vector<1x64xf32> to vector<16x64xf32>
    %313 = arith.addf %311, %312 : vector<16x64xf32>
    %314 = arith.truncf %313 : vector<16x64xf32> to vector<16x64xbf16>
    %c0_119 = arith.constant 0 : index
    %c0_120 = arith.constant 0 : index
    %c0_121 = arith.constant 0 : index
    %315 = vector.load %arg15[%c0_119, %c0_120, %c0_121] : memref<1x64x2048xbf16, #tpu.memory_space<vmem>>, vector<1x64x2048xbf16>
    %316 = vector.shape_cast %315 : vector<1x64x2048xbf16> to vector<64x2048xbf16>
    %cst_122 = arith.constant dense<0.000000e+00> : vector<16x2048xf32>
    %317 = tpu.matmul %314, %316, %cst_122 {dimension_numbers = #tpu.dot_dimension_numbers<[1], [0], [0], [1], [0, 0, 1, 1], [], []>} : vector<16x64xbf16>, vector<64x2048xbf16>, vector<16x2048xf32> -> vector<16x2048xf32>
    %c0_123 = arith.constant 0 : index
    %c0_124 = arith.constant 0 : index
    %c0_125 = arith.constant 0 : index
    %318 = vector.load %arg16[%c0_123, %c0_124, %c0_125] : memref<1x1x2048xf32, #tpu.memory_space<vmem>>, vector<1x1x2048xf32>
    %319 = vector.shape_cast %318 : vector<1x1x2048xf32> to vector<1x2048xf32>
    %320 = vector.broadcast %319 : vector<1x2048xf32> to vector<16x2048xf32>
    %321 = arith.addf %317, %320 : vector<16x2048xf32>
    %cst_126 = arith.constant 0.000000e+00 : f32
    %322 = vector.broadcast %cst_126 : f32 to vector<16x2048xf32>
    %323 = arith.maximumf %321, %322 : vector<16x2048xf32>
    %324 = arith.truncf %323 : vector<16x2048xf32> to vector<16x2048xbf16>
    %c0_127 = arith.constant 0 : index
    %c0_128 = arith.constant 0 : index
    %c0_129 = arith.constant 0 : index
    %325 = vector.load %arg17[%c0_127, %c0_128, %c0_129] : memref<1x2048x64xbf16, #tpu.memory_space<vmem>>, vector<1x2048x64xbf16>
    %326 = vector.shape_cast %325 : vector<1x2048x64xbf16> to vector<2048x64xbf16>
    %cst_130 = arith.constant dense<0.000000e+00> : vector<16x64xf32>
    %327 = tpu.matmul %324, %326, %cst_130 {dimension_numbers = #tpu.dot_dimension_numbers<[1], [0], [0], [1], [0, 0, 1, 1], [], []>} : vector<16x2048xbf16>, vector<2048x64xbf16>, vector<16x64xf32> -> vector<16x64xf32>
    %c0_131 = arith.constant 0 : index
    %c0_132 = arith.constant 0 : index
    %c0_133 = arith.constant 0 : index
    %328 = vector.load %arg18[%c0_131, %c0_132, %c0_133] : memref<1x1x64xf32, #tpu.memory_space<vmem>>, vector<1x1x64xf32>
    %329 = vector.shape_cast %328 : vector<1x1x64xf32> to vector<1x64xf32>
    %330 = vector.broadcast %329 : vector<1x64xf32> to vector<16x64xf32>
    %331 = arith.addf %327, %330 : vector<16x64xf32>
    %332 = arith.addf %313, %331 : vector<16x64xf32>
    %cst_134 = arith.constant dense<0.000000e+00> : vector<16xf32>
    %333 = vector.multi_reduction <add>, %332, %cst_134 [1] : vector<16x64xf32> to vector<16xf32>
    %334 = vector.shape_cast %333 : vector<16xf32> to vector<16x1xf32>
    %cst_135 = arith.constant 6.400000e+01 : f32
    %335 = vector.broadcast %cst_135 : f32 to vector<16x1xf32>
    %336 = arith.divf %334, %335 : vector<16x1xf32>
    %337 = vector.broadcast %336 : vector<16x1xf32> to vector<16x64xf32>
    %338 = arith.subf %332, %337 : vector<16x64xf32>
    %339 = arith.mulf %338, %338 : vector<16x64xf32>
    %cst_136 = arith.constant dense<0.000000e+00> : vector<16xf32>
    %340 = vector.multi_reduction <add>, %339, %cst_136 [1] : vector<16x64xf32> to vector<16xf32>
    %341 = vector.shape_cast %340 : vector<16xf32> to vector<16x1xf32>
    %cst_137 = arith.constant 6.400000e+01 : f32
    %342 = vector.broadcast %cst_137 : f32 to vector<16x1xf32>
    %343 = arith.divf %341, %342 : vector<16x1xf32>
    %344 = vector.broadcast %336 : vector<16x1xf32> to vector<16x64xf32>
    %345 = arith.subf %332, %344 : vector<16x64xf32>
    %cst_138 = arith.constant 9.99999974E-6 : f32
    %346 = vector.broadcast %cst_138 : f32 to vector<16x1xf32>
    %347 = arith.addf %343, %346 : vector<16x1xf32>
    %348 = math.rsqrt %347 : vector<16x1xf32>
    %349 = vector.broadcast %348 : vector<16x1xf32> to vector<16x64xf32>
    %350 = arith.mulf %345, %349 : vector<16x64xf32>
    %351 = vector.broadcast %13 : vector<1x64xf32> to vector<16x64xf32>
    %352 = arith.mulf %350, %351 : vector<16x64xf32>
    %353 = vector.broadcast %15 : vector<1x64xf32> to vector<16x64xf32>
    %354 = arith.addf %352, %353 : vector<16x64xf32>
    %c0_139 = arith.constant 0 : index
    %c0_140 = arith.constant 0 : index
    %355 = vector.load %arg22[%c0_139, %c0_140] : memref<16x64xf32, #tpu.memory_space<vmem>>, vector<16x64xf32>
    tpu.vector_store %arg22[%c0_139, %c0_140], %354 {strides = array<i32>} : memref<16x64xf32, #tpu.memory_space<vmem>>, vector<16x64xf32>,
    %c1_i32 = arith.constant 1 : i32
    %356 = arith.cmpi eq, %arg0, %c1_i32 : i32
    %357 = arith.extui %356 : i1 to i32
    %c0_i32_141 = arith.constant 0 : i32
    %358 = arith.cmpi ne, %357, %c0_i32_141 : i32
    scf.if %358 {
      %359 = arith.truncf %354 : vector<16x64xf32> to vector<16x64xbf16>
      %c0_142 = arith.constant 0 : index
      %c0_143 = arith.constant 0 : index
      %360 = vector.load %arg21[%c0_142, %c0_143] : memref<16x64xbf16, #tpu.memory_space<vmem>>, vector<16x64xbf16>
      tpu.vector_store %arg21[%c0_142, %c0_143], %359 {strides = array<i32>} : memref<16x64xbf16, #tpu.memory_space<vmem>>, vector<16x64xbf16>,
    } else {
    }
    return
  }
  func.func @transform_0(%arg0: i32) -> (i32, i32) {
    %c0_i32 = arith.constant 0 : i32
    %c0_i32_0 = arith.constant 0 : i32
    %c0_i32_1 = arith.constant 0 : i32
    return %c0_i32, %c0_i32_0 : i32, i32
  }
  func.func @transform_1(%arg0: i32) -> (i32, i32) {
    %c0_i32 = arith.constant 0 : i32
    %c0_i32_0 = arith.constant 0 : i32
    %c0_i32_1 = arith.constant 0 : i32
    return %c0_i32, %c0_i32_0 : i32, i32
  }
  func.func @transform_2(%arg0: i32) -> (i32, i32, i32) {
    %c0_i32 = arith.constant 0 : i32
    %c0_i32_0 = arith.constant 0 : i32
    %c0_i32_1 = arith.constant 0 : i32
    return %arg0, %c0_i32, %c0_i32_0 : i32, i32, i32
  }
  func.func @transform_3(%arg0: i32) -> (i32, i32, i32) {
    %c0_i32 = arith.constant 0 : i32
    %c0_i32_0 = arith.constant 0 : i32
    %c0_i32_1 = arith.constant 0 : i32
    return %arg0, %c0_i32, %c0_i32_0 : i32, i32, i32
  }
  func.func @transform_4(%arg0: i32) -> (i32, i32, i32) {
    %c0_i32 = arith.constant 0 : i32
    %c0_i32_0 = arith.constant 0 : i32
    %c0_i32_1 = arith.constant 0 : i32
    return %arg0, %c0_i32, %c0_i32_0 : i32, i32, i32
  }
  func.func @transform_5(%arg0: i32) -> (i32, i32, i32) {
    %c0_i32 = arith.constant 0 : i32
    %c0_i32_0 = arith.constant 0 : i32
    %c0_i32_1 = arith.constant 0 : i32
    return %arg0, %c0_i32, %c0_i32_0 : i32, i32, i32
  }
  func.func @transform_6(%arg0: i32) -> (i32, i32, i32) {
    %c0_i32 = arith.constant 0 : i32
    %c0_i32_0 = arith.constant 0 : i32
    %c0_i32_1 = arith.constant 0 : i32
    return %arg0, %c0_i32, %c0_i32_0 : i32, i32, i32
  }
  func.func @transform_7(%arg0: i32) -> (i32, i32, i32) {
    %c0_i32 = arith.constant 0 : i32
    %c0_i32_0 = arith.constant 0 : i32
    %c0_i32_1 = arith.constant 0 : i32
    return %arg0, %c0_i32, %c0_i32_0 : i32, i32, i32
  }
  func.func @transform_8(%arg0: i32) -> (i32, i32, i32) {
    %c0_i32 = arith.constant 0 : i32
    %c0_i32_0 = arith.constant 0 : i32
    %c0_i32_1 = arith.constant 0 : i32
    return %arg0, %c0_i32, %c0_i32_0 : i32, i32, i32
  }
  func.func @transform_9(%arg0: i32) -> (i32, i32, i32) {
    %c0_i32 = arith.constant 0 : i32
    %c0_i32_0 = arith.constant 0 : i32
    %c0_i32_1 = arith.constant 0 : i32
    return %arg0, %c0_i32, %c0_i32_0 : i32, i32, i32
  }
  func.func @transform_10(%arg0: i32) -> (i32, i32, i32) {
    %c0_i32 = arith.constant 0 : i32
    %c0_i32_0 = arith.constant 0 : i32
    %c0_i32_1 = arith.constant 0 : i32
    return %arg0, %c0_i32, %c0_i32_0 : i32, i32, i32
  }
  func.func @transform_11(%arg0: i32) -> (i32, i32, i32) {
    %c0_i32 = arith.constant 0 : i32
    %c0_i32_0 = arith.constant 0 : i32
    %c0_i32_1 = arith.constant 0 : i32
    return %arg0, %c0_i32, %c0_i32_0 : i32, i32, i32
  }
  func.func @transform_12(%arg0: i32) -> (i32, i32, i32) {
    %c0_i32 = arith.constant 0 : i32
    %c0_i32_0 = arith.constant 0 : i32
    %c0_i32_1 = arith.constant 0 : i32
    return %arg0, %c0_i32, %c0_i32_0 : i32, i32, i32
  }
  func.func @transform_13(%arg0: i32) -> (i32, i32, i32) {
    %c0_i32 = arith.constant 0 : i32
    %c0_i32_0 = arith.constant 0 : i32
    %c0_i32_1 = arith.constant 0 : i32
    return %arg0, %c0_i32, %c0_i32_0 : i32, i32, i32
  }
  func.func @transform_14(%arg0: i32) -> (i32, i32, i32) {
    %c0_i32 = arith.constant 0 : i32
    %c0_i32_0 = arith.constant 0 : i32
    %c0_i32_1 = arith.constant 0 : i32
    return %arg0, %c0_i32, %c0_i32_0 : i32, i32, i32
  }
  func.func @transform_15(%arg0: i32) -> (i32, i32, i32) {
    %c0_i32 = arith.constant 0 : i32
    %c0_i32_0 = arith.constant 0 : i32
    %c0_i32_1 = arith.constant 0 : i32
    return %arg0, %c0_i32, %c0_i32_0 : i32, i32, i32
  }
  func.func @transform_16(%arg0: i32) -> (i32, i32, i32) {
    %c0_i32 = arith.constant 0 : i32
    %c0_i32_0 = arith.constant 0 : i32
    %c0_i32_1 = arith.constant 0 : i32
    return %arg0, %c0_i32, %c0_i32_0 : i32, i32, i32
  }
  func.func @transform_17(%arg0: i32) -> (i32, i32, i32) {
    %c0_i32 = arith.constant 0 : i32
    %c0_i32_0 = arith.constant 0 : i32
    %c0_i32_1 = arith.constant 0 : i32
    return %arg0, %c0_i32, %c0_i32_0 : i32, i32, i32
  }
  func.func @transform_18(%arg0: i32) -> (i32, i32, i32) {
    %c0_i32 = arith.constant 0 : i32
    %c0_i32_0 = arith.constant 0 : i32
    %c0_i32_1 = arith.constant 0 : i32
    return %arg0, %c0_i32, %c0_i32_0 : i32, i32, i32
  }
  func.func @transform_19(%arg0: i32) -> (i32, i32, i32) {
    %c0_i32 = arith.constant 0 : i32
    %c0_i32_0 = arith.constant 0 : i32
    %c0_i32_1 = arith.constant 0 : i32
    return %arg0, %c0_i32, %c0_i32_0 : i32, i32, i32
  }
  func.func @transform_20(%arg0: i32) -> (i32, i32) {
    %c0_i32 = arith.constant 0 : i32
    %c0_i32_0 = arith.constant 0 : i32
    %c0_i32_1 = arith.constant 0 : i32
    return %c0_i32, %c0_i32_0 : i32, i32
  }
}

</mosaic_0001>

<llo_original>
// kernel: forward.3
$region0: #{forward.3}
  #allocation0 [shape = 'u32[]', space=smem, size = 0x4, offset = 0x4, fixed_abs, tag = 'smem constant byte address 0x4 - core index']
  #allocation1 [shape = 'u32[144,128]{1,0:T(1,128)}', space=vmem, size = 0x12000, scoped, tag = 'internal scratch']
  %s0 = inlined_call_operand.vmem [shape: f32[2,3], index: 0, kind: input, shape index: {}]
  %s1 = inlined_call_operand.vmem [shape: f32[3,64], index: 1, kind: input, shape index: {}]
  %s2 = inlined_call_operand.vmem [shape: f32[1,64], index: 2, kind: input, shape index: {}]
  %s3 = inlined_call_operand.hbm [shape: f32[2,64], index: 3, kind: output, shape index: {}]
  %s4 = sld [smem:[#allocation0]]
  $region22: #{forward.3} parent=0
    _
  %s6 = ssub.s32 1, %s4
  %s7 = scalar_select 0, %s6, %s4
  $region1: #{forward.3} parent=0
    #allocation2 [shape = 'u8[1024]{0}', space=vmem, size = 0x400, scoped, tag = 'output window, operand 0, single buffered']
    #allocation3 [shape = 's32[1]{0}', space=sflag, size = 0x4, scoped, tag = 'scoped memory for forward.3']
    %8 = vsyncpa [#allocation3], 0
    // Predicated region
    $region2: #{forward.3} parent=1 // pred_check
      _
    $region3: #{forward.3} parent=1 // pred_check_branch
      %10 = sbr.rel (0) target = $region5
    $region4: #{forward.3} parent=1 // pred_region
      _
    $region5: #{forward.3} parent=1 // pred_fallthru
      _
    // Predicated region
    $region6: #{forward.3} parent=1 // pred_check
      _
    $region7: #{forward.3} parent=1 // pred_check_branch
      %12 = sbr.rel (0) target = $region9
    $region8: #{forward.3} parent=1 // pred_region
      _
    $region9: #{forward.3} parent=1 // pred_fallthru
      _
    // Predicated region
    $region10: #{forward.3} parent=1 // pred_check
      _
    $region11: #{forward.3} parent=1 // pred_check_branch
      %14 = sbr.rel (0) target = $region13
    $region12: #{forward.3} parent=1 // pred_region
      _
    $region13: #{forward.3} parent=1 // pred_fallthru
      _
    %v15 = vld [vmem:[%s0] sm:$0x3]
    %v16 = vld [vmem:[%s1] sm:$0x7]
    %v17 = vld [vmem:[%s2] sm:$0x1]
    %v19 = vlaneseq
    %v20 = vshrl.u32 %v19, 7
    %v21 = vsub.s32 0, %v20
    %v22 = vrot.slane %v17, %v21
    %vm24 = vcmask 23552
    %v26 = vsel %vm24, %v15, 0
    %vm28 = vcmask 1042432
    %v30 = vsel %vm28, %v16, 0
    %32 = vmatprep.subr.mxu0 0.0
    %33 = vmatpush1.msra.mxu0 %v30
    %34 = vmatprep.subr.mxu0 0.0
    %35 = vmatpush1.msra.mxu0 0.0
    %36 = vmatprep.subr.mxu0 0.0
    %37 = vmatpush1.msra.mxu0 0.0
    %38 = vmatprep.subr.mxu0 0.0
    %39 = vmatpush1.msra.mxu0 0.0
    %40 = vmatprep.subr.mxu0 0.0
    %41 = vmatpush1.msra.mxu0 0.0
    %42 = vmatprep.subr.mxu0 0.0
    %43 = vmatpush1.msra.mxu0 0.0
    %44 = vmatprep.subr.mxu0 0.0
    %45 = vmatpush1.msra.mxu0 0.0
    %46 = vmatprep.subr.mxu0 0.0
    %47 = vmatpush1.msra.mxu0 0.0
    %48 = vmatprep.subr.mxu0 0.0
    %49 = vmatpush1.msra.mxu0 0.0
    %50 = vmatprep.subr.mxu0 0.0
    %51 = vmatpush1.msra.mxu0 0.0
    %52 = vmatprep.subr.mxu0 0.0
    %53 = vmatpush1.msra.mxu0 0.0
    %54 = vmatprep.subr.mxu0 0.0
    %55 = vmatpush1.msra.mxu0 0.0
    %56 = vmatprep.subr.mxu0 0.0
    %57 = vmatpush1.msra.mxu0 0.0
    %58 = vmatprep.subr.mxu0 0.0
    %59 = vmatpush1.msra.mxu0 0.0
    %60 = vmatprep.subr.mxu0 0.0
    %61 = vmatpush1.msra.mxu0 0.0
    %62 = vmatprep.subr.mxu0 0.0
    %63 = vmatpush1.msra.mxu0 0.0
    %64 = vmatprep.subr.mxu0 0.0
    %65 = vmatpush1.msra.mxu0 0.0
    %66 = vmatprep.subr.mxu0 0.0
    %67 = vmatpush1.msra.mxu0 0.0
    %68 = vmatprep.subr.mxu0 0.0
    %69 = vmatpush1.msra.mxu0 0.0
    %70 = vmatprep.subr.mxu0 0.0
    %71 = vmatpush1.msra.mxu0 0.0
    %72 = vmatprep.subr.mxu0 0.0
    %73 = vmatpush1.msra.mxu0 0.0
    %74 = vmatprep.subr.mxu0 0.0
    %75 = vmatpush1.msra.mxu0 0.0
    %76 = vmatprep.subr.mxu0 0.0
    %77 = vmatpush1.msra.mxu0 0.0
    %78 = vmatprep.subr.mxu0 0.0
    %79 = vmatpush1.msra.mxu0 0.0
    %80 = vmatprep.subr.mxu0 0.0
    %81 = vmatpush1.msra.mxu0 0.0
    %82 = vmatprep.subr.mxu0 0.0
    %83 = vmatpush1.msra.mxu0 0.0
    %84 = vmatprep.subr.mxu0 0.0
    %85 = vmatpush1.msra.mxu0 0.0
    %86 = vmatprep.subr.mxu0 0.0
    %87 = vmatpush1.msra.mxu0 0.0
    %88 = vmatprep.subr.mxu0 0.0
    %89 = vmatpush1.msra.mxu0 0.0
    %90 = vmatprep.subr.mxu0 0.0
    %91 = vmatpush1.msra.mxu0 0.0
    %92 = vmatprep.subr.mxu0 0.0
    %93 = vmatpush1.msra.mxu0 0.0
    %94 = vmatprep.subr.mxu0 0.0
    %95 = vmatpush1.msra.mxu0 0.0
    %96 = vmatprep.mubr.f32.mxu0 0.0
    %97 = vmatmul.mubr.f32.gmra.mrb[0].mxu0 %v26
    %v98 = vpop.f32.mrb[0].mxu0
    %v99 = vadd.f32 %v22, %v98
    %v100 = vpop.f32.mrb[0].mxu0
    %101 = vdwg.mxu0
    %v102 = vmax.f32 %v99, 0.0
    %vm103 = vcmask 517120
    %104 = vst.msk [vmem:[#allocation2] sm:$0x3] %vm103, %v102
    // Predicated region
    $region14: #{forward.3} parent=1 // pred_check
      _
    $region15: #{forward.3} parent=1 // pred_check_branch
      %106 = sbr.rel (0) target = $region17
    $region16: #{forward.3} parent=1 // pred_region
      %s108 = ssub.s32 32, 32
      %109 = vsyncadd [#allocation3], %s108
      %s111 = sshll.u32 [#allocation2], 4
      %s112 = int_to_ptr.vmem [resolvable:$true] %s111
      %114 = dma.vmem_to_hbm [thread:$0]  %s112, 32, %s3, [#allocation3]
    $region17: #{forward.3} parent=1 // pred_fallthru
      _
    // Predicated region
    $region18: #{forward.3} parent=1 // pred_check
      _
    $region19: #{forward.3} parent=1 // pred_check_branch
      %116 = sbr.rel (0) target = $region21
    $region20: #{forward.3} parent=1 // pred_region
      %117 = dma.done [#allocation3], 32
    $region21: #{forward.3} parent=1 // pred_fallthru
      _
    %118 = vsyncpa [#allocation3], 1

// kernel: forward.5
$region0: #{forward.5}
  #allocation0 [shape = 'u32[]', space=smem, size = 0x4, offset = 0x4, fixed_abs, tag = 'smem constant byte address 0x4 - core index']
  #allocation1 [shape = 'u32[144,128]{1,0:T(1,128)}', space=vmem, size = 0x12000, scoped, tag = 'internal scratch']
  %s0 = inlined_call_operand.hbm [shape: bf16[16,64], index: 0, kind: input, shape index: {}]
  %s1 = inlined_call_operand.hbm [shape: bf16[64,128], index: 1, kind: input, shape index: {}]
  %s2 = inlined_call_operand.hbm [shape: f32[1,128], index: 2, kind: input, shape index: {}]
  %s3 = inlined_call_operand.vmem [shape: f32[16,128], index: 3, kind: output, shape index: {}]
  %s4 = sld [smem:[#allocation0]]
  $region34: #{forward.5} parent=0
    _
  %s6 = ssub.s32 1, %s4
  %s7 = scalar_select 0, %s6, %s4
  $region1: #{forward.5} parent=0
    #allocation2 [shape = 'u8[4096]{0}', space=vmem, size = 0x1000, scoped, tag = 'input window, operand 0, single buffered']
    #allocation3 [shape = 's32[1]{0}', space=sflag, size = 0x4, scoped, tag = 'scoped memory for forward.5']
    #allocation4 [shape = 'u8[16384]{0}', space=vmem, size = 0x4000, scoped, tag = 'input window, operand 1, single buffered']
    #allocation5 [shape = 's32[1]{0}', space=sflag, size = 0x4, scoped, tag = 'scoped memory for forward.5']
    #allocation6 [shape = 'u8[512]{0}', space=vmem, size = 0x400, scoped, tag = 'input window, operand 2, single buffered']
    %8 = vsyncpa [#allocation3], 0
    %9 = vsyncpa [#allocation5], 0
    // Predicated region
    $region2: #{forward.5} parent=1 // pred_check
      _
    $region3: #{forward.5} parent=1 // pred_check_branch
      %11 = sbr.rel (0) target = $region5
    $region4: #{forward.5} parent=1 // pred_region
      %s13 = ssub.s32 128, 128
      %14 = vsyncadd [#allocation3], %s13
      %s15 = sshll.u32 [#allocation2], 4
      %s16 = int_to_ptr.vmem [resolvable:$true] %s15
      %21 = dma.hbm_to_vmem [thread:$0]  %s0, 128, %s16, [#allocation3], 64, 64, 4
    $region5: #{forward.5} parent=1 // pred_fallthru
      _
    // Predicated region
    $region6: #{forward.5} parent=1 // pred_check
      _
    $region7: #{forward.5} parent=1 // pred_check_branch
      %23 = sbr.rel (0) target = $region9
    $region8: #{forward.5} parent=1 // pred_region
      %s25 = ssub.s32 512, 512
      %26 = vsyncadd [#allocation5], %s25
      %s27 = sshll.u32 [#allocation4], 4
      %s28 = int_to_ptr.vmem [resolvable:$true] %s27
      %33 = dma.hbm_to_vmem [thread:$0]  %s1, 512, %s28, [#allocation5], 64, 64, 4
    $region9: #{forward.5} parent=1 // pred_fallthru
      _
    // Predicated region
    $region10: #{forward.5} parent=1 // pred_check
      _
    $region11: #{forward.5} parent=1 // pred_check_branch
      %35 = sbr.rel (0) target = $region13
    $region12: #{forward.5} parent=1 // pred_region
      %s37 = ssub.s32 16, 16
      %38 = vsyncadd [#allocation5], %s37
      %s40 = sshll.u32 [#allocation6], 4
      %s41 = int_to_ptr.vmem [resolvable:$true] %s40
      %43 = dma.hbm_to_vmem [thread:$0]  %s2, 16, %s41, [#allocation5]
    $region13: #{forward.5} parent=1 // pred_fallthru
      _
    // Predicated region
    $region14: #{forward.5} parent=1 // pred_check
      _
    $region15: #{forward.5} parent=1 // pred_check_branch
      %45 = sbr.rel (0) target = $region17
    $region16: #{forward.5} parent=1 // pred_region
      %46 = dma.done [#allocation3], 128
    $region17: #{forward.5} parent=1 // pred_fallthru
      _
    // Predicated region
    $region18: #{forward.5} parent=1 // pred_check
      _
    $region19: #{forward.5} parent=1 // pred_check_branch
      %48 = sbr.rel (0) target = $region21
    $region20: #{forward.5} parent=1 // pred_region
      %49 = dma.done [#allocation5], 512
    $region21: #{forward.5} parent=1 // pred_fallthru
      _
    // Predicated region
    $region22: #{forward.5} parent=1 // pred_check
      _
    $region23: #{forward.5} parent=1 // pred_check_branch
      %51 = sbr.rel (0) target = $region25
    $region24: #{forward.5} parent=1 // pred_region
      %52 = dma.done [#allocation5], 16
    $region25: #{forward.5} parent=1 // pred_fallthru
      _
    %v54 = vld [vmem:[#allocation2] sm:$0xf]
    %v55 = vld [vmem:[#allocation2 + $0x4] sm:$0xf]
    %v56 = vld [vmem:[#allocation4] sm:$0xf]
    %v57 = vld [vmem:[#allocation4 + $0x4] sm:$0xf]
    %v58 = vld [vmem:[#allocation4 + $0x8] sm:$0xf]
    %v59 = vld [vmem:[#allocation4 + $0xc] sm:$0xf]
    %v60 = vld [vmem:[#allocation4 + $0x10] sm:$0xf]
    %v61 = vld [vmem:[#allocation4 + $0x14] sm:$0xf]
    %v62 = vld [vmem:[#allocation4 + $0x18] sm:$0xf]
    %v63 = vld [vmem:[#allocation4 + $0x1c] sm:$0xf]
    %v64 = vld [vmem:[#allocation6] sm:$0x1]
    %v66 = vlaneseq
    %v67 = vshrl.u32 %v66, 7
    %v68 = vsub.s32 0, %v67
    %v69 = vrot.slane %v64, %v68
    %v73 = vunpack.c.l.b16 %v54
    %v74 = vunpack.c.l.b16 %v55
    %v75 = vpack.c.b16 %v74, %v73
    %v84 = vunpack.c.l.b16 %v56
    %v85 = vunpack.c.l.b16 %v57
    %v86 = vunpack.c.l.b16 %v58
    %v87 = vunpack.c.l.b16 %v59
    %v88 = vunpack.c.l.b16 %v60
    %v89 = vunpack.c.l.b16 %v61
    %v90 = vunpack.c.l.b16 %v62
    %v91 = vunpack.c.l.b16 %v63
    %v92 = vpack.c.b16 %v85, %v84
    %v93 = vpack.c.b16 %v87, %v86
    %v94 = vpack.c.b16 %v89, %v88
    %v95 = vpack.c.b16 %v91, %v90
    %vm100 = vcmask 523264
    %v102 = vsel %vm100, %v75, 0
    %104 = vmatprep.subr.bf16.mxu0 0
    %105 = vmatpush1.bf16.msra.mxu0 %v92
    %106 = vmatprep.subr.bf16.mxu0 0
    %107 = vmatpush1.bf16.msra.mxu0 %v93
    %108 = vmatprep.subr.bf16.mxu0 0
    %109 = vmatpush1.bf16.msra.mxu0 %v94
    %110 = vmatprep.subr.bf16.mxu0 0
    %111 = vmatpush1.bf16.msra.mxu0 %v95
    %112 = vmatprep.subr.bf16.mxu0 0
    %113 = vmatpush1.bf16.msra.mxu0 0
    %114 = vmatprep.subr.bf16.mxu0 0
    %115 = vmatpush1.bf16.msra.mxu0 0
    %116 = vmatprep.subr.bf16.mxu0 0
    %117 = vmatpush1.bf16.msra.mxu0 0
    %118 = vmatprep.subr.bf16.mxu0 0
    %119 = vmatpush1.bf16.msra.mxu0 0
    %120 = vmatprep.subr.bf16.mxu0 0
    %121 = vmatpush1.bf16.msra.mxu0 0
    %122 = vmatprep.subr.bf16.mxu0 0
    %123 = vmatpush1.bf16.msra.mxu0 0
    %124 = vmatprep.subr.bf16.mxu0 0
    %125 = vmatpush1.bf16.msra.mxu0 0
    %126 = vmatprep.subr.bf16.mxu0 0
    %127 = vmatpush1.bf16.msra.mxu0 0
    %128 = vmatprep.subr.bf16.mxu0 0
    %129 = vmatpush1.bf16.msra.mxu0 0
    %130 = vmatprep.subr.bf16.mxu0 0
    %131 = vmatpush1.bf16.msra.mxu0 0
    %132 = vmatprep.subr.bf16.mxu0 0
    %133 = vmatpush1.bf16.msra.mxu0 0
    %134 = vmatprep.subr.bf16.mxu0 0
    %135 = vmatpush1.bf16.msra.mxu0 0
    %136 = vmatprep.mubr.bf16.mxu0 0
    %137 = vmatmul.mubr.bf16.gmra.mrb[0].mxu0 %v102
    %v138 = vpop.f32.mrb[0].mxu0
    %v139 = vadd.f32 %v69, %v138
    %v140 = vpop.f32.mrb[0].mxu0
    %v141 = vpop.f32.mrb[0].mxu0
    %v142 = vadd.f32 %v69, %v141
    %v143 = vpop.f32.mrb[0].mxu0
    %144 = vdwg.mxu0
    %145 = vst [vmem:[%s3] sm:$0xff] %v139
    %146 = vst [vmem:[%s3 + $0x8] sm:$0xff] %v142
    // Predicated region
    $region26: #{forward.5} parent=1 // pred_check
      _
    $region27: #{forward.5} parent=1 // pred_check_branch
      %148 = sbr.rel (0) target = $region29
    $region28: #{forward.5} parent=1 // pred_region
      _
    $region29: #{forward.5} parent=1 // pred_fallthru
      _
    // Predicated region
    $region30: #{forward.5} parent=1 // pred_check
      _
    $region31: #{forward.5} parent=1 // pred_check_branch
      %150 = sbr.rel (0) target = $region33
    $region32: #{forward.5} parent=1 // pred_region
      _
    $region33: #{forward.5} parent=1 // pred_fallthru
      _
    %151 = vsyncpa [#allocation3], 1
    %152 = vsyncpa [#allocation5], 1

// kernel: forward.4
$region0: #{forward.4}
  #allocation0 [shape = 'u32[]', space=smem, size = 0x4, offset = 0x4, fixed_abs, tag = 'smem constant byte address 0x4 - core index']
  #allocation1 [shape = 'u32[144,128]{1,0:T(1,128)}', space=vmem, size = 0x12000, scoped, tag = 'internal scratch']
  #allocation2 [shape = 'f32[16,64]{1,0:T(8,128)}', space=vmem, size = 0x2000, scoped, tag = 'scratch operand']
  %s0 = inlined_call_operand.hbm [shape: f32[16,64], index: 0, kind: input, shape index: {}]
  %s1 = inlined_call_operand.hbm [shape: f32[2,64], index: 1, kind: input, shape index: {}]
  %s2 = inlined_call_operand.hbm [shape: bf16[2,64,64], index: 2, kind: input, shape index: {}]
  %s3 = inlined_call_operand.hbm [shape: f32[2,1,64], index: 3, kind: input, shape index: {}]
  %s4 = inlined_call_operand.hbm [shape: bf16[2,64,64], index: 4, kind: input, shape index: {}]
  %s5 = inlined_call_operand.hbm [shape: f32[2,1,64], index: 5, kind: input, shape index: {}]
  %s6 = inlined_call_operand.hbm [shape: bf16[2,64,64], index: 6, kind: input, shape index: {}]
  %s7 = inlined_call_operand.hbm [shape: f32[2,1,64], index: 7, kind: input, shape index: {}]
  %s8 = inlined_call_operand.hbm [shape: bf16[2,64,64], index: 8, kind: input, shape index: {}]
  %s9 = inlined_call_operand.hbm [shape: f32[2,1,64], index: 9, kind: input, shape index: {}]
  %s10 = inlined_call_operand.hbm [shape: bf16[2,64,64], index: 10, kind: input, shape index: {}]
  %s11 = inlined_call_operand.hbm [shape: f32[2,1,64], index: 11, kind: input, shape index: {}]
  %s12 = inlined_call_operand.hbm [shape: bf16[2,64,64], index: 12, kind: input, shape index: {}]
  %s13 = inlined_call_operand.hbm [shape: f32[2,1,64], index: 13, kind: input, shape index: {}]
  %s14 = inlined_call_operand.hbm [shape: bf16[2,64,2048], index: 14, kind: input, shape index: {}]
  %s15 = inlined_call_operand.hbm [shape: f32[2,1,2048], index: 15, kind: input, shape index: {}]
  %s16 = inlined_call_operand.hbm [shape: bf16[2,2048,64], index: 16, kind: input, shape index: {}]
  %s17 = inlined_call_operand.hbm [shape: f32[2,1,64], index: 17, kind: input, shape index: {}]
  %s18 = inlined_call_operand.hbm [shape: f32[2,3,64], index: 18, kind: input, shape index: {}]
  %s19 = inlined_call_operand.hbm [shape: f32[2,3,64], index: 19, kind: input, shape index: {}]
  %s20 = inlined_call_operand.hbm [shape: bf16[16,64], index: 20, kind: output, shape index: {}]
  %s21 = sld [smem:[#allocation0]]
  $region201: #{forward.4} parent=0
    _
  %s23 = ssub.s32 1, %s21
  %s24 = scalar_select 0, %s23, %s21
  $region1: #{forward.4} parent=0
    #allocation3 [shape = 'u8[8192]{0}', space=vmem, size = 0x2000, scoped, tag = 'input window, operand 0, single buffered']
    #allocation4 [shape = 's32[2]{0}', space=sflag, size = 0x8, scoped, tag = 'scoped memory for forward.4']
    #allocation5 [shape = 's32[2]{0}', space=sflag, size = 0x8, scoped, tag = 'scoped memory for forward.4']
    #allocation6 [shape = 'u8[1024]{0}', space=vmem, size = 0x400, scoped, tag = 'input window, operand 1, single buffered']
    #allocation7 [shape = 's32[1]{0}', space=sflag, size = 0x4, scoped, tag = 'scoped memory for forward.4']
    #allocation8 [shape = 'u8[32768]{0}', space=vmem, size = 0x8000, scoped, tag = 'input window, operand 2']
    #allocation9 [shape = 'u8[1024]{0}', space=vmem, size = 0x400, scoped, tag = 'input window, operand 3']
    #allocation10 [shape = 'u8[32768]{0}', space=vmem, size = 0x8000, scoped, tag = 'input window, operand 4']
    #allocation11 [shape = 'u8[1024]{0}', space=vmem, size = 0x400, scoped, tag = 'input window, operand 5']
    #allocation12 [shape = 'u8[32768]{0}', space=vmem, size = 0x8000, scoped, tag = 'input window, operand 6']
    #allocation13 [shape = 'u8[1024]{0}', space=vmem, size = 0x400, scoped, tag = 'input window, operand 7']
    #allocation14 [shape = 'u8[32768]{0}', space=vmem, size = 0x8000, scoped, tag = 'input window, operand 8']
    #allocation15 [shape = 'u8[1024]{0}', space=vmem, size = 0x400, scoped, tag = 'input window, operand 9']
    #allocation16 [shape = 'u8[32768]{0}', space=vmem, size = 0x8000, scoped, tag = 'input window, operand 10']
    #allocation17 [shape = 'u8[1024]{0}', space=vmem, size = 0x400, scoped, tag = 'input window, operand 11']
    #allocation18 [shape = 'u8[32768]{0}', space=vmem, size = 0x8000, scoped, tag = 'input window, operand 12']
    #allocation19 [shape = 'u8[1024]{0}', space=vmem, size = 0x400, scoped, tag = 'input window, operand 13']
    #allocation20 [shape = 'u8[524288]{0}', space=vmem, size = 0x80000, scoped, tag = 'input window, operand 14']
    #allocation21 [shape = 'u8[16384]{0}', space=vmem, size = 0x4000, scoped, tag = 'input window, operand 15']
    #allocation22 [shape = 'u8[1048576]{0}', space=vmem, size = 0x100000, scoped, tag = 'input window, operand 16']
    #allocation23 [shape = 'u8[1024]{0}', space=vmem, size = 0x400, scoped, tag = 'input window, operand 17']
    #allocation24 [shape = 'u8[4096]{0}', space=vmem, size = 0x1000, scoped, tag = 'input window, operand 18']
    #allocation25 [shape = 'u8[4096]{0}', space=vmem, size = 0x1000, scoped, tag = 'input window, operand 19']
    #allocation26 [shape = 'u8[4096]{0}', space=vmem, size = 0x1000, scoped, tag = 'output window, operand 0, single buffered']
    %25 = vsyncpa [#allocation4], 0
    %26 = vsyncpa [#allocation7], 0
    %27 = vsyncpa [#allocation5], 0
    loop: start=0, step=1, limit=4
    $region2: #{forward.4} parent=1 // loop_pre_header
      _
    $region3: #{forward.4} parent=1 // loop_header
      %s29 = sphi 0, %s33
      %p30 = scmp.ge.s32.totalorder %s29, 4
      %s37 = sphi 0, %s37
      %s39 = sphi 0, %s37
      %s40 = sphi 0, %s39
      %s54 = sphi 0, %s40
      %s58 = sphi 0, %s58
      %s60 = sphi 0, %s58
      %s61 = sphi 0, %s60
      %s75 = sphi 0, %s61
      %s81 = sphi 0, %s83
      %s84 = sphi 0, %s81
      %s85 = sphi 0, %s84
      %s101 = sphi 0, %s85
      %s107 = sphi 0, %s109
      %s110 = sphi 0, %s107
      %s111 = sphi 0, %s110
      %s127 = sphi 0, %s111
      %s133 = sphi 0, %s135
      %s136 = sphi 0, %s133
      %s137 = sphi 0, %s136
      %s153 = sphi 0, %s137
      %s159 = sphi 0, %s161
      %s162 = sphi 0, %s159
      %s163 = sphi 0, %s162
      %s179 = sphi 0, %s163
      %s185 = sphi 0, %s187
      %s188 = sphi 0, %s185
      %s189 = sphi 0, %s188
      %s205 = sphi 0, %s189
      %s211 = sphi 0, %s213
      %s214 = sphi 0, %s211
      %s215 = sphi 0, %s214
      %s231 = sphi 0, %s215
      %s237 = sphi 0, %s239
      %s240 = sphi 0, %s237
      %s241 = sphi 0, %s240
      %s257 = sphi 0, %s241
      %s263 = sphi 0, %s265
      %s266 = sphi 0, %s263
      %s267 = sphi 0, %s266
      %s283 = sphi 0, %s267
      %s289 = sphi 0, %s291
      %s292 = sphi 0, %s289
      %s293 = sphi 0, %s292
      %s309 = sphi 0, %s293
      %s315 = sphi 0, %s317
      %s318 = sphi 0, %s315
      %s319 = sphi 0, %s318
      %s335 = sphi 0, %s319
      %s341 = sphi 0, %s343
      %s344 = sphi 0, %s341
      %s345 = sphi 0, %s344
      %s361 = sphi 0, %s345
      %s367 = sphi 0, %s369
      %s370 = sphi 0, %s367
      %s371 = sphi 0, %s370
      %s387 = sphi 0, %s371
      %s393 = sphi 0, %s395
      %s396 = sphi 0, %s393
      %s397 = sphi 0, %s396
      %s413 = sphi 0, %s397
      %s419 = sphi 0, %s421
      %s422 = sphi 0, %s419
      %s423 = sphi 0, %s422
      %s439 = sphi 0, %s423
      %s445 = sphi 0, %s447
      %s448 = sphi 0, %s445
      %s449 = sphi 0, %s448
      %s465 = sphi 0, %s449
      %s471 = sphi 0, %s473
      %s474 = sphi 0, %s471
      %s475 = sphi 0, %s474
      %s491 = sphi 0, %s475
      %s497 = sphi 0, %s499
      %s500 = sphi 0, %s497
      %s501 = sphi 0, %s500
      %s517 = sphi 0, %s501
      %s523 = sphi 0, %s525
      %s526 = sphi 0, %s523
      %s527 = sphi 0, %s526
      %s543 = sphi 0, %s527
      %s547 = sphi 0, %s547
      %s549 = sphi 0, %s547
      %s550 = sphi 0, %s549
      %s564 = sphi 0, %s550
    $region4: #{forward.4} parent=1 // loop_header_branch
      %32 = sbr.rel (%p30) target = $region8
    $region5: #{forward.4} parent=1 // loop_body
      %s34 = ssub.s32 %s29, 1
      %s35 = ssub.s32 %s29, 2
      %s36 = sadd.s32 %s29, 1
      %s38 = sadd.s32 %s37, 1
      %p41 = scmp.eq.s32.totalorder %s29, 1
      %p42 = scmp.ne.s32.totalorder %s37, %s39
      %p43 = scmp.eq.s32.totalorder %s29, 0
      %p44 = por %p42, %p43
      %p45 = scmp.ne.s32.totalorder %s37, %s39
      %p46 = scmp.eq.s32.totalorder %s34, 1
      %p47 = por %p45, %p46
      %p48 = scmp.ne.s32.totalorder %s39, %s40
      %p49 = scmp.eq.s32.totalorder %s34, 0
      %p50 = por %p48, %p49
      %p51 = scmp.ne.s32.totalorder %s39, %s40
      %p52 = scmp.eq.s32.totalorder %s35, 1
      %p53 = por %p51, %p52
      %p55 = scmp.ne.s32.totalorder %s40, %s54
      %p56 = scmp.eq.s32.totalorder %s35, 0
      %p57 = por %p55, %p56
      %s59 = sadd.s32 %s58, 1
      %p62 = scmp.eq.s32.totalorder %s29, 1
      %p63 = scmp.ne.s32.totalorder %s58, %s60
      %p64 = scmp.eq.s32.totalorder %s29, 0
      %p65 = por %p63, %p64
      %p66 = scmp.ne.s32.totalorder %s58, %s60
      %p67 = scmp.eq.s32.totalorder %s34, 1
      %p68 = por %p66, %p67
      %p69 = scmp.ne.s32.totalorder %s60, %s61
      %p70 = scmp.eq.s32.totalorder %s34, 0
      %p71 = por %p69, %p70
      %p72 = scmp.ne.s32.totalorder %s60, %s61
      %p73 = scmp.eq.s32.totalorder %s35, 1
      %p74 = por %p72, %p73
      %p76 = scmp.ne.s32.totalorder %s61, %s75
      %p77 = scmp.eq.s32.totalorder %s35, 0
      %p78 = por %p76, %p77
      %s79 = ssub.s32 %s29, %s36
      %p80 = scmp.eq.s32.totalorder %s79, 0
      %s82 = sadd.s32 %s81, 1
      %s83 = scalar_select %p80, %s81, %s82
      %p86 = pneg %p80
      %p87 = scmp.eq.s32.totalorder %s29, 1
      %p88 = por %p86, %p87
      %p89 = scmp.ne.s32.totalorder %s81, %s84
      %p90 = scmp.eq.s32.totalorder %s29, 0
      %p91 = por %p89, %p90
      %p92 = scmp.ne.s32.totalorder %s81, %s84
      %p93 = scmp.eq.s32.totalorder %s34, 1
      %p94 = por %p92, %p93
      %p95 = scmp.ne.s32.totalorder %s84, %s85
      %p96 = scmp.eq.s32.totalorder %s34, 0
      %p97 = por %p95, %p96
      %p98 = scmp.ne.s32.totalorder %s84, %s85
      %p99 = scmp.eq.s32.totalorder %s35, 1
      %p100 = por %p98, %p99
      %p102 = scmp.ne.s32.totalorder %s85, %s101
      %p103 = scmp.eq.s32.totalorder %s35, 0
      %p104 = por %p102, %p103
      %s105 = ssub.s32 %s29, %s36
      %p106 = scmp.eq.s32.totalorder %s105, 0
      %s108 = sadd.s32 %s107, 1
      %s109 = scalar_select %p106, %s107, %s108
      %p112 = pneg %p106
      %p113 = scmp.eq.s32.totalorder %s29, 1
      %p114 = por %p112, %p113
      %p115 = scmp.ne.s32.totalorder %s107, %s110
      %p116 = scmp.eq.s32.totalorder %s29, 0
      %p117 = por %p115, %p116
      %p118 = scmp.ne.s32.totalorder %s107, %s110
      %p119 = scmp.eq.s32.totalorder %s34, 1
      %p120 = por %p118, %p119
      %p121 = scmp.ne.s32.totalorder %s110, %s111
      %p122 = scmp.eq.s32.totalorder %s34, 0
      %p123 = por %p121, %p122
      %p124 = scmp.ne.s32.totalorder %s110, %s111
      %p125 = scmp.eq.s32.totalorder %s35, 1
      %p126 = por %p124, %p125
      %p128 = scmp.ne.s32.totalorder %s111, %s127
      %p129 = scmp.eq.s32.totalorder %s35, 0
      %p130 = por %p128, %p129
      %s131 = ssub.s32 %s29, %s36
      %p132 = scmp.eq.s32.totalorder %s131, 0
      %s134 = sadd.s32 %s133, 1
      %s135 = scalar_select %p132, %s133, %s134
      %p138 = pneg %p132
      %p139 = scmp.eq.s32.totalorder %s29, 1
      %p140 = por %p138, %p139
      %p141 = scmp.ne.s32.totalorder %s133, %s136
      %p142 = scmp.eq.s32.totalorder %s29, 0
      %p143 = por %p141, %p142
      %p144 = scmp.ne.s32.totalorder %s133, %s136
      %p145 = scmp.eq.s32.totalorder %s34, 1
      %p146 = por %p144, %p145
      %p147 = scmp.ne.s32.totalorder %s136, %s137
      %p148 = scmp.eq.s32.totalorder %s34, 0
      %p149 = por %p147, %p148
      %p150 = scmp.ne.s32.totalorder %s136, %s137
      %p151 = scmp.eq.s32.totalorder %s35, 1
      %p152 = por %p150, %p151
      %p154 = scmp.ne.s32.totalorder %s137, %s153
      %p155 = scmp.eq.s32.totalorder %s35, 0
      %p156 = por %p154, %p155
      %s157 = ssub.s32 %s29, %s36
      %p158 = scmp.eq.s32.totalorder %s157, 0
      %s160 = sadd.s32 %s159, 1
      %s161 = scalar_select %p158, %s159, %s160
      %p164 = pneg %p158
      %p165 = scmp.eq.s32.totalorder %s29, 1
      %p166 = por %p164, %p165
      %p167 = scmp.ne.s32.totalorder %s159, %s162
      %p168 = scmp.eq.s32.totalorder %s29, 0
      %p169 = por %p167, %p168
      %p170 = scmp.ne.s32.totalorder %s159, %s162
      %p171 = scmp.eq.s32.totalorder %s34, 1
      %p172 = por %p170, %p171
      %p173 = scmp.ne.s32.totalorder %s162, %s163
      %p174 = scmp.eq.s32.totalorder %s34, 0
      %p175 = por %p173, %p174
      %p176 = scmp.ne.s32.totalorder %s162, %s163
      %p177 = scmp.eq.s32.totalorder %s35, 1
      %p178 = por %p176, %p177
      %p180 = scmp.ne.s32.totalorder %s163, %s179
      %p181 = scmp.eq.s32.totalorder %s35, 0
      %p182 = por %p180, %p181
      %s183 = ssub.s32 %s29, %s36
      %p184 = scmp.eq.s32.totalorder %s183, 0
      %s186 = sadd.s32 %s185, 1
      %s187 = scalar_select %p184, %s185, %s186
      %p190 = pneg %p184
      %p191 = scmp.eq.s32.totalorder %s29, 1
      %p192 = por %p190, %p191
      %p193 = scmp.ne.s32.totalorder %s185, %s188
      %p194 = scmp.eq.s32.totalorder %s29, 0
      %p195 = por %p193, %p194
      %p196 = scmp.ne.s32.totalorder %s185, %s188
      %p197 = scmp.eq.s32.totalorder %s34, 1
      %p198 = por %p196, %p197
      %p199 = scmp.ne.s32.totalorder %s188, %s189
      %p200 = scmp.eq.s32.totalorder %s34, 0
      %p201 = por %p199, %p200
      %p202 = scmp.ne.s32.totalorder %s188, %s189
      %p203 = scmp.eq.s32.totalorder %s35, 1
      %p204 = por %p202, %p203
      %p206 = scmp.ne.s32.totalorder %s189, %s205
      %p207 = scmp.eq.s32.totalorder %s35, 0
      %p208 = por %p206, %p207
      %s209 = ssub.s32 %s29, %s36
      %p210 = scmp.eq.s32.totalorder %s209, 0
      %s212 = sadd.s32 %s211, 1
      %s213 = scalar_select %p210, %s211, %s212
      %p216 = pneg %p210
      %p217 = scmp.eq.s32.totalorder %s29, 1
      %p218 = por %p216, %p217
      %p219 = scmp.ne.s32.totalorder %s211, %s214
      %p220 = scmp.eq.s32.totalorder %s29, 0
      %p221 = por %p219, %p220
      %p222 = scmp.ne.s32.totalorder %s211, %s214
      %p223 = scmp.eq.s32.totalorder %s34, 1
      %p224 = por %p222, %p223
      %p225 = scmp.ne.s32.totalorder %s214, %s215
      %p226 = scmp.eq.s32.totalorder %s34, 0
      %p227 = por %p225, %p226
      %p228 = scmp.ne.s32.totalorder %s214, %s215
      %p229 = scmp.eq.s32.totalorder %s35, 1
      %p230 = por %p228, %p229
      %p232 = scmp.ne.s32.totalorder %s215, %s231
      %p233 = scmp.eq.s32.totalorder %s35, 0
      %p234 = por %p232, %p233
      %s235 = ssub.s32 %s29, %s36
      %p236 = scmp.eq.s32.totalorder %s235, 0
      %s238 = sadd.s32 %s237, 1
      %s239 = scalar_select %p236, %s237, %s238
      %p242 = pneg %p236
      %p243 = scmp.eq.s32.totalorder %s29, 1
      %p244 = por %p242, %p243
      %p245 = scmp.ne.s32.totalorder %s237, %s240
      %p246 = scmp.eq.s32.totalorder %s29, 0
      %p247 = por %p245, %p246
      %p248 = scmp.ne.s32.totalorder %s237, %s240
      %p249 = scmp.eq.s32.totalorder %s34, 1
      %p250 = por %p248, %p249
      %p251 = scmp.ne.s32.totalorder %s240, %s241
      %p252 = scmp.eq.s32.totalorder %s34, 0
      %p253 = por %p251, %p252
      %p254 = scmp.ne.s32.totalorder %s240, %s241
      %p255 = scmp.eq.s32.totalorder %s35, 1
      %p256 = por %p254, %p255
      %p258 = scmp.ne.s32.totalorder %s241, %s257
      %p259 = scmp.eq.s32.totalorder %s35, 0
      %p260 = por %p258, %p259
      %s261 = ssub.s32 %s29, %s36
      %p262 = scmp.eq.s32.totalorder %s261, 0
      %s264 = sadd.s32 %s263, 1
      %s265 = scalar_select %p262, %s263, %s264
      %p268 = pneg %p262
      %p269 = scmp.eq.s32.totalorder %s29, 1
      %p270 = por %p268, %p269
      %p271 = scmp.ne.s32.totalorder %s263, %s266
      %p272 = scmp.eq.s32.totalorder %s29, 0
      %p273 = por %p271, %p272
      %p274 = scmp.ne.s32.totalorder %s263, %s266
      %p275 = scmp.eq.s32.totalorder %s34, 1
      %p276 = por %p274, %p275
      %p277 = scmp.ne.s32.totalorder %s266, %s267
      %p278 = scmp.eq.s32.totalorder %s34, 0
      %p279 = por %p277, %p278
      %p280 = scmp.ne.s32.totalorder %s266, %s267
      %p281 = scmp.eq.s32.totalorder %s35, 1
      %p282 = por %p280, %p281
      %p284 = scmp.ne.s32.totalorder %s267, %s283
      %p285 = scmp.eq.s32.totalorder %s35, 0
      %p286 = por %p284, %p285
      %s287 = ssub.s32 %s29, %s36
      %p288 = scmp.eq.s32.totalorder %s287, 0
      %s290 = sadd.s32 %s289, 1
      %s291 = scalar_select %p288, %s289, %s290
      %p294 = pneg %p288
      %p295 = scmp.eq.s32.totalorder %s29, 1
      %p296 = por %p294, %p295
      %p297 = scmp.ne.s32.totalorder %s289, %s292
      %p298 = scmp.eq.s32.totalorder %s29, 0
      %p299 = por %p297, %p298
      %p300 = scmp.ne.s32.totalorder %s289, %s292
      %p301 = scmp.eq.s32.totalorder %s34, 1
      %p302 = por %p300, %p301
      %p303 = scmp.ne.s32.totalorder %s292, %s293
      %p304 = scmp.eq.s32.totalorder %s34, 0
      %p305 = por %p303, %p304
      %p306 = scmp.ne.s32.totalorder %s292, %s293
      %p307 = scmp.eq.s32.totalorder %s35, 1
      %p308 = por %p306, %p307
      %p310 = scmp.ne.s32.totalorder %s293, %s309
      %p311 = scmp.eq.s32.totalorder %s35, 0
      %p312 = por %p310, %p311
      %s313 = ssub.s32 %s29, %s36
      %p314 = scmp.eq.s32.totalorder %s313, 0
      %s316 = sadd.s32 %s315, 1
      %s317 = scalar_select %p314, %s315, %s316
      %p320 = pneg %p314
      %p321 = scmp.eq.s32.totalorder %s29, 1
      %p322 = por %p320, %p321
      %p323 = scmp.ne.s32.totalorder %s315, %s318
      %p324 = scmp.eq.s32.totalorder %s29, 0
      %p325 = por %p323, %p324
      %p326 = scmp.ne.s32.totalorder %s315, %s318
      %p327 = scmp.eq.s32.totalorder %s34, 1
      %p328 = por %p326, %p327
      %p329 = scmp.ne.s32.totalorder %s318, %s319
      %p330 = scmp.eq.s32.totalorder %s34, 0
      %p331 = por %p329, %p330
      %p332 = scmp.ne.s32.totalorder %s318, %s319
      %p333 = scmp.eq.s32.totalorder %s35, 1
      %p334 = por %p332, %p333
      %p336 = scmp.ne.s32.totalorder %s319, %s335
      %p337 = scmp.eq.s32.totalorder %s35, 0
      %p338 = por %p336, %p337
      %s339 = ssub.s32 %s29, %s36
      %p340 = scmp.eq.s32.totalorder %s339, 0
      %s342 = sadd.s32 %s341, 1
      %s343 = scalar_select %p340, %s341, %s342
      %p346 = pneg %p340
      %p347 = scmp.eq.s32.totalorder %s29, 1
      %p348 = por %p346, %p347
      %p349 = scmp.ne.s32.totalorder %s341, %s344
      %p350 = scmp.eq.s32.totalorder %s29, 0
      %p351 = por %p349, %p350
      %p352 = scmp.ne.s32.totalorder %s341, %s344
      %p353 = scmp.eq.s32.totalorder %s34, 1
      %p354 = por %p352, %p353
      %p355 = scmp.ne.s32.totalorder %s344, %s345
      %p356 = scmp.eq.s32.totalorder %s34, 0
      %p357 = por %p355, %p356
      %p358 = scmp.ne.s32.totalorder %s344, %s345
      %p359 = scmp.eq.s32.totalorder %s35, 1
      %p360 = por %p358, %p359
      %p362 = scmp.ne.s32.totalorder %s345, %s361
      %p363 = scmp.eq.s32.totalorder %s35, 0
      %p364 = por %p362, %p363
      %s365 = ssub.s32 %s29, %s36
      %p366 = scmp.eq.s32.totalorder %s365, 0
      %s368 = sadd.s32 %s367, 1
      %s369 = scalar_select %p366, %s367, %s368
      %p372 = pneg %p366
      %p373 = scmp.eq.s32.totalorder %s29, 1
      %p374 = por %p372, %p373
      %p375 = scmp.ne.s32.totalorder %s367, %s370
      %p376 = scmp.eq.s32.totalorder %s29, 0
      %p377 = por %p375, %p376
      %p378 = scmp.ne.s32.totalorder %s367, %s370
      %p379 = scmp.eq.s32.totalorder %s34, 1
      %p380 = por %p378, %p379
      %p381 = scmp.ne.s32.totalorder %s370, %s371
      %p382 = scmp.eq.s32.totalorder %s34, 0
      %p383 = por %p381, %p382
      %p384 = scmp.ne.s32.totalorder %s370, %s371
      %p385 = scmp.eq.s32.totalorder %s35, 1
      %p386 = por %p384, %p385
      %p388 = scmp.ne.s32.totalorder %s371, %s387
      %p389 = scmp.eq.s32.totalorder %s35, 0
      %p390 = por %p388, %p389
      %s391 = ssub.s32 %s29, %s36
      %p392 = scmp.eq.s32.totalorder %s391, 0
      %s394 = sadd.s32 %s393, 1
      %s395 = scalar_select %p392, %s393, %s394
      %p398 = pneg %p392
      %p399 = scmp.eq.s32.totalorder %s29, 1
      %p400 = por %p398, %p399
      %p401 = scmp.ne.s32.totalorder %s393, %s396
      %p402 = scmp.eq.s32.totalorder %s29, 0
      %p403 = por %p401, %p402
      %p404 = scmp.ne.s32.totalorder %s393, %s396
      %p405 = scmp.eq.s32.totalorder %s34, 1
      %p406 = por %p404, %p405
      %p407 = scmp.ne.s32.totalorder %s396, %s397
      %p408 = scmp.eq.s32.totalorder %s34, 0
      %p409 = por %p407, %p408
      %p410 = scmp.ne.s32.totalorder %s396, %s397
      %p411 = scmp.eq.s32.totalorder %s35, 1
      %p412 = por %p410, %p411
      %p414 = scmp.ne.s32.totalorder %s397, %s413
      %p415 = scmp.eq.s32.totalorder %s35, 0
      %p416 = por %p414, %p415
      %s417 = ssub.s32 %s29, %s36
      %p418 = scmp.eq.s32.totalorder %s417, 0
      %s420 = sadd.s32 %s419, 1
      %s421 = scalar_select %p418, %s419, %s420
      %p424 = pneg %p418
      %p425 = scmp.eq.s32.totalorder %s29, 1
      %p426 = por %p424, %p425
      %p427 = scmp.ne.s32.totalorder %s419, %s422
      %p428 = scmp.eq.s32.totalorder %s29, 0
      %p429 = por %p427, %p428
      %p430 = scmp.ne.s32.totalorder %s419, %s422
      %p431 = scmp.eq.s32.totalorder %s34, 1
      %p432 = por %p430, %p431
      %p433 = scmp.ne.s32.totalorder %s422, %s423
      %p434 = scmp.eq.s32.totalorder %s34, 0
      %p435 = por %p433, %p434
      %p436 = scmp.ne.s32.totalorder %s422, %s423
      %p437 = scmp.eq.s32.totalorder %s35, 1
      %p438 = por %p436, %p437
      %p440 = scmp.ne.s32.totalorder %s423, %s439
      %p441 = scmp.eq.s32.totalorder %s35, 0
      %p442 = por %p440, %p441
      %s443 = ssub.s32 %s29, %s36
      %p444 = scmp.eq.s32.totalorder %s443, 0
      %s446 = sadd.s32 %s445, 1
      %s447 = scalar_select %p444, %s445, %s446
      %p450 = pneg %p444
      %p451 = scmp.eq.s32.totalorder %s29, 1
      %p452 = por %p450, %p451
      %p453 = scmp.ne.s32.totalorder %s445, %s448
      %p454 = scmp.eq.s32.totalorder %s29, 0
      %p455 = por %p453, %p454
      %p456 = scmp.ne.s32.totalorder %s445, %s448
      %p457 = scmp.eq.s32.totalorder %s34, 1
      %p458 = por %p456, %p457
      %p459 = scmp.ne.s32.totalorder %s448, %s449
      %p460 = scmp.eq.s32.totalorder %s34, 0
      %p461 = por %p459, %p460
      %p462 = scmp.ne.s32.totalorder %s448, %s449
      %p463 = scmp.eq.s32.totalorder %s35, 1
      %p464 = por %p462, %p463
      %p466 = scmp.ne.s32.totalorder %s449, %s465
      %p467 = scmp.eq.s32.totalorder %s35, 0
      %p468 = por %p466, %p467
      %s469 = ssub.s32 %s29, %s36
      %p470 = scmp.eq.s32.totalorder %s469, 0
      %s472 = sadd.s32 %s471, 1
      %s473 = scalar_select %p470, %s471, %s472
      %p476 = pneg %p470
      %p477 = scmp.eq.s32.totalorder %s29, 1
      %p478 = por %p476, %p477
      %p479 = scmp.ne.s32.totalorder %s471, %s474
      %p480 = scmp.eq.s32.totalorder %s29, 0
      %p481 = por %p479, %p480
      %p482 = scmp.ne.s32.totalorder %s471, %s474
      %p483 = scmp.eq.s32.totalorder %s34, 1
      %p484 = por %p482, %p483
      %p485 = scmp.ne.s32.totalorder %s474, %s475
      %p486 = scmp.eq.s32.totalorder %s34, 0
      %p487 = por %p485, %p486
      %p488 = scmp.ne.s32.totalorder %s474, %s475
      %p489 = scmp.eq.s32.totalorder %s35, 1
      %p490 = por %p488, %p489
      %p492 = scmp.ne.s32.totalorder %s475, %s491
      %p493 = scmp.eq.s32.totalorder %s35, 0
      %p494 = por %p492, %p493
      %s495 = ssub.s32 %s29, %s36
      %p496 = scmp.eq.s32.totalorder %s495, 0
      %s498 = sadd.s32 %s497, 1
      %s499 = scalar_select %p496, %s497, %s498
      %p502 = pneg %p496
      %p503 = scmp.eq.s32.totalorder %s29, 1
      %p504 = por %p502, %p503
      %p505 = scmp.ne.s32.totalorder %s497, %s500
      %p506 = scmp.eq.s32.totalorder %s29, 0
      %p507 = por %p505, %p506
      %p508 = scmp.ne.s32.totalorder %s497, %s500
      %p509 = scmp.eq.s32.totalorder %s34, 1
      %p510 = por %p508, %p509
      %p511 = scmp.ne.s32.totalorder %s500, %s501
      %p512 = scmp.eq.s32.totalorder %s34, 0
      %p513 = por %p511, %p512
      %p514 = scmp.ne.s32.totalorder %s500, %s501
      %p515 = scmp.eq.s32.totalorder %s35, 1
      %p516 = por %p514, %p515
      %p518 = scmp.ne.s32.totalorder %s501, %s517
      %p519 = scmp.eq.s32.totalorder %s35, 0
      %p520 = por %p518, %p519
      %s521 = ssub.s32 %s29, %s36
      %p522 = scmp.eq.s32.totalorder %s521, 0
      %s524 = sadd.s32 %s523, 1
      %s525 = scalar_select %p522, %s523, %s524
      %p528 = pneg %p522
      %p529 = scmp.eq.s32.totalorder %s29, 1
      %p530 = por %p528, %p529
      %p531 = scmp.ne.s32.totalorder %s523, %s526
      %p532 = scmp.eq.s32.totalorder %s29, 0
      %p533 = por %p531, %p532
      %p534 = scmp.ne.s32.totalorder %s523, %s526
      %p535 = scmp.eq.s32.totalorder %s34, 1
      %p536 = por %p534, %p535
      %p537 = scmp.ne.s32.totalorder %s526, %s527
      %p538 = scmp.eq.s32.totalorder %s34, 0
      %p539 = por %p537, %p538
      %p540 = scmp.ne.s32.totalorder %s526, %s527
      %p541 = scmp.eq.s32.totalorder %s35, 1
      %p542 = por %p540, %p541
      %p544 = scmp.ne.s32.totalorder %s527, %s543
      %p545 = scmp.eq.s32.totalorder %s35, 0
      %p546 = por %p544, %p545
      %s548 = sadd.s32 %s547, 1
      %p551 = scmp.eq.s32.totalorder %s29, 1
      %p552 = scmp.ne.s32.totalorder %s547, %s549
      %p553 = scmp.eq.s32.totalorder %s29, 0
      %p554 = por %p552, %p553
      %p555 = scmp.ne.s32.totalorder %s547, %s549
      %p556 = scmp.eq.s32.totalorder %s34, 1
      %p557 = por %p555, %p556
      %p558 = scmp.ne.s32.totalorder %s549, %s550
      %p559 = scmp.eq.s32.totalorder %s34, 0
      %p560 = por %p558, %p559
      %p561 = scmp.ne.s32.totalorder %s549, %s550
      %p562 = scmp.eq.s32.totalorder %s35, 1
      %p563 = por %p561, %p562
      %p565 = scmp.ne.s32.totalorder %s550, %s564
      %p566 = scmp.eq.s32.totalorder %s35, 0
      %p567 = por %p565, %p566
      %p568 = scmp.le.s32.totalorder 1, %s29
      %p569 = scmp.lt.s32.totalorder %s29, 3
      %p570 = pnand %p568, %p569
      %p571 = pneg %p570
      // Predicated region
      $region9: #{forward.4} parent=5 // pred_check
        _
      $region10: #{forward.4} parent=5 // pred_check_branch
        %573 = sbr.rel (%p570) target = $region12
      $region11: #{forward.4} parent=5 // pred_region
        %s574 = ssub.s32 %s29, 1
        // Predicated region
        $region13: #{forward.4} parent=11 // pred_check
          %p575 = pneg %p50
        $region14: #{forward.4} parent=11 // pred_check_branch
          %577 = sbr.rel (%p575) target = $region16
        $region15: #{forward.4} parent=11 // pred_region
          %s579 = ssub.s32 256, 256
          %580 = vsyncadd [#allocation4], %s579
          %s581 = sshll.u32 [#allocation3], 4
          %s582 = int_to_ptr.vmem [resolvable:$true] %s581
          %587 = dma.hbm_to_vmem [thread:$0]  %s0, 256, %s582, [#allocation4], 128, 128, 8
        $region16: #{forward.4} parent=11 // pred_fallthru
          _
        // Predicated region
        $region17: #{forward.4} parent=11 // pred_check
          %p588 = pneg %p71
        $region18: #{forward.4} parent=11 // pred_check_branch
          %590 = sbr.rel (%p588) target = $region20
        $region19: #{forward.4} parent=11 // pred_region
          %s592 = ssub.s32 32, 32
          %593 = vsyncadd [#allocation7], %s592
          %s595 = sshll.u32 [#allocation6], 4
          %s596 = int_to_ptr.vmem [resolvable:$true] %s595
          %598 = dma.hbm_to_vmem [thread:$0]  %s1, 32, %s596, [#allocation7]
        $region20: #{forward.4} parent=11 // pred_fallthru
          _
      $region12: #{forward.4} parent=5 // pred_fallthru
        _
      %p599 = scmp.lt.s32.totalorder %s29, 2
      // Predicated region
      $region21: #{forward.4} parent=5 // pred_check
        %p600 = pneg %p599
      $region22: #{forward.4} parent=5 // pred_check_branch
        %602 = sbr.rel (%p600) target = $region24
      $region23: #{forward.4} parent=5 // pred_region
        // Predicated region
        $region25: #{forward.4} parent=23 // pred_check
          %p603 = pneg %p91
        $region26: #{forward.4} parent=23 // pred_check_branch
          %605 = sbr.rel (%p603) target = $region28
        $region27: #{forward.4} parent=23 // pred_region
          %s606 = sand.u32 %s29, 1
          %s607 = scalar_lea.sflag [#allocation4], %s606
          %s608 = sand.u32 %s81, 1
          %s609 = smul.addr %s608, 32
          %s610 = scalar_lea.vmem [#allocation8], %s609
          %s612 = ssub.s32 512, 512
          %613 = vsyncadd %s607, %s612
          %s614 = smul.addr %s29, 8
          %s615 = smul.addr %s614, 64
          %s616 = scalar_lea.hbm %s2, %s615
          %s617 = sshll.u32 %s610, 4
          %s618 = int_to_ptr.vmem [resolvable:$true] %s617
          %623 = dma.hbm_to_vmem [thread:$0]  %s616, 512, %s618, %s607, 64, 64, 4
        $region28: #{forward.4} parent=23 // pred_fallthru
          _
        // Predicated region
        $region29: #{forward.4} parent=23 // pred_check
          %p624 = pneg %p117
        $region30: #{forward.4} parent=23 // pred_check_branch
          %626 = sbr.rel (%p624) target = $region32
        $region31: #{forward.4} parent=23 // pred_region
          %s627 = sand.u32 %s29, 1
          %s628 = scalar_lea.sflag [#allocation4], %s627
          %s629 = sand.u32 %s107, 1
          %s630 = scalar_lea.vmem [#allocation9], %s629
          %s632 = ssub.s32 16, 16
          %633 = vsyncadd %s628, %s632
          %s634 = smul.addr %s29, 16
          %s635 = scalar_lea.hbm %s3, %s634
          %s637 = sshll.u32 %s630, 4
          %s638 = int_to_ptr.vmem [resolvable:$true] %s637
          %640 = dma.hbm_to_vmem [thread:$0]  %s635, 16, %s638, %s628
        $region32: #{forward.4} parent=23 // pred_fallthru
          _
        // Predicated region
        $region33: #{forward.4} parent=23 // pred_check
          %p641 = pneg %p143
        $region34: #{forward.4} parent=23 // pred_check_branch
          %643 = sbr.rel (%p641) target = $region36
        $region35: #{forward.4} parent=23 // pred_region
          %s644 = sand.u32 %s29, 1
          %s645 = scalar_lea.sflag [#allocation4], %s644
          %s646 = sand.u32 %s133, 1
          %s647 = smul.addr %s646, 32
          %s648 = scalar_lea.vmem [#allocation10], %s647
          %s650 = ssub.s32 512, 512
          %651 = vsyncadd %s645, %s650
          %s652 = smul.addr %s29, 8
          %s653 = smul.addr %s652, 64
          %s654 = scalar_lea.hbm %s4, %s653
          %s655 = sshll.u32 %s648, 4
          %s656 = int_to_ptr.vmem [resolvable:$true] %s655
          %661 = dma.hbm_to_vmem [thread:$0]  %s654, 512, %s656, %s645, 64, 64, 4
        $region36: #{forward.4} parent=23 // pred_fallthru
          _
        // Predicated region
        $region37: #{forward.4} parent=23 // pred_check
          %p662 = pneg %p169
        $region38: #{forward.4} parent=23 // pred_check_branch
          %664 = sbr.rel (%p662) target = $region40
        $region39: #{forward.4} parent=23 // pred_region
          %s665 = sand.u32 %s29, 1
          %s666 = scalar_lea.sflag [#allocation4], %s665
          %s667 = sand.u32 %s159, 1
          %s668 = scalar_lea.vmem [#allocation11], %s667
          %s670 = ssub.s32 16, 16
          %671 = vsyncadd %s666, %s670
          %s672 = smul.addr %s29, 16
          %s673 = scalar_lea.hbm %s5, %s672
          %s675 = sshll.u32 %s668, 4
          %s676 = int_to_ptr.vmem [resolvable:$true] %s675
          %678 = dma.hbm_to_vmem [thread:$0]  %s673, 16, %s676, %s666
        $region40: #{forward.4} parent=23 // pred_fallthru
          _
        // Predicated region
        $region41: #{forward.4} parent=23 // pred_check
          %p679 = pneg %p195
        $region42: #{forward.4} parent=23 // pred_check_branch
          %681 = sbr.rel (%p679) target = $region44
        $region43: #{forward.4} parent=23 // pred_region
          %s682 = sand.u32 %s29, 1
          %s683 = scalar_lea.sflag [#allocation4], %s682
          %s684 = sand.u32 %s185, 1
          %s685 = smul.addr %s684, 32
          %s686 = scalar_lea.vmem [#allocation12], %s685
          %s688 = ssub.s32 512, 512
          %689 = vsyncadd %s683, %s688
          %s690 = smul.addr %s29, 8
          %s691 = smul.addr %s690, 64
          %s692 = scalar_lea.hbm %s6, %s691
          %s693 = sshll.u32 %s686, 4
          %s694 = int_to_ptr.vmem [resolvable:$true] %s693
          %699 = dma.hbm_to_vmem [thread:$0]  %s692, 512, %s694, %s683, 64, 64, 4
        $region44: #{forward.4} parent=23 // pred_fallthru
          _
        // Predicated region
        $region45: #{forward.4} parent=23 // pred_check
          %p700 = pneg %p221
        $region46: #{forward.4} parent=23 // pred_check_branch
          %702 = sbr.rel (%p700) target = $region48
        $region47: #{forward.4} parent=23 // pred_region
          %s703 = sand.u32 %s29, 1
          %s704 = scalar_lea.sflag [#allocation4], %s703
          %s705 = sand.u32 %s211, 1
          %s706 = scalar_lea.vmem [#allocation13], %s705
          %s708 = ssub.s32 16, 16
          %709 = vsyncadd %s704, %s708
          %s710 = smul.addr %s29, 16
          %s711 = scalar_lea.hbm %s7, %s710
          %s713 = sshll.u32 %s706, 4
          %s714 = int_to_ptr.vmem [resolvable:$true] %s713
          %716 = dma.hbm_to_vmem [thread:$0]  %s711, 16, %s714, %s704
        $region48: #{forward.4} parent=23 // pred_fallthru
          _
        // Predicated region
        $region49: #{forward.4} parent=23 // pred_check
          %p717 = pneg %p247
        $region50: #{forward.4} parent=23 // pred_check_branch
          %719 = sbr.rel (%p717) target = $region52
        $region51: #{forward.4} parent=23 // pred_region
          %s720 = sand.u32 %s29, 1
          %s721 = scalar_lea.sflag [#allocation4], %s720
          %s722 = sand.u32 %s237, 1
          %s723 = smul.addr %s722, 32
          %s724 = scalar_lea.vmem [#allocation14], %s723
          %s726 = ssub.s32 512, 512
          %727 = vsyncadd %s721, %s726
          %s728 = smul.addr %s29, 8
          %s729 = smul.addr %s728, 64
          %s730 = scalar_lea.hbm %s8, %s729
          %s731 = sshll.u32 %s724, 4
          %s732 = int_to_ptr.vmem [resolvable:$true] %s731
          %737 = dma.hbm_to_vmem [thread:$0]  %s730, 512, %s732, %s721, 64, 64, 4
        $region52: #{forward.4} parent=23 // pred_fallthru
          _
        // Predicated region
        $region53: #{forward.4} parent=23 // pred_check
          %p738 = pneg %p273
        $region54: #{forward.4} parent=23 // pred_check_branch
          %740 = sbr.rel (%p738) target = $region56
        $region55: #{forward.4} parent=23 // pred_region
          %s741 = sand.u32 %s29, 1
          %s742 = scalar_lea.sflag [#allocation4], %s741
          %s743 = sand.u32 %s263, 1
          %s744 = scalar_lea.vmem [#allocation15], %s743
          %s746 = ssub.s32 16, 16
          %747 = vsyncadd %s742, %s746
          %s748 = smul.addr %s29, 16
          %s749 = scalar_lea.hbm %s9, %s748
          %s751 = sshll.u32 %s744, 4
          %s752 = int_to_ptr.vmem [resolvable:$true] %s751
          %754 = dma.hbm_to_vmem [thread:$0]  %s749, 16, %s752, %s742
        $region56: #{forward.4} parent=23 // pred_fallthru
          _
        // Predicated region
        $region57: #{forward.4} parent=23 // pred_check
          %p755 = pneg %p299
        $region58: #{forward.4} parent=23 // pred_check_branch
          %757 = sbr.rel (%p755) target = $region60
        $region59: #{forward.4} parent=23 // pred_region
          %s758 = sand.u32 %s29, 1
          %s759 = scalar_lea.sflag [#allocation4], %s758
          %s760 = sand.u32 %s289, 1
          %s761 = smul.addr %s760, 32
          %s762 = scalar_lea.vmem [#allocation16], %s761
          %s764 = ssub.s32 512, 512
          %765 = vsyncadd %s759, %s764
          %s766 = smul.addr %s29, 8
          %s767 = smul.addr %s766, 64
          %s768 = scalar_lea.hbm %s10, %s767
          %s769 = sshll.u32 %s762, 4
          %s770 = int_to_ptr.vmem [resolvable:$true] %s769
          %775 = dma.hbm_to_vmem [thread:$0]  %s768, 512, %s770, %s759, 64, 64, 4
        $region60: #{forward.4} parent=23 // pred_fallthru
          _
        // Predicated region
        $region61: #{forward.4} parent=23 // pred_check
          %p776 = pneg %p325
        $region62: #{forward.4} parent=23 // pred_check_branch
          %778 = sbr.rel (%p776) target = $region64
        $region63: #{forward.4} parent=23 // pred_region
          %s779 = sand.u32 %s29, 1
          %s780 = scalar_lea.sflag [#allocation4], %s779
          %s781 = sand.u32 %s315, 1
          %s782 = scalar_lea.vmem [#allocation17], %s781
          %s784 = ssub.s32 16, 16
          %785 = vsyncadd %s780, %s784
          %s786 = smul.addr %s29, 16
          %s787 = scalar_lea.hbm %s11, %s786
          %s789 = sshll.u32 %s782, 4
          %s790 = int_to_ptr.vmem [resolvable:$true] %s789
          %792 = dma.hbm_to_vmem [thread:$0]  %s787, 16, %s790, %s780
        $region64: #{forward.4} parent=23 // pred_fallthru
          _
        // Predicated region
        $region65: #{forward.4} parent=23 // pred_check
          %p793 = pneg %p351
        $region66: #{forward.4} parent=23 // pred_check_branch
          %795 = sbr.rel (%p793) target = $region68
        $region67: #{forward.4} parent=23 // pred_region
          %s796 = sand.u32 %s29, 1
          %s797 = scalar_lea.sflag [#allocation4], %s796
          %s798 = sand.u32 %s341, 1
          %s799 = smul.addr %s798, 32
          %s800 = scalar_lea.vmem [#allocation18], %s799
          %s802 = ssub.s32 512, 512
          %803 = vsyncadd %s797, %s802
          %s804 = smul.addr %s29, 8
          %s805 = smul.addr %s804, 64
          %s806 = scalar_lea.hbm %s12, %s805
          %s807 = sshll.u32 %s800, 4
          %s808 = int_to_ptr.vmem [resolvable:$true] %s807
          %813 = dma.hbm_to_vmem [thread:$0]  %s806, 512, %s808, %s797, 64, 64, 4
        $region68: #{forward.4} parent=23 // pred_fallthru
          _
        // Predicated region
        $region69: #{forward.4} parent=23 // pred_check
          %p814 = pneg %p377
        $region70: #{forward.4} parent=23 // pred_check_branch
          %816 = sbr.rel (%p814) target = $region72
        $region71: #{forward.4} parent=23 // pred_region
          %s817 = sand.u32 %s29, 1
          %s818 = scalar_lea.sflag [#allocation4], %s817
          %s819 = sand.u32 %s367, 1
          %s820 = scalar_lea.vmem [#allocation19], %s819
          %s822 = ssub.s32 16, 16
          %823 = vsyncadd %s818, %s822
          %s824 = smul.addr %s29, 16
          %s825 = scalar_lea.hbm %s13, %s824
          %s827 = sshll.u32 %s820, 4
          %s828 = int_to_ptr.vmem [resolvable:$true] %s827
          %830 = dma.hbm_to_vmem [thread:$0]  %s825, 16, %s828, %s818
        $region72: #{forward.4} parent=23 // pred_fallthru
          _
        // Predicated region
        $region73: #{forward.4} parent=23 // pred_check
          %p831 = pneg %p403
        $region74: #{forward.4} parent=23 // pred_check_branch
          %833 = sbr.rel (%p831) target = $region76
        $region75: #{forward.4} parent=23 // pred_region
          %s834 = sand.u32 %s29, 1
          %s835 = scalar_lea.sflag [#allocation4], %s834
          %s836 = sand.u32 %s393, 1
          %s837 = smul.addr %s836, 512
          %s838 = scalar_lea.vmem [#allocation20], %s837
          %s840 = ssub.s32 8192, 8192
          %841 = vsyncadd %s835, %s840
          %s842 = smul.addr %s29, 128
          %s843 = smul.addr %s842, 64
          %s844 = scalar_lea.hbm %s14, %s843
          %s845 = sshll.u32 %s838, 4
          %s846 = int_to_ptr.vmem [resolvable:$true] %s845
          %851 = dma.hbm_to_vmem [thread:$0]  %s844, 8192, %s846, %s835, 1024, 1024, 64
        $region76: #{forward.4} parent=23 // pred_fallthru
          _
        // Predicated region
        $region77: #{forward.4} parent=23 // pred_check
          %p852 = pneg %p429
        $region78: #{forward.4} parent=23 // pred_check_branch
          %854 = sbr.rel (%p852) target = $region80
        $region79: #{forward.4} parent=23 // pred_region
          %s855 = sand.u32 %s29, 1
          %s856 = scalar_lea.sflag [#allocation4], %s855
          %s857 = sand.u32 %s419, 1
          %s858 = smul.addr %s857, 16
          %s859 = scalar_lea.vmem [#allocation21], %s858
          %s861 = ssub.s32 256, 256
          %862 = vsyncadd %s856, %s861
          %s863 = smul.addr %s29, 16
          %s864 = smul.addr %s863, 16
          %s865 = scalar_lea.hbm %s15, %s864
          %s867 = sshll.u32 %s859, 4
          %s868 = int_to_ptr.vmem [resolvable:$true] %s867
          %870 = dma.hbm_to_vmem [thread:$0]  %s865, 256, %s868, %s856
        $region80: #{forward.4} parent=23 // pred_fallthru
          _
        // Predicated region
        $region81: #{forward.4} parent=23 // pred_check
          %p871 = pneg %p455
        $region82: #{forward.4} parent=23 // pred_check_branch
          %873 = sbr.rel (%p871) target = $region84
        $region83: #{forward.4} parent=23 // pred_region
          %s874 = sand.u32 %s29, 1
          %s875 = scalar_lea.sflag [#allocation4], %s874
          %s876 = sand.u32 %s445, 1
          %s877 = smul.addr %s876, 1024
          %s878 = scalar_lea.vmem [#allocation22], %s877
          %s880 = ssub.s32 16384, 16384
          %881 = vsyncadd %s875, %s880
          %s882 = smul.addr %s29, 256
          %s883 = smul.addr %s882, 64
          %s884 = scalar_lea.hbm %s16, %s883
          %s885 = sshll.u32 %s878, 4
          %s886 = int_to_ptr.vmem [resolvable:$true] %s885
          %891 = dma.hbm_to_vmem [thread:$0]  %s884, 16384, %s886, %s875, 64, 64, 4
        $region84: #{forward.4} parent=23 // pred_fallthru
          _
        // Predicated region
        $region85: #{forward.4} parent=23 // pred_check
          %p892 = pneg %p481
        $region86: #{forward.4} parent=23 // pred_check_branch
          %894 = sbr.rel (%p892) target = $region88
        $region87: #{forward.4} parent=23 // pred_region
          %s895 = sand.u32 %s29, 1
          %s896 = scalar_lea.sflag [#allocation4], %s895
          %s897 = sand.u32 %s471, 1
          %s898 = scalar_lea.vmem [#allocation23], %s897
          %s900 = ssub.s32 16, 16
          %901 = vsyncadd %s896, %s900
          %s902 = smul.addr %s29, 16
          %s903 = scalar_lea.hbm %s17, %s902
          %s905 = sshll.u32 %s898, 4
          %s906 = int_to_ptr.vmem [resolvable:$true] %s905
          %908 = dma.hbm_to_vmem [thread:$0]  %s903, 16, %s906, %s896
        $region88: #{forward.4} parent=23 // pred_fallthru
          _
        // Predicated region
        $region89: #{forward.4} parent=23 // pred_check
          %p909 = pneg %p507
        $region90: #{forward.4} parent=23 // pred_check_branch
          %911 = sbr.rel (%p909) target = $region92
        $region91: #{forward.4} parent=23 // pred_region
          %s912 = sand.u32 %s29, 1
          %s913 = scalar_lea.sflag [#allocation4], %s912
          %s914 = sand.u32 %s497, 1
          %s915 = smul.addr %s914, 4
          %s916 = scalar_lea.vmem [#allocation24], %s915
          %s918 = ssub.s32 64, 64
          %919 = vsyncadd %s913, %s918
          %s920 = smul.addr %s29, 64
          %s921 = scalar_lea.hbm %s18, %s920
          %s923 = sshll.u32 %s916, 4
          %s924 = int_to_ptr.vmem [resolvable:$true] %s923
          %926 = dma.hbm_to_vmem [thread:$0]  %s921, 64, %s924, %s913
        $region92: #{forward.4} parent=23 // pred_fallthru
          _
        // Predicated region
        $region93: #{forward.4} parent=23 // pred_check
          %p927 = pneg %p533
        $region94: #{forward.4} parent=23 // pred_check_branch
          %929 = sbr.rel (%p927) target = $region96
        $region95: #{forward.4} parent=23 // pred_region
          %s930 = sand.u32 %s29, 1
          %s931 = scalar_lea.sflag [#allocation4], %s930
          %s932 = sand.u32 %s523, 1
          %s933 = smul.addr %s932, 4
          %s934 = scalar_lea.vmem [#allocation25], %s933
          %s936 = ssub.s32 64, 64
          %937 = vsyncadd %s931, %s936
          %s938 = smul.addr %s29, 64
          %s939 = scalar_lea.hbm %s19, %s938
          %s941 = sshll.u32 %s934, 4
          %s942 = int_to_ptr.vmem [resolvable:$true] %s941
          %944 = dma.hbm_to_vmem [thread:$0]  %s939, 64, %s942, %s931
        $region96: #{forward.4} parent=23 // pred_fallthru
          _
      $region24: #{forward.4} parent=5 // pred_fallthru
        _
      %p945 = scmp.le.s32.totalorder 1, %s29
      %p946 = scmp.lt.s32.totalorder %s29, 3
      %p947 = pnand %p945, %p946
      %p948 = pneg %p947
      // Predicated region
      $region97: #{forward.4} parent=5 // pred_check
        _
      $region98: #{forward.4} parent=5 // pred_check_branch
        %950 = sbr.rel (%p947) target = $region100
      $region99: #{forward.4} parent=5 // pred_region
        %s951 = ssub.s32 %s29, 1
        // Predicated region
        $region101: #{forward.4} parent=99 // pred_check
          %p952 = pneg %p50
        $region102: #{forward.4} parent=99 // pred_check_branch
          %954 = sbr.rel (%p952) target = $region104
        $region103: #{forward.4} parent=99 // pred_region
          %955 = dma.done [#allocation4], 256
        $region104: #{forward.4} parent=99 // pred_fallthru
          _
        // Predicated region
        $region105: #{forward.4} parent=99 // pred_check
          %p956 = pneg %p71
        $region106: #{forward.4} parent=99 // pred_check_branch
          %958 = sbr.rel (%p956) target = $region108
        $region107: #{forward.4} parent=99 // pred_region
          %959 = dma.done [#allocation7], 32
        $region108: #{forward.4} parent=99 // pred_fallthru
          _
        %s960 = sand.u32 %s34, 1
        %s961 = scalar_lea.sflag [#allocation4], %s960
        %s962 = sand.u32 %s84, 1
        %s963 = smul.addr %s962, 32
        %s964 = scalar_lea.vmem [#allocation8], %s963
        // Predicated region
        $region109: #{forward.4} parent=99 // pred_check
          %p965 = pneg %p97
        $region110: #{forward.4} parent=99 // pred_check_branch
          %967 = sbr.rel (%p965) target = $region112
        $region111: #{forward.4} parent=99 // pred_region
          %968 = dma.done %s961, 512
        $region112: #{forward.4} parent=99 // pred_fallthru
          _
        %s969 = sand.u32 %s34, 1
        %s970 = scalar_lea.sflag [#allocation4], %s969
        %s971 = sand.u32 %s110, 1
        %s972 = scalar_lea.vmem [#allocation9], %s971
        // Predicated region
        $region113: #{forward.4} parent=99 // pred_check
          %p973 = pneg %p123
        $region114: #{forward.4} parent=99 // pred_check_branch
          %975 = sbr.rel (%p973) target = $region116
        $region115: #{forward.4} parent=99 // pred_region
          %976 = dma.done %s970, 16
        $region116: #{forward.4} parent=99 // pred_fallthru
          _
        %s977 = sand.u32 %s34, 1
        %s978 = scalar_lea.sflag [#allocation4], %s977
        %s979 = sand.u32 %s136, 1
        %s980 = smul.addr %s979, 32
        %s981 = scalar_lea.vmem [#allocation10], %s980
        // Predicated region
        $region117: #{forward.4} parent=99 // pred_check
          %p982 = pneg %p149
        $region118: #{forward.4} parent=99 // pred_check_branch
          %984 = sbr.rel (%p982) target = $region120
        $region119: #{forward.4} parent=99 // pred_region
          %985 = dma.done %s978, 512
        $region120: #{forward.4} parent=99 // pred_fallthru
          _
        %s986 = sand.u32 %s34, 1
        %s987 = scalar_lea.sflag [#allocation4], %s986
        %s988 = sand.u32 %s162, 1
        %s989 = scalar_lea.vmem [#allocation11], %s988
        // Predicated region
        $region121: #{forward.4} parent=99 // pred_check
          %p990 = pneg %p175
        $region122: #{forward.4} parent=99 // pred_check_branch
          %992 = sbr.rel (%p990) target = $region124
        $region123: #{forward.4} parent=99 // pred_region
          %993 = dma.done %s987, 16
        $region124: #{forward.4} parent=99 // pred_fallthru
          _
        %s994 = sand.u32 %s34, 1
        %s995 = scalar_lea.sflag [#allocation4], %s994
        %s996 = sand.u32 %s188, 1
        %s997 = smul.addr %s996, 32
        %s998 = scalar_lea.vmem [#allocation12], %s997
        // Predicated region
        $region125: #{forward.4} parent=99 // pred_check
          %p999 = pneg %p201
        $region126: #{forward.4} parent=99 // pred_check_branch
          %1001 = sbr.rel (%p999) target = $region128
        $region127: #{forward.4} parent=99 // pred_region
          %1002 = dma.done %s995, 512
        $region128: #{forward.4} parent=99 // pred_fallthru
          _
        %s1003 = sand.u32 %s34, 1
        %s1004 = scalar_lea.sflag [#allocation4], %s1003
        %s1005 = sand.u32 %s214, 1
        %s1006 = scalar_lea.vmem [#allocation13], %s1005
        // Predicated region
        $region129: #{forward.4} parent=99 // pred_check
          %p1007 = pneg %p227
        $region130: #{forward.4} parent=99 // pred_check_branch
          %1009 = sbr.rel (%p1007) target = $region132
        $region131: #{forward.4} parent=99 // pred_region
          %1010 = dma.done %s1004, 16
        $region132: #{forward.4} parent=99 // pred_fallthru
          _
        %s1011 = sand.u32 %s34, 1
        %s1012 = scalar_lea.sflag [#allocation4], %s1011
        %s1013 = sand.u32 %s240, 1
        %s1014 = smul.addr %s1013, 32
        %s1015 = scalar_lea.vmem [#allocation14], %s1014
        // Predicated region
        $region133: #{forward.4} parent=99 // pred_check
          %p1016 = pneg %p253
        $region134: #{forward.4} parent=99 // pred_check_branch
          %1018 = sbr.rel (%p1016) target = $region136
        $region135: #{forward.4} parent=99 // pred_region
          %1019 = dma.done %s1012, 512
        $region136: #{forward.4} parent=99 // pred_fallthru
          _
        %s1020 = sand.u32 %s34, 1
        %s1021 = scalar_lea.sflag [#allocation4], %s1020
        %s1022 = sand.u32 %s266, 1
        %s1023 = scalar_lea.vmem [#allocation15], %s1022
        // Predicated region
        $region137: #{forward.4} parent=99 // pred_check
          %p1024 = pneg %p279
        $region138: #{forward.4} parent=99 // pred_check_branch
          %1026 = sbr.rel (%p1024) target = $region140
        $region139: #{forward.4} parent=99 // pred_region
          %1027 = dma.done %s1021, 16
        $region140: #{forward.4} parent=99 // pred_fallthru
          _
        %s1028 = sand.u32 %s34, 1
        %s1029 = scalar_lea.sflag [#allocation4], %s1028
        %s1030 = sand.u32 %s292, 1
        %s1031 = smul.addr %s1030, 32
        %s1032 = scalar_lea.vmem [#allocation16], %s1031
        // Predicated region
        $region141: #{forward.4} parent=99 // pred_check
          %p1033 = pneg %p305
        $region142: #{forward.4} parent=99 // pred_check_branch
          %1035 = sbr.rel (%p1033) target = $region144
        $region143: #{forward.4} parent=99 // pred_region
          %1036 = dma.done %s1029, 512
        $region144: #{forward.4} parent=99 // pred_fallthru
          _
        %s1037 = sand.u32 %s34, 1
        %s1038 = scalar_lea.sflag [#allocation4], %s1037
        %s1039 = sand.u32 %s318, 1
        %s1040 = scalar_lea.vmem [#allocation17], %s1039
        // Predicated region
        $region145: #{forward.4} parent=99 // pred_check
          %p1041 = pneg %p331
        $region146: #{forward.4} parent=99 // pred_check_branch
          %1043 = sbr.rel (%p1041) target = $region148
        $region147: #{forward.4} parent=99 // pred_region
          %1044 = dma.done %s1038, 16
        $region148: #{forward.4} parent=99 // pred_fallthru
          _
        %s1045 = sand.u32 %s34, 1
        %s1046 = scalar_lea.sflag [#allocation4], %s1045
        %s1047 = sand.u32 %s344, 1
        %s1048 = smul.addr %s1047, 32
        %s1049 = scalar_lea.vmem [#allocation18], %s1048
        // Predicated region
        $region149: #{forward.4} parent=99 // pred_check
          %p1050 = pneg %p357
        $region150: #{forward.4} parent=99 // pred_check_branch
          %1052 = sbr.rel (%p1050) target = $region152
        $region151: #{forward.4} parent=99 // pred_region
          %1053 = dma.done %s1046, 512
        $region152: #{forward.4} parent=99 // pred_fallthru
          _
        %s1054 = sand.u32 %s34, 1
        %s1055 = scalar_lea.sflag [#allocation4], %s1054
        %s1056 = sand.u32 %s370, 1
        %s1057 = scalar_lea.vmem [#allocation19], %s1056
        // Predicated region
        $region153: #{forward.4} parent=99 // pred_check
          %p1058 = pneg %p383
        $region154: #{forward.4} parent=99 // pred_check_branch
          %1060 = sbr.rel (%p1058) target = $region156
        $region155: #{forward.4} parent=99 // pred_region
          %1061 = dma.done %s1055, 16
        $region156: #{forward.4} parent=99 // pred_fallthru
          _
        %s1062 = sand.u32 %s34, 1
        %s1063 = scalar_lea.sflag [#allocation4], %s1062
        %s1064 = sand.u32 %s396, 1
        %s1065 = smul.addr %s1064, 512
        %s1066 = scalar_lea.vmem [#allocation20], %s1065
        // Predicated region
        $region157: #{forward.4} parent=99 // pred_check
          %p1067 = pneg %p409
        $region158: #{forward.4} parent=99 // pred_check_branch
          %1069 = sbr.rel (%p1067) target = $region160
        $region159: #{forward.4} parent=99 // pred_region
          %1070 = dma.done %s1063, 8192
        $region160: #{forward.4} parent=99 // pred_fallthru
          _
        %s1071 = sand.u32 %s34, 1
        %s1072 = scalar_lea.sflag [#allocation4], %s1071
        %s1073 = sand.u32 %s422, 1
        %s1074 = smul.addr %s1073, 16
        %s1075 = scalar_lea.vmem [#allocation21], %s1074
        // Predicated region
        $region161: #{forward.4} parent=99 // pred_check
          %p1076 = pneg %p435
        $region162: #{forward.4} parent=99 // pred_check_branch
          %1078 = sbr.rel (%p1076) target = $region164
        $region163: #{forward.4} parent=99 // pred_region
          %1079 = dma.done %s1072, 256
        $region164: #{forward.4} parent=99 // pred_fallthru
          _
        %s1080 = sand.u32 %s34, 1
        %s1081 = scalar_lea.sflag [#allocation4], %s1080
        %s1082 = sand.u32 %s448, 1
        %s1083 = smul.addr %s1082, 1024
        %s1084 = scalar_lea.vmem [#allocation22], %s1083
        // Predicated region
        $region165: #{forward.4} parent=99 // pred_check
          %p1085 = pneg %p461
        $region166: #{forward.4} parent=99 // pred_check_branch
          %1087 = sbr.rel (%p1085) target = $region168
        $region167: #{forward.4} parent=99 // pred_region
          %1088 = dma.done %s1081, 16384
        $region168: #{forward.4} parent=99 // pred_fallthru
          _
        %s1089 = sand.u32 %s34, 1
        %s1090 = scalar_lea.sflag [#allocation4], %s1089
        %s1091 = sand.u32 %s474, 1
        %s1092 = scalar_lea.vmem [#allocation23], %s1091
        // Predicated region
        $region169: #{forward.4} parent=99 // pred_check
          %p1093 = pneg %p487
        $region170: #{forward.4} parent=99 // pred_check_branch
          %1095 = sbr.rel (%p1093) target = $region172
        $region171: #{forward.4} parent=99 // pred_region
          %1096 = dma.done %s1090, 16
        $region172: #{forward.4} parent=99 // pred_fallthru
          _
        %s1097 = sand.u32 %s34, 1
        %s1098 = scalar_lea.sflag [#allocation4], %s1097
        %s1099 = sand.u32 %s500, 1
        %s1100 = smul.addr %s1099, 4
        %s1101 = scalar_lea.vmem [#allocation24], %s1100
        // Predicated region
        $region173: #{forward.4} parent=99 // pred_check
          %p1102 = pneg %p513
        $region174: #{forward.4} parent=99 // pred_check_branch
          %1104 = sbr.rel (%p1102) target = $region176
        $region175: #{forward.4} parent=99 // pred_region
          %1105 = dma.done %s1098, 64
        $region176: #{forward.4} parent=99 // pred_fallthru
          _
        %s1106 = sand.u32 %s34, 1
        %s1107 = scalar_lea.sflag [#allocation4], %s1106
        %s1108 = sand.u32 %s526, 1
        %s1109 = smul.addr %s1108, 4
        %s1110 = scalar_lea.vmem [#allocation25], %s1109
        // Predicated region
        $region177: #{forward.4} parent=99 // pred_check
          %p1111 = pneg %p539
        $region178: #{forward.4} parent=99 // pred_check_branch
          %1113 = sbr.rel (%p1111) target = $region180
        $region179: #{forward.4} parent=99 // pred_region
          %1114 = dma.done %s1107, 64
        $region180: #{forward.4} parent=99 // pred_fallthru
          _
        %p1115 = pneg %p50
        %p1116 = pneg %p47
        %p1117 = pneg %p71
        %p1118 = pneg %p68
        %s1119 = sand.u32 %s34, 1
        %s1120 = scalar_lea.sflag [#allocation4], %s1119
        %s1121 = sand.u32 %s84, 1
        %s1122 = smul.addr %s1121, 32
        %s1123 = scalar_lea.vmem [#allocation8], %s1122
        %p1124 = pneg %p97
        %p1125 = pneg %p94
        %s1126 = sand.u32 %s34, 1
        %s1127 = scalar_lea.sflag [#allocation4], %s1126
        %s1128 = sand.u32 %s110, 1
        %s1129 = scalar_lea.vmem [#allocation9], %s1128
        %p1130 = pneg %p123
        %p1131 = pneg %p120
        %s1132 = sand.u32 %s34, 1
        %s1133 = scalar_lea.sflag [#allocation4], %s1132
        %s1134 = sand.u32 %s136, 1
        %s1135 = smul.addr %s1134, 32
        %s1136 = scalar_lea.vmem [#allocation10], %s1135
        %p1137 = pneg %p149
        %p1138 = pneg %p146
        %s1139 = sand.u32 %s34, 1
        %s1140 = scalar_lea.sflag [#allocation4], %s1139
        %s1141 = sand.u32 %s162, 1
        %s1142 = scalar_lea.vmem [#allocation11], %s1141
        %p1143 = pneg %p175
        %p1144 = pneg %p172
        %s1145 = sand.u32 %s34, 1
        %s1146 = scalar_lea.sflag [#allocation4], %s1145
        %s1147 = sand.u32 %s188, 1
        %s1148 = smul.addr %s1147, 32
        %s1149 = scalar_lea.vmem [#allocation12], %s1148
        %p1150 = pneg %p201
        %p1151 = pneg %p198
        %s1152 = sand.u32 %s34, 1
        %s1153 = scalar_lea.sflag [#allocation4], %s1152
        %s1154 = sand.u32 %s214, 1
        %s1155 = scalar_lea.vmem [#allocation13], %s1154
        %p1156 = pneg %p227
        %p1157 = pneg %p224
        %s1158 = sand.u32 %s34, 1
        %s1159 = scalar_lea.sflag [#allocation4], %s1158
        %s1160 = sand.u32 %s240, 1
        %s1161 = smul.addr %s1160, 32
        %s1162 = scalar_lea.vmem [#allocation14], %s1161
        %p1163 = pneg %p253
        %p1164 = pneg %p250
        %s1165 = sand.u32 %s34, 1
        %s1166 = scalar_lea.sflag [#allocation4], %s1165
        %s1167 = sand.u32 %s266, 1
        %s1168 = scalar_lea.vmem [#allocation15], %s1167
        %p1169 = pneg %p279
        %p1170 = pneg %p276
        %s1171 = sand.u32 %s34, 1
        %s1172 = scalar_lea.sflag [#allocation4], %s1171
        %s1173 = sand.u32 %s292, 1
        %s1174 = smul.addr %s1173, 32
        %s1175 = scalar_lea.vmem [#allocation16], %s1174
        %p1176 = pneg %p305
        %p1177 = pneg %p302
        %s1178 = sand.u32 %s34, 1
        %s1179 = scalar_lea.sflag [#allocation4], %s1178
        %s1180 = sand.u32 %s318, 1
        %s1181 = scalar_lea.vmem [#allocation17], %s1180
        %p1182 = pneg %p331
        %p1183 = pneg %p328
        %s1184 = sand.u32 %s34, 1
        %s1185 = scalar_lea.sflag [#allocation4], %s1184
        %s1186 = sand.u32 %s344, 1
        %s1187 = smul.addr %s1186, 32
        %s1188 = scalar_lea.vmem [#allocation18], %s1187
        %p1189 = pneg %p357
        %p1190 = pneg %p354
        %s1191 = sand.u32 %s34, 1
        %s1192 = scalar_lea.sflag [#allocation4], %s1191
        %s1193 = sand.u32 %s370, 1
        %s1194 = scalar_lea.vmem [#allocation19], %s1193
        %p1195 = pneg %p383
        %p1196 = pneg %p380
        %s1197 = sand.u32 %s34, 1
        %s1198 = scalar_lea.sflag [#allocation4], %s1197
        %s1199 = sand.u32 %s396, 1
        %s1200 = smul.addr %s1199, 512
        %s1201 = scalar_lea.vmem [#allocation20], %s1200
        %p1202 = pneg %p409
        %p1203 = pneg %p406
        %s1204 = sand.u32 %s34, 1
        %s1205 = scalar_lea.sflag [#allocation4], %s1204
        %s1206 = sand.u32 %s422, 1
        %s1207 = smul.addr %s1206, 16
        %s1208 = scalar_lea.vmem [#allocation21], %s1207
        %p1209 = pneg %p435
        %p1210 = pneg %p432
        %s1211 = sand.u32 %s34, 1
        %s1212 = scalar_lea.sflag [#allocation4], %s1211
        %s1213 = sand.u32 %s448, 1
        %s1214 = smul.addr %s1213, 1024
        %s1215 = scalar_lea.vmem [#allocation22], %s1214
        %p1216 = pneg %p461
        %p1217 = pneg %p458
        %s1218 = sand.u32 %s34, 1
        %s1219 = scalar_lea.sflag [#allocation4], %s1218
        %s1220 = sand.u32 %s474, 1
        %s1221 = scalar_lea.vmem [#allocation23], %s1220
        %p1222 = pneg %p487
        %p1223 = pneg %p484
        %s1224 = sand.u32 %s34, 1
        %s1225 = scalar_lea.sflag [#allocation4], %s1224
        %s1226 = sand.u32 %s500, 1
        %s1227 = smul.addr %s1226, 4
        %s1228 = scalar_lea.vmem [#allocation24], %s1227
        %p1229 = pneg %p513
        %p1230 = pneg %p510
        %s1231 = sand.u32 %s34, 1
        %s1232 = scalar_lea.sflag [#allocation4], %s1231
        %s1233 = sand.u32 %s526, 1
        %s1234 = smul.addr %s1233, 4
        %s1235 = scalar_lea.vmem [#allocation25], %s1234
        %p1236 = pneg %p539
        %p1237 = pneg %p536
        %p1238 = pneg %p560
        %p1239 = pneg %p557
        %p1241 = scmp.eq.s32.totalorder %s34, 0
        // Predicated region
        $region181: #{forward.4} parent=99 // pred_check
          %p1242 = pneg %p1241
        $region182: #{forward.4} parent=99 // pred_check_branch
          %1244 = sbr.rel (%p1242) target = $region184
        $region183: #{forward.4} parent=99 // pred_region
          %v1245 = vld [vmem:[#allocation3] sm:$0xff]
          %v1246 = vld [vmem:[#allocation3 + $0x8] sm:$0xff]
          %vm1247 = vcmask 523264
          %1248 = vst.msk [vmem:[#allocation2] sm:$0xff] %vm1247, %v1245
          %1249 = vst.msk [vmem:[#allocation2 + $0x8] sm:$0xff] %vm1247, %v1246
        $region184: #{forward.4} parent=99 // pred_fallthru
          _
        %v1250 = vld [vmem:[#allocation2] sm:$0xff]
        %v1251 = vld [vmem:[#allocation2 + $0x8] sm:$0xff]
        %v1252 = vld [vmem:[%s1101] sm:$0x1]
        %v1253 = vld [vmem:[%s1110] sm:$0x1]
        %v1254 = vld [vmem:[%s1101 + $0x1] sm:$0x1]
        %v1255 = vld [vmem:[%s1110 + $0x1] sm:$0x1]
        %v1256 = vld [vmem:[%s1101 + $0x2] sm:$0x1]
        %v1257 = vld [vmem:[%s1110 + $0x2] sm:$0x1]
        %v1258 = vlaneseq
        %v1259 = vshrl.u32 %v1258, 7
        %v1260 = vlaneseq
        %v1261 = vand.u32 %v1260, 127
        %vm1262 = vcmp.le.s32.totalorder %v1261, %v1259
        %v1263 = vpack.c.bf16 %v1251, %v1250
        %v1264 = vld [vmem:[%s964] sm:$0xf]
        %v1265 = vld [vmem:[%s964 + $0x4] sm:$0xf]
        %v1266 = vld [vmem:[%s964 + $0x8] sm:$0xf]
        %v1267 = vld [vmem:[%s964 + $0xc] sm:$0xf]
        %v1268 = vld [vmem:[%s964 + $0x10] sm:$0xf]
        %v1269 = vld [vmem:[%s964 + $0x14] sm:$0xf]
        %v1270 = vld [vmem:[%s964 + $0x18] sm:$0xf]
        %v1271 = vld [vmem:[%s964 + $0x1c] sm:$0xf]
        %v1272 = vld [vmem:[%s972] sm:$0x1]
        %v1274 = vlaneseq
        %v1275 = vshrl.u32 %v1274, 7
        %v1276 = vsub.s32 0, %v1275
        %v1277 = vrot.slane %v1272, %v1276
        %v1287 = vunpack.c.l.b16 %v1264
        %v1288 = vunpack.c.l.b16 %v1265
        %v1289 = vunpack.c.l.b16 %v1266
        %v1290 = vunpack.c.l.b16 %v1267
        %v1291 = vunpack.c.l.b16 %v1268
        %v1292 = vunpack.c.l.b16 %v1269
        %v1293 = vunpack.c.l.b16 %v1270
        %v1294 = vunpack.c.l.b16 %v1271
        %v1295 = vpack.c.b16 %v1288, %v1287
        %v1296 = vpack.c.b16 %v1290, %v1289
        %v1297 = vpack.c.b16 %v1292, %v1291
        %v1298 = vpack.c.b16 %v1294, %v1293
        %vm1303 = vcmask 523264
        %v1305 = vsel %vm1303, %v1263, 0
        %1307 = vmatprep.subr.bf16.mxu0 0
        %1308 = vmatpush1.bf16.msra.mxu0 %v1295
        %1309 = vmatprep.subr.bf16.mxu0 0
        %1310 = vmatpush1.bf16.msra.mxu0 %v1296
        %1311 = vmatprep.subr.bf16.mxu0 0
        %1312 = vmatpush1.bf16.msra.mxu0 %v1297
        %1313 = vmatprep.subr.bf16.mxu0 0
        %1314 = vmatpush1.bf16.msra.mxu0 %v1298
        %1315 = vmatprep.subr.bf16.mxu0 0
        %1316 = vmatpush1.bf16.msra.mxu0 0
        %1317 = vmatprep.subr.bf16.mxu0 0
        %1318 = vmatpush1.bf16.msra.mxu0 0
        %1319 = vmatprep.subr.bf16.mxu0 0
        %1320 = vmatpush1.bf16.msra.mxu0 0
        %1321 = vmatprep.subr.bf16.mxu0 0
        %1322 = vmatpush1.bf16.msra.mxu0 0
        %1323 = vmatprep.subr.bf16.mxu0 0
        %1324 = vmatpush1.bf16.msra.mxu0 0
        %1325 = vmatprep.subr.bf16.mxu0 0
        %1326 = vmatpush1.bf16.msra.mxu0 0
        %1327 = vmatprep.subr.bf16.mxu0 0
        %1328 = vmatpush1.bf16.msra.mxu0 0
        %1329 = vmatprep.subr.bf16.mxu0 0
        %1330 = vmatpush1.bf16.msra.mxu0 0
        %1331 = vmatprep.subr.bf16.mxu0 0
        %1332 = vmatpush1.bf16.msra.mxu0 0
        %1333 = vmatprep.subr.bf16.mxu0 0
        %1334 = vmatpush1.bf16.msra.mxu0 0
        %1335 = vmatprep.subr.bf16.mxu0 0
        %1336 = vmatpush1.bf16.msra.mxu0 0
        %1337 = vmatprep.subr.bf16.mxu0 0
        %1338 = vmatpush1.bf16.msra.mxu0 0
        %1339 = vmatprep.mubr.bf16.mxu0 0
        %1340 = vmatmul.mubr.bf16.gmra.mrb[0].mxu0 %v1305
        %v1341 = vpop.f32.mrb[0].mxu0
        %v1342 = vadd.f32 %v1277, %v1341
        %v1343 = vpop.f32.mrb[0].mxu0
        %v1344 = vpop.f32.mrb[0].mxu0
        %v1345 = vadd.f32 %v1277, %v1344
        %v1346 = vpop.f32.mrb[0].mxu0
        %1347 = vdwg.mxu0
        %v1348 = vld [vmem:[%s981] sm:$0xf]
        %v1349 = vld [vmem:[%s981 + $0x4] sm:$0xf]
        %v1350 = vld [vmem:[%s981 + $0x8] sm:$0xf]
        %v1351 = vld [vmem:[%s981 + $0xc] sm:$0xf]
        %v1352 = vld [vmem:[%s981 + $0x10] sm:$0xf]
        %v1353 = vld [vmem:[%s981 + $0x14] sm:$0xf]
        %v1354 = vld [vmem:[%s981 + $0x18] sm:$0xf]
        %v1355 = vld [vmem:[%s981 + $0x1c] sm:$0xf]
        %v1356 = vld [vmem:[%s989] sm:$0x1]
        %v1358 = vlaneseq
        %v1359 = vshrl.u32 %v1358, 7
        %v1360 = vsub.s32 0, %v1359
        %v1361 = vrot.slane %v1356, %v1360
        %v1371 = vunpack.c.l.b16 %v1348
        %v1372 = vunpack.c.l.b16 %v1349
        %v1373 = vunpack.c.l.b16 %v1350
        %v1374 = vunpack.c.l.b16 %v1351
        %v1375 = vunpack.c.l.b16 %v1352
        %v1376 = vunpack.c.l.b16 %v1353
        %v1377 = vunpack.c.l.b16 %v1354
        %v1378 = vunpack.c.l.b16 %v1355
        %v1379 = vpack.c.b16 %v1372, %v1371
        %v1380 = vpack.c.b16 %v1374, %v1373
        %v1381 = vpack.c.b16 %v1376, %v1375
        %v1382 = vpack.c.b16 %v1378, %v1377
        %1387 = vmatprep.subr.bf16.mxu0 0
        %1388 = vmatpush1.bf16.msra.mxu0 %v1379
        %1389 = vmatprep.subr.bf16.mxu0 0
        %1390 = vmatpush1.bf16.msra.mxu0 %v1380
        %1391 = vmatprep.subr.bf16.mxu0 0
        %1392 = vmatpush1.bf16.msra.mxu0 %v1381
        %1393 = vmatprep.subr.bf16.mxu0 0
        %1394 = vmatpush1.bf16.msra.mxu0 %v1382
        %1395 = vmatprep.subr.bf16.mxu0 0
        %1396 = vmatpush1.bf16.msra.mxu0 0
        %1397 = vmatprep.subr.bf16.mxu0 0
        %1398 = vmatpush1.bf16.msra.mxu0 0
        %1399 = vmatprep.subr.bf16.mxu0 0
        %1400 = vmatpush1.bf16.msra.mxu0 0
        %1401 = vmatprep.subr.bf16.mxu0 0
        %1402 = vmatpush1.bf16.msra.mxu0 0
        %1403 = vmatprep.subr.bf16.mxu0 0
        %1404 = vmatpush1.bf16.msra.mxu0 0
        %1405 = vmatprep.subr.bf16.mxu0 0
        %1406 = vmatpush1.bf16.msra.mxu0 0
        %1407 = vmatprep.subr.bf16.mxu0 0
        %1408 = vmatpush1.bf16.msra.mxu0 0
        %1409 = vmatprep.subr.bf16.mxu0 0
        %1410 = vmatpush1.bf16.msra.mxu0 0
        %1411 = vmatprep.subr.bf16.mxu0 0
        %1412 = vmatpush1.bf16.msra.mxu0 0
        %1413 = vmatprep.subr.bf16.mxu0 0
        %1414 = vmatpush1.bf16.msra.mxu0 0
        %1415 = vmatprep.subr.bf16.mxu0 0
        %1416 = vmatpush1.bf16.msra.mxu0 0
        %1417 = vmatprep.subr.bf16.mxu0 0
        %1418 = vmatpush1.bf16.msra.mxu0 0
        %1419 = vmatprep.mubr.bf16.mxu0 0
        %1420 = vmatmul.mubr.bf16.gmra.mrb[0].mxu0 %v1305
        %v1421 = vpop.f32.mrb[0].mxu0
        %v1422 = vadd.f32 %v1361, %v1421
        %v1423 = vpop.f32.mrb[0].mxu0
        %v1424 = vpop.f32.mrb[0].mxu0
        %v1425 = vadd.f32 %v1361, %v1424
        %v1426 = vpop.f32.mrb[0].mxu0
        %1427 = vdwg.mxu0
        %v1428 = vld [vmem:[%s998] sm:$0xf]
        %v1429 = vld [vmem:[%s998 + $0x4] sm:$0xf]
        %v1430 = vld [vmem:[%s998 + $0x8] sm:$0xf]
        %v1431 = vld [vmem:[%s998 + $0xc] sm:$0xf]
        %v1432 = vld [vmem:[%s998 + $0x10] sm:$0xf]
        %v1433 = vld [vmem:[%s998 + $0x14] sm:$0xf]
        %v1434 = vld [vmem:[%s998 + $0x18] sm:$0xf]
        %v1435 = vld [vmem:[%s998 + $0x1c] sm:$0xf]
        %v1436 = vld [vmem:[%s1006] sm:$0x1]
        %v1438 = vlaneseq
        %v1439 = vshrl.u32 %v1438, 7
        %v1440 = vsub.s32 0, %v1439
        %v1441 = vrot.slane %v1436, %v1440
        %v1451 = vunpack.c.l.b16 %v1428
        %v1452 = vunpack.c.l.b16 %v1429
        %v1453 = vunpack.c.l.b16 %v1430
        %v1454 = vunpack.c.l.b16 %v1431
        %v1455 = vunpack.c.l.b16 %v1432
        %v1456 = vunpack.c.l.b16 %v1433
        %v1457 = vunpack.c.l.b16 %v1434
        %v1458 = vunpack.c.l.b16 %v1435
        %v1459 = vpack.c.b16 %v1452, %v1451
        %v1460 = vpack.c.b16 %v1454, %v1453
        %v1461 = vpack.c.b16 %v1456, %v1455
        %v1462 = vpack.c.b16 %v1458, %v1457
        %1467 = vmatprep.subr.bf16.mxu0 0
        %1468 = vmatpush1.bf16.msra.mxu0 %v1459
        %1469 = vmatprep.subr.bf16.mxu0 0
        %1470 = vmatpush1.bf16.msra.mxu0 %v1460
        %1471 = vmatprep.subr.bf16.mxu0 0
        %1472 = vmatpush1.bf16.msra.mxu0 %v1461
        %1473 = vmatprep.subr.bf16.mxu0 0
        %1474 = vmatpush1.bf16.msra.mxu0 %v1462
        %1475 = vmatprep.subr.bf16.mxu0 0
        %1476 = vmatpush1.bf16.msra.mxu0 0
        %1477 = vmatprep.subr.bf16.mxu0 0
        %1478 = vmatpush1.bf16.msra.mxu0 0
        %1479 = vmatprep.subr.bf16.mxu0 0
        %1480 = vmatpush1.bf16.msra.mxu0 0
        %1481 = vmatprep.subr.bf16.mxu0 0
        %1482 = vmatpush1.bf16.msra.mxu0 0
        %1483 = vmatprep.subr.bf16.mxu0 0
        %1484 = vmatpush1.bf16.msra.mxu0 0
        %1485 = vmatprep.subr.bf16.mxu0 0
        %1486 = vmatpush1.bf16.msra.mxu0 0
        %1487 = vmatprep.subr.bf16.mxu0 0
        %1488 = vmatpush1.bf16.msra.mxu0 0
        %1489 = vmatprep.subr.bf16.mxu0 0
        %1490 = vmatpush1.bf16.msra.mxu0 0
        %1491 = vmatprep.subr.bf16.mxu0 0
        %1492 = vmatpush1.bf16.msra.mxu0 0
        %1493 = vmatprep.subr.bf16.mxu0 0
        %1494 = vmatpush1.bf16.msra.mxu0 0
        %1495 = vmatprep.subr.bf16.mxu0 0
        %1496 = vmatpush1.bf16.msra.mxu0 0
        %1497 = vmatprep.subr.bf16.mxu0 0
        %1498 = vmatpush1.bf16.msra.mxu0 0
        %1499 = vmatprep.mubr.bf16.mxu0 0
        %1500 = vmatmul.mubr.bf16.gmra.mrb[0].mxu0 %v1305
        %v1501 = vpop.f32.mrb[0].mxu0
        %v1502 = vadd.f32 %v1441, %v1501
        %v1503 = vpop.f32.mrb[0].mxu0
        %v1504 = vpop.f32.mrb[0].mxu0
        %v1505 = vadd.f32 %v1441, %v1504
        %v1506 = vpop.f32.mrb[0].mxu0
        %1507 = vdwg.mxu0
        %v1508 = vpack.c.bf16 %v1342, %v1342
        %v1509 = vpack.c.bf16 %v1345, %v1345
        %v1510 = vpack.c.bf16 %v1422, %v1422
        %v1511 = vpack.c.bf16 %v1425, %v1425
        %v1512 = vpack.c.bf16 %v1502, %v1502
        %v1513 = vpack.c.bf16 %v1505, %v1505
        %vm1514 = vcmask 64512
        %v1516 = vsel %vm1514, %v1508, 0
        %v1519 = vsel %vm1514, %v1510, 0
        %1521 = vmatprep.subr.bf16.mxu0 0
        %1522 = vmatpush1.bf16.xpose.msra.mxu0 %v1519
        %1523 = vmatprep.subr.bf16.mxu0 0
        %1524 = vmatpush1.bf16.xpose.msra.mxu0 0
        %1525 = vmatprep.subr.bf16.mxu0 0
        %1526 = vmatpush1.bf16.xpose.msra.mxu0 0
        %1527 = vmatprep.subr.bf16.mxu0 0
        %1528 = vmatpush1.bf16.xpose.msra.mxu0 0
        %1529 = vmatprep.subr.bf16.mxu0 0
        %1530 = vmatpush1.bf16.xpose.msra.mxu0 0
        %1531 = vmatprep.subr.bf16.mxu0 0
        %1532 = vmatpush1.bf16.xpose.msra.mxu0 0
        %1533 = vmatprep.subr.bf16.mxu0 0
        %1534 = vmatpush1.bf16.xpose.msra.mxu0 0
        %1535 = vmatprep.subr.bf16.mxu0 0
        %1536 = vmatpush1.bf16.xpose.msra.mxu0 0
        %1537 = vmatprep.subr.bf16.mxu0 0
        %1538 = vmatpush1.bf16.xpose.msra.mxu0 0
        %1539 = vmatprep.subr.bf16.mxu0 0
        %1540 = vmatpush1.bf16.xpose.msra.mxu0 0
        %1541 = vmatprep.subr.bf16.mxu0 0
        %1542 = vmatpush1.bf16.xpose.msra.mxu0 0
        %1543 = vmatprep.subr.bf16.mxu0 0
        %1544 = vmatpush1.bf16.xpose.msra.mxu0 0
        %1545 = vmatprep.subr.bf16.mxu0 0
        %1546 = vmatpush1.bf16.xpose.msra.mxu0 0
        %1547 = vmatprep.subr.bf16.mxu0 0
        %1548 = vmatpush1.bf16.xpose.msra.mxu0 0
        %1549 = vmatprep.subr.bf16.mxu0 0
        %1550 = vmatpush1.bf16.xpose.msra.mxu0 0
        %1551 = vmatprep.subr.bf16.mxu0 0
        %1552 = vmatpush1.bf16.xpose.msra.mxu0 0
        %1553 = vmatprep.mubr.bf16.mxu0 0
        %1554 = vmatmul.mubr.bf16.gmra.mrb[0].mxu0 %v1516
        %v1555 = vpop.f32.mrb[0].mxu0
        %v1556 = vadd.f32 0.0, %v1555
        %v1557 = vpop.f32.mrb[0].mxu0
        %v1558 = vpop.f32.mrb[0].mxu0
        %v1559 = vpop.f32.mrb[0].mxu0
        %1560 = vdwg.mxu0
        %v1562 = vsel %vm1514, %v1509, 0
        %v1565 = vsel %vm1514, %v1511, 0
        %1567 = vmatprep.subr.bf16.mxu0 0
        %1568 = vmatpush1.bf16.xpose.msra.mxu0 %v1565
        %1569 = vmatprep.subr.bf16.mxu0 0
        %1570 = vmatpush1.bf16.xpose.msra.mxu0 0
        %1571 = vmatprep.subr.bf16.mxu0 0
        %1572 = vmatpush1.bf16.xpose.msra.mxu0 0
        %1573 = vmatprep.subr.bf16.mxu0 0
        %1574 = vmatpush1.bf16.xpose.msra.mxu0 0
        %1575 = vmatprep.subr.bf16.mxu0 0
        %1576 = vmatpush1.bf16.xpose.msra.mxu0 0
        %1577 = vmatprep.subr.bf16.mxu0 0
        %1578 = vmatpush1.bf16.xpose.msra.mxu0 0
        %1579 = vmatprep.subr.bf16.mxu0 0
        %1580 = vmatpush1.bf16.xpose.msra.mxu0 0
        %1581 = vmatprep.subr.bf16.mxu0 0
        %1582 = vmatpush1.bf16.xpose.msra.mxu0 0
        %1583 = vmatprep.subr.bf16.mxu0 0
        %1584 = vmatpush1.bf16.xpose.msra.mxu0 0
        %1585 = vmatprep.subr.bf16.mxu0 0
        %1586 = vmatpush1.bf16.xpose.msra.mxu0 0
        %1587 = vmatprep.subr.bf16.mxu0 0
        %1588 = vmatpush1.bf16.xpose.msra.mxu0 0
        %1589 = vmatprep.subr.bf16.mxu0 0
        %1590 = vmatpush1.bf16.xpose.msra.mxu0 0
        %1591 = vmatprep.subr.bf16.mxu0 0
        %1592 = vmatpush1.bf16.xpose.msra.mxu0 0
        %1593 = vmatprep.subr.bf16.mxu0 0
        %1594 = vmatpush1.bf16.xpose.msra.mxu0 0
        %1595 = vmatprep.subr.bf16.mxu0 0
        %1596 = vmatpush1.bf16.xpose.msra.mxu0 0
        %1597 = vmatprep.subr.bf16.mxu0 0
        %1598 = vmatpush1.bf16.xpose.msra.mxu0 0
        %1599 = vmatprep.mubr.bf16.mxu0 0
        %1600 = vmatmul.mubr.bf16.gmra.mrb[0].mxu0 %v1562
        %v1601 = vpop.f32.mrb[0].mxu0
        %v1602 = vadd.f32 0.0, %v1601
        %v1603 = vpop.f32.mrb[0].mxu0
        %v1604 = vpop.f32.mrb[0].mxu0
        %v1605 = vpop.f32.mrb[0].mxu0
        %1606 = vdwg.mxu0
        %v1607 = vmul.f32 %v1556, 0.35355338
        %v1608 = vmul.f32 %v1602, 0.35355338
        %v1609 = vsel %vm1262, 1, 0
        %vm1610 = vcmp.eq.s32.totalorder %v1609, 1
        %v1611 = vsel %vm1610, %v1607, -1e+30
        %v1612 = vsel %vm1610, %v1608, -1e+30
        %v1613 = vsel %vm1514, %v1611, -inf
        %1614 = vmax.xlane.f32.xlu0 %v1613
        %v1615 = vpop.xlane.xlu0 %1614
        %v1616 = vsel %vm1514, %v1612, -inf
        %1617 = vmax.xlane.f32.xlu0 %v1616
        %v1618 = vpop.xlane.xlu0 %1617
        %v1619 = vsub.f32 %v1611, %v1615
        %v1620 = vsub.f32 %v1612, %v1618
        %v1621 = vmul.f32 %v1619, 1.442695
        %v1622 = vpow.pop %v1621
        %v1623 = vmul.f32 %v1620, 1.442695
        %v1624 = vpow.pop %v1623
        %v1625 = vsel %vm1514, %v1622, 0.0
        %1626 = vadd.xlane.f32.xlu0 %v1625
        %v1627 = vpop.xlane.xlu0 %1626
        %v1628 = vsel %vm1514, %v1624, 0.0
        %1629 = vadd.xlane.f32.xlu0 %v1628
        %v1630 = vpop.xlane.xlu0 %1629
        %v1631 = vrcp.pop %v1627
        %v1632 = vmul.f32 %v1622, %v1631
        %v1633 = vrcp.pop %v1630
        %v1634 = vmul.f32 %v1624, %v1633
        %v1635 = vpack.c.bf16 %v1632, %v1632
        %v1636 = vpack.c.bf16 %v1634, %v1634
        %v1638 = vsel %vm1514, %v1635, 0
        %vm1640 = vcmask 1043456
        %v1642 = vsel %vm1640, %v1512, 0
        %1644 = vmatprep.subr.bf16.mxu0 0
        %1645 = vmatpush1.bf16.msra.mxu0 %v1642
        %1646 = vmatprep.subr.bf16.mxu0 0
        %1647 = vmatpush1.bf16.msra.mxu0 0
        %1648 = vmatprep.subr.bf16.mxu0 0
        %1649 = vmatpush1.bf16.msra.mxu0 0
        %1650 = vmatprep.subr.bf16.mxu0 0
        %1651 = vmatpush1.bf16.msra.mxu0 0
        %1652 = vmatprep.subr.bf16.mxu0 0
        %1653 = vmatpush1.bf16.msra.mxu0 0
        %1654 = vmatprep.subr.bf16.mxu0 0
        %1655 = vmatpush1.bf16.msra.mxu0 0
        %1656 = vmatprep.subr.bf16.mxu0 0
        %1657 = vmatpush1.bf16.msra.mxu0 0
        %1658 = vmatprep.subr.bf16.mxu0 0
        %1659 = vmatpush1.bf16.msra.mxu0 0
        %1660 = vmatprep.subr.bf16.mxu0 0
        %1661 = vmatpush1.bf16.msra.mxu0 0
        %1662 = vmatprep.subr.bf16.mxu0 0
        %1663 = vmatpush1.bf16.msra.mxu0 0
        %1664 = vmatprep.subr.bf16.mxu0 0
        %1665 = vmatpush1.bf16.msra.mxu0 0
        %1666 = vmatprep.subr.bf16.mxu0 0
        %1667 = vmatpush1.bf16.msra.mxu0 0
        %1668 = vmatprep.subr.bf16.mxu0 0
        %1669 = vmatpush1.bf16.msra.mxu0 0
        %1670 = vmatprep.subr.bf16.mxu0 0
        %1671 = vmatpush1.bf16.msra.mxu0 0
        %1672 = vmatprep.subr.bf16.mxu0 0
        %1673 = vmatpush1.bf16.msra.mxu0 0
        %1674 = vmatprep.subr.bf16.mxu0 0
        %1675 = vmatpush1.bf16.msra.mxu0 0
        %1676 = vmatprep.mubr.bf16.mxu0 0
        %1677 = vmatmul.mubr.bf16.gmra.mrb[0].mxu0 %v1638
        %v1678 = vpop.f32.mrb[0].mxu0
        %v1679 = vadd.f32 0.0, %v1678
        %v1680 = vpop.f32.mrb[0].mxu0
        %v1681 = vpop.f32.mrb[0].mxu0
        %v1682 = vpop.f32.mrb[0].mxu0
        %1683 = vdwg.mxu0
        %v1685 = vsel %vm1514, %v1636, 0
        %v1688 = vsel %vm1640, %v1513, 0
        %1690 = vmatprep.subr.bf16.mxu0 0
        %1691 = vmatpush1.bf16.msra.mxu0 %v1688
        %1692 = vmatprep.subr.bf16.mxu0 0
        %1693 = vmatpush1.bf16.msra.mxu0 0
        %1694 = vmatprep.subr.bf16.mxu0 0
        %1695 = vmatpush1.bf16.msra.mxu0 0
        %1696 = vmatprep.subr.bf16.mxu0 0
        %1697 = vmatpush1.bf16.msra.mxu0 0
        %1698 = vmatprep.subr.bf16.mxu0 0
        %1699 = vmatpush1.bf16.msra.mxu0 0
        %1700 = vmatprep.subr.bf16.mxu0 0
        %1701 = vmatpush1.bf16.msra.mxu0 0
        %1702 = vmatprep.subr.bf16.mxu0 0
        %1703 = vmatpush1.bf16.msra.mxu0 0
        %1704 = vmatprep.subr.bf16.mxu0 0
        %1705 = vmatpush1.bf16.msra.mxu0 0
        %1706 = vmatprep.subr.bf16.mxu0 0
        %1707 = vmatpush1.bf16.msra.mxu0 0
        %1708 = vmatprep.subr.bf16.mxu0 0
        %1709 = vmatpush1.bf16.msra.mxu0 0
        %1710 = vmatprep.subr.bf16.mxu0 0
        %1711 = vmatpush1.bf16.msra.mxu0 0
        %1712 = vmatprep.subr.bf16.mxu0 0
        %1713 = vmatpush1.bf16.msra.mxu0 0
        %1714 = vmatprep.subr.bf16.mxu0 0
        %1715 = vmatpush1.bf16.msra.mxu0 0
        %1716 = vmatprep.subr.bf16.mxu0 0
        %1717 = vmatpush1.bf16.msra.mxu0 0
        %1718 = vmatprep.subr.bf16.mxu0 0
        %1719 = vmatpush1.bf16.msra.mxu0 0
        %1720 = vmatprep.subr.bf16.mxu0 0
        %1721 = vmatpush1.bf16.msra.mxu0 0
        %1722 = vmatprep.mubr.bf16.mxu0 0
        %1723 = vmatmul.mubr.bf16.gmra.mrb[0].mxu0 %v1685
        %v1724 = vpop.f32.mrb[0].mxu0
        %v1725 = vadd.f32 0.0, %v1724
        %v1726 = vpop.f32.mrb[0].mxu0
        %v1727 = vpop.f32.mrb[0].mxu0
        %v1728 = vpop.f32.mrb[0].mxu0
        %1729 = vdwg.mxu0
        %1731 = vrot.lane.b32.xlu0 %v1508, 120
        %v1732 = vpop.permute.xlu0 %1731
        %1734 = vrot.lane.b32.xlu0 %v1510, 120
        %v1735 = vpop.permute.xlu0 %1734
        %v1737 = vsel %vm1514, %v1732, 0
        %v1740 = vsel %vm1514, %v1735, 0
        %1742 = vmatprep.subr.bf16.mxu0 0
        %1743 = vmatpush1.bf16.xpose.msra.mxu0 %v1740
        %1744 = vmatprep.subr.bf16.mxu0 0
        %1745 = vmatpush1.bf16.xpose.msra.mxu0 0
        %1746 = vmatprep.subr.bf16.mxu0 0
        %1747 = vmatpush1.bf16.xpose.msra.mxu0 0
        %1748 = vmatprep.subr.bf16.mxu0 0
        %1749 = vmatpush1.bf16.xpose.msra.mxu0 0
        %1750 = vmatprep.subr.bf16.mxu0 0
        %1751 = vmatpush1.bf16.xpose.msra.mxu0 0
        %1752 = vmatprep.subr.bf16.mxu0 0
        %1753 = vmatpush1.bf16.xpose.msra.mxu0 0
        %1754 = vmatprep.subr.bf16.mxu0 0
        %1755 = vmatpush1.bf16.xpose.msra.mxu0 0
        %1756 = vmatprep.subr.bf16.mxu0 0
        %1757 = vmatpush1.bf16.xpose.msra.mxu0 0
        %1758 = vmatprep.subr.bf16.mxu0 0
        %1759 = vmatpush1.bf16.xpose.msra.mxu0 0
        %1760 = vmatprep.subr.bf16.mxu0 0
        %1761 = vmatpush1.bf16.xpose.msra.mxu0 0
        %1762 = vmatprep.subr.bf16.mxu0 0
        %1763 = vmatpush1.bf16.xpose.msra.mxu0 0
        %1764 = vmatprep.subr.bf16.mxu0 0
        %1765 = vmatpush1.bf16.xpose.msra.mxu0 0
        %1766 = vmatprep.subr.bf16.mxu0 0
        %1767 = vmatpush1.bf16.xpose.msra.mxu0 0
        %1768 = vmatprep.subr.bf16.mxu0 0
        %1769 = vmatpush1.bf16.xpose.msra.mxu0 0
        %1770 = vmatprep.subr.bf16.mxu0 0
        %1771 = vmatpush1.bf16.xpose.msra.mxu0 0
        %1772 = vmatprep.subr.bf16.mxu0 0
        %1773 = vmatpush1.bf16.xpose.msra.mxu0 0
        %1774 = vmatprep.mubr.bf16.mxu0 0
        %1775 = vmatmul.mubr.bf16.gmra.mrb[0].mxu0 %v1737
        %v1776 = vpop.f32.mrb[0].mxu0
        %v1777 = vadd.f32 0.0, %v1776
        %v1778 = vpop.f32.mrb[0].mxu0
        %v1779 = vpop.f32.mrb[0].mxu0
        %v1780 = vpop.f32.mrb[0].mxu0
        %1781 = vdwg.mxu0
        %1783 = vrot.lane.b32.xlu0 %v1509, 120
        %v1784 = vpop.permute.xlu0 %1783
        %1786 = vrot.lane.b32.xlu0 %v1511, 120
        %v1787 = vpop.permute.xlu0 %1786
        %v1789 = vsel %vm1514, %v1784, 0
        %v1792 = vsel %vm1514, %v1787, 0
        %1794 = vmatprep.subr.bf16.mxu0 0
        %1795 = vmatpush1.bf16.xpose.msra.mxu0 %v1792
        %1796 = vmatprep.subr.bf16.mxu0 0
        %1797 = vmatpush1.bf16.xpose.msra.mxu0 0
        %1798 = vmatprep.subr.bf16.mxu0 0
        %1799 = vmatpush1.bf16.xpose.msra.mxu0 0
        %1800 = vmatprep.subr.bf16.mxu0 0
        %1801 = vmatpush1.bf16.xpose.msra.mxu0 0
        %1802 = vmatprep.subr.bf16.mxu0 0
        %1803 = vmatpush1.bf16.xpose.msra.mxu0 0
        %1804 = vmatprep.subr.bf16.mxu0 0
        %1805 = vmatpush1.bf16.xpose.msra.mxu0 0
        %1806 = vmatprep.subr.bf16.mxu0 0
        %1807 = vmatpush1.bf16.xpose.msra.mxu0 0
        %1808 = vmatprep.subr.bf16.mxu0 0
        %1809 = vmatpush1.bf16.xpose.msra.mxu0 0
        %1810 = vmatprep.subr.bf16.mxu0 0
        %1811 = vmatpush1.bf16.xpose.msra.mxu0 0
        %1812 = vmatprep.subr.bf16.mxu0 0
        %1813 = vmatpush1.bf16.xpose.msra.mxu0 0
        %1814 = vmatprep.subr.bf16.mxu0 0
        %1815 = vmatpush1.bf16.xpose.msra.mxu0 0
        %1816 = vmatprep.subr.bf16.mxu0 0
        %1817 = vmatpush1.bf16.xpose.msra.mxu0 0
        %1818 = vmatprep.subr.bf16.mxu0 0
        %1819 = vmatpush1.bf16.xpose.msra.mxu0 0
        %1820 = vmatprep.subr.bf16.mxu0 0
        %1821 = vmatpush1.bf16.xpose.msra.mxu0 0
        %1822 = vmatprep.subr.bf16.mxu0 0
        %1823 = vmatpush1.bf16.xpose.msra.mxu0 0
        %1824 = vmatprep.subr.bf16.mxu0 0
        %1825 = vmatpush1.bf16.xpose.msra.mxu0 0
        %1826 = vmatprep.mubr.bf16.mxu0 0
        %1827 = vmatmul.mubr.bf16.gmra.mrb[0].mxu0 %v1789
        %v1828 = vpop.f32.mrb[0].mxu0
        %v1829 = vadd.f32 0.0, %v1828
        %v1830 = vpop.f32.mrb[0].mxu0
        %v1831 = vpop.f32.mrb[0].mxu0
        %v1832 = vpop.f32.mrb[0].mxu0
        %1833 = vdwg.mxu0
        %v1834 = vmul.f32 %v1777, 0.35355338
        %v1835 = vmul.f32 %v1829, 0.35355338
        %v1836 = vsel %vm1610, %v1834, -1e+30
        %v1837 = vsel %vm1610, %v1835, -1e+30
        %v1838 = vsel %vm1514, %v1836, -inf
        %1839 = vmax.xlane.f32.xlu0 %v1838
        %v1840 = vpop.xlane.xlu0 %1839
        %v1841 = vsel %vm1514, %v1837, -inf
        %1842 = vmax.xlane.f32.xlu0 %v1841
        %v1843 = vpop.xlane.xlu0 %1842
        %v1844 = vsub.f32 %v1836, %v1840
        %v1845 = vsub.f32 %v1837, %v1843
        %v1846 = vmul.f32 %v1844, 1.442695
        %v1847 = vpow.pop %v1846
        %v1848 = vmul.f32 %v1845, 1.442695
        %v1849 = vpow.pop %v1848
        %v1850 = vsel %vm1514, %v1847, 0.0
        %1851 = vadd.xlane.f32.xlu0 %v1850
        %v1852 = vpop.xlane.xlu0 %1851
        %v1853 = vsel %vm1514, %v1849, 0.0
        %1854 = vadd.xlane.f32.xlu0 %v1853
        %v1855 = vpop.xlane.xlu0 %1854
        %v1856 = vrcp.pop %v1852
        %v1857 = vmul.f32 %v1847, %v1856
        %v1858 = vrcp.pop %v1855
        %v1859 = vmul.f32 %v1849, %v1858
        %v1860 = vpack.c.bf16 %v1857, %v1857
        %v1861 = vpack.c.bf16 %v1859, %v1859
        %1863 = vrot.lane.b32.xlu0 %v1512, 120
        %v1864 = vpop.permute.xlu0 %1863
        %v1866 = vsel %vm1514, %v1860, 0
        %v1869 = vsel %vm1640, %v1864, 0
        %1871 = vmatprep.subr.bf16.mxu0 0
        %1872 = vmatpush1.bf16.msra.mxu0 %v1869
        %1873 = vmatprep.subr.bf16.mxu0 0
        %1874 = vmatpush1.bf16.msra.mxu0 0
        %1875 = vmatprep.subr.bf16.mxu0 0
        %1876 = vmatpush1.bf16.msra.mxu0 0
        %1877 = vmatprep.subr.bf16.mxu0 0
        %1878 = vmatpush1.bf16.msra.mxu0 0
        %1879 = vmatprep.subr.bf16.mxu0 0
        %1880 = vmatpush1.bf16.msra.mxu0 0
        %1881 = vmatprep.subr.bf16.mxu0 0
        %1882 = vmatpush1.bf16.msra.mxu0 0
        %1883 = vmatprep.subr.bf16.mxu0 0
        %1884 = vmatpush1.bf16.msra.mxu0 0
        %1885 = vmatprep.subr.bf16.mxu0 0
        %1886 = vmatpush1.bf16.msra.mxu0 0
        %1887 = vmatprep.subr.bf16.mxu0 0
        %1888 = vmatpush1.bf16.msra.mxu0 0
        %1889 = vmatprep.subr.bf16.mxu0 0
        %1890 = vmatpush1.bf16.msra.mxu0 0
        %1891 = vmatprep.subr.bf16.mxu0 0
        %1892 = vmatpush1.bf16.msra.mxu0 0
        %1893 = vmatprep.subr.bf16.mxu0 0
        %1894 = vmatpush1.bf16.msra.mxu0 0
        %1895 = vmatprep.subr.bf16.mxu0 0
        %1896 = vmatpush1.bf16.msra.mxu0 0
        %1897 = vmatprep.subr.bf16.mxu0 0
        %1898 = vmatpush1.bf16.msra.mxu0 0
        %1899 = vmatprep.subr.bf16.mxu0 0
        %1900 = vmatpush1.bf16.msra.mxu0 0
        %1901 = vmatprep.subr.bf16.mxu0 0
        %1902 = vmatpush1.bf16.msra.mxu0 0
        %1903 = vmatprep.mubr.bf16.mxu0 0
        %1904 = vmatmul.mubr.bf16.gmra.mrb[0].mxu0 %v1866
        %v1905 = vpop.f32.mrb[0].mxu0
        %v1906 = vadd.f32 0.0, %v1905
        %v1907 = vpop.f32.mrb[0].mxu0
        %v1908 = vpop.f32.mrb[0].mxu0
        %v1909 = vpop.f32.mrb[0].mxu0
        %1910 = vdwg.mxu0
        %1912 = vrot.lane.b32.xlu0 %v1513, 120
        %v1913 = vpop.permute.xlu0 %1912
        %v1915 = vsel %vm1514, %v1861, 0
        %v1918 = vsel %vm1640, %v1913, 0
        %1920 = vmatprep.subr.bf16.mxu0 0
        %1921 = vmatpush1.bf16.msra.mxu0 %v1918
        %1922 = vmatprep.subr.bf16.mxu0 0
        %1923 = vmatpush1.bf16.msra.mxu0 0
        %1924 = vmatprep.subr.bf16.mxu0 0
        %1925 = vmatpush1.bf16.msra.mxu0 0
        %1926 = vmatprep.subr.bf16.mxu0 0
        %1927 = vmatpush1.bf16.msra.mxu0 0
        %1928 = vmatprep.subr.bf16.mxu0 0
        %1929 = vmatpush1.bf16.msra.mxu0 0
        %1930 = vmatprep.subr.bf16.mxu0 0
        %1931 = vmatpush1.bf16.msra.mxu0 0
        %1932 = vmatprep.subr.bf16.mxu0 0
        %1933 = vmatpush1.bf16.msra.mxu0 0
        %1934 = vmatprep.subr.bf16.mxu0 0
        %1935 = vmatpush1.bf16.msra.mxu0 0
        %1936 = vmatprep.subr.bf16.mxu0 0
        %1937 = vmatpush1.bf16.msra.mxu0 0
        %1938 = vmatprep.subr.bf16.mxu0 0
        %1939 = vmatpush1.bf16.msra.mxu0 0
        %1940 = vmatprep.subr.bf16.mxu0 0
        %1941 = vmatpush1.bf16.msra.mxu0 0
        %1942 = vmatprep.subr.bf16.mxu0 0
        %1943 = vmatpush1.bf16.msra.mxu0 0
        %1944 = vmatprep.subr.bf16.mxu0 0
        %1945 = vmatpush1.bf16.msra.mxu0 0
        %1946 = vmatprep.subr.bf16.mxu0 0
        %1947 = vmatpush1.bf16.msra.mxu0 0
        %1948 = vmatprep.subr.bf16.mxu0 0
        %1949 = vmatpush1.bf16.msra.mxu0 0
        %1950 = vmatprep.subr.bf16.mxu0 0
        %1951 = vmatpush1.bf16.msra.mxu0 0
        %1952 = vmatprep.mubr.bf16.mxu0 0
        %1953 = vmatmul.mubr.bf16.gmra.mrb[0].mxu0 %v1915
        %v1954 = vpop.f32.mrb[0].mxu0
        %v1955 = vadd.f32 0.0, %v1954
        %v1956 = vpop.f32.mrb[0].mxu0
        %v1957 = vpop.f32.mrb[0].mxu0
        %v1958 = vpop.f32.mrb[0].mxu0
        %1959 = vdwg.mxu0
        %1960 = vrot.lane.b32.xlu0 %v1508, 112
        %v1961 = vpop.permute.xlu0 %1960
        %1962 = vrot.lane.b32.xlu0 %v1510, 112
        %v1963 = vpop.permute.xlu0 %1962
        %v1965 = vsel %vm1514, %v1961, 0
        %v1968 = vsel %vm1514, %v1963, 0
        %1970 = vmatprep.subr.bf16.mxu0 0
        %1971 = vmatpush1.bf16.xpose.msra.mxu0 %v1968
        %1972 = vmatprep.subr.bf16.mxu0 0
        %1973 = vmatpush1.bf16.xpose.msra.mxu0 0
        %1974 = vmatprep.subr.bf16.mxu0 0
        %1975 = vmatpush1.bf16.xpose.msra.mxu0 0
        %1976 = vmatprep.subr.bf16.mxu0 0
        %1977 = vmatpush1.bf16.xpose.msra.mxu0 0
        %1978 = vmatprep.subr.bf16.mxu0 0
        %1979 = vmatpush1.bf16.xpose.msra.mxu0 0
        %1980 = vmatprep.subr.bf16.mxu0 0
        %1981 = vmatpush1.bf16.xpose.msra.mxu0 0
        %1982 = vmatprep.subr.bf16.mxu0 0
        %1983 = vmatpush1.bf16.xpose.msra.mxu0 0
        %1984 = vmatprep.subr.bf16.mxu0 0
        %1985 = vmatpush1.bf16.xpose.msra.mxu0 0
        %1986 = vmatprep.subr.bf16.mxu0 0
        %1987 = vmatpush1.bf16.xpose.msra.mxu0 0
        %1988 = vmatprep.subr.bf16.mxu0 0
        %1989 = vmatpush1.bf16.xpose.msra.mxu0 0
        %1990 = vmatprep.subr.bf16.mxu0 0
        %1991 = vmatpush1.bf16.xpose.msra.mxu0 0
        %1992 = vmatprep.subr.bf16.mxu0 0
        %1993 = vmatpush1.bf16.xpose.msra.mxu0 0
        %1994 = vmatprep.subr.bf16.mxu0 0
        %1995 = vmatpush1.bf16.xpose.msra.mxu0 0
        %1996 = vmatprep.subr.bf16.mxu0 0
        %1997 = vmatpush1.bf16.xpose.msra.mxu0 0
        %1998 = vmatprep.subr.bf16.mxu0 0
        %1999 = vmatpush1.bf16.xpose.msra.mxu0 0
        %2000 = vmatprep.subr.bf16.mxu0 0
        %2001 = vmatpush1.bf16.xpose.msra.mxu0 0
        %2002 = vmatprep.mubr.bf16.mxu0 0
        %2003 = vmatmul.mubr.bf16.gmra.mrb[0].mxu0 %v1965
        %v2004 = vpop.f32.mrb[0].mxu0
        %v2005 = vadd.f32 0.0, %v2004
        %v2006 = vpop.f32.mrb[0].mxu0
        %v2007 = vpop.f32.mrb[0].mxu0
        %v2008 = vpop.f32.mrb[0].mxu0
        %2009 = vdwg.mxu0
        %2010 = vrot.lane.b32.xlu0 %v1509, 112
        %v2011 = vpop.permute.xlu0 %2010
        %2012 = vrot.lane.b32.xlu0 %v1511, 112
        %v2013 = vpop.permute.xlu0 %2012
        %v2015 = vsel %vm1514, %v2011, 0
        %v2018 = vsel %vm1514, %v2013, 0
        %2020 = vmatprep.subr.bf16.mxu0 0
        %2021 = vmatpush1.bf16.xpose.msra.mxu0 %v2018
        %2022 = vmatprep.subr.bf16.mxu0 0
        %2023 = vmatpush1.bf16.xpose.msra.mxu0 0
        %2024 = vmatprep.subr.bf16.mxu0 0
        %2025 = vmatpush1.bf16.xpose.msra.mxu0 0
        %2026 = vmatprep.subr.bf16.mxu0 0
        %2027 = vmatpush1.bf16.xpose.msra.mxu0 0
        %2028 = vmatprep.subr.bf16.mxu0 0
        %2029 = vmatpush1.bf16.xpose.msra.mxu0 0
        %2030 = vmatprep.subr.bf16.mxu0 0
        %2031 = vmatpush1.bf16.xpose.msra.mxu0 0
        %2032 = vmatprep.subr.bf16.mxu0 0
        %2033 = vmatpush1.bf16.xpose.msra.mxu0 0
        %2034 = vmatprep.subr.bf16.mxu0 0
        %2035 = vmatpush1.bf16.xpose.msra.mxu0 0
        %2036 = vmatprep.subr.bf16.mxu0 0
        %2037 = vmatpush1.bf16.xpose.msra.mxu0 0
        %2038 = vmatprep.subr.bf16.mxu0 0
        %2039 = vmatpush1.bf16.xpose.msra.mxu0 0
        %2040 = vmatprep.subr.bf16.mxu0 0
        %2041 = vmatpush1.bf16.xpose.msra.mxu0 0
        %2042 = vmatprep.subr.bf16.mxu0 0
        %2043 = vmatpush1.bf16.xpose.msra.mxu0 0
        %2044 = vmatprep.subr.bf16.mxu0 0
        %2045 = vmatpush1.bf16.xpose.msra.mxu0 0
        %2046 = vmatprep.subr.bf16.mxu0 0
        %2047 = vmatpush1.bf16.xpose.msra.mxu0 0
        %2048 = vmatprep.subr.bf16.mxu0 0
        %2049 = vmatpush1.bf16.xpose.msra.mxu0 0
        %2050 = vmatprep.subr.bf16.mxu0 0
        %2051 = vmatpush1.bf16.xpose.msra.mxu0 0
        %2052 = vmatprep.mubr.bf16.mxu0 0
        %2053 = vmatmul.mubr.bf16.gmra.mrb[0].mxu0 %v2015
        %v2054 = vpop.f32.mrb[0].mxu0
        %v2055 = vadd.f32 0.0, %v2054
        %v2056 = vpop.f32.mrb[0].mxu0
        %v2057 = vpop.f32.mrb[0].mxu0
        %v2058 = vpop.f32.mrb[0].mxu0
        %2059 = vdwg.mxu0
        %v2060 = vmul.f32 %v2005, 0.35355338
        %v2061 = vmul.f32 %v2055, 0.35355338
        %v2062 = vsel %vm1610, %v2060, -1e+30
        %v2063 = vsel %vm1610, %v2061, -1e+30
        %v2064 = vsel %vm1514, %v2062, -inf
        %2065 = vmax.xlane.f32.xlu0 %v2064
        %v2066 = vpop.xlane.xlu0 %2065
        %v2067 = vsel %vm1514, %v2063, -inf
        %2068 = vmax.xlane.f32.xlu0 %v2067
        %v2069 = vpop.xlane.xlu0 %2068
        %v2070 = vsub.f32 %v2062, %v2066
        %v2071 = vsub.f32 %v2063, %v2069
        %v2072 = vmul.f32 %v2070, 1.442695
        %v2073 = vpow.pop %v2072
        %v2074 = vmul.f32 %v2071, 1.442695
        %v2075 = vpow.pop %v2074
        %v2076 = vsel %vm1514, %v2073, 0.0
        %2077 = vadd.xlane.f32.xlu0 %v2076
        %v2078 = vpop.xlane.xlu0 %2077
        %v2079 = vsel %vm1514, %v2075, 0.0
        %2080 = vadd.xlane.f32.xlu0 %v2079
        %v2081 = vpop.xlane.xlu0 %2080
        %v2082 = vrcp.pop %v2078
        %v2083 = vmul.f32 %v2073, %v2082
        %v2084 = vrcp.pop %v2081
        %v2085 = vmul.f32 %v2075, %v2084
        %v2086 = vpack.c.bf16 %v2083, %v2083
        %v2087 = vpack.c.bf16 %v2085, %v2085
        %2088 = vrot.lane.b32.xlu0 %v1512, 112
        %v2089 = vpop.permute.xlu0 %2088
        %v2091 = vsel %vm1514, %v2086, 0
        %v2094 = vsel %vm1640, %v2089, 0
        %2096 = vmatprep.subr.bf16.mxu0 0
        %2097 = vmatpush1.bf16.msra.mxu0 %v2094
        %2098 = vmatprep.subr.bf16.mxu0 0
        %2099 = vmatpush1.bf16.msra.mxu0 0
        %2100 = vmatprep.subr.bf16.mxu0 0
        %2101 = vmatpush1.bf16.msra.mxu0 0
        %2102 = vmatprep.subr.bf16.mxu0 0
        %2103 = vmatpush1.bf16.msra.mxu0 0
        %2104 = vmatprep.subr.bf16.mxu0 0
        %2105 = vmatpush1.bf16.msra.mxu0 0
        %2106 = vmatprep.subr.bf16.mxu0 0
        %2107 = vmatpush1.bf16.msra.mxu0 0
        %2108 = vmatprep.subr.bf16.mxu0 0
        %2109 = vmatpush1.bf16.msra.mxu0 0
        %2110 = vmatprep.subr.bf16.mxu0 0
        %2111 = vmatpush1.bf16.msra.mxu0 0
        %2112 = vmatprep.subr.bf16.mxu0 0
        %2113 = vmatpush1.bf16.msra.mxu0 0
        %2114 = vmatprep.subr.bf16.mxu0 0
        %2115 = vmatpush1.bf16.msra.mxu0 0
        %2116 = vmatprep.subr.bf16.mxu0 0
        %2117 = vmatpush1.bf16.msra.mxu0 0
        %2118 = vmatprep.subr.bf16.mxu0 0
        %2119 = vmatpush1.bf16.msra.mxu0 0
        %2120 = vmatprep.subr.bf16.mxu0 0
        %2121 = vmatpush1.bf16.msra.mxu0 0
        %2122 = vmatprep.subr.bf16.mxu0 0
        %2123 = vmatpush1.bf16.msra.mxu0 0
        %2124 = vmatprep.subr.bf16.mxu0 0
        %2125 = vmatpush1.bf16.msra.mxu0 0
        %2126 = vmatprep.subr.bf16.mxu0 0
        %2127 = vmatpush1.bf16.msra.mxu0 0
        %2128 = vmatprep.mubr.bf16.mxu0 0
        %2129 = vmatmul.mubr.bf16.gmra.mrb[0].mxu0 %v2091
        %v2130 = vpop.f32.mrb[0].mxu0
        %v2131 = vadd.f32 0.0, %v2130
        %v2132 = vpop.f32.mrb[0].mxu0
        %v2133 = vpop.f32.mrb[0].mxu0
        %v2134 = vpop.f32.mrb[0].mxu0
        %2135 = vdwg.mxu0
        %2136 = vrot.lane.b32.xlu0 %v1513, 112
        %v2137 = vpop.permute.xlu0 %2136
        %v2139 = vsel %vm1514, %v2087, 0
        %v2142 = vsel %vm1640, %v2137, 0
        %2144 = vmatprep.subr.bf16.mxu0 0
        %2145 = vmatpush1.bf16.msra.mxu0 %v2142
        %2146 = vmatprep.subr.bf16.mxu0 0
        %2147 = vmatpush1.bf16.msra.mxu0 0
        %2148 = vmatprep.subr.bf16.mxu0 0
        %2149 = vmatpush1.bf16.msra.mxu0 0
        %2150 = vmatprep.subr.bf16.mxu0 0
        %2151 = vmatpush1.bf16.msra.mxu0 0
        %2152 = vmatprep.subr.bf16.mxu0 0
        %2153 = vmatpush1.bf16.msra.mxu0 0
        %2154 = vmatprep.subr.bf16.mxu0 0
        %2155 = vmatpush1.bf16.msra.mxu0 0
        %2156 = vmatprep.subr.bf16.mxu0 0
        %2157 = vmatpush1.bf16.msra.mxu0 0
        %2158 = vmatprep.subr.bf16.mxu0 0
        %2159 = vmatpush1.bf16.msra.mxu0 0
        %2160 = vmatprep.subr.bf16.mxu0 0
        %2161 = vmatpush1.bf16.msra.mxu0 0
        %2162 = vmatprep.subr.bf16.mxu0 0
        %2163 = vmatpush1.bf16.msra.mxu0 0
        %2164 = vmatprep.subr.bf16.mxu0 0
        %2165 = vmatpush1.bf16.msra.mxu0 0
        %2166 = vmatprep.subr.bf16.mxu0 0
        %2167 = vmatpush1.bf16.msra.mxu0 0
        %2168 = vmatprep.subr.bf16.mxu0 0
        %2169 = vmatpush1.bf16.msra.mxu0 0
        %2170 = vmatprep.subr.bf16.mxu0 0
        %2171 = vmatpush1.bf16.msra.mxu0 0
        %2172 = vmatprep.subr.bf16.mxu0 0
        %2173 = vmatpush1.bf16.msra.mxu0 0
        %2174 = vmatprep.subr.bf16.mxu0 0
        %2175 = vmatpush1.bf16.msra.mxu0 0
        %2176 = vmatprep.mubr.bf16.mxu0 0
        %2177 = vmatmul.mubr.bf16.gmra.mrb[0].mxu0 %v2139
        %v2178 = vpop.f32.mrb[0].mxu0
        %v2179 = vadd.f32 0.0, %v2178
        %v2180 = vpop.f32.mrb[0].mxu0
        %v2181 = vpop.f32.mrb[0].mxu0
        %v2182 = vpop.f32.mrb[0].mxu0
        %2183 = vdwg.mxu0
        %2184 = vrot.lane.b32.xlu0 %v1508, 104
        %v2185 = vpop.permute.xlu0 %2184
        %2186 = vrot.lane.b32.xlu0 %v1510, 104
        %v2187 = vpop.permute.xlu0 %2186
        %v2189 = vsel %vm1514, %v2185, 0
        %v2192 = vsel %vm1514, %v2187, 0
        %2194 = vmatprep.subr.bf16.mxu0 0
        %2195 = vmatpush1.bf16.xpose.msra.mxu0 %v2192
        %2196 = vmatprep.subr.bf16.mxu0 0
        %2197 = vmatpush1.bf16.xpose.msra.mxu0 0
        %2198 = vmatprep.subr.bf16.mxu0 0
        %2199 = vmatpush1.bf16.xpose.msra.mxu0 0
        %2200 = vmatprep.subr.bf16.mxu0 0
        %2201 = vmatpush1.bf16.xpose.msra.mxu0 0
        %2202 = vmatprep.subr.bf16.mxu0 0
        %2203 = vmatpush1.bf16.xpose.msra.mxu0 0
        %2204 = vmatprep.subr.bf16.mxu0 0
        %2205 = vmatpush1.bf16.xpose.msra.mxu0 0
        %2206 = vmatprep.subr.bf16.mxu0 0
        %2207 = vmatpush1.bf16.xpose.msra.mxu0 0
        %2208 = vmatprep.subr.bf16.mxu0 0
        %2209 = vmatpush1.bf16.xpose.msra.mxu0 0
        %2210 = vmatprep.subr.bf16.mxu0 0
        %2211 = vmatpush1.bf16.xpose.msra.mxu0 0
        %2212 = vmatprep.subr.bf16.mxu0 0
        %2213 = vmatpush1.bf16.xpose.msra.mxu0 0
        %2214 = vmatprep.subr.bf16.mxu0 0
        %2215 = vmatpush1.bf16.xpose.msra.mxu0 0
        %2216 = vmatprep.subr.bf16.mxu0 0
        %2217 = vmatpush1.bf16.xpose.msra.mxu0 0
        %2218 = vmatprep.subr.bf16.mxu0 0
        %2219 = vmatpush1.bf16.xpose.msra.mxu0 0
        %2220 = vmatprep.subr.bf16.mxu0 0
        %2221 = vmatpush1.bf16.xpose.msra.mxu0 0
        %2222 = vmatprep.subr.bf16.mxu0 0
        %2223 = vmatpush1.bf16.xpose.msra.mxu0 0
        %2224 = vmatprep.subr.bf16.mxu0 0
        %2225 = vmatpush1.bf16.xpose.msra.mxu0 0
        %2226 = vmatprep.mubr.bf16.mxu0 0
        %2227 = vmatmul.mubr.bf16.gmra.mrb[0].mxu0 %v2189
        %v2228 = vpop.f32.mrb[0].mxu0
        %v2229 = vadd.f32 0.0, %v2228
        %v2230 = vpop.f32.mrb[0].mxu0
        %v2231 = vpop.f32.mrb[0].mxu0
        %v2232 = vpop.f32.mrb[0].mxu0
        %2233 = vdwg.mxu0
        %2234 = vrot.lane.b32.xlu0 %v1509, 104
        %v2235 = vpop.permute.xlu0 %2234
        %2236 = vrot.lane.b32.xlu0 %v1511, 104
        %v2237 = vpop.permute.xlu0 %2236
        %v2239 = vsel %vm1514, %v2235, 0
        %v2242 = vsel %vm1514, %v2237, 0
        %2244 = vmatprep.subr.bf16.mxu0 0
        %2245 = vmatpush1.bf16.xpose.msra.mxu0 %v2242
        %2246 = vmatprep.subr.bf16.mxu0 0
        %2247 = vmatpush1.bf16.xpose.msra.mxu0 0
        %2248 = vmatprep.subr.bf16.mxu0 0
        %2249 = vmatpush1.bf16.xpose.msra.mxu0 0
        %2250 = vmatprep.subr.bf16.mxu0 0
        %2251 = vmatpush1.bf16.xpose.msra.mxu0 0
        %2252 = vmatprep.subr.bf16.mxu0 0
        %2253 = vmatpush1.bf16.xpose.msra.mxu0 0
        %2254 = vmatprep.subr.bf16.mxu0 0
        %2255 = vmatpush1.bf16.xpose.msra.mxu0 0
        %2256 = vmatprep.subr.bf16.mxu0 0
        %2257 = vmatpush1.bf16.xpose.msra.mxu0 0
        %2258 = vmatprep.subr.bf16.mxu0 0
        %2259 = vmatpush1.bf16.xpose.msra.mxu0 0
        %2260 = vmatprep.subr.bf16.mxu0 0
        %2261 = vmatpush1.bf16.xpose.msra.mxu0 0
        %2262 = vmatprep.subr.bf16.mxu0 0
        %2263 = vmatpush1.bf16.xpose.msra.mxu0 0
        %2264 = vmatprep.subr.bf16.mxu0 0
        %2265 = vmatpush1.bf16.xpose.msra.mxu0 0
        %2266 = vmatprep.subr.bf16.mxu0 0
        %2267 = vmatpush1.bf16.xpose.msra.mxu0 0
        %2268 = vmatprep.subr.bf16.mxu0 0
        %2269 = vmatpush1.bf16.xpose.msra.mxu0 0
        %2270 = vmatprep.subr.bf16.mxu0 0
        %2271 = vmatpush1.bf16.xpose.msra.mxu0 0
        %2272 = vmatprep.subr.bf16.mxu0 0
        %2273 = vmatpush1.bf16.xpose.msra.mxu0 0
        %2274 = vmatprep.subr.bf16.mxu0 0
        %2275 = vmatpush1.bf16.xpose.msra.mxu0 0
        %2276 = vmatprep.mubr.bf16.mxu0 0
        %2277 = vmatmul.mubr.bf16.gmra.mrb[0].mxu0 %v2239
        %v2278 = vpop.f32.mrb[0].mxu0
        %v2279 = vadd.f32 0.0, %v2278
        %v2280 = vpop.f32.mrb[0].mxu0
        %v2281 = vpop.f32.mrb[0].mxu0
        %v2282 = vpop.f32.mrb[0].mxu0
        %2283 = vdwg.mxu0
        %v2284 = vmul.f32 %v2229, 0.35355338
        %v2285 = vmul.f32 %v2279, 0.35355338
        %v2286 = vsel %vm1610, %v2284, -1e+30
        %v2287 = vsel %vm1610, %v2285, -1e+30
        %v2288 = vsel %vm1514, %v2286, -inf
        %2289 = vmax.xlane.f32.xlu0 %v2288
        %v2290 = vpop.xlane.xlu0 %2289
        %v2291 = vsel %vm1514, %v2287, -inf
        %2292 = vmax.xlane.f32.xlu0 %v2291
        %v2293 = vpop.xlane.xlu0 %2292
        %v2294 = vsub.f32 %v2286, %v2290
        %v2295 = vsub.f32 %v2287, %v2293
        %v2296 = vmul.f32 %v2294, 1.442695
        %v2297 = vpow.pop %v2296
        %v2298 = vmul.f32 %v2295, 1.442695
        %v2299 = vpow.pop %v2298
        %v2300 = vsel %vm1514, %v2297, 0.0
        %2301 = vadd.xlane.f32.xlu0 %v2300
        %v2302 = vpop.xlane.xlu0 %2301
        %v2303 = vsel %vm1514, %v2299, 0.0
        %2304 = vadd.xlane.f32.xlu0 %v2303
        %v2305 = vpop.xlane.xlu0 %2304
        %v2306 = vrcp.pop %v2302
        %v2307 = vmul.f32 %v2297, %v2306
        %v2308 = vrcp.pop %v2305
        %v2309 = vmul.f32 %v2299, %v2308
        %v2310 = vpack.c.bf16 %v2307, %v2307
        %v2311 = vpack.c.bf16 %v2309, %v2309
        %2312 = vrot.lane.b32.xlu0 %v1512, 104
        %v2313 = vpop.permute.xlu0 %2312
        %v2315 = vsel %vm1514, %v2310, 0
        %v2318 = vsel %vm1640, %v2313, 0
        %2320 = vmatprep.subr.bf16.mxu0 0
        %2321 = vmatpush1.bf16.msra.mxu0 %v2318
        %2322 = vmatprep.subr.bf16.mxu0 0
        %2323 = vmatpush1.bf16.msra.mxu0 0
        %2324 = vmatprep.subr.bf16.mxu0 0
        %2325 = vmatpush1.bf16.msra.mxu0 0
        %2326 = vmatprep.subr.bf16.mxu0 0
        %2327 = vmatpush1.bf16.msra.mxu0 0
        %2328 = vmatprep.subr.bf16.mxu0 0
        %2329 = vmatpush1.bf16.msra.mxu0 0
        %2330 = vmatprep.subr.bf16.mxu0 0
        %2331 = vmatpush1.bf16.msra.mxu0 0
        %2332 = vmatprep.subr.bf16.mxu0 0
        %2333 = vmatpush1.bf16.msra.mxu0 0
        %2334 = vmatprep.subr.bf16.mxu0 0
        %2335 = vmatpush1.bf16.msra.mxu0 0
        %2336 = vmatprep.subr.bf16.mxu0 0
        %2337 = vmatpush1.bf16.msra.mxu0 0
        %2338 = vmatprep.subr.bf16.mxu0 0
        %2339 = vmatpush1.bf16.msra.mxu0 0
        %2340 = vmatprep.subr.bf16.mxu0 0
        %2341 = vmatpush1.bf16.msra.mxu0 0
        %2342 = vmatprep.subr.bf16.mxu0 0
        %2343 = vmatpush1.bf16.msra.mxu0 0
        %2344 = vmatprep.subr.bf16.mxu0 0
        %2345 = vmatpush1.bf16.msra.mxu0 0
        %2346 = vmatprep.subr.bf16.mxu0 0
        %2347 = vmatpush1.bf16.msra.mxu0 0
        %2348 = vmatprep.subr.bf16.mxu0 0
        %2349 = vmatpush1.bf16.msra.mxu0 0
        %2350 = vmatprep.subr.bf16.mxu0 0
        %2351 = vmatpush1.bf16.msra.mxu0 0
        %2352 = vmatprep.mubr.bf16.mxu0 0
        %2353 = vmatmul.mubr.bf16.gmra.mrb[0].mxu0 %v2315
        %v2354 = vpop.f32.mrb[0].mxu0
        %v2355 = vadd.f32 0.0, %v2354
        %v2356 = vpop.f32.mrb[0].mxu0
        %v2357 = vpop.f32.mrb[0].mxu0
        %v2358 = vpop.f32.mrb[0].mxu0
        %2359 = vdwg.mxu0
        %2360 = vrot.lane.b32.xlu0 %v1513, 104
        %v2361 = vpop.permute.xlu0 %2360
        %v2363 = vsel %vm1514, %v2311, 0
        %v2366 = vsel %vm1640, %v2361, 0
        %2368 = vmatprep.subr.bf16.mxu0 0
        %2369 = vmatpush1.bf16.msra.mxu0 %v2366
        %2370 = vmatprep.subr.bf16.mxu0 0
        %2371 = vmatpush1.bf16.msra.mxu0 0
        %2372 = vmatprep.subr.bf16.mxu0 0
        %2373 = vmatpush1.bf16.msra.mxu0 0
        %2374 = vmatprep.subr.bf16.mxu0 0
        %2375 = vmatpush1.bf16.msra.mxu0 0
        %2376 = vmatprep.subr.bf16.mxu0 0
        %2377 = vmatpush1.bf16.msra.mxu0 0
        %2378 = vmatprep.subr.bf16.mxu0 0
        %2379 = vmatpush1.bf16.msra.mxu0 0
        %2380 = vmatprep.subr.bf16.mxu0 0
        %2381 = vmatpush1.bf16.msra.mxu0 0
        %2382 = vmatprep.subr.bf16.mxu0 0
        %2383 = vmatpush1.bf16.msra.mxu0 0
        %2384 = vmatprep.subr.bf16.mxu0 0
        %2385 = vmatpush1.bf16.msra.mxu0 0
        %2386 = vmatprep.subr.bf16.mxu0 0
        %2387 = vmatpush1.bf16.msra.mxu0 0
        %2388 = vmatprep.subr.bf16.mxu0 0
        %2389 = vmatpush1.bf16.msra.mxu0 0
        %2390 = vmatprep.subr.bf16.mxu0 0
        %2391 = vmatpush1.bf16.msra.mxu0 0
        %2392 = vmatprep.subr.bf16.mxu0 0
        %2393 = vmatpush1.bf16.msra.mxu0 0
        %2394 = vmatprep.subr.bf16.mxu0 0
        %2395 = vmatpush1.bf16.msra.mxu0 0
        %2396 = vmatprep.subr.bf16.mxu0 0
        %2397 = vmatpush1.bf16.msra.mxu0 0
        %2398 = vmatprep.subr.bf16.mxu0 0
        %2399 = vmatpush1.bf16.msra.mxu0 0
        %2400 = vmatprep.mubr.bf16.mxu0 0
        %2401 = vmatmul.mubr.bf16.gmra.mrb[0].mxu0 %v2363
        %v2402 = vpop.f32.mrb[0].mxu0
        %v2403 = vadd.f32 0.0, %v2402
        %v2404 = vpop.f32.mrb[0].mxu0
        %v2405 = vpop.f32.mrb[0].mxu0
        %v2406 = vpop.f32.mrb[0].mxu0
        %2407 = vdwg.mxu0
        %2408 = vrot.lane.b32.xlu0 %v1508, 96
        %v2409 = vpop.permute.xlu0 %2408
        %2410 = vrot.lane.b32.xlu0 %v1510, 96
        %v2411 = vpop.permute.xlu0 %2410
        %v2413 = vsel %vm1514, %v2409, 0
        %v2416 = vsel %vm1514, %v2411, 0
        %2418 = vmatprep.subr.bf16.mxu0 0
        %2419 = vmatpush1.bf16.xpose.msra.mxu0 %v2416
        %2420 = vmatprep.subr.bf16.mxu0 0
        %2421 = vmatpush1.bf16.xpose.msra.mxu0 0
        %2422 = vmatprep.subr.bf16.mxu0 0
        %2423 = vmatpush1.bf16.xpose.msra.mxu0 0
        %2424 = vmatprep.subr.bf16.mxu0 0
        %2425 = vmatpush1.bf16.xpose.msra.mxu0 0
        %2426 = vmatprep.subr.bf16.mxu0 0
        %2427 = vmatpush1.bf16.xpose.msra.mxu0 0
        %2428 = vmatprep.subr.bf16.mxu0 0
        %2429 = vmatpush1.bf16.xpose.msra.mxu0 0
        %2430 = vmatprep.subr.bf16.mxu0 0
        %2431 = vmatpush1.bf16.xpose.msra.mxu0 0
        %2432 = vmatprep.subr.bf16.mxu0 0
        %2433 = vmatpush1.bf16.xpose.msra.mxu0 0
        %2434 = vmatprep.subr.bf16.mxu0 0
        %2435 = vmatpush1.bf16.xpose.msra.mxu0 0
        %2436 = vmatprep.subr.bf16.mxu0 0
        %2437 = vmatpush1.bf16.xpose.msra.mxu0 0
        %2438 = vmatprep.subr.bf16.mxu0 0
        %2439 = vmatpush1.bf16.xpose.msra.mxu0 0
        %2440 = vmatprep.subr.bf16.mxu0 0
        %2441 = vmatpush1.bf16.xpose.msra.mxu0 0
        %2442 = vmatprep.subr.bf16.mxu0 0
        %2443 = vmatpush1.bf16.xpose.msra.mxu0 0
        %2444 = vmatprep.subr.bf16.mxu0 0
        %2445 = vmatpush1.bf16.xpose.msra.mxu0 0
        %2446 = vmatprep.subr.bf16.mxu0 0
        %2447 = vmatpush1.bf16.xpose.msra.mxu0 0
        %2448 = vmatprep.subr.bf16.mxu0 0
        %2449 = vmatpush1.bf16.xpose.msra.mxu0 0
        %2450 = vmatprep.mubr.bf16.mxu0 0
        %2451 = vmatmul.mubr.bf16.gmra.mrb[0].mxu0 %v2413
        %v2452 = vpop.f32.mrb[0].mxu0
        %v2453 = vadd.f32 0.0, %v2452
        %v2454 = vpop.f32.mrb[0].mxu0
        %v2455 = vpop.f32.mrb[0].mxu0
        %v2456 = vpop.f32.mrb[0].mxu0
        %2457 = vdwg.mxu0
        %2458 = vrot.lane.b32.xlu0 %v1509, 96
        %v2459 = vpop.permute.xlu0 %2458
        %2460 = vrot.lane.b32.xlu0 %v1511, 96
        %v2461 = vpop.permute.xlu0 %2460
        %v2463 = vsel %vm1514, %v2459, 0
        %v2466 = vsel %vm1514, %v2461, 0
        %2468 = vmatprep.subr.bf16.mxu0 0
        %2469 = vmatpush1.bf16.xpose.msra.mxu0 %v2466
        %2470 = vmatprep.subr.bf16.mxu0 0
        %2471 = vmatpush1.bf16.xpose.msra.mxu0 0
        %2472 = vmatprep.subr.bf16.mxu0 0
        %2473 = vmatpush1.bf16.xpose.msra.mxu0 0
        %2474 = vmatprep.subr.bf16.mxu0 0
        %2475 = vmatpush1.bf16.xpose.msra.mxu0 0
        %2476 = vmatprep.subr.bf16.mxu0 0
        %2477 = vmatpush1.bf16.xpose.msra.mxu0 0
        %2478 = vmatprep.subr.bf16.mxu0 0
        %2479 = vmatpush1.bf16.xpose.msra.mxu0 0
        %2480 = vmatprep.subr.bf16.mxu0 0
        %2481 = vmatpush1.bf16.xpose.msra.mxu0 0
        %2482 = vmatprep.subr.bf16.mxu0 0
        %2483 = vmatpush1.bf16.xpose.msra.mxu0 0
        %2484 = vmatprep.subr.bf16.mxu0 0
        %2485 = vmatpush1.bf16.xpose.msra.mxu0 0
        %2486 = vmatprep.subr.bf16.mxu0 0
        %2487 = vmatpush1.bf16.xpose.msra.mxu0 0
        %2488 = vmatprep.subr.bf16.mxu0 0
        %2489 = vmatpush1.bf16.xpose.msra.mxu0 0
        %2490 = vmatprep.subr.bf16.mxu0 0
        %2491 = vmatpush1.bf16.xpose.msra.mxu0 0
        %2492 = vmatprep.subr.bf16.mxu0 0
        %2493 = vmatpush1.bf16.xpose.msra.mxu0 0
        %2494 = vmatprep.subr.bf16.mxu0 0
        %2495 = vmatpush1.bf16.xpose.msra.mxu0 0
        %2496 = vmatprep.subr.bf16.mxu0 0
        %2497 = vmatpush1.bf16.xpose.msra.mxu0 0
        %2498 = vmatprep.subr.bf16.mxu0 0
        %2499 = vmatpush1.bf16.xpose.msra.mxu0 0
        %2500 = vmatprep.mubr.bf16.mxu0 0
        %2501 = vmatmul.mubr.bf16.gmra.mrb[0].mxu0 %v2463
        %v2502 = vpop.f32.mrb[0].mxu0
        %v2503 = vadd.f32 0.0, %v2502
        %v2504 = vpop.f32.mrb[0].mxu0
        %v2505 = vpop.f32.mrb[0].mxu0
        %v2506 = vpop.f32.mrb[0].mxu0
        %2507 = vdwg.mxu0
        %v2508 = vmul.f32 %v2453, 0.35355338
        %v2509 = vmul.f32 %v2503, 0.35355338
        %v2510 = vsel %vm1610, %v2508, -1e+30
        %v2511 = vsel %vm1610, %v2509, -1e+30
        %v2512 = vsel %vm1514, %v2510, -inf
        %2513 = vmax.xlane.f32.xlu0 %v2512
        %v2514 = vpop.xlane.xlu0 %2513
        %v2515 = vsel %vm1514, %v2511, -inf
        %2516 = vmax.xlane.f32.xlu0 %v2515
        %v2517 = vpop.xlane.xlu0 %2516
        %v2518 = vsub.f32 %v2510, %v2514
        %v2519 = vsub.f32 %v2511, %v2517
        %v2520 = vmul.f32 %v2518, 1.442695
        %v2521 = vpow.pop %v2520
        %v2522 = vmul.f32 %v2519, 1.442695
        %v2523 = vpow.pop %v2522
        %v2524 = vsel %vm1514, %v2521, 0.0
        %2525 = vadd.xlane.f32.xlu0 %v2524
        %v2526 = vpop.xlane.xlu0 %2525
        %v2527 = vsel %vm1514, %v2523, 0.0
        %2528 = vadd.xlane.f32.xlu0 %v2527
        %v2529 = vpop.xlane.xlu0 %2528
        %v2530 = vrcp.pop %v2526
        %v2531 = vmul.f32 %v2521, %v2530
        %v2532 = vrcp.pop %v2529
        %v2533 = vmul.f32 %v2523, %v2532
        %v2534 = vpack.c.bf16 %v2531, %v2531
        %v2535 = vpack.c.bf16 %v2533, %v2533
        %2536 = vrot.lane.b32.xlu0 %v1512, 96
        %v2537 = vpop.permute.xlu0 %2536
        %v2539 = vsel %vm1514, %v2534, 0
        %v2542 = vsel %vm1640, %v2537, 0
        %2544 = vmatprep.subr.bf16.mxu0 0
        %2545 = vmatpush1.bf16.msra.mxu0 %v2542
        %2546 = vmatprep.subr.bf16.mxu0 0
        %2547 = vmatpush1.bf16.msra.mxu0 0
        %2548 = vmatprep.subr.bf16.mxu0 0
        %2549 = vmatpush1.bf16.msra.mxu0 0
        %2550 = vmatprep.subr.bf16.mxu0 0
        %2551 = vmatpush1.bf16.msra.mxu0 0
        %2552 = vmatprep.subr.bf16.mxu0 0
        %2553 = vmatpush1.bf16.msra.mxu0 0
        %2554 = vmatprep.subr.bf16.mxu0 0
        %2555 = vmatpush1.bf16.msra.mxu0 0
        %2556 = vmatprep.subr.bf16.mxu0 0
        %2557 = vmatpush1.bf16.msra.mxu0 0
        %2558 = vmatprep.subr.bf16.mxu0 0
        %2559 = vmatpush1.bf16.msra.mxu0 0
        %2560 = vmatprep.subr.bf16.mxu0 0
        %2561 = vmatpush1.bf16.msra.mxu0 0
        %2562 = vmatprep.subr.bf16.mxu0 0
        %2563 = vmatpush1.bf16.msra.mxu0 0
        %2564 = vmatprep.subr.bf16.mxu0 0
        %2565 = vmatpush1.bf16.msra.mxu0 0
        %2566 = vmatprep.subr.bf16.mxu0 0
        %2567 = vmatpush1.bf16.msra.mxu0 0
        %2568 = vmatprep.subr.bf16.mxu0 0
        %2569 = vmatpush1.bf16.msra.mxu0 0
        %2570 = vmatprep.subr.bf16.mxu0 0
        %2571 = vmatpush1.bf16.msra.mxu0 0
        %2572 = vmatprep.subr.bf16.mxu0 0
        %2573 = vmatpush1.bf16.msra.mxu0 0
        %2574 = vmatprep.subr.bf16.mxu0 0
        %2575 = vmatpush1.bf16.msra.mxu0 0
        %2576 = vmatprep.mubr.bf16.mxu0 0
        %2577 = vmatmul.mubr.bf16.gmra.mrb[0].mxu0 %v2539
        %v2578 = vpop.f32.mrb[0].mxu0
        %v2579 = vadd.f32 0.0, %v2578
        %v2580 = vpop.f32.mrb[0].mxu0
        %v2581 = vpop.f32.mrb[0].mxu0
        %v2582 = vpop.f32.mrb[0].mxu0
        %2583 = vdwg.mxu0
        %2584 = vrot.lane.b32.xlu0 %v1513, 96
        %v2585 = vpop.permute.xlu0 %2584
        %v2587 = vsel %vm1514, %v2535, 0
        %v2590 = vsel %vm1640, %v2585, 0
        %2592 = vmatprep.subr.bf16.mxu0 0
        %2593 = vmatpush1.bf16.msra.mxu0 %v2590
        %2594 = vmatprep.subr.bf16.mxu0 0
        %2595 = vmatpush1.bf16.msra.mxu0 0
        %2596 = vmatprep.subr.bf16.mxu0 0
        %2597 = vmatpush1.bf16.msra.mxu0 0
        %2598 = vmatprep.subr.bf16.mxu0 0
        %2599 = vmatpush1.bf16.msra.mxu0 0
        %2600 = vmatprep.subr.bf16.mxu0 0
        %2601 = vmatpush1.bf16.msra.mxu0 0
        %2602 = vmatprep.subr.bf16.mxu0 0
        %2603 = vmatpush1.bf16.msra.mxu0 0
        %2604 = vmatprep.subr.bf16.mxu0 0
        %2605 = vmatpush1.bf16.msra.mxu0 0
        %2606 = vmatprep.subr.bf16.mxu0 0
        %2607 = vmatpush1.bf16.msra.mxu0 0
        %2608 = vmatprep.subr.bf16.mxu0 0
        %2609 = vmatpush1.bf16.msra.mxu0 0
        %2610 = vmatprep.subr.bf16.mxu0 0
        %2611 = vmatpush1.bf16.msra.mxu0 0
        %2612 = vmatprep.subr.bf16.mxu0 0
        %2613 = vmatpush1.bf16.msra.mxu0 0
        %2614 = vmatprep.subr.bf16.mxu0 0
        %2615 = vmatpush1.bf16.msra.mxu0 0
        %2616 = vmatprep.subr.bf16.mxu0 0
        %2617 = vmatpush1.bf16.msra.mxu0 0
        %2618 = vmatprep.subr.bf16.mxu0 0
        %2619 = vmatpush1.bf16.msra.mxu0 0
        %2620 = vmatprep.subr.bf16.mxu0 0
        %2621 = vmatpush1.bf16.msra.mxu0 0
        %2622 = vmatprep.subr.bf16.mxu0 0
        %2623 = vmatpush1.bf16.msra.mxu0 0
        %2624 = vmatprep.mubr.bf16.mxu0 0
        %2625 = vmatmul.mubr.bf16.gmra.mrb[0].mxu0 %v2587
        %v2626 = vpop.f32.mrb[0].mxu0
        %v2627 = vadd.f32 0.0, %v2626
        %v2628 = vpop.f32.mrb[0].mxu0
        %v2629 = vpop.f32.mrb[0].mxu0
        %v2630 = vpop.f32.mrb[0].mxu0
        %2631 = vdwg.mxu0
        %2632 = vrot.lane.b32.xlu0 %v1508, 88
        %v2633 = vpop.permute.xlu0 %2632
        %2634 = vrot.lane.b32.xlu0 %v1510, 88
        %v2635 = vpop.permute.xlu0 %2634
        %v2637 = vsel %vm1514, %v2633, 0
        %v2640 = vsel %vm1514, %v2635, 0
        %2642 = vmatprep.subr.bf16.mxu0 0
        %2643 = vmatpush1.bf16.xpose.msra.mxu0 %v2640
        %2644 = vmatprep.subr.bf16.mxu0 0
        %2645 = vmatpush1.bf16.xpose.msra.mxu0 0
        %2646 = vmatprep.subr.bf16.mxu0 0
        %2647 = vmatpush1.bf16.xpose.msra.mxu0 0
        %2648 = vmatprep.subr.bf16.mxu0 0
        %2649 = vmatpush1.bf16.xpose.msra.mxu0 0
        %2650 = vmatprep.subr.bf16.mxu0 0
        %2651 = vmatpush1.bf16.xpose.msra.mxu0 0
        %2652 = vmatprep.subr.bf16.mxu0 0
        %2653 = vmatpush1.bf16.xpose.msra.mxu0 0
        %2654 = vmatprep.subr.bf16.mxu0 0
        %2655 = vmatpush1.bf16.xpose.msra.mxu0 0
        %2656 = vmatprep.subr.bf16.mxu0 0
        %2657 = vmatpush1.bf16.xpose.msra.mxu0 0
        %2658 = vmatprep.subr.bf16.mxu0 0
        %2659 = vmatpush1.bf16.xpose.msra.mxu0 0
        %2660 = vmatprep.subr.bf16.mxu0 0
        %2661 = vmatpush1.bf16.xpose.msra.mxu0 0
        %2662 = vmatprep.subr.bf16.mxu0 0
        %2663 = vmatpush1.bf16.xpose.msra.mxu0 0
        %2664 = vmatprep.subr.bf16.mxu0 0
        %2665 = vmatpush1.bf16.xpose.msra.mxu0 0
        %2666 = vmatprep.subr.bf16.mxu0 0
        %2667 = vmatpush1.bf16.xpose.msra.mxu0 0
        %2668 = vmatprep.subr.bf16.mxu0 0
        %2669 = vmatpush1.bf16.xpose.msra.mxu0 0
        %2670 = vmatprep.subr.bf16.mxu0 0
        %2671 = vmatpush1.bf16.xpose.msra.mxu0 0
        %2672 = vmatprep.subr.bf16.mxu0 0
        %2673 = vmatpush1.bf16.xpose.msra.mxu0 0
        %2674 = vmatprep.mubr.bf16.mxu0 0
        %2675 = vmatmul.mubr.bf16.gmra.mrb[0].mxu0 %v2637
        %v2676 = vpop.f32.mrb[0].mxu0
        %v2677 = vadd.f32 0.0, %v2676
        %v2678 = vpop.f32.mrb[0].mxu0
        %v2679 = vpop.f32.mrb[0].mxu0
        %v2680 = vpop.f32.mrb[0].mxu0
        %2681 = vdwg.mxu0
        %2682 = vrot.lane.b32.xlu0 %v1509, 88
        %v2683 = vpop.permute.xlu0 %2682
        %2684 = vrot.lane.b32.xlu0 %v1511, 88
        %v2685 = vpop.permute.xlu0 %2684
        %v2687 = vsel %vm1514, %v2683, 0
        %v2690 = vsel %vm1514, %v2685, 0
        %2692 = vmatprep.subr.bf16.mxu0 0
        %2693 = vmatpush1.bf16.xpose.msra.mxu0 %v2690
        %2694 = vmatprep.subr.bf16.mxu0 0
        %2695 = vmatpush1.bf16.xpose.msra.mxu0 0
        %2696 = vmatprep.subr.bf16.mxu0 0
        %2697 = vmatpush1.bf16.xpose.msra.mxu0 0
        %2698 = vmatprep.subr.bf16.mxu0 0
        %2699 = vmatpush1.bf16.xpose.msra.mxu0 0
        %2700 = vmatprep.subr.bf16.mxu0 0
        %2701 = vmatpush1.bf16.xpose.msra.mxu0 0
        %2702 = vmatprep.subr.bf16.mxu0 0
        %2703 = vmatpush1.bf16.xpose.msra.mxu0 0
        %2704 = vmatprep.subr.bf16.mxu0 0
        %2705 = vmatpush1.bf16.xpose.msra.mxu0 0
        %2706 = vmatprep.subr.bf16.mxu0 0
        %2707 = vmatpush1.bf16.xpose.msra.mxu0 0
        %2708 = vmatprep.subr.bf16.mxu0 0
        %2709 = vmatpush1.bf16.xpose.msra.mxu0 0
        %2710 = vmatprep.subr.bf16.mxu0 0
        %2711 = vmatpush1.bf16.xpose.msra.mxu0 0
        %2712 = vmatprep.subr.bf16.mxu0 0
        %2713 = vmatpush1.bf16.xpose.msra.mxu0 0
        %2714 = vmatprep.subr.bf16.mxu0 0
        %2715 = vmatpush1.bf16.xpose.msra.mxu0 0
        %2716 = vmatprep.subr.bf16.mxu0 0
        %2717 = vmatpush1.bf16.xpose.msra.mxu0 0
        %2718 = vmatprep.subr.bf16.mxu0 0
        %2719 = vmatpush1.bf16.xpose.msra.mxu0 0
        %2720 = vmatprep.subr.bf16.mxu0 0
        %2721 = vmatpush1.bf16.xpose.msra.mxu0 0
        %2722 = vmatprep.subr.bf16.mxu0 0
        %2723 = vmatpush1.bf16.xpose.msra.mxu0 0
        %2724 = vmatprep.mubr.bf16.mxu0 0
        %2725 = vmatmul.mubr.bf16.gmra.mrb[0].mxu0 %v2687
        %v2726 = vpop.f32.mrb[0].mxu0
        %v2727 = vadd.f32 0.0, %v2726
        %v2728 = vpop.f32.mrb[0].mxu0
        %v2729 = vpop.f32.mrb[0].mxu0
        %v2730 = vpop.f32.mrb[0].mxu0
        %2731 = vdwg.mxu0
        %v2732 = vmul.f32 %v2677, 0.35355338
        %v2733 = vmul.f32 %v2727, 0.35355338
        %v2734 = vsel %vm1610, %v2732, -1e+30
        %v2735 = vsel %vm1610, %v2733, -1e+30
        %v2736 = vsel %vm1514, %v2734, -inf
        %2737 = vmax.xlane.f32.xlu0 %v2736
        %v2738 = vpop.xlane.xlu0 %2737
        %v2739 = vsel %vm1514, %v2735, -inf
        %2740 = vmax.xlane.f32.xlu0 %v2739
        %v2741 = vpop.xlane.xlu0 %2740
        %v2742 = vsub.f32 %v2734, %v2738
        %v2743 = vsub.f32 %v2735, %v2741
        %v2744 = vmul.f32 %v2742, 1.442695
        %v2745 = vpow.pop %v2744
        %v2746 = vmul.f32 %v2743, 1.442695
        %v2747 = vpow.pop %v2746
        %v2748 = vsel %vm1514, %v2745, 0.0
        %2749 = vadd.xlane.f32.xlu0 %v2748
        %v2750 = vpop.xlane.xlu0 %2749
        %v2751 = vsel %vm1514, %v2747, 0.0
        %2752 = vadd.xlane.f32.xlu0 %v2751
        %v2753 = vpop.xlane.xlu0 %2752
        %v2754 = vrcp.pop %v2750
        %v2755 = vmul.f32 %v2745, %v2754
        %v2756 = vrcp.pop %v2753
        %v2757 = vmul.f32 %v2747, %v2756
        %v2758 = vpack.c.bf16 %v2755, %v2755
        %v2759 = vpack.c.bf16 %v2757, %v2757
        %2760 = vrot.lane.b32.xlu0 %v1512, 88
        %v2761 = vpop.permute.xlu0 %2760
        %v2763 = vsel %vm1514, %v2758, 0
        %v2766 = vsel %vm1640, %v2761, 0
        %2768 = vmatprep.subr.bf16.mxu0 0
        %2769 = vmatpush1.bf16.msra.mxu0 %v2766
        %2770 = vmatprep.subr.bf16.mxu0 0
        %2771 = vmatpush1.bf16.msra.mxu0 0
        %2772 = vmatprep.subr.bf16.mxu0 0
        %2773 = vmatpush1.bf16.msra.mxu0 0
        %2774 = vmatprep.subr.bf16.mxu0 0
        %2775 = vmatpush1.bf16.msra.mxu0 0
        %2776 = vmatprep.subr.bf16.mxu0 0
        %2777 = vmatpush1.bf16.msra.mxu0 0
        %2778 = vmatprep.subr.bf16.mxu0 0
        %2779 = vmatpush1.bf16.msra.mxu0 0
        %2780 = vmatprep.subr.bf16.mxu0 0
        %2781 = vmatpush1.bf16.msra.mxu0 0
        %2782 = vmatprep.subr.bf16.mxu0 0
        %2783 = vmatpush1.bf16.msra.mxu0 0
        %2784 = vmatprep.subr.bf16.mxu0 0
        %2785 = vmatpush1.bf16.msra.mxu0 0
        %2786 = vmatprep.subr.bf16.mxu0 0
        %2787 = vmatpush1.bf16.msra.mxu0 0
        %2788 = vmatprep.subr.bf16.mxu0 0
        %2789 = vmatpush1.bf16.msra.mxu0 0
        %2790 = vmatprep.subr.bf16.mxu0 0
        %2791 = vmatpush1.bf16.msra.mxu0 0
        %2792 = vmatprep.subr.bf16.mxu0 0
        %2793 = vmatpush1.bf16.msra.mxu0 0
        %2794 = vmatprep.subr.bf16.mxu0 0
        %2795 = vmatpush1.bf16.msra.mxu0 0
        %2796 = vmatprep.subr.bf16.mxu0 0
        %2797 = vmatpush1.bf16.msra.mxu0 0
        %2798 = vmatprep.subr.bf16.mxu0 0
        %2799 = vmatpush1.bf16.msra.mxu0 0
        %2800 = vmatprep.mubr.bf16.mxu0 0
        %2801 = vmatmul.mubr.bf16.gmra.mrb[0].mxu0 %v2763
        %v2802 = vpop.f32.mrb[0].mxu0
        %v2803 = vadd.f32 0.0, %v2802
        %v2804 = vpop.f32.mrb[0].mxu0
        %v2805 = vpop.f32.mrb[0].mxu0
        %v2806 = vpop.f32.mrb[0].mxu0
        %2807 = vdwg.mxu0
        %2808 = vrot.lane.b32.xlu0 %v1513, 88
        %v2809 = vpop.permute.xlu0 %2808
        %v2811 = vsel %vm1514, %v2759, 0
        %v2814 = vsel %vm1640, %v2809, 0
        %2816 = vmatprep.subr.bf16.mxu0 0
        %2817 = vmatpush1.bf16.msra.mxu0 %v2814
        %2818 = vmatprep.subr.bf16.mxu0 0
        %2819 = vmatpush1.bf16.msra.mxu0 0
        %2820 = vmatprep.subr.bf16.mxu0 0
        %2821 = vmatpush1.bf16.msra.mxu0 0
        %2822 = vmatprep.subr.bf16.mxu0 0
        %2823 = vmatpush1.bf16.msra.mxu0 0
        %2824 = vmatprep.subr.bf16.mxu0 0
        %2825 = vmatpush1.bf16.msra.mxu0 0
        %2826 = vmatprep.subr.bf16.mxu0 0
        %2827 = vmatpush1.bf16.msra.mxu0 0
        %2828 = vmatprep.subr.bf16.mxu0 0
        %2829 = vmatpush1.bf16.msra.mxu0 0
        %2830 = vmatprep.subr.bf16.mxu0 0
        %2831 = vmatpush1.bf16.msra.mxu0 0
        %2832 = vmatprep.subr.bf16.mxu0 0
        %2833 = vmatpush1.bf16.msra.mxu0 0
        %2834 = vmatprep.subr.bf16.mxu0 0
        %2835 = vmatpush1.bf16.msra.mxu0 0
        %2836 = vmatprep.subr.bf16.mxu0 0
        %2837 = vmatpush1.bf16.msra.mxu0 0
        %2838 = vmatprep.subr.bf16.mxu0 0
        %2839 = vmatpush1.bf16.msra.mxu0 0
        %2840 = vmatprep.subr.bf16.mxu0 0
        %2841 = vmatpush1.bf16.msra.mxu0 0
        %2842 = vmatprep.subr.bf16.mxu0 0
        %2843 = vmatpush1.bf16.msra.mxu0 0
        %2844 = vmatprep.subr.bf16.mxu0 0
        %2845 = vmatpush1.bf16.msra.mxu0 0
        %2846 = vmatprep.subr.bf16.mxu0 0
        %2847 = vmatpush1.bf16.msra.mxu0 0
        %2848 = vmatprep.mubr.bf16.mxu0 0
        %2849 = vmatmul.mubr.bf16.gmra.mrb[0].mxu0 %v2811
        %v2850 = vpop.f32.mrb[0].mxu0
        %v2851 = vadd.f32 0.0, %v2850
        %v2852 = vpop.f32.mrb[0].mxu0
        %v2853 = vpop.f32.mrb[0].mxu0
        %v2854 = vpop.f32.mrb[0].mxu0
        %2855 = vdwg.mxu0
        %2856 = vrot.lane.b32.xlu0 %v1508, 80
        %v2857 = vpop.permute.xlu0 %2856
        %2858 = vrot.lane.b32.xlu0 %v1510, 80
        %v2859 = vpop.permute.xlu0 %2858
        %v2861 = vsel %vm1514, %v2857, 0
        %v2864 = vsel %vm1514, %v2859, 0
        %2866 = vmatprep.subr.bf16.mxu0 0
        %2867 = vmatpush1.bf16.xpose.msra.mxu0 %v2864
        %2868 = vmatprep.subr.bf16.mxu0 0
        %2869 = vmatpush1.bf16.xpose.msra.mxu0 0
        %2870 = vmatprep.subr.bf16.mxu0 0
        %2871 = vmatpush1.bf16.xpose.msra.mxu0 0
        %2872 = vmatprep.subr.bf16.mxu0 0
        %2873 = vmatpush1.bf16.xpose.msra.mxu0 0
        %2874 = vmatprep.subr.bf16.mxu0 0
        %2875 = vmatpush1.bf16.xpose.msra.mxu0 0
        %2876 = vmatprep.subr.bf16.mxu0 0
        %2877 = vmatpush1.bf16.xpose.msra.mxu0 0
        %2878 = vmatprep.subr.bf16.mxu0 0
        %2879 = vmatpush1.bf16.xpose.msra.mxu0 0
        %2880 = vmatprep.subr.bf16.mxu0 0
        %2881 = vmatpush1.bf16.xpose.msra.mxu0 0
        %2882 = vmatprep.subr.bf16.mxu0 0
        %2883 = vmatpush1.bf16.xpose.msra.mxu0 0
        %2884 = vmatprep.subr.bf16.mxu0 0
        %2885 = vmatpush1.bf16.xpose.msra.mxu0 0
        %2886 = vmatprep.subr.bf16.mxu0 0
        %2887 = vmatpush1.bf16.xpose.msra.mxu0 0
        %2888 = vmatprep.subr.bf16.mxu0 0
        %2889 = vmatpush1.bf16.xpose.msra.mxu0 0
        %2890 = vmatprep.subr.bf16.mxu0 0
        %2891 = vmatpush1.bf16.xpose.msra.mxu0 0
        %2892 = vmatprep.subr.bf16.mxu0 0
        %2893 = vmatpush1.bf16.xpose.msra.mxu0 0
        %2894 = vmatprep.subr.bf16.mxu0 0
        %2895 = vmatpush1.bf16.xpose.msra.mxu0 0
        %2896 = vmatprep.subr.bf16.mxu0 0
        %2897 = vmatpush1.bf16.xpose.msra.mxu0 0
        %2898 = vmatprep.mubr.bf16.mxu0 0
        %2899 = vmatmul.mubr.bf16.gmra.mrb[0].mxu0 %v2861
        %v2900 = vpop.f32.mrb[0].mxu0
        %v2901 = vadd.f32 0.0, %v2900
        %v2902 = vpop.f32.mrb[0].mxu0
        %v2903 = vpop.f32.mrb[0].mxu0
        %v2904 = vpop.f32.mrb[0].mxu0
        %2905 = vdwg.mxu0
        %2906 = vrot.lane.b32.xlu0 %v1509, 80
        %v2907 = vpop.permute.xlu0 %2906
        %2908 = vrot.lane.b32.xlu0 %v1511, 80
        %v2909 = vpop.permute.xlu0 %2908
        %v2911 = vsel %vm1514, %v2907, 0
        %v2914 = vsel %vm1514, %v2909, 0
        %2916 = vmatprep.subr.bf16.mxu0 0
        %2917 = vmatpush1.bf16.xpose.msra.mxu0 %v2914
        %2918 = vmatprep.subr.bf16.mxu0 0
        %2919 = vmatpush1.bf16.xpose.msra.mxu0 0
        %2920 = vmatprep.subr.bf16.mxu0 0
        %2921 = vmatpush1.bf16.xpose.msra.mxu0 0
        %2922 = vmatprep.subr.bf16.mxu0 0
        %2923 = vmatpush1.bf16.xpose.msra.mxu0 0
        %2924 = vmatprep.subr.bf16.mxu0 0
        %2925 = vmatpush1.bf16.xpose.msra.mxu0 0
        %2926 = vmatprep.subr.bf16.mxu0 0
        %2927 = vmatpush1.bf16.xpose.msra.mxu0 0
        %2928 = vmatprep.subr.bf16.mxu0 0
        %2929 = vmatpush1.bf16.xpose.msra.mxu0 0
        %2930 = vmatprep.subr.bf16.mxu0 0
        %2931 = vmatpush1.bf16.xpose.msra.mxu0 0
        %2932 = vmatprep.subr.bf16.mxu0 0
        %2933 = vmatpush1.bf16.xpose.msra.mxu0 0
        %2934 = vmatprep.subr.bf16.mxu0 0
        %2935 = vmatpush1.bf16.xpose.msra.mxu0 0
        %2936 = vmatprep.subr.bf16.mxu0 0
        %2937 = vmatpush1.bf16.xpose.msra.mxu0 0
        %2938 = vmatprep.subr.bf16.mxu0 0
        %2939 = vmatpush1.bf16.xpose.msra.mxu0 0
        %2940 = vmatprep.subr.bf16.mxu0 0
        %2941 = vmatpush1.bf16.xpose.msra.mxu0 0
        %2942 = vmatprep.subr.bf16.mxu0 0
        %2943 = vmatpush1.bf16.xpose.msra.mxu0 0
        %2944 = vmatprep.subr.bf16.mxu0 0
        %2945 = vmatpush1.bf16.xpose.msra.mxu0 0
        %2946 = vmatprep.subr.bf16.mxu0 0
        %2947 = vmatpush1.bf16.xpose.msra.mxu0 0
        %2948 = vmatprep.mubr.bf16.mxu0 0
        %2949 = vmatmul.mubr.bf16.gmra.mrb[0].mxu0 %v2911
        %v2950 = vpop.f32.mrb[0].mxu0
        %v2951 = vadd.f32 0.0, %v2950
        %v2952 = vpop.f32.mrb[0].mxu0
        %v2953 = vpop.f32.mrb[0].mxu0
        %v2954 = vpop.f32.mrb[0].mxu0
        %2955 = vdwg.mxu0
        %v2956 = vmul.f32 %v2901, 0.35355338
        %v2957 = vmul.f32 %v2951, 0.35355338
        %v2958 = vsel %vm1610, %v2956, -1e+30
        %v2959 = vsel %vm1610, %v2957, -1e+30
        %v2960 = vsel %vm1514, %v2958, -inf
        %2961 = vmax.xlane.f32.xlu0 %v2960
        %v2962 = vpop.xlane.xlu0 %2961
        %v2963 = vsel %vm1514, %v2959, -inf
        %2964 = vmax.xlane.f32.xlu0 %v2963
        %v2965 = vpop.xlane.xlu0 %2964
        %v2966 = vsub.f32 %v2958, %v2962
        %v2967 = vsub.f32 %v2959, %v2965
        %v2968 = vmul.f32 %v2966, 1.442695
        %v2969 = vpow.pop %v2968
        %v2970 = vmul.f32 %v2967, 1.442695
        %v2971 = vpow.pop %v2970
        %v2972 = vsel %vm1514, %v2969, 0.0
        %2973 = vadd.xlane.f32.xlu0 %v2972
        %v2974 = vpop.xlane.xlu0 %2973
        %v2975 = vsel %vm1514, %v2971, 0.0
        %2976 = vadd.xlane.f32.xlu0 %v2975
        %v2977 = vpop.xlane.xlu0 %2976
        %v2978 = vrcp.pop %v2974
        %v2979 = vmul.f32 %v2969, %v2978
        %v2980 = vrcp.pop %v2977
        %v2981 = vmul.f32 %v2971, %v2980
        %v2982 = vpack.c.bf16 %v2979, %v2979
        %v2983 = vpack.c.bf16 %v2981, %v2981
        %2984 = vrot.lane.b32.xlu0 %v1512, 80
        %v2985 = vpop.permute.xlu0 %2984
        %v2987 = vsel %vm1514, %v2982, 0
        %v2990 = vsel %vm1640, %v2985, 0
        %2992 = vmatprep.subr.bf16.mxu0 0
        %2993 = vmatpush1.bf16.msra.mxu0 %v2990
        %2994 = vmatprep.subr.bf16.mxu0 0
        %2995 = vmatpush1.bf16.msra.mxu0 0
        %2996 = vmatprep.subr.bf16.mxu0 0
        %2997 = vmatpush1.bf16.msra.mxu0 0
        %2998 = vmatprep.subr.bf16.mxu0 0
        %2999 = vmatpush1.bf16.msra.mxu0 0
        %3000 = vmatprep.subr.bf16.mxu0 0
        %3001 = vmatpush1.bf16.msra.mxu0 0
        %3002 = vmatprep.subr.bf16.mxu0 0
        %3003 = vmatpush1.bf16.msra.mxu0 0
        %3004 = vmatprep.subr.bf16.mxu0 0
        %3005 = vmatpush1.bf16.msra.mxu0 0
        %3006 = vmatprep.subr.bf16.mxu0 0
        %3007 = vmatpush1.bf16.msra.mxu0 0
        %3008 = vmatprep.subr.bf16.mxu0 0
        %3009 = vmatpush1.bf16.msra.mxu0 0
        %3010 = vmatprep.subr.bf16.mxu0 0
        %3011 = vmatpush1.bf16.msra.mxu0 0
        %3012 = vmatprep.subr.bf16.mxu0 0
        %3013 = vmatpush1.bf16.msra.mxu0 0
        %3014 = vmatprep.subr.bf16.mxu0 0
        %3015 = vmatpush1.bf16.msra.mxu0 0
        %3016 = vmatprep.subr.bf16.mxu0 0
        %3017 = vmatpush1.bf16.msra.mxu0 0
        %3018 = vmatprep.subr.bf16.mxu0 0
        %3019 = vmatpush1.bf16.msra.mxu0 0
        %3020 = vmatprep.subr.bf16.mxu0 0
        %3021 = vmatpush1.bf16.msra.mxu0 0
        %3022 = vmatprep.subr.bf16.mxu0 0
        %3023 = vmatpush1.bf16.msra.mxu0 0
        %3024 = vmatprep.mubr.bf16.mxu0 0
        %3025 = vmatmul.mubr.bf16.gmra.mrb[0].mxu0 %v2987
        %v3026 = vpop.f32.mrb[0].mxu0
        %v3027 = vadd.f32 0.0, %v3026
        %v3028 = vpop.f32.mrb[0].mxu0
        %v3029 = vpop.f32.mrb[0].mxu0
        %v3030 = vpop.f32.mrb[0].mxu0
        %3031 = vdwg.mxu0
        %3032 = vrot.lane.b32.xlu0 %v1513, 80
        %v3033 = vpop.permute.xlu0 %3032
        %v3035 = vsel %vm1514, %v2983, 0
        %v3038 = vsel %vm1640, %v3033, 0
        %3040 = vmatprep.subr.bf16.mxu0 0
        %3041 = vmatpush1.bf16.msra.mxu0 %v3038
        %3042 = vmatprep.subr.bf16.mxu0 0
        %3043 = vmatpush1.bf16.msra.mxu0 0
        %3044 = vmatprep.subr.bf16.mxu0 0
        %3045 = vmatpush1.bf16.msra.mxu0 0
        %3046 = vmatprep.subr.bf16.mxu0 0
        %3047 = vmatpush1.bf16.msra.mxu0 0
        %3048 = vmatprep.subr.bf16.mxu0 0
        %3049 = vmatpush1.bf16.msra.mxu0 0
        %3050 = vmatprep.subr.bf16.mxu0 0
        %3051 = vmatpush1.bf16.msra.mxu0 0
        %3052 = vmatprep.subr.bf16.mxu0 0
        %3053 = vmatpush1.bf16.msra.mxu0 0
        %3054 = vmatprep.subr.bf16.mxu0 0
        %3055 = vmatpush1.bf16.msra.mxu0 0
        %3056 = vmatprep.subr.bf16.mxu0 0
        %3057 = vmatpush1.bf16.msra.mxu0 0
        %3058 = vmatprep.subr.bf16.mxu0 0
        %3059 = vmatpush1.bf16.msra.mxu0 0
        %3060 = vmatprep.subr.bf16.mxu0 0
        %3061 = vmatpush1.bf16.msra.mxu0 0
        %3062 = vmatprep.subr.bf16.mxu0 0
        %3063 = vmatpush1.bf16.msra.mxu0 0
        %3064 = vmatprep.subr.bf16.mxu0 0
        %3065 = vmatpush1.bf16.msra.mxu0 0
        %3066 = vmatprep.subr.bf16.mxu0 0
        %3067 = vmatpush1.bf16.msra.mxu0 0
        %3068 = vmatprep.subr.bf16.mxu0 0
        %3069 = vmatpush1.bf16.msra.mxu0 0
        %3070 = vmatprep.subr.bf16.mxu0 0
        %3071 = vmatpush1.bf16.msra.mxu0 0
        %3072 = vmatprep.mubr.bf16.mxu0 0
        %3073 = vmatmul.mubr.bf16.gmra.mrb[0].mxu0 %v3035
        %v3074 = vpop.f32.mrb[0].mxu0
        %v3075 = vadd.f32 0.0, %v3074
        %v3076 = vpop.f32.mrb[0].mxu0
        %v3077 = vpop.f32.mrb[0].mxu0
        %v3078 = vpop.f32.mrb[0].mxu0
        %3079 = vdwg.mxu0
        %3080 = vrot.lane.b32.xlu0 %v1508, 72
        %v3081 = vpop.permute.xlu0 %3080
        %3082 = vrot.lane.b32.xlu0 %v1510, 72
        %v3083 = vpop.permute.xlu0 %3082
        %v3085 = vsel %vm1514, %v3081, 0
        %v3088 = vsel %vm1514, %v3083, 0
        %3090 = vmatprep.subr.bf16.mxu0 0
        %3091 = vmatpush1.bf16.xpose.msra.mxu0 %v3088
        %3092 = vmatprep.subr.bf16.mxu0 0
        %3093 = vmatpush1.bf16.xpose.msra.mxu0 0
        %3094 = vmatprep.subr.bf16.mxu0 0
        %3095 = vmatpush1.bf16.xpose.msra.mxu0 0
        %3096 = vmatprep.subr.bf16.mxu0 0
        %3097 = vmatpush1.bf16.xpose.msra.mxu0 0
        %3098 = vmatprep.subr.bf16.mxu0 0
        %3099 = vmatpush1.bf16.xpose.msra.mxu0 0
        %3100 = vmatprep.subr.bf16.mxu0 0
        %3101 = vmatpush1.bf16.xpose.msra.mxu0 0
        %3102 = vmatprep.subr.bf16.mxu0 0
        %3103 = vmatpush1.bf16.xpose.msra.mxu0 0
        %3104 = vmatprep.subr.bf16.mxu0 0
        %3105 = vmatpush1.bf16.xpose.msra.mxu0 0
        %3106 = vmatprep.subr.bf16.mxu0 0
        %3107 = vmatpush1.bf16.xpose.msra.mxu0 0
        %3108 = vmatprep.subr.bf16.mxu0 0
        %3109 = vmatpush1.bf16.xpose.msra.mxu0 0
        %3110 = vmatprep.subr.bf16.mxu0 0
        %3111 = vmatpush1.bf16.xpose.msra.mxu0 0
        %3112 = vmatprep.subr.bf16.mxu0 0
        %3113 = vmatpush1.bf16.xpose.msra.mxu0 0
        %3114 = vmatprep.subr.bf16.mxu0 0
        %3115 = vmatpush1.bf16.xpose.msra.mxu0 0
        %3116 = vmatprep.subr.bf16.mxu0 0
        %3117 = vmatpush1.bf16.xpose.msra.mxu0 0
        %3118 = vmatprep.subr.bf16.mxu0 0
        %3119 = vmatpush1.bf16.xpose.msra.mxu0 0
        %3120 = vmatprep.subr.bf16.mxu0 0
        %3121 = vmatpush1.bf16.xpose.msra.mxu0 0
        %3122 = vmatprep.mubr.bf16.mxu0 0
        %3123 = vmatmul.mubr.bf16.gmra.mrb[0].mxu0 %v3085
        %v3124 = vpop.f32.mrb[0].mxu0
        %v3125 = vadd.f32 0.0, %v3124
        %v3126 = vpop.f32.mrb[0].mxu0
        %v3127 = vpop.f32.mrb[0].mxu0
        %v3128 = vpop.f32.mrb[0].mxu0
        %3129 = vdwg.mxu0
        %3130 = vrot.lane.b32.xlu0 %v1509, 72
        %v3131 = vpop.permute.xlu0 %3130
        %3132 = vrot.lane.b32.xlu0 %v1511, 72
        %v3133 = vpop.permute.xlu0 %3132
        %v3135 = vsel %vm1514, %v3131, 0
        %v3138 = vsel %vm1514, %v3133, 0
        %3140 = vmatprep.subr.bf16.mxu0 0
        %3141 = vmatpush1.bf16.xpose.msra.mxu0 %v3138
        %3142 = vmatprep.subr.bf16.mxu0 0
        %3143 = vmatpush1.bf16.xpose.msra.mxu0 0
        %3144 = vmatprep.subr.bf16.mxu0 0
        %3145 = vmatpush1.bf16.xpose.msra.mxu0 0
        %3146 = vmatprep.subr.bf16.mxu0 0
        %3147 = vmatpush1.bf16.xpose.msra.mxu0 0
        %3148 = vmatprep.subr.bf16.mxu0 0
        %3149 = vmatpush1.bf16.xpose.msra.mxu0 0
        %3150 = vmatprep.subr.bf16.mxu0 0
        %3151 = vmatpush1.bf16.xpose.msra.mxu0 0
        %3152 = vmatprep.subr.bf16.mxu0 0
        %3153 = vmatpush1.bf16.xpose.msra.mxu0 0
        %3154 = vmatprep.subr.bf16.mxu0 0
        %3155 = vmatpush1.bf16.xpose.msra.mxu0 0
        %3156 = vmatprep.subr.bf16.mxu0 0
        %3157 = vmatpush1.bf16.xpose.msra.mxu0 0
        %3158 = vmatprep.subr.bf16.mxu0 0
        %3159 = vmatpush1.bf16.xpose.msra.mxu0 0
        %3160 = vmatprep.subr.bf16.mxu0 0
        %3161 = vmatpush1.bf16.xpose.msra.mxu0 0
        %3162 = vmatprep.subr.bf16.mxu0 0
        %3163 = vmatpush1.bf16.xpose.msra.mxu0 0
        %3164 = vmatprep.subr.bf16.mxu0 0
        %3165 = vmatpush1.bf16.xpose.msra.mxu0 0
        %3166 = vmatprep.subr.bf16.mxu0 0
        %3167 = vmatpush1.bf16.xpose.msra.mxu0 0
        %3168 = vmatprep.subr.bf16.mxu0 0
        %3169 = vmatpush1.bf16.xpose.msra.mxu0 0
        %3170 = vmatprep.subr.bf16.mxu0 0
        %3171 = vmatpush1.bf16.xpose.msra.mxu0 0
        %3172 = vmatprep.mubr.bf16.mxu0 0
        %3173 = vmatmul.mubr.bf16.gmra.mrb[0].mxu0 %v3135
        %v3174 = vpop.f32.mrb[0].mxu0
        %v3175 = vadd.f32 0.0, %v3174
        %v3176 = vpop.f32.mrb[0].mxu0
        %v3177 = vpop.f32.mrb[0].mxu0
        %v3178 = vpop.f32.mrb[0].mxu0
        %3179 = vdwg.mxu0
        %v3180 = vmul.f32 %v3125, 0.35355338
        %v3181 = vmul.f32 %v3175, 0.35355338
        %v3182 = vsel %vm1610, %v3180, -1e+30
        %v3183 = vsel %vm1610, %v3181, -1e+30
        %v3184 = vsel %vm1514, %v3182, -inf
        %3185 = vmax.xlane.f32.xlu0 %v3184
        %v3186 = vpop.xlane.xlu0 %3185
        %v3187 = vsel %vm1514, %v3183, -inf
        %3188 = vmax.xlane.f32.xlu0 %v3187
        %v3189 = vpop.xlane.xlu0 %3188
        %v3190 = vsub.f32 %v3182, %v3186
        %v3191 = vsub.f32 %v3183, %v3189
        %v3192 = vmul.f32 %v3190, 1.442695
        %v3193 = vpow.pop %v3192
        %v3194 = vmul.f32 %v3191, 1.442695
        %v3195 = vpow.pop %v3194
        %v3196 = vsel %vm1514, %v3193, 0.0
        %3197 = vadd.xlane.f32.xlu0 %v3196
        %v3198 = vpop.xlane.xlu0 %3197
        %v3199 = vsel %vm1514, %v3195, 0.0
        %3200 = vadd.xlane.f32.xlu0 %v3199
        %v3201 = vpop.xlane.xlu0 %3200
        %v3202 = vrcp.pop %v3198
        %v3203 = vmul.f32 %v3193, %v3202
        %v3204 = vrcp.pop %v3201
        %v3205 = vmul.f32 %v3195, %v3204
        %v3206 = vpack.c.bf16 %v3203, %v3203
        %v3207 = vpack.c.bf16 %v3205, %v3205
        %3208 = vrot.lane.b32.xlu0 %v1512, 72
        %v3209 = vpop.permute.xlu0 %3208
        %v3211 = vsel %vm1514, %v3206, 0
        %v3214 = vsel %vm1640, %v3209, 0
        %3216 = vmatprep.subr.bf16.mxu0 0
        %3217 = vmatpush1.bf16.msra.mxu0 %v3214
        %3218 = vmatprep.subr.bf16.mxu0 0
        %3219 = vmatpush1.bf16.msra.mxu0 0
        %3220 = vmatprep.subr.bf16.mxu0 0
        %3221 = vmatpush1.bf16.msra.mxu0 0
        %3222 = vmatprep.subr.bf16.mxu0 0
        %3223 = vmatpush1.bf16.msra.mxu0 0
        %3224 = vmatprep.subr.bf16.mxu0 0
        %3225 = vmatpush1.bf16.msra.mxu0 0
        %3226 = vmatprep.subr.bf16.mxu0 0
        %3227 = vmatpush1.bf16.msra.mxu0 0
        %3228 = vmatprep.subr.bf16.mxu0 0
        %3229 = vmatpush1.bf16.msra.mxu0 0
        %3230 = vmatprep.subr.bf16.mxu0 0
        %3231 = vmatpush1.bf16.msra.mxu0 0
        %3232 = vmatprep.subr.bf16.mxu0 0
        %3233 = vmatpush1.bf16.msra.mxu0 0
        %3234 = vmatprep.subr.bf16.mxu0 0
        %3235 = vmatpush1.bf16.msra.mxu0 0
        %3236 = vmatprep.subr.bf16.mxu0 0
        %3237 = vmatpush1.bf16.msra.mxu0 0
        %3238 = vmatprep.subr.bf16.mxu0 0
        %3239 = vmatpush1.bf16.msra.mxu0 0
        %3240 = vmatprep.subr.bf16.mxu0 0
        %3241 = vmatpush1.bf16.msra.mxu0 0
        %3242 = vmatprep.subr.bf16.mxu0 0
        %3243 = vmatpush1.bf16.msra.mxu0 0
        %3244 = vmatprep.subr.bf16.mxu0 0
        %3245 = vmatpush1.bf16.msra.mxu0 0
        %3246 = vmatprep.subr.bf16.mxu0 0
        %3247 = vmatpush1.bf16.msra.mxu0 0
        %3248 = vmatprep.mubr.bf16.mxu0 0
        %3249 = vmatmul.mubr.bf16.gmra.mrb[0].mxu0 %v3211
        %v3250 = vpop.f32.mrb[0].mxu0
        %v3251 = vadd.f32 0.0, %v3250
        %v3252 = vpop.f32.mrb[0].mxu0
        %v3253 = vpop.f32.mrb[0].mxu0
        %v3254 = vpop.f32.mrb[0].mxu0
        %3255 = vdwg.mxu0
        %3256 = vrot.lane.b32.xlu0 %v1513, 72
        %v3257 = vpop.permute.xlu0 %3256
        %v3259 = vsel %vm1514, %v3207, 0
        %v3262 = vsel %vm1640, %v3257, 0
        %3264 = vmatprep.subr.bf16.mxu0 0
        %3265 = vmatpush1.bf16.msra.mxu0 %v3262
        %3266 = vmatprep.subr.bf16.mxu0 0
        %3267 = vmatpush1.bf16.msra.mxu0 0
        %3268 = vmatprep.subr.bf16.mxu0 0
        %3269 = vmatpush1.bf16.msra.mxu0 0
        %3270 = vmatprep.subr.bf16.mxu0 0
        %3271 = vmatpush1.bf16.msra.mxu0 0
        %3272 = vmatprep.subr.bf16.mxu0 0
        %3273 = vmatpush1.bf16.msra.mxu0 0
        %3274 = vmatprep.subr.bf16.mxu0 0
        %3275 = vmatpush1.bf16.msra.mxu0 0
        %3276 = vmatprep.subr.bf16.mxu0 0
        %3277 = vmatpush1.bf16.msra.mxu0 0
        %3278 = vmatprep.subr.bf16.mxu0 0
        %3279 = vmatpush1.bf16.msra.mxu0 0
        %3280 = vmatprep.subr.bf16.mxu0 0
        %3281 = vmatpush1.bf16.msra.mxu0 0
        %3282 = vmatprep.subr.bf16.mxu0 0
        %3283 = vmatpush1.bf16.msra.mxu0 0
        %3284 = vmatprep.subr.bf16.mxu0 0
        %3285 = vmatpush1.bf16.msra.mxu0 0
        %3286 = vmatprep.subr.bf16.mxu0 0
        %3287 = vmatpush1.bf16.msra.mxu0 0
        %3288 = vmatprep.subr.bf16.mxu0 0
        %3289 = vmatpush1.bf16.msra.mxu0 0
        %3290 = vmatprep.subr.bf16.mxu0 0
        %3291 = vmatpush1.bf16.msra.mxu0 0
        %3292 = vmatprep.subr.bf16.mxu0 0
        %3293 = vmatpush1.bf16.msra.mxu0 0
        %3294 = vmatprep.subr.bf16.mxu0 0
        %3295 = vmatpush1.bf16.msra.mxu0 0
        %3296 = vmatprep.mubr.bf16.mxu0 0
        %3297 = vmatmul.mubr.bf16.gmra.mrb[0].mxu0 %v3259
        %v3298 = vpop.f32.mrb[0].mxu0
        %v3299 = vadd.f32 0.0, %v3298
        %v3300 = vpop.f32.mrb[0].mxu0
        %v3301 = vpop.f32.mrb[0].mxu0
        %v3302 = vpop.f32.mrb[0].mxu0
        %3303 = vdwg.mxu0
        %3306 = vrot.lane.b32.xlu0 %v1906, 8
        %v3307 = vpop.permute.xlu0 %3306
        %3308 = vrot.lane.b32.xlu0 %v1955, 8
        %v3309 = vpop.permute.xlu0 %3308
        %3314 = vrot.lane.b32.xlu0 %v2131, 16
        %v3315 = vpop.permute.xlu0 %3314
        %3316 = vrot.lane.b32.xlu0 %v2179, 16
        %v3317 = vpop.permute.xlu0 %3316
        %3322 = vrot.lane.b32.xlu0 %v2355, 24
        %v3323 = vpop.permute.xlu0 %3322
        %3324 = vrot.lane.b32.xlu0 %v2403, 24
        %v3325 = vpop.permute.xlu0 %3324
        %3330 = vrot.lane.b32.xlu0 %v2579, 32
        %v3331 = vpop.permute.xlu0 %3330
        %3332 = vrot.lane.b32.xlu0 %v2627, 32
        %v3333 = vpop.permute.xlu0 %3332
        %3338 = vrot.lane.b32.xlu0 %v2803, 40
        %v3339 = vpop.permute.xlu0 %3338
        %3340 = vrot.lane.b32.xlu0 %v2851, 40
        %v3341 = vpop.permute.xlu0 %3340
        %3346 = vrot.lane.b32.xlu0 %v3027, 48
        %v3347 = vpop.permute.xlu0 %3346
        %3348 = vrot.lane.b32.xlu0 %v3075, 48
        %v3349 = vpop.permute.xlu0 %3348
        %3354 = vrot.lane.b32.xlu0 %v3251, 56
        %v3355 = vpop.permute.xlu0 %3354
        %3356 = vrot.lane.b32.xlu0 %v3299, 56
        %v3357 = vpop.permute.xlu0 %3356
        %v3360 = vsel %vm1514, %v1679, %v3307
        %v3361 = vsel %vm1514, %v1725, %v3309
        %vm3362 = vcmask 130048
        %v3363 = vsel %vm3362, %v3360, %v3315
        %v3364 = vsel %vm3362, %v3361, %v3317
        %vm3365 = vcmask 195584
        %v3366 = vsel %vm3365, %v3363, %v3323
        %v3367 = vsel %vm3365, %v3364, %v3325
        %vm3368 = vcmask 261120
        %v3369 = vsel %vm3368, %v3366, %v3331
        %v3370 = vsel %vm3368, %v3367, %v3333
        %vm3371 = vcmask 326656
        %v3372 = vsel %vm3371, %v3369, %v3339
        %v3373 = vsel %vm3371, %v3370, %v3341
        %vm3374 = vcmask 392192
        %v3375 = vsel %vm3374, %v3372, %v3347
        %v3376 = vsel %vm3374, %v3373, %v3349
        %vm3377 = vcmask 457728
        %v3378 = vsel %vm3377, %v3375, %v3355
        %v3379 = vsel %vm3377, %v3376, %v3357
        %v3380 = vpack.c.bf16 %v3379, %v3378
        %v3381 = vld [vmem:[%s1015] sm:$0xf]
        %v3382 = vld [vmem:[%s1015 + $0x4] sm:$0xf]
        %v3383 = vld [vmem:[%s1015 + $0x8] sm:$0xf]
        %v3384 = vld [vmem:[%s1015 + $0xc] sm:$0xf]
        %v3385 = vld [vmem:[%s1015 + $0x10] sm:$0xf]
        %v3386 = vld [vmem:[%s1015 + $0x14] sm:$0xf]
        %v3387 = vld [vmem:[%s1015 + $0x18] sm:$0xf]
        %v3388 = vld [vmem:[%s1015 + $0x1c] sm:$0xf]
        %v3389 = vld [vmem:[%s1023] sm:$0x1]
        %v3391 = vlaneseq
        %v3392 = vshrl.u32 %v3391, 7
        %v3393 = vsub.s32 0, %v3392
        %v3394 = vrot.slane %v3389, %v3393
        %v3404 = vunpack.c.l.b16 %v3381
        %v3405 = vunpack.c.l.b16 %v3382
        %v3406 = vunpack.c.l.b16 %v3383
        %v3407 = vunpack.c.l.b16 %v3384
        %v3408 = vunpack.c.l.b16 %v3385
        %v3409 = vunpack.c.l.b16 %v3386
        %v3410 = vunpack.c.l.b16 %v3387
        %v3411 = vunpack.c.l.b16 %v3388
        %v3412 = vpack.c.b16 %v3405, %v3404
        %v3413 = vpack.c.b16 %v3407, %v3406
        %v3414 = vpack.c.b16 %v3409, %v3408
        %v3415 = vpack.c.b16 %v3411, %v3410
        %v3421 = vsel %vm1303, %v3380, 0
        %3423 = vmatprep.subr.bf16.mxu0 0
        %3424 = vmatpush1.bf16.msra.mxu0 %v3412
        %3425 = vmatprep.subr.bf16.mxu0 0
        %3426 = vmatpush1.bf16.msra.mxu0 %v3413
        %3427 = vmatprep.subr.bf16.mxu0 0
        %3428 = vmatpush1.bf16.msra.mxu0 %v3414
        %3429 = vmatprep.subr.bf16.mxu0 0
        %3430 = vmatpush1.bf16.msra.mxu0 %v3415
        %3431 = vmatprep.subr.bf16.mxu0 0
        %3432 = vmatpush1.bf16.msra.mxu0 0
        %3433 = vmatprep.subr.bf16.mxu0 0
        %3434 = vmatpush1.bf16.msra.mxu0 0
        %3435 = vmatprep.subr.bf16.mxu0 0
        %3436 = vmatpush1.bf16.msra.mxu0 0
        %3437 = vmatprep.subr.bf16.mxu0 0
        %3438 = vmatpush1.bf16.msra.mxu0 0
        %3439 = vmatprep.subr.bf16.mxu0 0
        %3440 = vmatpush1.bf16.msra.mxu0 0
        %3441 = vmatprep.subr.bf16.mxu0 0
        %3442 = vmatpush1.bf16.msra.mxu0 0
        %3443 = vmatprep.subr.bf16.mxu0 0
        %3444 = vmatpush1.bf16.msra.mxu0 0
        %3445 = vmatprep.subr.bf16.mxu0 0
        %3446 = vmatpush1.bf16.msra.mxu0 0
        %3447 = vmatprep.subr.bf16.mxu0 0
        %3448 = vmatpush1.bf16.msra.mxu0 0
        %3449 = vmatprep.subr.bf16.mxu0 0
        %3450 = vmatpush1.bf16.msra.mxu0 0
        %3451 = vmatprep.subr.bf16.mxu0 0
        %3452 = vmatpush1.bf16.msra.mxu0 0
        %3453 = vmatprep.subr.bf16.mxu0 0
        %3454 = vmatpush1.bf16.msra.mxu0 0
        %3455 = vmatprep.mubr.bf16.mxu0 0
        %3456 = vmatmul.mubr.bf16.gmra.mrb[0].mxu0 %v3421
        %v3457 = vpop.f32.mrb[0].mxu0
        %v3458 = vadd.f32 %v3394, %v3457
        %v3459 = vpop.f32.mrb[0].mxu0
        %v3460 = vpop.f32.mrb[0].mxu0
        %v3461 = vadd.f32 %v3394, %v3460
        %v3462 = vpop.f32.mrb[0].mxu0
        %3463 = vdwg.mxu0
        %v3464 = vadd.f32 %v1250, %v3458
        %v3465 = vadd.f32 %v1251, %v3461
        %v3466 = vsel %vm1303, %v3464, 0.0
        %3467 = vadd.xlane.f32.xlu0 %v3466
        %v3468 = vpop.xlane.xlu0 %3467
        %v3469 = vsel %vm1303, %v3465, 0.0
        %3470 = vadd.xlane.f32.xlu0 %v3469
        %v3471 = vpop.xlane.xlu0 %3470
        %v3472 = vrcp.pop 64.0
        %v3473 = vmul.f32 %v3468, %v3472
        %v3474 = vmul.f32 %v3471, %v3472
        %v3475 = vsub.f32 %v3464, %v3473
        %v3476 = vsub.f32 %v3465, %v3474
        %v3477 = vmul.f32 %v3475, %v3475
        %v3478 = vmul.f32 %v3476, %v3476
        %v3479 = vsel %vm1303, %v3477, 0.0
        %3480 = vadd.xlane.f32.xlu0 %v3479
        %v3481 = vpop.xlane.xlu0 %3480
        %v3482 = vsel %vm1303, %v3478, 0.0
        %3483 = vadd.xlane.f32.xlu0 %v3482
        %v3484 = vpop.xlane.xlu0 %3483
        %v3485 = vmul.f32 %v3481, %v3472
        %v3486 = vmul.f32 %v3484, %v3472
        %v3487 = vadd.f32 %v3485, 1e-05
        %v3488 = vadd.f32 %v3486, 1e-05
        %v3489 = vrsqrt.pop %v3487
        %v3490 = vrsqrt.pop %v3488
        %v3491 = vmul.f32 %v3475, %v3489
        %v3492 = vmul.f32 %v3476, %v3490
        %v3493 = vlaneseq
        %v3494 = vshrl.u32 %v3493, 7
        %v3495 = vsub.s32 0, %v3494
        %v3496 = vrot.slane %v1252, %v3495
        %v3497 = vmul.f32 %v3491, %v3496
        %v3498 = vmul.f32 %v3492, %v3496
        %v3499 = vlaneseq
        %v3500 = vshrl.u32 %v3499, 7
        %v3501 = vsub.s32 0, %v3500
        %v3502 = vrot.slane %v1253, %v3501
        %v3503 = vadd.f32 %v3497, %v3502
        %v3504 = vadd.f32 %v3498, %v3502
        %v3505 = vld [vmem:[#allocation6] sm:$0x3]
        %v3506 = vpack.c.bf16 %v3505, %v3505
        %v3507 = vld [vmem:[%s1032] sm:$0xf]
        %v3508 = vld [vmem:[%s1032 + $0x4] sm:$0xf]
        %v3509 = vld [vmem:[%s1032 + $0x8] sm:$0xf]
        %v3510 = vld [vmem:[%s1032 + $0xc] sm:$0xf]
        %v3511 = vld [vmem:[%s1032 + $0x10] sm:$0xf]
        %v3512 = vld [vmem:[%s1032 + $0x14] sm:$0xf]
        %v3513 = vld [vmem:[%s1032 + $0x18] sm:$0xf]
        %v3514 = vld [vmem:[%s1032 + $0x1c] sm:$0xf]
        %v3515 = vld [vmem:[%s1040] sm:$0x1]
        %v3517 = vlaneseq
        %v3518 = vshrl.u32 %v3517, 7
        %v3519 = vsub.s32 0, %v3518
        %v3520 = vrot.slane %v3515, %v3519
        %v3530 = vunpack.c.l.b16 %v3507
        %v3531 = vunpack.c.l.b16 %v3508
        %v3532 = vunpack.c.l.b16 %v3509
        %v3533 = vunpack.c.l.b16 %v3510
        %v3534 = vunpack.c.l.b16 %v3511
        %v3535 = vunpack.c.l.b16 %v3512
        %v3536 = vunpack.c.l.b16 %v3513
        %v3537 = vunpack.c.l.b16 %v3514
        %v3538 = vpack.c.b16 %v3531, %v3530
        %v3539 = vpack.c.b16 %v3533, %v3532
        %v3540 = vpack.c.b16 %v3535, %v3534
        %v3541 = vpack.c.b16 %v3537, %v3536
        %v3547 = vsel %vm1303, %v3506, 0
        %3549 = vmatprep.subr.bf16.mxu0 0
        %3550 = vmatpush1.bf16.msra.mxu0 %v3538
        %3551 = vmatprep.subr.bf16.mxu0 0
        %3552 = vmatpush1.bf16.msra.mxu0 %v3539
        %3553 = vmatprep.subr.bf16.mxu0 0
        %3554 = vmatpush1.bf16.msra.mxu0 %v3540
        %3555 = vmatprep.subr.bf16.mxu0 0
        %3556 = vmatpush1.bf16.msra.mxu0 %v3541
        %3557 = vmatprep.subr.bf16.mxu0 0
        %3558 = vmatpush1.bf16.msra.mxu0 0
        %3559 = vmatprep.subr.bf16.mxu0 0
        %3560 = vmatpush1.bf16.msra.mxu0 0
        %3561 = vmatprep.subr.bf16.mxu0 0
        %3562 = vmatpush1.bf16.msra.mxu0 0
        %3563 = vmatprep.subr.bf16.mxu0 0
        %3564 = vmatpush1.bf16.msra.mxu0 0
        %3565 = vmatprep.subr.bf16.mxu0 0
        %3566 = vmatpush1.bf16.msra.mxu0 0
        %3567 = vmatprep.subr.bf16.mxu0 0
        %3568 = vmatpush1.bf16.msra.mxu0 0
        %3569 = vmatprep.subr.bf16.mxu0 0
        %3570 = vmatpush1.bf16.msra.mxu0 0
        %3571 = vmatprep.subr.bf16.mxu0 0
        %3572 = vmatpush1.bf16.msra.mxu0 0
        %3573 = vmatprep.subr.bf16.mxu0 0
        %3574 = vmatpush1.bf16.msra.mxu0 0
        %3575 = vmatprep.subr.bf16.mxu0 0
        %3576 = vmatpush1.bf16.msra.mxu0 0
        %3577 = vmatprep.subr.bf16.mxu0 0
        %3578 = vmatpush1.bf16.msra.mxu0 0
        %3579 = vmatprep.subr.bf16.mxu0 0
        %3580 = vmatpush1.bf16.msra.mxu0 0
        %3581 = vmatprep.mubr.bf16.mxu0 0
        %3582 = vmatmul.mubr.bf16.gmra.mrb[0].mxu0 %v3547
        %v3583 = vpop.f32.mrb[0].mxu0
        %v3584 = vadd.f32 %v3520, %v3583
        %v3585 = vpop.f32.mrb[0].mxu0
        %v3586 = vpop.f32.mrb[0].mxu0
        %v3587 = vpop.f32.mrb[0].mxu0
        %3588 = vdwg.mxu0
        %v3589 = vpack.c.bf16 %v3584, %v3584
        %v3590 = vld [vmem:[%s1049] sm:$0xf]
        %v3591 = vld [vmem:[%s1049 + $0x4] sm:$0xf]
        %v3592 = vld [vmem:[%s1049 + $0x8] sm:$0xf]
        %v3593 = vld [vmem:[%s1049 + $0xc] sm:$0xf]
        %v3594 = vld [vmem:[%s1049 + $0x10] sm:$0xf]
        %v3595 = vld [vmem:[%s1049 + $0x14] sm:$0xf]
        %v3596 = vld [vmem:[%s1049 + $0x18] sm:$0xf]
        %v3597 = vld [vmem:[%s1049 + $0x1c] sm:$0xf]
        %v3598 = vld [vmem:[%s1057] sm:$0x1]
        %v3600 = vlaneseq
        %v3601 = vshrl.u32 %v3600, 7
        %v3602 = vsub.s32 0, %v3601
        %v3603 = vrot.slane %v3598, %v3602
        %v3613 = vunpack.c.l.b16 %v3590
        %v3614 = vunpack.c.l.b16 %v3591
        %v3615 = vunpack.c.l.b16 %v3592
        %v3616 = vunpack.c.l.b16 %v3593
        %v3617 = vunpack.c.l.b16 %v3594
        %v3618 = vunpack.c.l.b16 %v3595
        %v3619 = vunpack.c.l.b16 %v3596
        %v3620 = vunpack.c.l.b16 %v3597
        %v3621 = vpack.c.b16 %v3614, %v3613
        %v3622 = vpack.c.b16 %v3616, %v3615
        %v3623 = vpack.c.b16 %v3618, %v3617
        %v3624 = vpack.c.b16 %v3620, %v3619
        %v3630 = vsel %vm1303, %v3589, 0
        %3632 = vmatprep.subr.bf16.mxu0 0
        %3633 = vmatpush1.bf16.msra.mxu0 %v3621
        %3634 = vmatprep.subr.bf16.mxu0 0
        %3635 = vmatpush1.bf16.msra.mxu0 %v3622
        %3636 = vmatprep.subr.bf16.mxu0 0
        %3637 = vmatpush1.bf16.msra.mxu0 %v3623
        %3638 = vmatprep.subr.bf16.mxu0 0
        %3639 = vmatpush1.bf16.msra.mxu0 %v3624
        %3640 = vmatprep.subr.bf16.mxu0 0
        %3641 = vmatpush1.bf16.msra.mxu0 0
        %3642 = vmatprep.subr.bf16.mxu0 0
        %3643 = vmatpush1.bf16.msra.mxu0 0
        %3644 = vmatprep.subr.bf16.mxu0 0
        %3645 = vmatpush1.bf16.msra.mxu0 0
        %3646 = vmatprep.subr.bf16.mxu0 0
        %3647 = vmatpush1.bf16.msra.mxu0 0
        %3648 = vmatprep.subr.bf16.mxu0 0
        %3649 = vmatpush1.bf16.msra.mxu0 0
        %3650 = vmatprep.subr.bf16.mxu0 0
        %3651 = vmatpush1.bf16.msra.mxu0 0
        %3652 = vmatprep.subr.bf16.mxu0 0
        %3653 = vmatpush1.bf16.msra.mxu0 0
        %3654 = vmatprep.subr.bf16.mxu0 0
        %3655 = vmatpush1.bf16.msra.mxu0 0
        %3656 = vmatprep.subr.bf16.mxu0 0
        %3657 = vmatpush1.bf16.msra.mxu0 0
        %3658 = vmatprep.subr.bf16.mxu0 0
        %3659 = vmatpush1.bf16.msra.mxu0 0
        %3660 = vmatprep.subr.bf16.mxu0 0
        %3661 = vmatpush1.bf16.msra.mxu0 0
        %3662 = vmatprep.subr.bf16.mxu0 0
        %3663 = vmatpush1.bf16.msra.mxu0 0
        %3664 = vmatprep.mubr.bf16.mxu0 0
        %3665 = vmatmul.mubr.bf16.gmra.mrb[0].mxu0 %v3630
        %v3666 = vpop.f32.mrb[0].mxu0
        %v3667 = vadd.f32 %v3603, %v3666
        %v3668 = vpop.f32.mrb[0].mxu0
        %v3669 = vpop.f32.mrb[0].mxu0
        %v3670 = vpop.f32.mrb[0].mxu0
        %3671 = vdwg.mxu0
        %v3674 = vunpack.c.l.s4 1966171168
        %v3675 = vunpack.c.0.s8 %v3674
        %v3676 = vlaneseq
        %v3677 = vshrl.u32 %v3676, 7
        %v3678 = vsub.s32 %v3675, %v3677
        %v3679 = vrot.slane %v3667, %v3678
        %v3680 = vcombine.high %v3679, %v3679
        %v3682 = vunpack.c.l.s4 1966171168
        %v3683 = vunpack.c.0.s8 %v3682
        %v3684 = vlaneseq
        %v3685 = vshrl.u32 %v3684, 7
        %v3686 = vsub.s32 %v3683, %v3685
        %v3687 = vrot.slane %v3679, %v3686
        %v3689 = vunpack.c.l.s4 1966171168
        %v3690 = vunpack.c.0.s8 %v3689
        %v3691 = vlaneseq
        %v3692 = vshrl.u32 %v3691, 7
        %v3693 = vsub.s32 %v3690, %v3692
        %v3694 = vrot.slane %v3680, %v3693
        %v3695 = vlaneseq
        %v3696 = vshrl.u32 %v3695, 7
        %v3697 = vsub.s32 0, %v3696
        %v3698 = vrot.slane %v3687, %v3697
        %v3699 = vlaneseq
        %v3700 = vshrl.u32 %v3699, 7
        %v3701 = vsub.s32 0, %v3700
        %v3702 = vrot.slane %v3694, %v3701
        %v3705 = vadd.f32 %v3503, %v3698
        %v3706 = vadd.f32 %v3504, %v3702
        %v3707 = vsel %vm1303, %v3705, 0.0
        %3708 = vadd.xlane.f32.xlu0 %v3707
        %v3709 = vpop.xlane.xlu0 %3708
        %v3710 = vsel %vm1303, %v3706, 0.0
        %3711 = vadd.xlane.f32.xlu0 %v3710
        %v3712 = vpop.xlane.xlu0 %3711
        %v3713 = vmul.f32 %v3709, %v3472
        %v3714 = vmul.f32 %v3712, %v3472
        %v3715 = vsub.f32 %v3705, %v3713
        %v3716 = vsub.f32 %v3706, %v3714
        %v3717 = vmul.f32 %v3715, %v3715
        %v3718 = vmul.f32 %v3716, %v3716
        %v3719 = vsel %vm1303, %v3717, 0.0
        %3720 = vadd.xlane.f32.xlu0 %v3719
        %v3721 = vpop.xlane.xlu0 %3720
        %v3722 = vsel %vm1303, %v3718, 0.0
        %3723 = vadd.xlane.f32.xlu0 %v3722
        %v3724 = vpop.xlane.xlu0 %3723
        %v3725 = vmul.f32 %v3721, %v3472
        %v3726 = vmul.f32 %v3724, %v3472
        %v3727 = vadd.f32 %v3725, 1e-05
        %v3728 = vadd.f32 %v3726, 1e-05
        %v3729 = vrsqrt.pop %v3727
        %v3730 = vrsqrt.pop %v3728
        %v3731 = vmul.f32 %v3715, %v3729
        %v3732 = vmul.f32 %v3716, %v3730
        %v3733 = vlaneseq
        %v3734 = vshrl.u32 %v3733, 7
        %v3735 = vsub.s32 0, %v3734
        %v3736 = vrot.slane %v1254, %v3735
        %v3737 = vmul.f32 %v3731, %v3736
        %v3738 = vmul.f32 %v3732, %v3736
        %v3739 = vlaneseq
        %v3740 = vshrl.u32 %v3739, 7
        %v3741 = vsub.s32 0, %v3740
        %v3742 = vrot.slane %v1255, %v3741
        %v3743 = vadd.f32 %v3737, %v3742
        %v3744 = vadd.f32 %v3738, %v3742
        %v3745 = vpack.c.bf16 %v3744, %v3743
        %v3746 = vld [vmem:[%s1066] sm:$0xff]
        %v3747 = vld [vmem:[%s1066 + $0x8] sm:$0xff]
        %v3748 = vld [vmem:[%s1066 + $0x10] sm:$0xff]
        %v3749 = vld [vmem:[%s1066 + $0x18] sm:$0xff]
        %v3750 = vld [vmem:[%s1066 + $0x20] sm:$0xff]
        %v3751 = vld [vmem:[%s1066 + $0x28] sm:$0xff]
        %v3752 = vld [vmem:[%s1066 + $0x30] sm:$0xff]
        %v3753 = vld [vmem:[%s1066 + $0x38] sm:$0xff]
        %v3754 = vld [vmem:[%s1066 + $0x40] sm:$0xff]
        %v3755 = vld [vmem:[%s1066 + $0x48] sm:$0xff]
        %v3756 = vld [vmem:[%s1066 + $0x50] sm:$0xff]
        %v3757 = vld [vmem:[%s1066 + $0x58] sm:$0xff]
        %v3758 = vld [vmem:[%s1066 + $0x60] sm:$0xff]
        %v3759 = vld [vmem:[%s1066 + $0x68] sm:$0xff]
        %v3760 = vld [vmem:[%s1066 + $0x70] sm:$0xff]
        %v3761 = vld [vmem:[%s1066 + $0x78] sm:$0xff]
        %v3762 = vld [vmem:[%s1066 + $0x80] sm:$0xff]
        %v3763 = vld [vmem:[%s1066 + $0x88] sm:$0xff]
        %v3764 = vld [vmem:[%s1066 + $0x90] sm:$0xff]
        %v3765 = vld [vmem:[%s1066 + $0x98] sm:$0xff]
        %v3766 = vld [vmem:[%s1066 + $0xa0] sm:$0xff]
        %v3767 = vld [vmem:[%s1066 + $0xa8] sm:$0xff]
        %v3768 = vld [vmem:[%s1066 + $0xb0] sm:$0xff]
        %v3769 = vld [vmem:[%s1066 + $0xb8] sm:$0xff]
        %v3770 = vld [vmem:[%s1066 + $0xc0] sm:$0xff]
        %v3771 = vld [vmem:[%s1066 + $0xc8] sm:$0xff]
        %v3772 = vld [vmem:[%s1066 + $0xd0] sm:$0xff]
        %v3773 = vld [vmem:[%s1066 + $0xd8] sm:$0xff]
        %v3774 = vld [vmem:[%s1066 + $0xe0] sm:$0xff]
        %v3775 = vld [vmem:[%s1066 + $0xe8] sm:$0xff]
        %v3776 = vld [vmem:[%s1066 + $0xf0] sm:$0xff]
        %v3777 = vld [vmem:[%s1066 + $0xf8] sm:$0xff]
        %v3778 = vld [vmem:[%s1066 + $0x100] sm:$0xff]
        %v3779 = vld [vmem:[%s1066 + $0x108] sm:$0xff]
        %v3780 = vld [vmem:[%s1066 + $0x110] sm:$0xff]
        %v3781 = vld [vmem:[%s1066 + $0x118] sm:$0xff]
        %v3782 = vld [vmem:[%s1066 + $0x120] sm:$0xff]
        %v3783 = vld [vmem:[%s1066 + $0x128] sm:$0xff]
        %v3784 = vld [vmem:[%s1066 + $0x130] sm:$0xff]
        %v3785 = vld [vmem:[%s1066 + $0x138] sm:$0xff]
        %v3786 = vld [vmem:[%s1066 + $0x140] sm:$0xff]
        %v3787 = vld [vmem:[%s1066 + $0x148] sm:$0xff]
        %v3788 = vld [vmem:[%s1066 + $0x150] sm:$0xff]
        %v3789 = vld [vmem:[%s1066 + $0x158] sm:$0xff]
        %v3790 = vld [vmem:[%s1066 + $0x160] sm:$0xff]
        %v3791 = vld [vmem:[%s1066 + $0x168] sm:$0xff]
        %v3792 = vld [vmem:[%s1066 + $0x170] sm:$0xff]
        %v3793 = vld [vmem:[%s1066 + $0x178] sm:$0xff]
        %v3794 = vld [vmem:[%s1066 + $0x180] sm:$0xff]
        %v3795 = vld [vmem:[%s1066 + $0x188] sm:$0xff]
        %v3796 = vld [vmem:[%s1066 + $0x190] sm:$0xff]
        %v3797 = vld [vmem:[%s1066 + $0x198] sm:$0xff]
        %v3798 = vld [vmem:[%s1066 + $0x1a0] sm:$0xff]
        %v3799 = vld [vmem:[%s1066 + $0x1a8] sm:$0xff]
        %v3800 = vld [vmem:[%s1066 + $0x1b0] sm:$0xff]
        %v3801 = vld [vmem:[%s1066 + $0x1b8] sm:$0xff]
        %v3802 = vld [vmem:[%s1066 + $0x1c0] sm:$0xff]
        %v3803 = vld [vmem:[%s1066 + $0x1c8] sm:$0xff]
        %v3804 = vld [vmem:[%s1066 + $0x1d0] sm:$0xff]
        %v3805 = vld [vmem:[%s1066 + $0x1d8] sm:$0xff]
        %v3806 = vld [vmem:[%s1066 + $0x1e0] sm:$0xff]
        %v3807 = vld [vmem:[%s1066 + $0x1e8] sm:$0xff]
        %v3808 = vld [vmem:[%s1066 + $0x1f0] sm:$0xff]
        %v3809 = vld [vmem:[%s1066 + $0x1f8] sm:$0xff]
        %v3810 = vld [vmem:[%s1075] sm:$0xff]
        %v3811 = vld [vmem:[%s1075 + $0x8] sm:$0xff]
        %v3814 = vlaneseq
        %v3815 = vshrl.u32 %v3814, 7
        %v3816 = vsub.s32 0, %v3815
        %v3817 = vrot.slane %v3810, %v3816
        %v3818 = vlaneseq
        %v3819 = vshrl.u32 %v3818, 7
        %v3820 = vsub.s32 1, %v3819
        %v3821 = vrot.slane %v3810, %v3820
        %v3822 = vlaneseq
        %v3823 = vshrl.u32 %v3822, 7
        %v3824 = vsub.s32 2, %v3823
        %v3825 = vrot.slane %v3810, %v3824
        %v3826 = vlaneseq
        %v3827 = vshrl.u32 %v3826, 7
        %v3828 = vsub.s32 3, %v3827
        %v3829 = vrot.slane %v3810, %v3828
        %v3830 = vlaneseq
        %v3831 = vshrl.u32 %v3830, 7
        %v3832 = vsub.s32 4, %v3831
        %v3833 = vrot.slane %v3810, %v3832
        %v3834 = vlaneseq
        %v3835 = vshrl.u32 %v3834, 7
        %v3836 = vsub.s32 5, %v3835
        %v3837 = vrot.slane %v3810, %v3836
        %v3838 = vlaneseq
        %v3839 = vshrl.u32 %v3838, 7
        %v3840 = vsub.s32 6, %v3839
        %v3841 = vrot.slane %v3810, %v3840
        %v3842 = vlaneseq
        %v3843 = vshrl.u32 %v3842, 7
        %v3844 = vsub.s32 7, %v3843
        %v3845 = vrot.slane %v3810, %v3844
        %v3846 = vlaneseq
        %v3847 = vshrl.u32 %v3846, 7
        %v3848 = vsub.s32 0, %v3847
        %v3849 = vrot.slane %v3811, %v3848
        %v3850 = vlaneseq
        %v3851 = vshrl.u32 %v3850, 7
        %v3852 = vsub.s32 1, %v3851
        %v3853 = vrot.slane %v3811, %v3852
        %v3854 = vlaneseq
        %v3855 = vshrl.u32 %v3854, 7
        %v3856 = vsub.s32 2, %v3855
        %v3857 = vrot.slane %v3811, %v3856
        %v3858 = vlaneseq
        %v3859 = vshrl.u32 %v3858, 7
        %v3860 = vsub.s32 3, %v3859
        %v3861 = vrot.slane %v3811, %v3860
        %v3862 = vlaneseq
        %v3863 = vshrl.u32 %v3862, 7
        %v3864 = vsub.s32 4, %v3863
        %v3865 = vrot.slane %v3811, %v3864
        %v3866 = vlaneseq
        %v3867 = vshrl.u32 %v3866, 7
        %v3868 = vsub.s32 5, %v3867
        %v3869 = vrot.slane %v3811, %v3868
        %v3870 = vlaneseq
        %v3871 = vshrl.u32 %v3870, 7
        %v3872 = vsub.s32 6, %v3871
        %v3873 = vrot.slane %v3811, %v3872
        %v3874 = vlaneseq
        %v3875 = vshrl.u32 %v3874, 7
        %v3876 = vsub.s32 7, %v3875
        %v3877 = vrot.slane %v3811, %v3876
        %v3958 = vunpack.c.l.b16 %v3746
        %v3959 = vunpack.c.h.b16 %v3746
        %v3960 = vunpack.c.l.b16 %v3747
        %v3961 = vunpack.c.h.b16 %v3747
        %v3962 = vunpack.c.l.b16 %v3748
        %v3963 = vunpack.c.h.b16 %v3748
        %v3964 = vunpack.c.l.b16 %v3749
        %v3965 = vunpack.c.h.b16 %v3749
        %v3966 = vunpack.c.l.b16 %v3750
        %v3967 = vunpack.c.h.b16 %v3750
        %v3968 = vunpack.c.l.b16 %v3751
        %v3969 = vunpack.c.h.b16 %v3751
        %v3970 = vunpack.c.l.b16 %v3752
        %v3971 = vunpack.c.h.b16 %v3752
        %v3972 = vunpack.c.l.b16 %v3753
        %v3973 = vunpack.c.h.b16 %v3753
        %v3974 = vunpack.c.l.b16 %v3754
        %v3975 = vunpack.c.h.b16 %v3754
        %v3976 = vunpack.c.l.b16 %v3755
        %v3977 = vunpack.c.h.b16 %v3755
        %v3978 = vunpack.c.l.b16 %v3756
        %v3979 = vunpack.c.h.b16 %v3756
        %v3980 = vunpack.c.l.b16 %v3757
        %v3981 = vunpack.c.h.b16 %v3757
        %v3982 = vunpack.c.l.b16 %v3758
        %v3983 = vunpack.c.h.b16 %v3758
        %v3984 = vunpack.c.l.b16 %v3759
        %v3985 = vunpack.c.h.b16 %v3759
        %v3986 = vunpack.c.l.b16 %v3760
        %v3987 = vunpack.c.h.b16 %v3760
        %v3988 = vunpack.c.l.b16 %v3761
        %v3989 = vunpack.c.h.b16 %v3761
        %v3990 = vunpack.c.l.b16 %v3762
        %v3991 = vunpack.c.h.b16 %v3762
        %v3992 = vunpack.c.l.b16 %v3763
        %v3993 = vunpack.c.h.b16 %v3763
        %v3994 = vunpack.c.l.b16 %v3764
        %v3995 = vunpack.c.h.b16 %v3764
        %v3996 = vunpack.c.l.b16 %v3765
        %v3997 = vunpack.c.h.b16 %v3765
        %v3998 = vunpack.c.l.b16 %v3766
        %v3999 = vunpack.c.h.b16 %v3766
        %v4000 = vunpack.c.l.b16 %v3767
        %v4001 = vunpack.c.h.b16 %v3767
        %v4002 = vunpack.c.l.b16 %v3768
        %v4003 = vunpack.c.h.b16 %v3768
        %v4004 = vunpack.c.l.b16 %v3769
        %v4005 = vunpack.c.h.b16 %v3769
        %v4006 = vunpack.c.l.b16 %v3770
        %v4007 = vunpack.c.h.b16 %v3770
        %v4008 = vunpack.c.l.b16 %v3771
        %v4009 = vunpack.c.h.b16 %v3771
        %v4010 = vunpack.c.l.b16 %v3772
        %v4011 = vunpack.c.h.b16 %v3772
        %v4012 = vunpack.c.l.b16 %v3773
        %v4013 = vunpack.c.h.b16 %v3773
        %v4014 = vunpack.c.l.b16 %v3774
        %v4015 = vunpack.c.h.b16 %v3774
        %v4016 = vunpack.c.l.b16 %v3775
        %v4017 = vunpack.c.h.b16 %v3775
        %v4018 = vunpack.c.l.b16 %v3776
        %v4019 = vunpack.c.h.b16 %v3776
        %v4020 = vunpack.c.l.b16 %v3777
        %v4021 = vunpack.c.h.b16 %v3777
        %v4022 = vunpack.c.l.b16 %v3778
        %v4023 = vunpack.c.h.b16 %v3778
        %v4024 = vunpack.c.l.b16 %v3779
        %v4025 = vunpack.c.h.b16 %v3779
        %v4026 = vunpack.c.l.b16 %v3780
        %v4027 = vunpack.c.h.b16 %v3780
        %v4028 = vunpack.c.l.b16 %v3781
        %v4029 = vunpack.c.h.b16 %v3781
        %v4030 = vunpack.c.l.b16 %v3782
        %v4031 = vunpack.c.h.b16 %v3782
        %v4032 = vunpack.c.l.b16 %v3783
        %v4033 = vunpack.c.h.b16 %v3783
        %v4034 = vunpack.c.l.b16 %v3784
        %v4035 = vunpack.c.h.b16 %v3784
        %v4036 = vunpack.c.l.b16 %v3785
        %v4037 = vunpack.c.h.b16 %v3785
        %v4038 = vunpack.c.l.b16 %v3786
        %v4039 = vunpack.c.h.b16 %v3786
        %v4040 = vunpack.c.l.b16 %v3787
        %v4041 = vunpack.c.h.b16 %v3787
        %v4042 = vunpack.c.l.b16 %v3788
        %v4043 = vunpack.c.h.b16 %v3788
        %v4044 = vunpack.c.l.b16 %v3789
        %v4045 = vunpack.c.h.b16 %v3789
        %v4046 = vunpack.c.l.b16 %v3790
        %v4047 = vunpack.c.h.b16 %v3790
        %v4048 = vunpack.c.l.b16 %v3791
        %v4049 = vunpack.c.h.b16 %v3791
        %v4050 = vunpack.c.l.b16 %v3792
        %v4051 = vunpack.c.h.b16 %v3792
        %v4052 = vunpack.c.l.b16 %v3793
        %v4053 = vunpack.c.h.b16 %v3793
        %v4054 = vunpack.c.l.b16 %v3794
        %v4055 = vunpack.c.h.b16 %v3794
        %v4056 = vunpack.c.l.b16 %v3795
        %v4057 = vunpack.c.h.b16 %v3795
        %v4058 = vunpack.c.l.b16 %v3796
        %v4059 = vunpack.c.h.b16 %v3796
        %v4060 = vunpack.c.l.b16 %v3797
        %v4061 = vunpack.c.h.b16 %v3797
        %v4062 = vunpack.c.l.b16 %v3798
        %v4063 = vunpack.c.h.b16 %v3798
        %v4064 = vunpack.c.l.b16 %v3799
        %v4065 = vunpack.c.h.b16 %v3799
        %v4066 = vunpack.c.l.b16 %v3800
        %v4067 = vunpack.c.h.b16 %v3800
        %v4068 = vunpack.c.l.b16 %v3801
        %v4069 = vunpack.c.h.b16 %v3801
        %v4070 = vunpack.c.l.b16 %v3802
        %v4071 = vunpack.c.h.b16 %v3802
        %v4072 = vunpack.c.l.b16 %v3803
        %v4073 = vunpack.c.h.b16 %v3803
        %v4074 = vunpack.c.l.b16 %v3804
        %v4075 = vunpack.c.h.b16 %v3804
        %v4076 = vunpack.c.l.b16 %v3805
        %v4077 = vunpack.c.h.b16 %v3805
        %v4078 = vunpack.c.l.b16 %v3806
        %v4079 = vunpack.c.h.b16 %v3806
        %v4080 = vunpack.c.l.b16 %v3807
        %v4081 = vunpack.c.h.b16 %v3807
        %v4082 = vunpack.c.l.b16 %v3808
        %v4083 = vunpack.c.h.b16 %v3808
        %v4084 = vunpack.c.l.b16 %v3809
        %v4085 = vunpack.c.h.b16 %v3809
        %v4086 = vpack.c.b16 %v3974, %v3958
        %v4087 = vpack.c.b16 %v3975, %v3959
        %v4088 = vpack.c.b16 %v3976, %v3960
        %v4089 = vpack.c.b16 %v3977, %v3961
        %v4090 = vpack.c.b16 %v3978, %v3962
        %v4091 = vpack.c.b16 %v3979, %v3963
        %v4092 = vpack.c.b16 %v3980, %v3964
        %v4093 = vpack.c.b16 %v3981, %v3965
        %v4094 = vpack.c.b16 %v3982, %v3966
        %v4095 = vpack.c.b16 %v3983, %v3967
        %v4096 = vpack.c.b16 %v3984, %v3968
        %v4097 = vpack.c.b16 %v3985, %v3969
        %v4098 = vpack.c.b16 %v3986, %v3970
        %v4099 = vpack.c.b16 %v3987, %v3971
        %v4100 = vpack.c.b16 %v3988, %v3972
        %v4101 = vpack.c.b16 %v3989, %v3973
        %v4102 = vpack.c.b16 %v4006, %v3990
        %v4103 = vpack.c.b16 %v4007, %v3991
        %v4104 = vpack.c.b16 %v4008, %v3992
        %v4105 = vpack.c.b16 %v4009, %v3993
        %v4106 = vpack.c.b16 %v4010, %v3994
        %v4107 = vpack.c.b16 %v4011, %v3995
        %v4108 = vpack.c.b16 %v4012, %v3996
        %v4109 = vpack.c.b16 %v4013, %v3997
        %v4110 = vpack.c.b16 %v4014, %v3998
        %v4111 = vpack.c.b16 %v4015, %v3999
        %v4112 = vpack.c.b16 %v4016, %v4000
        %v4113 = vpack.c.b16 %v4017, %v4001
        %v4114 = vpack.c.b16 %v4018, %v4002
        %v4115 = vpack.c.b16 %v4019, %v4003
        %v4116 = vpack.c.b16 %v4020, %v4004
        %v4117 = vpack.c.b16 %v4021, %v4005
        %v4118 = vpack.c.b16 %v4038, %v4022
        %v4119 = vpack.c.b16 %v4039, %v4023
        %v4120 = vpack.c.b16 %v4040, %v4024
        %v4121 = vpack.c.b16 %v4041, %v4025
        %v4122 = vpack.c.b16 %v4042, %v4026
        %v4123 = vpack.c.b16 %v4043, %v4027
        %v4124 = vpack.c.b16 %v4044, %v4028
        %v4125 = vpack.c.b16 %v4045, %v4029
        %v4126 = vpack.c.b16 %v4046, %v4030
        %v4127 = vpack.c.b16 %v4047, %v4031
        %v4128 = vpack.c.b16 %v4048, %v4032
        %v4129 = vpack.c.b16 %v4049, %v4033
        %v4130 = vpack.c.b16 %v4050, %v4034
        %v4131 = vpack.c.b16 %v4051, %v4035
        %v4132 = vpack.c.b16 %v4052, %v4036
        %v4133 = vpack.c.b16 %v4053, %v4037
        %v4134 = vpack.c.b16 %v4070, %v4054
        %v4135 = vpack.c.b16 %v4071, %v4055
        %v4136 = vpack.c.b16 %v4072, %v4056
        %v4137 = vpack.c.b16 %v4073, %v4057
        %v4138 = vpack.c.b16 %v4074, %v4058
        %v4139 = vpack.c.b16 %v4075, %v4059
        %v4140 = vpack.c.b16 %v4076, %v4060
        %v4141 = vpack.c.b16 %v4077, %v4061
        %v4142 = vpack.c.b16 %v4078, %v4062
        %v4143 = vpack.c.b16 %v4079, %v4063
        %v4144 = vpack.c.b16 %v4080, %v4064
        %v4145 = vpack.c.b16 %v4081, %v4065
        %v4146 = vpack.c.b16 %v4082, %v4066
        %v4147 = vpack.c.b16 %v4083, %v4067
        %v4148 = vpack.c.b16 %v4084, %v4068
        %v4149 = vpack.c.b16 %v4085, %v4069
        %v4215 = vsel %vm1303, %v3745, 0
        %4217 = vmatprep.subr.bf16.mxu0 %v4087
        %4218 = vmatpush1.bf16.msra.mxu0 %v4086
        %4219 = vmatprep.subr.bf16.mxu0 %v4103
        %4220 = vmatpush1.bf16.msra.mxu0 %v4102
        %4221 = vmatprep.subr.bf16.mxu0 %v4119
        %4222 = vmatpush1.bf16.msra.mxu0 %v4118
        %4223 = vmatprep.subr.bf16.mxu0 %v4135
        %4224 = vmatpush1.bf16.msra.mxu0 %v4134
        %4225 = vmatprep.subr.bf16.mxu0 0
        %4226 = vmatpush1.bf16.msra.mxu0 0
        %4227 = vmatprep.subr.bf16.mxu0 0
        %4228 = vmatpush1.bf16.msra.mxu0 0
        %4229 = vmatprep.subr.bf16.mxu0 0
        %4230 = vmatpush1.bf16.msra.mxu0 0
        %4231 = vmatprep.subr.bf16.mxu0 0
        %4232 = vmatpush1.bf16.msra.mxu0 0
        %4233 = vmatprep.subr.bf16.mxu0 0
        %4234 = vmatpush1.bf16.msra.mxu0 0
        %4235 = vmatprep.subr.bf16.mxu0 0
        %4236 = vmatpush1.bf16.msra.mxu0 0
        %4237 = vmatprep.subr.bf16.mxu0 0
        %4238 = vmatpush1.bf16.msra.mxu0 0
        %4239 = vmatprep.subr.bf16.mxu0 0
        %4240 = vmatpush1.bf16.msra.mxu0 0
        %4241 = vmatprep.subr.bf16.mxu0 0
        %4242 = vmatpush1.bf16.msra.mxu0 0
        %4243 = vmatprep.subr.bf16.mxu0 0
        %4244 = vmatpush1.bf16.msra.mxu0 0
        %4245 = vmatprep.subr.bf16.mxu0 0
        %4246 = vmatpush1.bf16.msra.mxu0 0
        %4247 = vmatprep.subr.bf16.mxu0 0
        %4248 = vmatpush1.bf16.msra.mxu0 0
        %4249 = vmatprep.mubr.bf16.mxu0 0
        %4250 = vmatmul.mubr.bf16.gmra.mrb[0].mxu0 %v4215
        %v4251 = vpop.f32.mrb[0].mxu0
        %v4252 = vadd.f32 %v3817, %v4251
        %v4253 = vpop.f32.mrb[0].mxu0
        %v4254 = vadd.f32 %v3821, %v4253
        %v4255 = vpop.f32.mrb[0].mxu0
        %v4256 = vadd.f32 %v3817, %v4255
        %v4257 = vpop.f32.mrb[0].mxu0
        %v4258 = vadd.f32 %v3821, %v4257
        %4259 = vdwg.mxu0
        %4260 = vmatprep.subr.bf16.mxu0 %v4089
        %4261 = vmatpush1.bf16.msra.mxu0 %v4088
        %4262 = vmatprep.subr.bf16.mxu0 %v4105
        %4263 = vmatpush1.bf16.msra.mxu0 %v4104
        %4264 = vmatprep.subr.bf16.mxu0 %v4121
        %4265 = vmatpush1.bf16.msra.mxu0 %v4120
        %4266 = vmatprep.subr.bf16.mxu0 %v4137
        %4267 = vmatpush1.bf16.msra.mxu0 %v4136
        %4268 = vmatprep.subr.bf16.mxu0 0
        %4269 = vmatpush1.bf16.msra.mxu0 0
        %4270 = vmatprep.subr.bf16.mxu0 0
        %4271 = vmatpush1.bf16.msra.mxu0 0
        %4272 = vmatprep.subr.bf16.mxu0 0
        %4273 = vmatpush1.bf16.msra.mxu0 0
        %4274 = vmatprep.subr.bf16.mxu0 0
        %4275 = vmatpush1.bf16.msra.mxu0 0
        %4276 = vmatprep.subr.bf16.mxu0 0
        %4277 = vmatpush1.bf16.msra.mxu0 0
        %4278 = vmatprep.subr.bf16.mxu0 0
        %4279 = vmatpush1.bf16.msra.mxu0 0
        %4280 = vmatprep.subr.bf16.mxu0 0
        %4281 = vmatpush1.bf16.msra.mxu0 0
        %4282 = vmatprep.subr.bf16.mxu0 0
        %4283 = vmatpush1.bf16.msra.mxu0 0
        %4284 = vmatprep.subr.bf16.mxu0 0
        %4285 = vmatpush1.bf16.msra.mxu0 0
        %4286 = vmatprep.subr.bf16.mxu0 0
        %4287 = vmatpush1.bf16.msra.mxu0 0
        %4288 = vmatprep.subr.bf16.mxu0 0
        %4289 = vmatpush1.bf16.msra.mxu0 0
        %4290 = vmatprep.subr.bf16.mxu0 0
        %4291 = vmatpush1.bf16.msra.mxu0 0
        %4292 = vmatprep.mubr.bf16.mxu0 0
        %4293 = vmatmul.mubr.bf16.gmra.mrb[0].mxu0 %v4215
        %v4294 = vpop.f32.mrb[0].mxu0
        %v4295 = vadd.f32 %v3825, %v4294
        %v4296 = vpop.f32.mrb[0].mxu0
        %v4297 = vadd.f32 %v3829, %v4296
        %v4298 = vpop.f32.mrb[0].mxu0
        %v4299 = vadd.f32 %v3825, %v4298
        %v4300 = vpop.f32.mrb[0].mxu0
        %v4301 = vadd.f32 %v3829, %v4300
        %4302 = vdwg.mxu0
        %4303 = vmatprep.subr.bf16.mxu0 %v4091
        %4304 = vmatpush1.bf16.msra.mxu0 %v4090
        %4305 = vmatprep.subr.bf16.mxu0 %v4107
        %4306 = vmatpush1.bf16.msra.mxu0 %v4106
        %4307 = vmatprep.subr.bf16.mxu0 %v4123
        %4308 = vmatpush1.bf16.msra.mxu0 %v4122
        %4309 = vmatprep.subr.bf16.mxu0 %v4139
        %4310 = vmatpush1.bf16.msra.mxu0 %v4138
        %4311 = vmatprep.subr.bf16.mxu0 0
        %4312 = vmatpush1.bf16.msra.mxu0 0
        %4313 = vmatprep.subr.bf16.mxu0 0
        %4314 = vmatpush1.bf16.msra.mxu0 0
        %4315 = vmatprep.subr.bf16.mxu0 0
        %4316 = vmatpush1.bf16.msra.mxu0 0
        %4317 = vmatprep.subr.bf16.mxu0 0
        %4318 = vmatpush1.bf16.msra.mxu0 0
        %4319 = vmatprep.subr.bf16.mxu0 0
        %4320 = vmatpush1.bf16.msra.mxu0 0
        %4321 = vmatprep.subr.bf16.mxu0 0
        %4322 = vmatpush1.bf16.msra.mxu0 0
        %4323 = vmatprep.subr.bf16.mxu0 0
        %4324 = vmatpush1.bf16.msra.mxu0 0
        %4325 = vmatprep.subr.bf16.mxu0 0
        %4326 = vmatpush1.bf16.msra.mxu0 0
        %4327 = vmatprep.subr.bf16.mxu0 0
        %4328 = vmatpush1.bf16.msra.mxu0 0
        %4329 = vmatprep.subr.bf16.mxu0 0
        %4330 = vmatpush1.bf16.msra.mxu0 0
        %4331 = vmatprep.subr.bf16.mxu0 0
        %4332 = vmatpush1.bf16.msra.mxu0 0
        %4333 = vmatprep.subr.bf16.mxu0 0
        %4334 = vmatpush1.bf16.msra.mxu0 0
        %4335 = vmatprep.mubr.bf16.mxu0 0
        %4336 = vmatmul.mubr.bf16.gmra.mrb[0].mxu0 %v4215
        %v4337 = vpop.f32.mrb[0].mxu0
        %v4338 = vadd.f32 %v3833, %v4337
        %v4339 = vpop.f32.mrb[0].mxu0
        %v4340 = vadd.f32 %v3837, %v4339
        %v4341 = vpop.f32.mrb[0].mxu0
        %v4342 = vadd.f32 %v3833, %v4341
        %v4343 = vpop.f32.mrb[0].mxu0
        %v4344 = vadd.f32 %v3837, %v4343
        %4345 = vdwg.mxu0
        %4346 = vmatprep.subr.bf16.mxu0 %v4093
        %4347 = vmatpush1.bf16.msra.mxu0 %v4092
        %4348 = vmatprep.subr.bf16.mxu0 %v4109
        %4349 = vmatpush1.bf16.msra.mxu0 %v4108
        %4350 = vmatprep.subr.bf16.mxu0 %v4125
        %4351 = vmatpush1.bf16.msra.mxu0 %v4124
        %4352 = vmatprep.subr.bf16.mxu0 %v4141
        %4353 = vmatpush1.bf16.msra.mxu0 %v4140
        %4354 = vmatprep.subr.bf16.mxu0 0
        %4355 = vmatpush1.bf16.msra.mxu0 0
        %4356 = vmatprep.subr.bf16.mxu0 0
        %4357 = vmatpush1.bf16.msra.mxu0 0
        %4358 = vmatprep.subr.bf16.mxu0 0
        %4359 = vmatpush1.bf16.msra.mxu0 0
        %4360 = vmatprep.subr.bf16.mxu0 0
        %4361 = vmatpush1.bf16.msra.mxu0 0
        %4362 = vmatprep.subr.bf16.mxu0 0
        %4363 = vmatpush1.bf16.msra.mxu0 0
        %4364 = vmatprep.subr.bf16.mxu0 0
        %4365 = vmatpush1.bf16.msra.mxu0 0
        %4366 = vmatprep.subr.bf16.mxu0 0
        %4367 = vmatpush1.bf16.msra.mxu0 0
        %4368 = vmatprep.subr.bf16.mxu0 0
        %4369 = vmatpush1.bf16.msra.mxu0 0
        %4370 = vmatprep.subr.bf16.mxu0 0
        %4371 = vmatpush1.bf16.msra.mxu0 0
        %4372 = vmatprep.subr.bf16.mxu0 0
        %4373 = vmatpush1.bf16.msra.mxu0 0
        %4374 = vmatprep.subr.bf16.mxu0 0
        %4375 = vmatpush1.bf16.msra.mxu0 0
        %4376 = vmatprep.subr.bf16.mxu0 0
        %4377 = vmatpush1.bf16.msra.mxu0 0
        %4378 = vmatprep.mubr.bf16.mxu0 0
        %4379 = vmatmul.mubr.bf16.gmra.mrb[0].mxu0 %v4215
        %v4380 = vpop.f32.mrb[0].mxu0
        %v4381 = vadd.f32 %v3841, %v4380
        %v4382 = vpop.f32.mrb[0].mxu0
        %v4383 = vadd.f32 %v3845, %v4382
        %v4384 = vpop.f32.mrb[0].mxu0
        %v4385 = vadd.f32 %v3841, %v4384
        %v4386 = vpop.f32.mrb[0].mxu0
        %v4387 = vadd.f32 %v3845, %v4386
        %4388 = vdwg.mxu0
        %4389 = vmatprep.subr.bf16.mxu0 %v4095
        %4390 = vmatpush1.bf16.msra.mxu0 %v4094
        %4391 = vmatprep.subr.bf16.mxu0 %v4111
        %4392 = vmatpush1.bf16.msra.mxu0 %v4110
        %4393 = vmatprep.subr.bf16.mxu0 %v4127
        %4394 = vmatpush1.bf16.msra.mxu0 %v4126
        %4395 = vmatprep.subr.bf16.mxu0 %v4143
        %4396 = vmatpush1.bf16.msra.mxu0 %v4142
        %4397 = vmatprep.subr.bf16.mxu0 0
        %4398 = vmatpush1.bf16.msra.mxu0 0
        %4399 = vmatprep.subr.bf16.mxu0 0
        %4400 = vmatpush1.bf16.msra.mxu0 0
        %4401 = vmatprep.subr.bf16.mxu0 0
        %4402 = vmatpush1.bf16.msra.mxu0 0
        %4403 = vmatprep.subr.bf16.mxu0 0
        %4404 = vmatpush1.bf16.msra.mxu0 0
        %4405 = vmatprep.subr.bf16.mxu0 0
        %4406 = vmatpush1.bf16.msra.mxu0 0
        %4407 = vmatprep.subr.bf16.mxu0 0
        %4408 = vmatpush1.bf16.msra.mxu0 0
        %4409 = vmatprep.subr.bf16.mxu0 0
        %4410 = vmatpush1.bf16.msra.mxu0 0
        %4411 = vmatprep.subr.bf16.mxu0 0
        %4412 = vmatpush1.bf16.msra.mxu0 0
        %4413 = vmatprep.subr.bf16.mxu0 0
        %4414 = vmatpush1.bf16.msra.mxu0 0
        %4415 = vmatprep.subr.bf16.mxu0 0
        %4416 = vmatpush1.bf16.msra.mxu0 0
        %4417 = vmatprep.subr.bf16.mxu0 0
        %4418 = vmatpush1.bf16.msra.mxu0 0
        %4419 = vmatprep.subr.bf16.mxu0 0
        %4420 = vmatpush1.bf16.msra.mxu0 0
        %4421 = vmatprep.mubr.bf16.mxu0 0
        %4422 = vmatmul.mubr.bf16.gmra.mrb[0].mxu0 %v4215
        %v4423 = vpop.f32.mrb[0].mxu0
        %v4424 = vadd.f32 %v3849, %v4423
        %v4425 = vpop.f32.mrb[0].mxu0
        %v4426 = vadd.f32 %v3853, %v4425
        %v4427 = vpop.f32.mrb[0].mxu0
        %v4428 = vadd.f32 %v3849, %v4427
        %v4429 = vpop.f32.mrb[0].mxu0
        %v4430 = vadd.f32 %v3853, %v4429
        %4431 = vdwg.mxu0
        %4432 = vmatprep.subr.bf16.mxu0 %v4097
        %4433 = vmatpush1.bf16.msra.mxu0 %v4096
        %4434 = vmatprep.subr.bf16.mxu0 %v4113
        %4435 = vmatpush1.bf16.msra.mxu0 %v4112
        %4436 = vmatprep.subr.bf16.mxu0 %v4129
        %4437 = vmatpush1.bf16.msra.mxu0 %v4128
        %4438 = vmatprep.subr.bf16.mxu0 %v4145
        %4439 = vmatpush1.bf16.msra.mxu0 %v4144
        %4440 = vmatprep.subr.bf16.mxu0 0
        %4441 = vmatpush1.bf16.msra.mxu0 0
        %4442 = vmatprep.subr.bf16.mxu0 0
        %4443 = vmatpush1.bf16.msra.mxu0 0
        %4444 = vmatprep.subr.bf16.mxu0 0
        %4445 = vmatpush1.bf16.msra.mxu0 0
        %4446 = vmatprep.subr.bf16.mxu0 0
        %4447 = vmatpush1.bf16.msra.mxu0 0
        %4448 = vmatprep.subr.bf16.mxu0 0
        %4449 = vmatpush1.bf16.msra.mxu0 0
        %4450 = vmatprep.subr.bf16.mxu0 0
        %4451 = vmatpush1.bf16.msra.mxu0 0
        %4452 = vmatprep.subr.bf16.mxu0 0
        %4453 = vmatpush1.bf16.msra.mxu0 0
        %4454 = vmatprep.subr.bf16.mxu0 0
        %4455 = vmatpush1.bf16.msra.mxu0 0
        %4456 = vmatprep.subr.bf16.mxu0 0
        %4457 = vmatpush1.bf16.msra.mxu0 0
        %4458 = vmatprep.subr.bf16.mxu0 0
        %4459 = vmatpush1.bf16.msra.mxu0 0
        %4460 = vmatprep.subr.bf16.mxu0 0
        %4461 = vmatpush1.bf16.msra.mxu0 0
        %4462 = vmatprep.subr.bf16.mxu0 0
        %4463 = vmatpush1.bf16.msra.mxu0 0
        %4464 = vmatprep.mubr.bf16.mxu0 0
        %4465 = vmatmul.mubr.bf16.gmra.mrb[0].mxu0 %v4215
        %v4466 = vpop.f32.mrb[0].mxu0
        %v4467 = vadd.f32 %v3857, %v4466
        %v4468 = vpop.f32.mrb[0].mxu0
        %v4469 = vadd.f32 %v3861, %v4468
        %v4470 = vpop.f32.mrb[0].mxu0
        %v4471 = vadd.f32 %v3857, %v4470
        %v4472 = vpop.f32.mrb[0].mxu0
        %v4473 = vadd.f32 %v3861, %v4472
        %4474 = vdwg.mxu0
        %4475 = vmatprep.subr.bf16.mxu0 %v4099
        %4476 = vmatpush1.bf16.msra.mxu0 %v4098
        %4477 = vmatprep.subr.bf16.mxu0 %v4115
        %4478 = vmatpush1.bf16.msra.mxu0 %v4114
        %4479 = vmatprep.subr.bf16.mxu0 %v4131
        %4480 = vmatpush1.bf16.msra.mxu0 %v4130
        %4481 = vmatprep.subr.bf16.mxu0 %v4147
        %4482 = vmatpush1.bf16.msra.mxu0 %v4146
        %4483 = vmatprep.subr.bf16.mxu0 0
        %4484 = vmatpush1.bf16.msra.mxu0 0
        %4485 = vmatprep.subr.bf16.mxu0 0
        %4486 = vmatpush1.bf16.msra.mxu0 0
        %4487 = vmatprep.subr.bf16.mxu0 0
        %4488 = vmatpush1.bf16.msra.mxu0 0
        %4489 = vmatprep.subr.bf16.mxu0 0
        %4490 = vmatpush1.bf16.msra.mxu0 0
        %4491 = vmatprep.subr.bf16.mxu0 0
        %4492 = vmatpush1.bf16.msra.mxu0 0
        %4493 = vmatprep.subr.bf16.mxu0 0
        %4494 = vmatpush1.bf16.msra.mxu0 0
        %4495 = vmatprep.subr.bf16.mxu0 0
        %4496 = vmatpush1.bf16.msra.mxu0 0
        %4497 = vmatprep.subr.bf16.mxu0 0
        %4498 = vmatpush1.bf16.msra.mxu0 0
        %4499 = vmatprep.subr.bf16.mxu0 0
        %4500 = vmatpush1.bf16.msra.mxu0 0
        %4501 = vmatprep.subr.bf16.mxu0 0
        %4502 = vmatpush1.bf16.msra.mxu0 0
        %4503 = vmatprep.subr.bf16.mxu0 0
        %4504 = vmatpush1.bf16.msra.mxu0 0
        %4505 = vmatprep.subr.bf16.mxu0 0
        %4506 = vmatpush1.bf16.msra.mxu0 0
        %4507 = vmatprep.mubr.bf16.mxu0 0
        %4508 = vmatmul.mubr.bf16.gmra.mrb[0].mxu0 %v4215
        %v4509 = vpop.f32.mrb[0].mxu0
        %v4510 = vadd.f32 %v3865, %v4509
        %v4511 = vpop.f32.mrb[0].mxu0
        %v4512 = vadd.f32 %v3869, %v4511
        %v4513 = vpop.f32.mrb[0].mxu0
        %v4514 = vadd.f32 %v3865, %v4513
        %v4515 = vpop.f32.mrb[0].mxu0
        %v4516 = vadd.f32 %v3869, %v4515
        %4517 = vdwg.mxu0
        %4518 = vmatprep.subr.bf16.mxu0 %v4101
        %4519 = vmatpush1.bf16.msra.mxu0 %v4100
        %4520 = vmatprep.subr.bf16.mxu0 %v4117
        %4521 = vmatpush1.bf16.msra.mxu0 %v4116
        %4522 = vmatprep.subr.bf16.mxu0 %v4133
        %4523 = vmatpush1.bf16.msra.mxu0 %v4132
        %4524 = vmatprep.subr.bf16.mxu0 %v4149
        %4525 = vmatpush1.bf16.msra.mxu0 %v4148
        %4526 = vmatprep.subr.bf16.mxu0 0
        %4527 = vmatpush1.bf16.msra.mxu0 0
        %4528 = vmatprep.subr.bf16.mxu0 0
        %4529 = vmatpush1.bf16.msra.mxu0 0
        %4530 = vmatprep.subr.bf16.mxu0 0
        %4531 = vmatpush1.bf16.msra.mxu0 0
        %4532 = vmatprep.subr.bf16.mxu0 0
        %4533 = vmatpush1.bf16.msra.mxu0 0
        %4534 = vmatprep.subr.bf16.mxu0 0
        %4535 = vmatpush1.bf16.msra.mxu0 0
        %4536 = vmatprep.subr.bf16.mxu0 0
        %4537 = vmatpush1.bf16.msra.mxu0 0
        %4538 = vmatprep.subr.bf16.mxu0 0
        %4539 = vmatpush1.bf16.msra.mxu0 0
        %4540 = vmatprep.subr.bf16.mxu0 0
        %4541 = vmatpush1.bf16.msra.mxu0 0
        %4542 = vmatprep.subr.bf16.mxu0 0
        %4543 = vmatpush1.bf16.msra.mxu0 0
        %4544 = vmatprep.subr.bf16.mxu0 0
        %4545 = vmatpush1.bf16.msra.mxu0 0
        %4546 = vmatprep.subr.bf16.mxu0 0
        %4547 = vmatpush1.bf16.msra.mxu0 0
        %4548 = vmatprep.subr.bf16.mxu0 0
        %4549 = vmatpush1.bf16.msra.mxu0 0
        %4550 = vmatprep.mubr.bf16.mxu0 0
        %4551 = vmatmul.mubr.bf16.gmra.mrb[0].mxu0 %v4215
        %v4552 = vpop.f32.mrb[0].mxu0
        %v4553 = vadd.f32 %v3873, %v4552
        %v4554 = vpop.f32.mrb[0].mxu0
        %v4555 = vadd.f32 %v3877, %v4554
        %v4556 = vpop.f32.mrb[0].mxu0
        %v4557 = vadd.f32 %v3873, %v4556
        %v4558 = vpop.f32.mrb[0].mxu0
        %v4559 = vadd.f32 %v3877, %v4558
        %4560 = vdwg.mxu0
        %v4561 = vmax.f32 %v4252, 0.0
        %v4562 = vmax.f32 %v4254, 0.0
        %v4563 = vmax.f32 %v4295, 0.0
        %v4564 = vmax.f32 %v4297, 0.0
        %v4565 = vmax.f32 %v4338, 0.0
        %v4566 = vmax.f32 %v4340, 0.0
        %v4567 = vmax.f32 %v4381, 0.0
        %v4568 = vmax.f32 %v4383, 0.0
        %v4569 = vmax.f32 %v4424, 0.0
        %v4570 = vmax.f32 %v4426, 0.0
        %v4571 = vmax.f32 %v4467, 0.0
        %v4572 = vmax.f32 %v4469, 0.0
        %v4573 = vmax.f32 %v4510, 0.0
        %v4574 = vmax.f32 %v4512, 0.0
        %v4575 = vmax.f32 %v4553, 0.0
        %v4576 = vmax.f32 %v4555, 0.0
        %v4577 = vmax.f32 %v4256, 0.0
        %v4578 = vmax.f32 %v4258, 0.0
        %v4579 = vmax.f32 %v4299, 0.0
        %v4580 = vmax.f32 %v4301, 0.0
        %v4581 = vmax.f32 %v4342, 0.0
        %v4582 = vmax.f32 %v4344, 0.0
        %v4583 = vmax.f32 %v4385, 0.0
        %v4584 = vmax.f32 %v4387, 0.0
        %v4585 = vmax.f32 %v4428, 0.0
        %v4586 = vmax.f32 %v4430, 0.0
        %v4587 = vmax.f32 %v4471, 0.0
        %v4588 = vmax.f32 %v4473, 0.0
        %v4589 = vmax.f32 %v4514, 0.0
        %v4590 = vmax.f32 %v4516, 0.0
        %v4591 = vmax.f32 %v4557, 0.0
        %v4592 = vmax.f32 %v4559, 0.0
        %v4593 = vpack.c.bf16 %v4577, %v4561
        %v4594 = vpack.c.bf16 %v4578, %v4562
        %v4595 = vpack.c.bf16 %v4579, %v4563
        %v4596 = vpack.c.bf16 %v4580, %v4564
        %v4597 = vpack.c.bf16 %v4581, %v4565
        %v4598 = vpack.c.bf16 %v4582, %v4566
        %v4599 = vpack.c.bf16 %v4583, %v4567
        %v4600 = vpack.c.bf16 %v4584, %v4568
        %v4601 = vpack.c.bf16 %v4585, %v4569
        %v4602 = vpack.c.bf16 %v4586, %v4570
        %v4603 = vpack.c.bf16 %v4587, %v4571
        %v4604 = vpack.c.bf16 %v4588, %v4572
        %v4605 = vpack.c.bf16 %v4589, %v4573
        %v4606 = vpack.c.bf16 %v4590, %v4574
        %v4607 = vpack.c.bf16 %v4591, %v4575
        %v4608 = vpack.c.bf16 %v4592, %v4576
        %v4609 = vld [vmem:[%s1084] sm:$0xf]
        %v4610 = vld [vmem:[%s1084 + $0x4] sm:$0xf]
        %v4611 = vld [vmem:[%s1084 + $0x8] sm:$0xf]
        %v4612 = vld [vmem:[%s1084 + $0xc] sm:$0xf]
        %v4613 = vld [vmem:[%s1084 + $0x10] sm:$0xf]
        %v4614 = vld [vmem:[%s1084 + $0x14] sm:$0xf]
        %v4615 = vld [vmem:[%s1084 + $0x18] sm:$0xf]
        %v4616 = vld [vmem:[%s1084 + $0x1c] sm:$0xf]
        %v4617 = vld [vmem:[%s1084 + $0x20] sm:$0xf]
        %v4618 = vld [vmem:[%s1084 + $0x24] sm:$0xf]
        %v4619 = vld [vmem:[%s1084 + $0x28] sm:$0xf]
        %v4620 = vld [vmem:[%s1084 + $0x2c] sm:$0xf]
        %v4621 = vld [vmem:[%s1084 + $0x30] sm:$0xf]
        %v4622 = vld [vmem:[%s1084 + $0x34] sm:$0xf]
        %v4623 = vld [vmem:[%s1084 + $0x38] sm:$0xf]
        %v4624 = vld [vmem:[%s1084 + $0x3c] sm:$0xf]
        %v4625 = vld [vmem:[%s1084 + $0x40] sm:$0xf]
        %v4626 = vld [vmem:[%s1084 + $0x44] sm:$0xf]
        %v4627 = vld [vmem:[%s1084 + $0x48] sm:$0xf]
        %v4628 = vld [vmem:[%s1084 + $0x4c] sm:$0xf]
        %v4629 = vld [vmem:[%s1084 + $0x50] sm:$0xf]
        %v4630 = vld [vmem:[%s1084 + $0x54] sm:$0xf]
        %v4631 = vld [vmem:[%s1084 + $0x58] sm:$0xf]
        %v4632 = vld [vmem:[%s1084 + $0x5c] sm:$0xf]
        %v4633 = vld [vmem:[%s1084 + $0x60] sm:$0xf]
        %v4634 = vld [vmem:[%s1084 + $0x64] sm:$0xf]
        %v4635 = vld [vmem:[%s1084 + $0x68] sm:$0xf]
        %v4636 = vld [vmem:[%s1084 + $0x6c] sm:$0xf]
        %v4637 = vld [vmem:[%s1084 + $0x70] sm:$0xf]
        %v4638 = vld [vmem:[%s1084 + $0x74] sm:$0xf]
        %v4639 = vld [vmem:[%s1084 + $0x78] sm:$0xf]
        %v4640 = vld [vmem:[%s1084 + $0x7c] sm:$0xf]
        %v4641 = vld [vmem:[%s1084 + $0x80] sm:$0xf]
        %v4642 = vld [vmem:[%s1084 + $0x84] sm:$0xf]
        %v4643 = vld [vmem:[%s1084 + $0x88] sm:$0xf]
        %v4644 = vld [vmem:[%s1084 + $0x8c] sm:$0xf]
        %v4645 = vld [vmem:[%s1084 + $0x90] sm:$0xf]
        %v4646 = vld [vmem:[%s1084 + $0x94] sm:$0xf]
        %v4647 = vld [vmem:[%s1084 + $0x98] sm:$0xf]
        %v4648 = vld [vmem:[%s1084 + $0x9c] sm:$0xf]
        %v4649 = vld [vmem:[%s1084 + $0xa0] sm:$0xf]
        %v4650 = vld [vmem:[%s1084 + $0xa4] sm:$0xf]
        %v4651 = vld [vmem:[%s1084 + $0xa8] sm:$0xf]
        %v4652 = vld [vmem:[%s1084 + $0xac] sm:$0xf]
        %v4653 = vld [vmem:[%s1084 + $0xb0] sm:$0xf]
        %v4654 = vld [vmem:[%s1084 + $0xb4] sm:$0xf]
        %v4655 = vld [vmem:[%s1084 + $0xb8] sm:$0xf]
        %v4656 = vld [vmem:[%s1084 + $0xbc] sm:$0xf]
        %v4657 = vld [vmem:[%s1084 + $0xc0] sm:$0xf]
        %v4658 = vld [vmem:[%s1084 + $0xc4] sm:$0xf]
        %v4659 = vld [vmem:[%s1084 + $0xc8] sm:$0xf]
        %v4660 = vld [vmem:[%s1084 + $0xcc] sm:$0xf]
        %v4661 = vld [vmem:[%s1084 + $0xd0] sm:$0xf]
        %v4662 = vld [vmem:[%s1084 + $0xd4] sm:$0xf]
        %v4663 = vld [vmem:[%s1084 + $0xd8] sm:$0xf]
        %v4664 = vld [vmem:[%s1084 + $0xdc] sm:$0xf]
        %v4665 = vld [vmem:[%s1084 + $0xe0] sm:$0xf]
        %v4666 = vld [vmem:[%s1084 + $0xe4] sm:$0xf]
        %v4667 = vld [vmem:[%s1084 + $0xe8] sm:$0xf]
        %v4668 = vld [vmem:[%s1084 + $0xec] sm:$0xf]
        %v4669 = vld [vmem:[%s1084 + $0xf0] sm:$0xf]
        %v4670 = vld [vmem:[%s1084 + $0xf4] sm:$0xf]
        %v4671 = vld [vmem:[%s1084 + $0xf8] sm:$0xf]
        %v4672 = vld [vmem:[%s1084 + $0xfc] sm:$0xf]
        %v4673 = vld [vmem:[%s1084 + $0x100] sm:$0xf]
        %v4674 = vld [vmem:[%s1084 + $0x104] sm:$0xf]
        %v4675 = vld [vmem:[%s1084 + $0x108] sm:$0xf]
        %v4676 = vld [vmem:[%s1084 + $0x10c] sm:$0xf]
        %v4677 = vld [vmem:[%s1084 + $0x110] sm:$0xf]
        %v4678 = vld [vmem:[%s1084 + $0x114] sm:$0xf]
        %v4679 = vld [vmem:[%s1084 + $0x118] sm:$0xf]
        %v4680 = vld [vmem:[%s1084 + $0x11c] sm:$0xf]
        %v4681 = vld [vmem:[%s1084 + $0x120] sm:$0xf]
        %v4682 = vld [vmem:[%s1084 + $0x124] sm:$0xf]
        %v4683 = vld [vmem:[%s1084 + $0x128] sm:$0xf]
        %v4684 = vld [vmem:[%s1084 + $0x12c] sm:$0xf]
        %v4685 = vld [vmem:[%s1084 + $0x130] sm:$0xf]
        %v4686 = vld [vmem:[%s1084 + $0x134] sm:$0xf]
        %v4687 = vld [vmem:[%s1084 + $0x138] sm:$0xf]
        %v4688 = vld [vmem:[%s1084 + $0x13c] sm:$0xf]
        %v4689 = vld [vmem:[%s1084 + $0x140] sm:$0xf]
        %v4690 = vld [vmem:[%s1084 + $0x144] sm:$0xf]
        %v4691 = vld [vmem:[%s1084 + $0x148] sm:$0xf]
        %v4692 = vld [vmem:[%s1084 + $0x14c] sm:$0xf]
        %v4693 = vld [vmem:[%s1084 + $0x150] sm:$0xf]
        %v4694 = vld [vmem:[%s1084 + $0x154] sm:$0xf]
        %v4695 = vld [vmem:[%s1084 + $0x158] sm:$0xf]
        %v4696 = vld [vmem:[%s1084 + $0x15c] sm:$0xf]
        %v4697 = vld [vmem:[%s1084 + $0x160] sm:$0xf]
        %v4698 = vld [vmem:[%s1084 + $0x164] sm:$0xf]
        %v4699 = vld [vmem:[%s1084 + $0x168] sm:$0xf]
        %v4700 = vld [vmem:[%s1084 + $0x16c] sm:$0xf]
        %v4701 = vld [vmem:[%s1084 + $0x170] sm:$0xf]
        %v4702 = vld [vmem:[%s1084 + $0x174] sm:$0xf]
        %v4703 = vld [vmem:[%s1084 + $0x178] sm:$0xf]
        %v4704 = vld [vmem:[%s1084 + $0x17c] sm:$0xf]
        %v4705 = vld [vmem:[%s1084 + $0x180] sm:$0xf]
        %v4706 = vld [vmem:[%s1084 + $0x184] sm:$0xf]
        %v4707 = vld [vmem:[%s1084 + $0x188] sm:$0xf]
        %v4708 = vld [vmem:[%s1084 + $0x18c] sm:$0xf]
        %v4709 = vld [vmem:[%s1084 + $0x190] sm:$0xf]
        %v4710 = vld [vmem:[%s1084 + $0x194] sm:$0xf]
        %v4711 = vld [vmem:[%s1084 + $0x198] sm:$0xf]
        %v4712 = vld [vmem:[%s1084 + $0x19c] sm:$0xf]
        %v4713 = vld [vmem:[%s1084 + $0x1a0] sm:$0xf]
        %v4714 = vld [vmem:[%s1084 + $0x1a4] sm:$0xf]
        %v4715 = vld [vmem:[%s1084 + $0x1a8] sm:$0xf]
        %v4716 = vld [vmem:[%s1084 + $0x1ac] sm:$0xf]
        %v4717 = vld [vmem:[%s1084 + $0x1b0] sm:$0xf]
        %v4718 = vld [vmem:[%s1084 + $0x1b4] sm:$0xf]
        %v4719 = vld [vmem:[%s1084 + $0x1b8] sm:$0xf]
        %v4720 = vld [vmem:[%s1084 + $0x1bc] sm:$0xf]
        %v4721 = vld [vmem:[%s1084 + $0x1c0] sm:$0xf]
        %v4722 = vld [vmem:[%s1084 + $0x1c4] sm:$0xf]
        %v4723 = vld [vmem:[%s1084 + $0x1c8] sm:$0xf]
        %v4724 = vld [vmem:[%s1084 + $0x1cc] sm:$0xf]
        %v4725 = vld [vmem:[%s1084 + $0x1d0] sm:$0xf]
        %v4726 = vld [vmem:[%s1084 + $0x1d4] sm:$0xf]
        %v4727 = vld [vmem:[%s1084 + $0x1d8] sm:$0xf]
        %v4728 = vld [vmem:[%s1084 + $0x1dc] sm:$0xf]
        %v4729 = vld [vmem:[%s1084 + $0x1e0] sm:$0xf]
        %v4730 = vld [vmem:[%s1084 + $0x1e4] sm:$0xf]
        %v4731 = vld [vmem:[%s1084 + $0x1e8] sm:$0xf]
        %v4732 = vld [vmem:[%s1084 + $0x1ec] sm:$0xf]
        %v4733 = vld [vmem:[%s1084 + $0x1f0] sm:$0xf]
        %v4734 = vld [vmem:[%s1084 + $0x1f4] sm:$0xf]
        %v4735 = vld [vmem:[%s1084 + $0x1f8] sm:$0xf]
        %v4736 = vld [vmem:[%s1084 + $0x1fc] sm:$0xf]
        %v4737 = vld [vmem:[%s1084 + $0x200] sm:$0xf]
        %v4738 = vld [vmem:[%s1084 + $0x204] sm:$0xf]
        %v4739 = vld [vmem:[%s1084 + $0x208] sm:$0xf]
        %v4740 = vld [vmem:[%s1084 + $0x20c] sm:$0xf]
        %v4741 = vld [vmem:[%s1084 + $0x210] sm:$0xf]
        %v4742 = vld [vmem:[%s1084 + $0x214] sm:$0xf]
        %v4743 = vld [vmem:[%s1084 + $0x218] sm:$0xf]
        %v4744 = vld [vmem:[%s1084 + $0x21c] sm:$0xf]
        %v4745 = vld [vmem:[%s1084 + $0x220] sm:$0xf]
        %v4746 = vld [vmem:[%s1084 + $0x224] sm:$0xf]
        %v4747 = vld [vmem:[%s1084 + $0x228] sm:$0xf]
        %v4748 = vld [vmem:[%s1084 + $0x22c] sm:$0xf]
        %v4749 = vld [vmem:[%s1084 + $0x230] sm:$0xf]
        %v4750 = vld [vmem:[%s1084 + $0x234] sm:$0xf]
        %v4751 = vld [vmem:[%s1084 + $0x238] sm:$0xf]
        %v4752 = vld [vmem:[%s1084 + $0x23c] sm:$0xf]
        %v4753 = vld [vmem:[%s1084 + $0x240] sm:$0xf]
        %v4754 = vld [vmem:[%s1084 + $0x244] sm:$0xf]
        %v4755 = vld [vmem:[%s1084 + $0x248] sm:$0xf]
        %v4756 = vld [vmem:[%s1084 + $0x24c] sm:$0xf]
        %v4757 = vld [vmem:[%s1084 + $0x250] sm:$0xf]
        %v4758 = vld [vmem:[%s1084 + $0x254] sm:$0xf]
        %v4759 = vld [vmem:[%s1084 + $0x258] sm:$0xf]
        %v4760 = vld [vmem:[%s1084 + $0x25c] sm:$0xf]
        %v4761 = vld [vmem:[%s1084 + $0x260] sm:$0xf]
        %v4762 = vld [vmem:[%s1084 + $0x264] sm:$0xf]
        %v4763 = vld [vmem:[%s1084 + $0x268] sm:$0xf]
        %v4764 = vld [vmem:[%s1084 + $0x26c] sm:$0xf]
        %v4765 = vld [vmem:[%s1084 + $0x270] sm:$0xf]
        %v4766 = vld [vmem:[%s1084 + $0x274] sm:$0xf]
        %v4767 = vld [vmem:[%s1084 + $0x278] sm:$0xf]
        %v4768 = vld [vmem:[%s1084 + $0x27c] sm:$0xf]
        %v4769 = vld [vmem:[%s1084 + $0x280] sm:$0xf]
        %v4770 = vld [vmem:[%s1084 + $0x284] sm:$0xf]
        %v4771 = vld [vmem:[%s1084 + $0x288] sm:$0xf]
        %v4772 = vld [vmem:[%s1084 + $0x28c] sm:$0xf]
        %v4773 = vld [vmem:[%s1084 + $0x290] sm:$0xf]
        %v4774 = vld [vmem:[%s1084 + $0x294] sm:$0xf]
        %v4775 = vld [vmem:[%s1084 + $0x298] sm:$0xf]
        %v4776 = vld [vmem:[%s1084 + $0x29c] sm:$0xf]
        %v4777 = vld [vmem:[%s1084 + $0x2a0] sm:$0xf]
        %v4778 = vld [vmem:[%s1084 + $0x2a4] sm:$0xf]
        %v4779 = vld [vmem:[%s1084 + $0x2a8] sm:$0xf]
        %v4780 = vld [vmem:[%s1084 + $0x2ac] sm:$0xf]
        %v4781 = vld [vmem:[%s1084 + $0x2b0] sm:$0xf]
        %v4782 = vld [vmem:[%s1084 + $0x2b4] sm:$0xf]
        %v4783 = vld [vmem:[%s1084 + $0x2b8] sm:$0xf]
        %v4784 = vld [vmem:[%s1084 + $0x2bc] sm:$0xf]
        %v4785 = vld [vmem:[%s1084 + $0x2c0] sm:$0xf]
        %v4786 = vld [vmem:[%s1084 + $0x2c4] sm:$0xf]
        %v4787 = vld [vmem:[%s1084 + $0x2c8] sm:$0xf]
        %v4788 = vld [vmem:[%s1084 + $0x2cc] sm:$0xf]
        %v4789 = vld [vmem:[%s1084 + $0x2d0] sm:$0xf]
        %v4790 = vld [vmem:[%s1084 + $0x2d4] sm:$0xf]
        %v4791 = vld [vmem:[%s1084 + $0x2d8] sm:$0xf]
        %v4792 = vld [vmem:[%s1084 + $0x2dc] sm:$0xf]
        %v4793 = vld [vmem:[%s1084 + $0x2e0] sm:$0xf]
        %v4794 = vld [vmem:[%s1084 + $0x2e4] sm:$0xf]
        %v4795 = vld [vmem:[%s1084 + $0x2e8] sm:$0xf]
        %v4796 = vld [vmem:[%s1084 + $0x2ec] sm:$0xf]
        %v4797 = vld [vmem:[%s1084 + $0x2f0] sm:$0xf]
        %v4798 = vld [vmem:[%s1084 + $0x2f4] sm:$0xf]
        %v4799 = vld [vmem:[%s1084 + $0x2f8] sm:$0xf]
        %v4800 = vld [vmem:[%s1084 + $0x2fc] sm:$0xf]
        %v4801 = vld [vmem:[%s1084 + $0x300] sm:$0xf]
        %v4802 = vld [vmem:[%s1084 + $0x304] sm:$0xf]
        %v4803 = vld [vmem:[%s1084 + $0x308] sm:$0xf]
        %v4804 = vld [vmem:[%s1084 + $0x30c] sm:$0xf]
        %v4805 = vld [vmem:[%s1084 + $0x310] sm:$0xf]
        %v4806 = vld [vmem:[%s1084 + $0x314] sm:$0xf]
        %v4807 = vld [vmem:[%s1084 + $0x318] sm:$0xf]
        %v4808 = vld [vmem:[%s1084 + $0x31c] sm:$0xf]
        %v4809 = vld [vmem:[%s1084 + $0x320] sm:$0xf]
        %v4810 = vld [vmem:[%s1084 + $0x324] sm:$0xf]
        %v4811 = vld [vmem:[%s1084 + $0x328] sm:$0xf]
        %v4812 = vld [vmem:[%s1084 + $0x32c] sm:$0xf]
        %v4813 = vld [vmem:[%s1084 + $0x330] sm:$0xf]
        %v4814 = vld [vmem:[%s1084 + $0x334] sm:$0xf]
        %v4815 = vld [vmem:[%s1084 + $0x338] sm:$0xf]
        %v4816 = vld [vmem:[%s1084 + $0x33c] sm:$0xf]
        %v4817 = vld [vmem:[%s1084 + $0x340] sm:$0xf]
        %v4818 = vld [vmem:[%s1084 + $0x344] sm:$0xf]
        %v4819 = vld [vmem:[%s1084 + $0x348] sm:$0xf]
        %v4820 = vld [vmem:[%s1084 + $0x34c] sm:$0xf]
        %v4821 = vld [vmem:[%s1084 + $0x350] sm:$0xf]
        %v4822 = vld [vmem:[%s1084 + $0x354] sm:$0xf]
        %v4823 = vld [vmem:[%s1084 + $0x358] sm:$0xf]
        %v4824 = vld [vmem:[%s1084 + $0x35c] sm:$0xf]
        %v4825 = vld [vmem:[%s1084 + $0x360] sm:$0xf]
        %v4826 = vld [vmem:[%s1084 + $0x364] sm:$0xf]
        %v4827 = vld [vmem:[%s1084 + $0x368] sm:$0xf]
        %v4828 = vld [vmem:[%s1084 + $0x36c] sm:$0xf]
        %v4829 = vld [vmem:[%s1084 + $0x370] sm:$0xf]
        %v4830 = vld [vmem:[%s1084 + $0x374] sm:$0xf]
        %v4831 = vld [vmem:[%s1084 + $0x378] sm:$0xf]
        %v4832 = vld [vmem:[%s1084 + $0x37c] sm:$0xf]
        %v4833 = vld [vmem:[%s1084 + $0x380] sm:$0xf]
        %v4834 = vld [vmem:[%s1084 + $0x384] sm:$0xf]
        %v4835 = vld [vmem:[%s1084 + $0x388] sm:$0xf]
        %v4836 = vld [vmem:[%s1084 + $0x38c] sm:$0xf]
        %v4837 = vld [vmem:[%s1084 + $0x390] sm:$0xf]
        %v4838 = vld [vmem:[%s1084 + $0x394] sm:$0xf]
        %v4839 = vld [vmem:[%s1084 + $0x398] sm:$0xf]
        %v4840 = vld [vmem:[%s1084 + $0x39c] sm:$0xf]
        %v4841 = vld [vmem:[%s1084 + $0x3a0] sm:$0xf]
        %v4842 = vld [vmem:[%s1084 + $0x3a4] sm:$0xf]
        %v4843 = vld [vmem:[%s1084 + $0x3a8] sm:$0xf]
        %v4844 = vld [vmem:[%s1084 + $0x3ac] sm:$0xf]
        %v4845 = vld [vmem:[%s1084 + $0x3b0] sm:$0xf]
        %v4846 = vld [vmem:[%s1084 + $0x3b4] sm:$0xf]
        %v4847 = vld [vmem:[%s1084 + $0x3b8] sm:$0xf]
        %v4848 = vld [vmem:[%s1084 + $0x3bc] sm:$0xf]
        %v4849 = vld [vmem:[%s1084 + $0x3c0] sm:$0xf]
        %v4850 = vld [vmem:[%s1084 + $0x3c4] sm:$0xf]
        %v4851 = vld [vmem:[%s1084 + $0x3c8] sm:$0xf]
        %v4852 = vld [vmem:[%s1084 + $0x3cc] sm:$0xf]
        %v4853 = vld [vmem:[%s1084 + $0x3d0] sm:$0xf]
        %v4854 = vld [vmem:[%s1084 + $0x3d4] sm:$0xf]
        %v4855 = vld [vmem:[%s1084 + $0x3d8] sm:$0xf]
        %v4856 = vld [vmem:[%s1084 + $0x3dc] sm:$0xf]
        %v4857 = vld [vmem:[%s1084 + $0x3e0] sm:$0xf]
        %v4858 = vld [vmem:[%s1084 + $0x3e4] sm:$0xf]
        %v4859 = vld [vmem:[%s1084 + $0x3e8] sm:$0xf]
        %v4860 = vld [vmem:[%s1084 + $0x3ec] sm:$0xf]
        %v4861 = vld [vmem:[%s1084 + $0x3f0] sm:$0xf]
        %v4862 = vld [vmem:[%s1084 + $0x3f4] sm:$0xf]
        %v4863 = vld [vmem:[%s1084 + $0x3f8] sm:$0xf]
        %v4864 = vld [vmem:[%s1084 + $0x3fc] sm:$0xf]
        %v4865 = vld [vmem:[%s1092] sm:$0x1]
        %v4867 = vlaneseq
        %v4868 = vshrl.u32 %v4867, 7
        %v4869 = vsub.s32 0, %v4868
        %v4870 = vrot.slane %v4865, %v4869
        %v5128 = vunpack.c.l.b16 %v4609
        %v5129 = vunpack.c.l.b16 %v4610
        %v5130 = vunpack.c.l.b16 %v4611
        %v5131 = vunpack.c.l.b16 %v4612
        %v5132 = vunpack.c.l.b16 %v4613
        %v5133 = vunpack.c.l.b16 %v4614
        %v5134 = vunpack.c.l.b16 %v4615
        %v5135 = vunpack.c.l.b16 %v4616
        %v5136 = vunpack.c.l.b16 %v4617
        %v5137 = vunpack.c.l.b16 %v4618
        %v5138 = vunpack.c.l.b16 %v4619
        %v5139 = vunpack.c.l.b16 %v4620
        %v5140 = vunpack.c.l.b16 %v4621
        %v5141 = vunpack.c.l.b16 %v4622
        %v5142 = vunpack.c.l.b16 %v4623
        %v5143 = vunpack.c.l.b16 %v4624
        %v5144 = vunpack.c.l.b16 %v4625
        %v5145 = vunpack.c.l.b16 %v4626
        %v5146 = vunpack.c.l.b16 %v4627
        %v5147 = vunpack.c.l.b16 %v4628
        %v5148 = vunpack.c.l.b16 %v4629
        %v5149 = vunpack.c.l.b16 %v4630
        %v5150 = vunpack.c.l.b16 %v4631
        %v5151 = vunpack.c.l.b16 %v4632
        %v5152 = vunpack.c.l.b16 %v4633
        %v5153 = vunpack.c.l.b16 %v4634
        %v5154 = vunpack.c.l.b16 %v4635
        %v5155 = vunpack.c.l.b16 %v4636
        %v5156 = vunpack.c.l.b16 %v4637
        %v5157 = vunpack.c.l.b16 %v4638
        %v5158 = vunpack.c.l.b16 %v4639
        %v5159 = vunpack.c.l.b16 %v4640
        %v5160 = vunpack.c.l.b16 %v4641
        %v5161 = vunpack.c.l.b16 %v4642
        %v5162 = vunpack.c.l.b16 %v4643
        %v5163 = vunpack.c.l.b16 %v4644
        %v5164 = vunpack.c.l.b16 %v4645
        %v5165 = vunpack.c.l.b16 %v4646
        %v5166 = vunpack.c.l.b16 %v4647
        %v5167 = vunpack.c.l.b16 %v4648
        %v5168 = vunpack.c.l.b16 %v4649
        %v5169 = vunpack.c.l.b16 %v4650
        %v5170 = vunpack.c.l.b16 %v4651
        %v5171 = vunpack.c.l.b16 %v4652
        %v5172 = vunpack.c.l.b16 %v4653
        %v5173 = vunpack.c.l.b16 %v4654
        %v5174 = vunpack.c.l.b16 %v4655
        %v5175 = vunpack.c.l.b16 %v4656
        %v5176 = vunpack.c.l.b16 %v4657
        %v5177 = vunpack.c.l.b16 %v4658
        %v5178 = vunpack.c.l.b16 %v4659
        %v5179 = vunpack.c.l.b16 %v4660
        %v5180 = vunpack.c.l.b16 %v4661
        %v5181 = vunpack.c.l.b16 %v4662
        %v5182 = vunpack.c.l.b16 %v4663
        %v5183 = vunpack.c.l.b16 %v4664
        %v5184 = vunpack.c.l.b16 %v4665
        %v5185 = vunpack.c.l.b16 %v4666
        %v5186 = vunpack.c.l.b16 %v4667
        %v5187 = vunpack.c.l.b16 %v4668
        %v5188 = vunpack.c.l.b16 %v4669
        %v5189 = vunpack.c.l.b16 %v4670
        %v5190 = vunpack.c.l.b16 %v4671
        %v5191 = vunpack.c.l.b16 %v4672
        %v5192 = vunpack.c.l.b16 %v4673
        %v5193 = vunpack.c.l.b16 %v4674
        %v5194 = vunpack.c.l.b16 %v4675
        %v5195 = vunpack.c.l.b16 %v4676
        %v5196 = vunpack.c.l.b16 %v4677
        %v5197 = vunpack.c.l.b16 %v4678
        %v5198 = vunpack.c.l.b16 %v4679
        %v5199 = vunpack.c.l.b16 %v4680
        %v5200 = vunpack.c.l.b16 %v4681
        %v5201 = vunpack.c.l.b16 %v4682
        %v5202 = vunpack.c.l.b16 %v4683
        %v5203 = vunpack.c.l.b16 %v4684
        %v5204 = vunpack.c.l.b16 %v4685
        %v5205 = vunpack.c.l.b16 %v4686
        %v5206 = vunpack.c.l.b16 %v4687
        %v5207 = vunpack.c.l.b16 %v4688
        %v5208 = vunpack.c.l.b16 %v4689
        %v5209 = vunpack.c.l.b16 %v4690
        %v5210 = vunpack.c.l.b16 %v4691
        %v5211 = vunpack.c.l.b16 %v4692
        %v5212 = vunpack.c.l.b16 %v4693
        %v5213 = vunpack.c.l.b16 %v4694
        %v5214 = vunpack.c.l.b16 %v4695
        %v5215 = vunpack.c.l.b16 %v4696
        %v5216 = vunpack.c.l.b16 %v4697
        %v5217 = vunpack.c.l.b16 %v4698
        %v5218 = vunpack.c.l.b16 %v4699
        %v5219 = vunpack.c.l.b16 %v4700
        %v5220 = vunpack.c.l.b16 %v4701
        %v5221 = vunpack.c.l.b16 %v4702
        %v5222 = vunpack.c.l.b16 %v4703
        %v5223 = vunpack.c.l.b16 %v4704
        %v5224 = vunpack.c.l.b16 %v4705
        %v5225 = vunpack.c.l.b16 %v4706
        %v5226 = vunpack.c.l.b16 %v4707
        %v5227 = vunpack.c.l.b16 %v4708
        %v5228 = vunpack.c.l.b16 %v4709
        %v5229 = vunpack.c.l.b16 %v4710
        %v5230 = vunpack.c.l.b16 %v4711
        %v5231 = vunpack.c.l.b16 %v4712
        %v5232 = vunpack.c.l.b16 %v4713
        %v5233 = vunpack.c.l.b16 %v4714
        %v5234 = vunpack.c.l.b16 %v4715
        %v5235 = vunpack.c.l.b16 %v4716
        %v5236 = vunpack.c.l.b16 %v4717
        %v5237 = vunpack.c.l.b16 %v4718
        %v5238 = vunpack.c.l.b16 %v4719
        %v5239 = vunpack.c.l.b16 %v4720
        %v5240 = vunpack.c.l.b16 %v4721
        %v5241 = vunpack.c.l.b16 %v4722
        %v5242 = vunpack.c.l.b16 %v4723
        %v5243 = vunpack.c.l.b16 %v4724
        %v5244 = vunpack.c.l.b16 %v4725
        %v5245 = vunpack.c.l.b16 %v4726
        %v5246 = vunpack.c.l.b16 %v4727
        %v5247 = vunpack.c.l.b16 %v4728
        %v5248 = vunpack.c.l.b16 %v4729
        %v5249 = vunpack.c.l.b16 %v4730
        %v5250 = vunpack.c.l.b16 %v4731
        %v5251 = vunpack.c.l.b16 %v4732
        %v5252 = vunpack.c.l.b16 %v4733
        %v5253 = vunpack.c.l.b16 %v4734
        %v5254 = vunpack.c.l.b16 %v4735
        %v5255 = vunpack.c.l.b16 %v4736
        %v5256 = vunpack.c.l.b16 %v4737
        %v5257 = vunpack.c.l.b16 %v4738
        %v5258 = vunpack.c.l.b16 %v4739
        %v5259 = vunpack.c.l.b16 %v4740
        %v5260 = vunpack.c.l.b16 %v4741
        %v5261 = vunpack.c.l.b16 %v4742
        %v5262 = vunpack.c.l.b16 %v4743
        %v5263 = vunpack.c.l.b16 %v4744
        %v5264 = vunpack.c.l.b16 %v4745
        %v5265 = vunpack.c.l.b16 %v4746
        %v5266 = vunpack.c.l.b16 %v4747
        %v5267 = vunpack.c.l.b16 %v4748
        %v5268 = vunpack.c.l.b16 %v4749
        %v5269 = vunpack.c.l.b16 %v4750
        %v5270 = vunpack.c.l.b16 %v4751
        %v5271 = vunpack.c.l.b16 %v4752
        %v5272 = vunpack.c.l.b16 %v4753
        %v5273 = vunpack.c.l.b16 %v4754
        %v5274 = vunpack.c.l.b16 %v4755
        %v5275 = vunpack.c.l.b16 %v4756
        %v5276 = vunpack.c.l.b16 %v4757
        %v5277 = vunpack.c.l.b16 %v4758
        %v5278 = vunpack.c.l.b16 %v4759
        %v5279 = vunpack.c.l.b16 %v4760
        %v5280 = vunpack.c.l.b16 %v4761
        %v5281 = vunpack.c.l.b16 %v4762
        %v5282 = vunpack.c.l.b16 %v4763
        %v5283 = vunpack.c.l.b16 %v4764
        %v5284 = vunpack.c.l.b16 %v4765
        %v5285 = vunpack.c.l.b16 %v4766
        %v5286 = vunpack.c.l.b16 %v4767
        %v5287 = vunpack.c.l.b16 %v4768
        %v5288 = vunpack.c.l.b16 %v4769
        %v5289 = vunpack.c.l.b16 %v4770
        %v5290 = vunpack.c.l.b16 %v4771
        %v5291 = vunpack.c.l.b16 %v4772
        %v5292 = vunpack.c.l.b16 %v4773
        %v5293 = vunpack.c.l.b16 %v4774
        %v5294 = vunpack.c.l.b16 %v4775
        %v5295 = vunpack.c.l.b16 %v4776
        %v5296 = vunpack.c.l.b16 %v4777
        %v5297 = vunpack.c.l.b16 %v4778
        %v5298 = vunpack.c.l.b16 %v4779
        %v5299 = vunpack.c.l.b16 %v4780
        %v5300 = vunpack.c.l.b16 %v4781
        %v5301 = vunpack.c.l.b16 %v4782
        %v5302 = vunpack.c.l.b16 %v4783
        %v5303 = vunpack.c.l.b16 %v4784
        %v5304 = vunpack.c.l.b16 %v4785
        %v5305 = vunpack.c.l.b16 %v4786
        %v5306 = vunpack.c.l.b16 %v4787
        %v5307 = vunpack.c.l.b16 %v4788
        %v5308 = vunpack.c.l.b16 %v4789
        %v5309 = vunpack.c.l.b16 %v4790
        %v5310 = vunpack.c.l.b16 %v4791
        %v5311 = vunpack.c.l.b16 %v4792
        %v5312 = vunpack.c.l.b16 %v4793
        %v5313 = vunpack.c.l.b16 %v4794
        %v5314 = vunpack.c.l.b16 %v4795
        %v5315 = vunpack.c.l.b16 %v4796
        %v5316 = vunpack.c.l.b16 %v4797
        %v5317 = vunpack.c.l.b16 %v4798
        %v5318 = vunpack.c.l.b16 %v4799
        %v5319 = vunpack.c.l.b16 %v4800
        %v5320 = vunpack.c.l.b16 %v4801
        %v5321 = vunpack.c.l.b16 %v4802
        %v5322 = vunpack.c.l.b16 %v4803
        %v5323 = vunpack.c.l.b16 %v4804
        %v5324 = vunpack.c.l.b16 %v4805
        %v5325 = vunpack.c.l.b16 %v4806
        %v5326 = vunpack.c.l.b16 %v4807
        %v5327 = vunpack.c.l.b16 %v4808
        %v5328 = vunpack.c.l.b16 %v4809
        %v5329 = vunpack.c.l.b16 %v4810
        %v5330 = vunpack.c.l.b16 %v4811
        %v5331 = vunpack.c.l.b16 %v4812
        %v5332 = vunpack.c.l.b16 %v4813
        %v5333 = vunpack.c.l.b16 %v4814
        %v5334 = vunpack.c.l.b16 %v4815
        %v5335 = vunpack.c.l.b16 %v4816
        %v5336 = vunpack.c.l.b16 %v4817
        %v5337 = vunpack.c.l.b16 %v4818
        %v5338 = vunpack.c.l.b16 %v4819
        %v5339 = vunpack.c.l.b16 %v4820
        %v5340 = vunpack.c.l.b16 %v4821
        %v5341 = vunpack.c.l.b16 %v4822
        %v5342 = vunpack.c.l.b16 %v4823
        %v5343 = vunpack.c.l.b16 %v4824
        %v5344 = vunpack.c.l.b16 %v4825
        %v5345 = vunpack.c.l.b16 %v4826
        %v5346 = vunpack.c.l.b16 %v4827
        %v5347 = vunpack.c.l.b16 %v4828
        %v5348 = vunpack.c.l.b16 %v4829
        %v5349 = vunpack.c.l.b16 %v4830
        %v5350 = vunpack.c.l.b16 %v4831
        %v5351 = vunpack.c.l.b16 %v4832
        %v5352 = vunpack.c.l.b16 %v4833
        %v5353 = vunpack.c.l.b16 %v4834
        %v5354 = vunpack.c.l.b16 %v4835
        %v5355 = vunpack.c.l.b16 %v4836
        %v5356 = vunpack.c.l.b16 %v4837
        %v5357 = vunpack.c.l.b16 %v4838
        %v5358 = vunpack.c.l.b16 %v4839
        %v5359 = vunpack.c.l.b16 %v4840
        %v5360 = vunpack.c.l.b16 %v4841
        %v5361 = vunpack.c.l.b16 %v4842
        %v5362 = vunpack.c.l.b16 %v4843
        %v5363 = vunpack.c.l.b16 %v4844
        %v5364 = vunpack.c.l.b16 %v4845
        %v5365 = vunpack.c.l.b16 %v4846
        %v5366 = vunpack.c.l.b16 %v4847
        %v5367 = vunpack.c.l.b16 %v4848
        %v5368 = vunpack.c.l.b16 %v4849
        %v5369 = vunpack.c.l.b16 %v4850
        %v5370 = vunpack.c.l.b16 %v4851
        %v5371 = vunpack.c.l.b16 %v4852
        %v5372 = vunpack.c.l.b16 %v4853
        %v5373 = vunpack.c.l.b16 %v4854
        %v5374 = vunpack.c.l.b16 %v4855
        %v5375 = vunpack.c.l.b16 %v4856
        %v5376 = vunpack.c.l.b16 %v4857
        %v5377 = vunpack.c.l.b16 %v4858
        %v5378 = vunpack.c.l.b16 %v4859
        %v5379 = vunpack.c.l.b16 %v4860
        %v5380 = vunpack.c.l.b16 %v4861
        %v5381 = vunpack.c.l.b16 %v4862
        %v5382 = vunpack.c.l.b16 %v4863
        %v5383 = vunpack.c.l.b16 %v4864
        %v5384 = vpack.c.b16 %v5129, %v5128
        %v5385 = vpack.c.b16 %v5131, %v5130
        %v5386 = vpack.c.b16 %v5133, %v5132
        %v5387 = vpack.c.b16 %v5135, %v5134
        %v5388 = vpack.c.b16 %v5137, %v5136
        %v5389 = vpack.c.b16 %v5139, %v5138
        %v5390 = vpack.c.b16 %v5141, %v5140
        %v5391 = vpack.c.b16 %v5143, %v5142
        %v5392 = vpack.c.b16 %v5145, %v5144
        %v5393 = vpack.c.b16 %v5147, %v5146
        %v5394 = vpack.c.b16 %v5149, %v5148
        %v5395 = vpack.c.b16 %v5151, %v5150
        %v5396 = vpack.c.b16 %v5153, %v5152
        %v5397 = vpack.c.b16 %v5155, %v5154
        %v5398 = vpack.c.b16 %v5157, %v5156
        %v5399 = vpack.c.b16 %v5159, %v5158
        %v5400 = vpack.c.b16 %v5161, %v5160
        %v5401 = vpack.c.b16 %v5163, %v5162
        %v5402 = vpack.c.b16 %v5165, %v5164
        %v5403 = vpack.c.b16 %v5167, %v5166
        %v5404 = vpack.c.b16 %v5169, %v5168
        %v5405 = vpack.c.b16 %v5171, %v5170
        %v5406 = vpack.c.b16 %v5173, %v5172
        %v5407 = vpack.c.b16 %v5175, %v5174
        %v5408 = vpack.c.b16 %v5177, %v5176
        %v5409 = vpack.c.b16 %v5179, %v5178
        %v5410 = vpack.c.b16 %v5181, %v5180
        %v5411 = vpack.c.b16 %v5183, %v5182
        %v5412 = vpack.c.b16 %v5185, %v5184
        %v5413 = vpack.c.b16 %v5187, %v5186
        %v5414 = vpack.c.b16 %v5189, %v5188
        %v5415 = vpack.c.b16 %v5191, %v5190
        %v5416 = vpack.c.b16 %v5193, %v5192
        %v5417 = vpack.c.b16 %v5195, %v5194
        %v5418 = vpack.c.b16 %v5197, %v5196
        %v5419 = vpack.c.b16 %v5199, %v5198
        %v5420 = vpack.c.b16 %v5201, %v5200
        %v5421 = vpack.c.b16 %v5203, %v5202
        %v5422 = vpack.c.b16 %v5205, %v5204
        %v5423 = vpack.c.b16 %v5207, %v5206
        %v5424 = vpack.c.b16 %v5209, %v5208
        %v5425 = vpack.c.b16 %v5211, %v5210
        %v5426 = vpack.c.b16 %v5213, %v5212
        %v5427 = vpack.c.b16 %v5215, %v5214
        %v5428 = vpack.c.b16 %v5217, %v5216
        %v5429 = vpack.c.b16 %v5219, %v5218
        %v5430 = vpack.c.b16 %v5221, %v5220
        %v5431 = vpack.c.b16 %v5223, %v5222
        %v5432 = vpack.c.b16 %v5225, %v5224
        %v5433 = vpack.c.b16 %v5227, %v5226
        %v5434 = vpack.c.b16 %v5229, %v5228
        %v5435 = vpack.c.b16 %v5231, %v5230
        %v5436 = vpack.c.b16 %v5233, %v5232
        %v5437 = vpack.c.b16 %v5235, %v5234
        %v5438 = vpack.c.b16 %v5237, %v5236
        %v5439 = vpack.c.b16 %v5239, %v5238
        %v5440 = vpack.c.b16 %v5241, %v5240
        %v5441 = vpack.c.b16 %v5243, %v5242
        %v5442 = vpack.c.b16 %v5245, %v5244
        %v5443 = vpack.c.b16 %v5247, %v5246
        %v5444 = vpack.c.b16 %v5249, %v5248
        %v5445 = vpack.c.b16 %v5251, %v5250
        %v5446 = vpack.c.b16 %v5253, %v5252
        %v5447 = vpack.c.b16 %v5255, %v5254
        %v5448 = vpack.c.b16 %v5257, %v5256
        %v5449 = vpack.c.b16 %v5259, %v5258
        %v5450 = vpack.c.b16 %v5261, %v5260
        %v5451 = vpack.c.b16 %v5263, %v5262
        %v5452 = vpack.c.b16 %v5265, %v5264
        %v5453 = vpack.c.b16 %v5267, %v5266
        %v5454 = vpack.c.b16 %v5269, %v5268
        %v5455 = vpack.c.b16 %v5271, %v5270
        %v5456 = vpack.c.b16 %v5273, %v5272
        %v5457 = vpack.c.b16 %v5275, %v5274
        %v5458 = vpack.c.b16 %v5277, %v5276
        %v5459 = vpack.c.b16 %v5279, %v5278
        %v5460 = vpack.c.b16 %v5281, %v5280
        %v5461 = vpack.c.b16 %v5283, %v5282
        %v5462 = vpack.c.b16 %v5285, %v5284
        %v5463 = vpack.c.b16 %v5287, %v5286
        %v5464 = vpack.c.b16 %v5289, %v5288
        %v5465 = vpack.c.b16 %v5291, %v5290
        %v5466 = vpack.c.b16 %v5293, %v5292
        %v5467 = vpack.c.b16 %v5295, %v5294
        %v5468 = vpack.c.b16 %v5297, %v5296
        %v5469 = vpack.c.b16 %v5299, %v5298
        %v5470 = vpack.c.b16 %v5301, %v5300
        %v5471 = vpack.c.b16 %v5303, %v5302
        %v5472 = vpack.c.b16 %v5305, %v5304
        %v5473 = vpack.c.b16 %v5307, %v5306
        %v5474 = vpack.c.b16 %v5309, %v5308
        %v5475 = vpack.c.b16 %v5311, %v5310
        %v5476 = vpack.c.b16 %v5313, %v5312
        %v5477 = vpack.c.b16 %v5315, %v5314
        %v5478 = vpack.c.b16 %v5317, %v5316
        %v5479 = vpack.c.b16 %v5319, %v5318
        %v5480 = vpack.c.b16 %v5321, %v5320
        %v5481 = vpack.c.b16 %v5323, %v5322
        %v5482 = vpack.c.b16 %v5325, %v5324
        %v5483 = vpack.c.b16 %v5327, %v5326
        %v5484 = vpack.c.b16 %v5329, %v5328
        %v5485 = vpack.c.b16 %v5331, %v5330
        %v5486 = vpack.c.b16 %v5333, %v5332
        %v5487 = vpack.c.b16 %v5335, %v5334
        %v5488 = vpack.c.b16 %v5337, %v5336
        %v5489 = vpack.c.b16 %v5339, %v5338
        %v5490 = vpack.c.b16 %v5341, %v5340
        %v5491 = vpack.c.b16 %v5343, %v5342
        %v5492 = vpack.c.b16 %v5345, %v5344
        %v5493 = vpack.c.b16 %v5347, %v5346
        %v5494 = vpack.c.b16 %v5349, %v5348
        %v5495 = vpack.c.b16 %v5351, %v5350
        %v5496 = vpack.c.b16 %v5353, %v5352
        %v5497 = vpack.c.b16 %v5355, %v5354
        %v5498 = vpack.c.b16 %v5357, %v5356
        %v5499 = vpack.c.b16 %v5359, %v5358
        %v5500 = vpack.c.b16 %v5361, %v5360
        %v5501 = vpack.c.b16 %v5363, %v5362
        %v5502 = vpack.c.b16 %v5365, %v5364
        %v5503 = vpack.c.b16 %v5367, %v5366
        %v5504 = vpack.c.b16 %v5369, %v5368
        %v5505 = vpack.c.b16 %v5371, %v5370
        %v5506 = vpack.c.b16 %v5373, %v5372
        %v5507 = vpack.c.b16 %v5375, %v5374
        %v5508 = vpack.c.b16 %v5377, %v5376
        %v5509 = vpack.c.b16 %v5379, %v5378
        %v5510 = vpack.c.b16 %v5381, %v5380
        %v5511 = vpack.c.b16 %v5383, %v5382
        %5640 = vmatprep.subr.bf16.mxu0 0
        %5641 = vmatpush1.bf16.msra.mxu0 %v5384
        %5642 = vmatprep.subr.bf16.mxu0 0
        %5643 = vmatpush1.bf16.msra.mxu0 %v5385
        %5644 = vmatprep.subr.bf16.mxu0 0
        %5645 = vmatpush1.bf16.msra.mxu0 %v5386
        %5646 = vmatprep.subr.bf16.mxu0 0
        %5647 = vmatpush1.bf16.msra.mxu0 %v5387
        %5648 = vmatprep.subr.bf16.mxu0 0
        %5649 = vmatpush1.bf16.msra.mxu0 %v5388
        %5650 = vmatprep.subr.bf16.mxu0 0
        %5651 = vmatpush1.bf16.msra.mxu0 %v5389
        %5652 = vmatprep.subr.bf16.mxu0 0
        %5653 = vmatpush1.bf16.msra.mxu0 %v5390
        %5654 = vmatprep.subr.bf16.mxu0 0
        %5655 = vmatpush1.bf16.msra.mxu0 %v5391
        %5656 = vmatprep.subr.bf16.mxu0 0
        %5657 = vmatpush1.bf16.msra.mxu0 %v5392
        %5658 = vmatprep.subr.bf16.mxu0 0
        %5659 = vmatpush1.bf16.msra.mxu0 %v5393
        %5660 = vmatprep.subr.bf16.mxu0 0
        %5661 = vmatpush1.bf16.msra.mxu0 %v5394
        %5662 = vmatprep.subr.bf16.mxu0 0
        %5663 = vmatpush1.bf16.msra.mxu0 %v5395
        %5664 = vmatprep.subr.bf16.mxu0 0
        %5665 = vmatpush1.bf16.msra.mxu0 %v5396
        %5666 = vmatprep.subr.bf16.mxu0 0
        %5667 = vmatpush1.bf16.msra.mxu0 %v5397
        %5668 = vmatprep.subr.bf16.mxu0 0
        %5669 = vmatpush1.bf16.msra.mxu0 %v5398
        %5670 = vmatprep.subr.bf16.mxu0 0
        %5671 = vmatpush1.bf16.msra.mxu0 %v5399
        %5672 = vmatprep.mubr.bf16.mxu0 %v4594
        %5673 = vmatmul.mubr.bf16.gmra.mrb[0].mxu0 %v4593
        %v5674 = vpop.f32.mrb[0].mxu0
        %v5675 = vadd.f32 %v4870, %v5674
        %v5676 = vpop.f32.mrb[0].mxu0
        %v5677 = vpop.f32.mrb[0].mxu0
        %v5678 = vadd.f32 %v4870, %v5677
        %v5679 = vpop.f32.mrb[0].mxu0
        %5680 = vdwg.mxu0
        %5681 = vmatprep.subr.bf16.mxu0 0
        %5682 = vmatpush1.bf16.msra.mxu0 %v5400
        %5683 = vmatprep.subr.bf16.mxu0 0
        %5684 = vmatpush1.bf16.msra.mxu0 %v5401
        %5685 = vmatprep.subr.bf16.mxu0 0
        %5686 = vmatpush1.bf16.msra.mxu0 %v5402
        %5687 = vmatprep.subr.bf16.mxu0 0
        %5688 = vmatpush1.bf16.msra.mxu0 %v5403
        %5689 = vmatprep.subr.bf16.mxu0 0
        %5690 = vmatpush1.bf16.msra.mxu0 %v5404
        %5691 = vmatprep.subr.bf16.mxu0 0
        %5692 = vmatpush1.bf16.msra.mxu0 %v5405
        %5693 = vmatprep.subr.bf16.mxu0 0
        %5694 = vmatpush1.bf16.msra.mxu0 %v5406
        %5695 = vmatprep.subr.bf16.mxu0 0
        %5696 = vmatpush1.bf16.msra.mxu0 %v5407
        %5697 = vmatprep.subr.bf16.mxu0 0
        %5698 = vmatpush1.bf16.msra.mxu0 %v5408
        %5699 = vmatprep.subr.bf16.mxu0 0
        %5700 = vmatpush1.bf16.msra.mxu0 %v5409
        %5701 = vmatprep.subr.bf16.mxu0 0
        %5702 = vmatpush1.bf16.msra.mxu0 %v5410
        %5703 = vmatprep.subr.bf16.mxu0 0
        %5704 = vmatpush1.bf16.msra.mxu0 %v5411
        %5705 = vmatprep.subr.bf16.mxu0 0
        %5706 = vmatpush1.bf16.msra.mxu0 %v5412
        %5707 = vmatprep.subr.bf16.mxu0 0
        %5708 = vmatpush1.bf16.msra.mxu0 %v5413
        %5709 = vmatprep.subr.bf16.mxu0 0
        %5710 = vmatpush1.bf16.msra.mxu0 %v5414
        %5711 = vmatprep.subr.bf16.mxu0 0
        %5712 = vmatpush1.bf16.msra.mxu0 %v5415
        %5713 = vmatprep.mubr.bf16.mxu0 %v4596
        %5714 = vmatmul.mubr.bf16.gmra.mrb[0].mxu0 %v4595
        %v5715 = vpop.f32.mrb[0].mxu0
        %v5716 = vadd.f32 %v5675, %v5715
        %v5717 = vpop.f32.mrb[0].mxu0
        %v5718 = vpop.f32.mrb[0].mxu0
        %v5719 = vadd.f32 %v5678, %v5718
        %v5720 = vpop.f32.mrb[0].mxu0
        %5721 = vdwg.mxu0
        %5722 = vmatprep.subr.bf16.mxu0 0
        %5723 = vmatpush1.bf16.msra.mxu0 %v5416
        %5724 = vmatprep.subr.bf16.mxu0 0
        %5725 = vmatpush1.bf16.msra.mxu0 %v5417
        %5726 = vmatprep.subr.bf16.mxu0 0
        %5727 = vmatpush1.bf16.msra.mxu0 %v5418
        %5728 = vmatprep.subr.bf16.mxu0 0
        %5729 = vmatpush1.bf16.msra.mxu0 %v5419
        %5730 = vmatprep.subr.bf16.mxu0 0
        %5731 = vmatpush1.bf16.msra.mxu0 %v5420
        %5732 = vmatprep.subr.bf16.mxu0 0
        %5733 = vmatpush1.bf16.msra.mxu0 %v5421
        %5734 = vmatprep.subr.bf16.mxu0 0
        %5735 = vmatpush1.bf16.msra.mxu0 %v5422
        %5736 = vmatprep.subr.bf16.mxu0 0
        %5737 = vmatpush1.bf16.msra.mxu0 %v5423
        %5738 = vmatprep.subr.bf16.mxu0 0
        %5739 = vmatpush1.bf16.msra.mxu0 %v5424
        %5740 = vmatprep.subr.bf16.mxu0 0
        %5741 = vmatpush1.bf16.msra.mxu0 %v5425
        %5742 = vmatprep.subr.bf16.mxu0 0
        %5743 = vmatpush1.bf16.msra.mxu0 %v5426
        %5744 = vmatprep.subr.bf16.mxu0 0
        %5745 = vmatpush1.bf16.msra.mxu0 %v5427
        %5746 = vmatprep.subr.bf16.mxu0 0
        %5747 = vmatpush1.bf16.msra.mxu0 %v5428
        %5748 = vmatprep.subr.bf16.mxu0 0
        %5749 = vmatpush1.bf16.msra.mxu0 %v5429
        %5750 = vmatprep.subr.bf16.mxu0 0
        %5751 = vmatpush1.bf16.msra.mxu0 %v5430
        %5752 = vmatprep.subr.bf16.mxu0 0
        %5753 = vmatpush1.bf16.msra.mxu0 %v5431
        %5754 = vmatprep.mubr.bf16.mxu0 %v4598
        %5755 = vmatmul.mubr.bf16.gmra.mrb[0].mxu0 %v4597
        %v5756 = vpop.f32.mrb[0].mxu0
        %v5757 = vadd.f32 %v5716, %v5756
        %v5758 = vpop.f32.mrb[0].mxu0
        %v5759 = vpop.f32.mrb[0].mxu0
        %v5760 = vadd.f32 %v5719, %v5759
        %v5761 = vpop.f32.mrb[0].mxu0
        %5762 = vdwg.mxu0
        %5763 = vmatprep.subr.bf16.mxu0 0
        %5764 = vmatpush1.bf16.msra.mxu0 %v5432
        %5765 = vmatprep.subr.bf16.mxu0 0
        %5766 = vmatpush1.bf16.msra.mxu0 %v5433
        %5767 = vmatprep.subr.bf16.mxu0 0
        %5768 = vmatpush1.bf16.msra.mxu0 %v5434
        %5769 = vmatprep.subr.bf16.mxu0 0
        %5770 = vmatpush1.bf16.msra.mxu0 %v5435
        %5771 = vmatprep.subr.bf16.mxu0 0
        %5772 = vmatpush1.bf16.msra.mxu0 %v5436
        %5773 = vmatprep.subr.bf16.mxu0 0
        %5774 = vmatpush1.bf16.msra.mxu0 %v5437
        %5775 = vmatprep.subr.bf16.mxu0 0
        %5776 = vmatpush1.bf16.msra.mxu0 %v5438
        %5777 = vmatprep.subr.bf16.mxu0 0
        %5778 = vmatpush1.bf16.msra.mxu0 %v5439
        %5779 = vmatprep.subr.bf16.mxu0 0
        %5780 = vmatpush1.bf16.msra.mxu0 %v5440
        %5781 = vmatprep.subr.bf16.mxu0 0
        %5782 = vmatpush1.bf16.msra.mxu0 %v5441
        %5783 = vmatprep.subr.bf16.mxu0 0
        %5784 = vmatpush1.bf16.msra.mxu0 %v5442
        %5785 = vmatprep.subr.bf16.mxu0 0
        %5786 = vmatpush1.bf16.msra.mxu0 %v5443
        %5787 = vmatprep.subr.bf16.mxu0 0
        %5788 = vmatpush1.bf16.msra.mxu0 %v5444
        %5789 = vmatprep.subr.bf16.mxu0 0
        %5790 = vmatpush1.bf16.msra.mxu0 %v5445
        %5791 = vmatprep.subr.bf16.mxu0 0
        %5792 = vmatpush1.bf16.msra.mxu0 %v5446
        %5793 = vmatprep.subr.bf16.mxu0 0
        %5794 = vmatpush1.bf16.msra.mxu0 %v5447
        %5795 = vmatprep.mubr.bf16.mxu0 %v4600
        %5796 = vmatmul.mubr.bf16.gmra.mrb[0].mxu0 %v4599
        %v5797 = vpop.f32.mrb[0].mxu0
        %v5798 = vadd.f32 %v5757, %v5797
        %v5799 = vpop.f32.mrb[0].mxu0
        %v5800 = vpop.f32.mrb[0].mxu0
        %v5801 = vadd.f32 %v5760, %v5800
        %v5802 = vpop.f32.mrb[0].mxu0
        %5803 = vdwg.mxu0
        %5804 = vmatprep.subr.bf16.mxu0 0
        %5805 = vmatpush1.bf16.msra.mxu0 %v5448
        %5806 = vmatprep.subr.bf16.mxu0 0
        %5807 = vmatpush1.bf16.msra.mxu0 %v5449
        %5808 = vmatprep.subr.bf16.mxu0 0
        %5809 = vmatpush1.bf16.msra.mxu0 %v5450
        %5810 = vmatprep.subr.bf16.mxu0 0
        %5811 = vmatpush1.bf16.msra.mxu0 %v5451
        %5812 = vmatprep.subr.bf16.mxu0 0
        %5813 = vmatpush1.bf16.msra.mxu0 %v5452
        %5814 = vmatprep.subr.bf16.mxu0 0
        %5815 = vmatpush1.bf16.msra.mxu0 %v5453
        %5816 = vmatprep.subr.bf16.mxu0 0
        %5817 = vmatpush1.bf16.msra.mxu0 %v5454
        %5818 = vmatprep.subr.bf16.mxu0 0
        %5819 = vmatpush1.bf16.msra.mxu0 %v5455
        %5820 = vmatprep.subr.bf16.mxu0 0
        %5821 = vmatpush1.bf16.msra.mxu0 %v5456
        %5822 = vmatprep.subr.bf16.mxu0 0
        %5823 = vmatpush1.bf16.msra.mxu0 %v5457
        %5824 = vmatprep.subr.bf16.mxu0 0
        %5825 = vmatpush1.bf16.msra.mxu0 %v5458
        %5826 = vmatprep.subr.bf16.mxu0 0
        %5827 = vmatpush1.bf16.msra.mxu0 %v5459
        %5828 = vmatprep.subr.bf16.mxu0 0
        %5829 = vmatpush1.bf16.msra.mxu0 %v5460
        %5830 = vmatprep.subr.bf16.mxu0 0
        %5831 = vmatpush1.bf16.msra.mxu0 %v5461
        %5832 = vmatprep.subr.bf16.mxu0 0
        %5833 = vmatpush1.bf16.msra.mxu0 %v5462
        %5834 = vmatprep.subr.bf16.mxu0 0
        %5835 = vmatpush1.bf16.msra.mxu0 %v5463
        %5836 = vmatprep.mubr.bf16.mxu0 %v4602
        %5837 = vmatmul.mubr.bf16.gmra.mrb[0].mxu0 %v4601
        %v5838 = vpop.f32.mrb[0].mxu0
        %v5839 = vadd.f32 %v5798, %v5838
        %v5840 = vpop.f32.mrb[0].mxu0
        %v5841 = vpop.f32.mrb[0].mxu0
        %v5842 = vadd.f32 %v5801, %v5841
        %v5843 = vpop.f32.mrb[0].mxu0
        %5844 = vdwg.mxu0
        %5845 = vmatprep.subr.bf16.mxu0 0
        %5846 = vmatpush1.bf16.msra.mxu0 %v5464
        %5847 = vmatprep.subr.bf16.mxu0 0
        %5848 = vmatpush1.bf16.msra.mxu0 %v5465
        %5849 = vmatprep.subr.bf16.mxu0 0
        %5850 = vmatpush1.bf16.msra.mxu0 %v5466
        %5851 = vmatprep.subr.bf16.mxu0 0
        %5852 = vmatpush1.bf16.msra.mxu0 %v5467
        %5853 = vmatprep.subr.bf16.mxu0 0
        %5854 = vmatpush1.bf16.msra.mxu0 %v5468
        %5855 = vmatprep.subr.bf16.mxu0 0
        %5856 = vmatpush1.bf16.msra.mxu0 %v5469
        %5857 = vmatprep.subr.bf16.mxu0 0
        %5858 = vmatpush1.bf16.msra.mxu0 %v5470
        %5859 = vmatprep.subr.bf16.mxu0 0
        %5860 = vmatpush1.bf16.msra.mxu0 %v5471
        %5861 = vmatprep.subr.bf16.mxu0 0
        %5862 = vmatpush1.bf16.msra.mxu0 %v5472
        %5863 = vmatprep.subr.bf16.mxu0 0
        %5864 = vmatpush1.bf16.msra.mxu0 %v5473
        %5865 = vmatprep.subr.bf16.mxu0 0
        %5866 = vmatpush1.bf16.msra.mxu0 %v5474
        %5867 = vmatprep.subr.bf16.mxu0 0
        %5868 = vmatpush1.bf16.msra.mxu0 %v5475
        %5869 = vmatprep.subr.bf16.mxu0 0
        %5870 = vmatpush1.bf16.msra.mxu0 %v5476
        %5871 = vmatprep.subr.bf16.mxu0 0
        %5872 = vmatpush1.bf16.msra.mxu0 %v5477
        %5873 = vmatprep.subr.bf16.mxu0 0
        %5874 = vmatpush1.bf16.msra.mxu0 %v5478
        %5875 = vmatprep.subr.bf16.mxu0 0
        %5876 = vmatpush1.bf16.msra.mxu0 %v5479
        %5877 = vmatprep.mubr.bf16.mxu0 %v4604
        %5878 = vmatmul.mubr.bf16.gmra.mrb[0].mxu0 %v4603
        %v5879 = vpop.f32.mrb[0].mxu0
        %v5880 = vadd.f32 %v5839, %v5879
        %v5881 = vpop.f32.mrb[0].mxu0
        %v5882 = vpop.f32.mrb[0].mxu0
        %v5883 = vadd.f32 %v5842, %v5882
        %v5884 = vpop.f32.mrb[0].mxu0
        %5885 = vdwg.mxu0
        %5886 = vmatprep.subr.bf16.mxu0 0
        %5887 = vmatpush1.bf16.msra.mxu0 %v5480
        %5888 = vmatprep.subr.bf16.mxu0 0
        %5889 = vmatpush1.bf16.msra.mxu0 %v5481
        %5890 = vmatprep.subr.bf16.mxu0 0
        %5891 = vmatpush1.bf16.msra.mxu0 %v5482
        %5892 = vmatprep.subr.bf16.mxu0 0
        %5893 = vmatpush1.bf16.msra.mxu0 %v5483
        %5894 = vmatprep.subr.bf16.mxu0 0
        %5895 = vmatpush1.bf16.msra.mxu0 %v5484
        %5896 = vmatprep.subr.bf16.mxu0 0
        %5897 = vmatpush1.bf16.msra.mxu0 %v5485
        %5898 = vmatprep.subr.bf16.mxu0 0
        %5899 = vmatpush1.bf16.msra.mxu0 %v5486
        %5900 = vmatprep.subr.bf16.mxu0 0
        %5901 = vmatpush1.bf16.msra.mxu0 %v5487
        %5902 = vmatprep.subr.bf16.mxu0 0
        %5903 = vmatpush1.bf16.msra.mxu0 %v5488
        %5904 = vmatprep.subr.bf16.mxu0 0
        %5905 = vmatpush1.bf16.msra.mxu0 %v5489
        %5906 = vmatprep.subr.bf16.mxu0 0
        %5907 = vmatpush1.bf16.msra.mxu0 %v5490
        %5908 = vmatprep.subr.bf16.mxu0 0
        %5909 = vmatpush1.bf16.msra.mxu0 %v5491
        %5910 = vmatprep.subr.bf16.mxu0 0
        %5911 = vmatpush1.bf16.msra.mxu0 %v5492
        %5912 = vmatprep.subr.bf16.mxu0 0
        %5913 = vmatpush1.bf16.msra.mxu0 %v5493
        %5914 = vmatprep.subr.bf16.mxu0 0
        %5915 = vmatpush1.bf16.msra.mxu0 %v5494
        %5916 = vmatprep.subr.bf16.mxu0 0
        %5917 = vmatpush1.bf16.msra.mxu0 %v5495
        %5918 = vmatprep.mubr.bf16.mxu0 %v4606
        %5919 = vmatmul.mubr.bf16.gmra.mrb[0].mxu0 %v4605
        %v5920 = vpop.f32.mrb[0].mxu0
        %v5921 = vadd.f32 %v5880, %v5920
        %v5922 = vpop.f32.mrb[0].mxu0
        %v5923 = vpop.f32.mrb[0].mxu0
        %v5924 = vadd.f32 %v5883, %v5923
        %v5925 = vpop.f32.mrb[0].mxu0
        %5926 = vdwg.mxu0
        %5927 = vmatprep.subr.bf16.mxu0 0
        %5928 = vmatpush1.bf16.msra.mxu0 %v5496
        %5929 = vmatprep.subr.bf16.mxu0 0
        %5930 = vmatpush1.bf16.msra.mxu0 %v5497
        %5931 = vmatprep.subr.bf16.mxu0 0
        %5932 = vmatpush1.bf16.msra.mxu0 %v5498
        %5933 = vmatprep.subr.bf16.mxu0 0
        %5934 = vmatpush1.bf16.msra.mxu0 %v5499
        %5935 = vmatprep.subr.bf16.mxu0 0
        %5936 = vmatpush1.bf16.msra.mxu0 %v5500
        %5937 = vmatprep.subr.bf16.mxu0 0
        %5938 = vmatpush1.bf16.msra.mxu0 %v5501
        %5939 = vmatprep.subr.bf16.mxu0 0
        %5940 = vmatpush1.bf16.msra.mxu0 %v5502
        %5941 = vmatprep.subr.bf16.mxu0 0
        %5942 = vmatpush1.bf16.msra.mxu0 %v5503
        %5943 = vmatprep.subr.bf16.mxu0 0
        %5944 = vmatpush1.bf16.msra.mxu0 %v5504
        %5945 = vmatprep.subr.bf16.mxu0 0
        %5946 = vmatpush1.bf16.msra.mxu0 %v5505
        %5947 = vmatprep.subr.bf16.mxu0 0
        %5948 = vmatpush1.bf16.msra.mxu0 %v5506
        %5949 = vmatprep.subr.bf16.mxu0 0
        %5950 = vmatpush1.bf16.msra.mxu0 %v5507
        %5951 = vmatprep.subr.bf16.mxu0 0
        %5952 = vmatpush1.bf16.msra.mxu0 %v5508
        %5953 = vmatprep.subr.bf16.mxu0 0
        %5954 = vmatpush1.bf16.msra.mxu0 %v5509
        %5955 = vmatprep.subr.bf16.mxu0 0
        %5956 = vmatpush1.bf16.msra.mxu0 %v5510
        %5957 = vmatprep.subr.bf16.mxu0 0
        %5958 = vmatpush1.bf16.msra.mxu0 %v5511
        %5959 = vmatprep.mubr.bf16.mxu0 %v4608
        %5960 = vmatmul.mubr.bf16.gmra.mrb[0].mxu0 %v4607
        %v5961 = vpop.f32.mrb[0].mxu0
        %v5962 = vadd.f32 %v5921, %v5961
        %v5963 = vpop.f32.mrb[0].mxu0
        %v5964 = vpop.f32.mrb[0].mxu0
        %v5965 = vadd.f32 %v5924, %v5964
        %v5966 = vpop.f32.mrb[0].mxu0
        %5967 = vdwg.mxu0
        %v5968 = vadd.f32 %v3743, %v5962
        %v5969 = vadd.f32 %v3744, %v5965
        %v5970 = vsel %vm1303, %v5968, 0.0
        %5971 = vadd.xlane.f32.xlu0 %v5970
        %v5972 = vpop.xlane.xlu0 %5971
        %v5973 = vsel %vm1303, %v5969, 0.0
        %5974 = vadd.xlane.f32.xlu0 %v5973
        %v5975 = vpop.xlane.xlu0 %5974
        %v5976 = vmul.f32 %v5972, %v3472
        %v5977 = vmul.f32 %v5975, %v3472
        %v5978 = vsub.f32 %v5968, %v5976
        %v5979 = vsub.f32 %v5969, %v5977
        %v5980 = vmul.f32 %v5978, %v5978
        %v5981 = vmul.f32 %v5979, %v5979
        %v5982 = vsel %vm1303, %v5980, 0.0
        %5983 = vadd.xlane.f32.xlu0 %v5982
        %v5984 = vpop.xlane.xlu0 %5983
        %v5985 = vsel %vm1303, %v5981, 0.0
        %5986 = vadd.xlane.f32.xlu0 %v5985
        %v5987 = vpop.xlane.xlu0 %5986
        %v5988 = vmul.f32 %v5984, %v3472
        %v5989 = vmul.f32 %v5987, %v3472
        %v5990 = vadd.f32 %v5988, 1e-05
        %v5991 = vadd.f32 %v5989, 1e-05
        %v5992 = vrsqrt.pop %v5990
        %v5993 = vrsqrt.pop %v5991
        %v5994 = vmul.f32 %v5978, %v5992
        %v5995 = vmul.f32 %v5979, %v5993
        %v5996 = vlaneseq
        %v5997 = vshrl.u32 %v5996, 7
        %v5998 = vsub.s32 0, %v5997
        %v5999 = vrot.slane %v1256, %v5998
        %v6000 = vmul.f32 %v5994, %v5999
        %v6001 = vmul.f32 %v5995, %v5999
        %v6002 = vlaneseq
        %v6003 = vshrl.u32 %v6002, 7
        %v6004 = vsub.s32 0, %v6003
        %v6005 = vrot.slane %v1257, %v6004
        %v6006 = vadd.f32 %v6000, %v6005
        %v6007 = vadd.f32 %v6001, %v6005
        %6008 = vst.msk [vmem:[#allocation2] sm:$0xff] %vm1303, %v6006
        %6009 = vst.msk [vmem:[#allocation2 + $0x8] sm:$0xff] %vm1303, %v6007
        %p6010 = scmp.eq.s32.totalorder %s34, 1
        // Predicated region
        $region185: #{forward.4} parent=99 // pred_check
          %p6011 = pneg %p6010
        $region186: #{forward.4} parent=99 // pred_check_branch
          %6013 = sbr.rel (%p6011) target = $region188
        $region187: #{forward.4} parent=99 // pred_region
          %v6014 = vpack.c.bf16 %v6007, %v6006
          %v6016 = vunpack.c.l.b16 %v6014
          %v6017 = vunpack.c.h.b16 %v6014
          %v6018 = vpack.c.b16 %v6016, %v6016
          %v6019 = vpack.c.b16 %v6017, %v6017
          %vm6022 = vcmask 519168
          %6023 = vst.msk [vmem:[#allocation26] sm:$0xf] %vm6022, %v6018
          %6024 = vst.msk [vmem:[#allocation26 + $0x4] sm:$0xf] %vm6022, %v6019
        $region188: #{forward.4} parent=99 // pred_fallthru
          _
        // Predicated region
        $region189: #{forward.4} parent=99 // pred_check
          %p6025 = pneg %p557
        $region190: #{forward.4} parent=99 // pred_check_branch
          %6027 = sbr.rel (%p6025) target = $region192
        $region191: #{forward.4} parent=99 // pred_region
          %s6029 = ssub.s32 128, 128
          %6030 = vsyncadd [#allocation5], %s6029
          %s6031 = sshll.u32 [#allocation26], 4
          %s6032 = int_to_ptr.vmem [resolvable:$true] %s6031
          %6037 = dma.vmem_to_hbm [thread:$0]  %s6032, 128, %s20, [#allocation5], 64, 64, 4
        $region192: #{forward.4} parent=99 // pred_fallthru
          _
        // Predicated region
        $region193: #{forward.4} parent=99 // pred_check
          %p6038 = pneg %p557
        $region194: #{forward.4} parent=99 // pred_check_branch
          %6040 = sbr.rel (%p6038) target = $region196
        $region195: #{forward.4} parent=99 // pred_region
          %6041 = dma.done [#allocation5], 128
        $region196: #{forward.4} parent=99 // pred_fallthru
          _
      $region100: #{forward.4} parent=5 // pred_fallthru
        _
      %p6042 = scmp.le.s32.totalorder 2, %s29
      // Predicated region
      $region197: #{forward.4} parent=5 // pred_check
        %p6043 = pneg %p6042
      $region198: #{forward.4} parent=5 // pred_check_branch
        %6045 = sbr.rel (%p6043) target = $region200
      $region199: #{forward.4} parent=5 // pred_region
        %s6046 = ssub.s32 %s29, 2
      $region200: #{forward.4} parent=5 // pred_fallthru
        _
    $region6: #{forward.4} parent=1 // loop_footer
      %s33 = sadd.s32 1, %s29
    $region7: #{forward.4} parent=1 // loop_footer_branch
      %28 = sbr.rel target = $region3
    $region8: #{forward.4} parent=1 // loop_exit
      _
    %6047 = vsyncpa [#allocation4], 1
    %s6048 = scalar_lea.sflag [#allocation4], 1
    %6049 = vsyncpa %s6048, 1
    %6050 = vsyncpa [#allocation7], 1
    %6051 = vsyncpa [#allocation5], 1
    %s6052 = scalar_lea.sflag [#allocation5], 1
    %6053 = vsyncpa %s6052, 1

</llo_original>
